<compile_context>
chip_gen: v6e
topology: v6e:2x2x1
jax: 0.10.0
libtpu: 0.0.40
codegen_flags: <defaults>
</compile_context>

<pallas_src>
import math

import numpy as np

import jax
import jax.numpy as jnp
from jax.experimental import pallas as pl
from jax.experimental.pallas import tpu as pltpu


# Order of the packed (constant) operands; must match the kernel signature.
PACKED_ORDER = (
    "w_f1", "b_f1",
    "wb_f2v", "b_f2v",
    "uh4", "rw_f5up",
    "w_f2cat_a", "w_f2cat_b", "b_f2cat",
    "wb_f3v", "b_f3v",
    "ph16", "rw_f3pool",
    "w_f3cat_a", "w_f3cat_b", "b_f3cat",
    "wb_fp5", "b_fp5",
    "wb_fp4", "b_fp4",
    "wb_fp3", "b_fp3",
    "rw_fq5up",
    "w_ag3", "w_ag4", "w_ag5", "b_ag",
    "wb_cc1", "cb_cc1",
    "wb_cc2", "b_cc2",
    "wb_fvq", "b_fvq",
)


# ---------------------------------------------------------------------------
# The fused kernel (one image per grid step; activations are (H, W*C) f32,
# quantized to bf16 only at matmul inputs; all weights are bf16 constants).
# ---------------------------------------------------------------------------

def fqfpn_kernel(
    v5_ref, v4_ref, v3_ref,
    w_f1, b_f1,
    wb_f2v, b_f2v,
    uh4, rw_f5up,
    w_f2cat_a, w_f2cat_b, b_f2cat,
    wb_f3v, b_f3v,
    ph16, rw_f3pool,
    w_f3cat_a, w_f3cat_b, b_f3cat,
    wb_fp5, b_fp5,
    wb_fp4, b_fp4,
    wb_fp3, b_fp3,
    rw_fq5up,
    w_ag3, w_ag4, w_ag5, b_ag,
    wb_cc1, cb_cc1,
    wb_cc2, b_cc2,
    wb_fvq, b_fvq,
    fvq_ref, fq_ref,
    pad_scr,
):
    f32 = jnp.float32
    bf16 = jnp.bfloat16

    def act(acc, add_ref):
        # add_ref: (1, N) or (H, N) f32 additive term (folded BN bias [+coords])
        return jnp.maximum(acc + add_ref[...], 0.0)

    def conv1x1(terms, add_ref):
        # terms: list of (x (H, W*Cin_i) f32, kron-block-diag weight ref)
        acc = None
        for x, w_ref in terms:
            t = jnp.dot(x.astype(bf16), w_ref[...], preferred_element_type=f32)
            acc = t if acc is None else acc + t
        return act(acc, add_ref)

    def conv3x3(x, wb_ref, add_ref):
        # x: (H, W*Cin) f32; wb_ref: (3, W*Cin, W*Cout) banded weight.
        # H-padding (pad=1) via zero rows in the VMEM scratch; the W-boundary
        # clamp is baked into the band.
        h = x.shape[0]
        wc = wb_ref.shape[1]
        pad_scr[0:1, 0:wc] = jnp.zeros((1, wc), f32)
        pad_scr[h + 1:h + 2, 0:wc] = jnp.zeros((1, wc), f32)
        pad_scr[1:h + 1, 0:wc] = x
        acc = jnp.dot(pad_scr[0:h, 0:wc].astype(bf16), wb_ref[0],
                      preferred_element_type=f32)
        acc = acc + jnp.dot(pad_scr[1:h + 1, 0:wc].astype(bf16), wb_ref[1],
                            preferred_element_type=f32)
        acc = acc + jnp.dot(pad_scr[2:h + 2, 0:wc].astype(bf16), wb_ref[2],
                            preferred_element_type=f32)
        return act(acc, add_ref)

    def spatial(x, row_ref, col_ref):
        # Separable constant spatial map: (rows) @ x @ (per-channel column map).
        t = jnp.dot(row_ref[...], x.astype(bf16), preferred_element_type=f32)
        return jnp.dot(t.astype(bf16), col_ref[...], preferred_element_type=f32)

    v5 = v5_ref[0]          # (H5, W5*Cin5) f32
    v4 = v4_ref[0]          # (H4, W4*Cin4)
    v3 = v3_ref[0]          # (H3, W3*Cin3)

    f5 = conv1x1([(v5, w_f1)], b_f1)                              # f1_v_proj
    f4a = conv3x3(v4, wb_f2v, b_f2v)                              # f2_v_proj
    f5u = spatial(f5, uh4, rw_f5up)                               # up x2 (bilinear)
    f4 = conv1x1([(f4a, w_f2cat_a), (f5u, w_f2cat_b)], b_f2cat)   # f2_cat (concat fused)
    f3a = conv3x3(v3, wb_f3v, b_f3v)                              # f3_v_proj
    f3p = spatial(f3a, ph16, rw_f3pool)                           # avg_pool2d(2,2)
    f3 = conv1x1([(f3p, w_f3cat_a), (f4, w_f3cat_b)], b_f3cat)    # f3_cat (concat fused)

    fq5 = conv3x3(f5, wb_fp5, b_fp5)                              # f4_proj5
    fq4 = conv3x3(f4, wb_fp4, b_fp4)                              # f4_proj4
    fq3 = conv3x3(f3, wb_fp3, b_fp3)                              # f4_proj3
    fq5u = spatial(fq5, uh4, rw_fq5up)                            # up x2 (bilinear)

    fqa = conv1x1([(fq3, w_ag3), (fq4, w_ag4), (fq5u, w_ag5)], b_ag)  # aggr (concat fused)
    c1 = conv3x3(fqa, wb_cc1, cb_cc1)        # CoordConv (coord contribution in cb_cc1)
    fqo = conv3x3(c1, wb_cc2, b_cc2)         # coordconv[1]
    fvq = conv3x3(fqo, wb_fvq, b_fvq)        # fvq_proj

    fvq_ref[0] = fvq.astype(fvq_ref.dtype)
    fq_ref[0] = fqo.astype(fq_ref.dtype)


# ---------------------------------------------------------------------------
# Pallas wrapper: one fused pallas_call for the whole forward.
# ---------------------------------------------------------------------------

def fqfpn_forward(v3, v4, v5, packed):
    """v3/v4/v5 are NCHW; `packed` is the dict produced by pack_params.
    Returns (fvq, fq) in NCHW."""
    B = v3.shape[0]

    def flat(x):  # NCHW -> row-flattened NHWC: (B, H, W*C)
        xb = jnp.transpose(x, (0, 2, 3, 1))
        b, h, w, c = xb.shape
        return xb.reshape(b, h, w * c).astype(jnp.float32)

    v5f, v4f, v3f = flat(v5), flat(v4), flat(v3)
    H5, H4, H3 = v5f.shape[1], v4f.shape[1], v3f.shape[1]
    W4 = v4.shape[3]
    c_fq = packed["wb_cc2"].shape[2] // W4      # channels of fq
    c_q = packed["wb_fvq"].shape[2] // W4       # query_number

    params = [packed[k] for k in PACKED_ORDER]

    pad_rows = max(H5, H4, H3) + 2
    pad_cols = max(a.shape[1] for k, a in packed.items() if k.startswith("wb_"))

    def batch_spec(a):
        return pl.BlockSpec((1,) + a.shape[1:], lambda b: (b, 0, 0))

    def const_spec(a):
        nd = a.ndim
        return pl.BlockSpec(a.shape, lambda b, _n=nd: (0,) * _n)

    in_specs = ([batch_spec(v5f), batch_spec(v4f), batch_spec(v3f)]
                + [const_spec(a) for a in params])

    out_shape = (jax.ShapeDtypeStruct((B, H4, W4 * c_q), jnp.float32),
                 jax.ShapeDtypeStruct((B, H4, W4 * c_fq), jnp.float32))
    out_specs = [pl.BlockSpec((1, H4, W4 * c_q), lambda b: (b, 0, 0)),
                 pl.BlockSpec((1, H4, W4 * c_fq), lambda b: (b, 0, 0))]

    fvq_flat, fq_flat = pl.pallas_call(
        fqfpn_kernel,
        out_shape=out_shape,
        grid_spec=pltpu.PrefetchScalarGridSpec(
            num_scalar_prefetch=0,
            grid=(B,),
            in_specs=in_specs,
            out_specs=out_specs,
            scratch_shapes=[pltpu.VMEM((pad_rows, pad_cols), jnp.float32)],
        ),
        compiler_params=pltpu.CompilerParams(
            # On v7x, pltpu.CORE_PARALLEL here shards the batch axis over
            # both TensorCores; "parallel" is the portable/safe choice.
            dimension_semantics=("parallel",),
            vmem_limit_bytes=32 * 1024 * 1024,
        ),
    )(v5f, v4f, v3f, *params)

    fvq = fvq_flat.reshape(B, H4, W4, c_q).transpose(0, 3, 1, 2)
    fq = fq_flat.reshape(B, H4, W4, c_fq).transpose(0, 3, 1, 2)
    return fvq, fq


# ---------------------------------------------------------------------------
# Host-side parameter packing (runs once, outside jit).
# ---------------------------------------------------------------------------

def _bilinear_up2_1d(n):
    # F.interpolate(scale_factor=2, mode='bilinear', align_corners=False), 1-D factor.
    m = np.zeros((2 * n, n), np.float32)
    for k in range(n):
        m[2 * k, max(k - 1, 0)] += 0.25
        m[2 * k, k] += 0.75
        m[2 * k + 1, k] += 0.75
        m[2 * k + 1, min(k + 1, n - 1)] += 0.25
    return m


def _avgpool2_1d(n):
    m = np.zeros((n // 2, n), np.float32)
    for i in range(n // 2):
        m[i, 2 * i] = 0.5
        m[i, 2 * i + 1] = 0.5
    return m


def _kron_pw(w, scale, width):
    # 1x1 conv (Cin, Cout) with BN scale folded -> block-diagonal (W*Cin, W*Cout).
    wf = np.asarray(w, np.float32) * np.asarray(scale, np.float32)[None, :]
    return jnp.asarray(np.kron(np.eye(width, dtype=np.float32), wf), jnp.bfloat16)


def _band3x3(wt, scale, width):
    # 3x3 HWIO conv weight with BN scale folded -> banded (3, W*Cin, W*Cout)
    # with the W-boundary (zero-pad) clamp baked in.
    wt = np.asarray(wt, np.float32) * np.asarray(scale, np.float32)
    cin, cout = wt.shape[2], wt.shape[3]
    band = np.zeros((3, width * cin, width * cout), np.float32)
    for dy in range(3):
        for dx in range(3):
            for wo in range(width):
                wi = wo + dx - 1
                if 0 <= wi < width:
                    band[dy, wi * cin:(wi + 1) * cin,
                         wo * cout:(wo + 1) * cout] += wt[dy, dx]
    return jnp.asarray(band, jnp.bfloat16)


def _bias_row(bias, width):
    return jnp.asarray(np.tile(np.asarray(bias, np.float32), width)[None, :],
                       jnp.float32)


def _up_col(width, ch):
    return jnp.asarray(np.kron(_bilinear_up2_1d(width).T,
                               np.eye(ch, dtype=np.float32)), jnp.bfloat16)


def _pool_col(width, ch):
    return jnp.asarray(np.kron(_avgpool2_1d(width).T,
                               np.eye(ch, dtype=np.float32)), jnp.bfloat16)


def _coord_term(wt, scale, bias, h, w):
    # Constant contribution of the CoordConv x/y channels through the 3x3 conv
    # (zero padded), plus the BN bias -> (H, W*Cout) additive term.
    wt = np.asarray(wt, np.float32) * np.asarray(scale, np.float32)
    cin, cout = wt.shape[2], wt.shape[3]
    xs = np.linspace(-1.0, 1.0, w, dtype=np.float32)
    ys = np.linspace(-1.0, 1.0, h, dtype=np.float32)
    coord = np.zeros((h, w, 2), np.float32)
    coord[..., 0] = xs[None, :]           # x channel (varies along W)
    coord[..., 1] = ys[:, None]           # y channel (varies along H)
    cp = np.zeros((h + 2, w + 2, 2), np.float32)
    cp[1:h + 1, 1:w + 1] = coord
    wc = wt[:, :, cin - 2:, :]            # coord channels are the last two
    contrib = np.zeros((h, w, cout), np.float32)
    for dy in range(3):
        for dx in range(3):
            contrib += np.einsum("hwc,co->hwo", cp[dy:dy + h, dx:dx + w, :],
                                 wc[dy, dx])
    out = contrib.reshape(h, w * cout) + np.tile(np.asarray(bias, np.float32), w)[None, :]
    return jnp.asarray(out, jnp.float32)


def pack_params(p, hw5, hw4, hw3):
    """Fold BN into weights and precompute banded / block-diagonal / spatial-map
    constants for the fused kernel.  Runs once, outside jit."""
    (h5, w5), (h4, w4), (h3, w3) = hw5, hw4, hw3
    assert 2 * h5 == h4 and 2 * w5 == w4 and h3 == 2 * h4 and w3 == 2 * w4

    packed = {}

    w, s, b = p["f1_v_proj"]
    c5 = w.shape[1]
    packed["w_f1"] = _kron_pw(w, s, w5)
    packed["b_f1"] = _bias_row(b, w5)

    wt, s, b = p["f2_v_proj"]
    c4a = wt.shape[-1]
    packed["wb_f2v"] = _band3x3(wt, s, w4)
    packed["b_f2v"] = _bias_row(b, w4)

    packed["uh4"] = jnp.asarray(_bilinear_up2_1d(h5), jnp.bfloat16)
    packed["rw_f5up"] = _up_col(w5, c5)

    w, s, b = p["f2_cat"]                       # cat([f4, f5_up]) -> split rows
    packed["w_f2cat_a"] = _kron_pw(w[:c4a], s, w4)
    packed["w_f2cat_b"] = _kron_pw(w[c4a:], s, w4)
    packed["b_f2cat"] = _bias_row(b, w4)

    wt, s, b = p["f3_v_proj"]
    c3a = wt.shape[-1]
    packed["wb_f3v"] = _band3x3(wt, s, w3)
    packed["b_f3v"] = _bias_row(b, w3)

    packed["ph16"] = jnp.asarray(_avgpool2_1d(h3), jnp.bfloat16)
    packed["rw_f3pool"] = _pool_col(w3, c3a)

    w, s, b = p["f3_cat"]                       # cat([f3_pooled, f4])
    packed["w_f3cat_a"] = _kron_pw(w[:c3a], s, w4)
    packed["w_f3cat_b"] = _kron_pw(w[c3a:], s, w4)
    packed["b_f3cat"] = _bias_row(b, w4)

    wt, s, b = p["f4_proj5"]
    cq5 = wt.shape[-1]
    packed["wb_fp5"] = _band3x3(wt, s, w5)
    packed["b_fp5"] = _bias_row(b, w5)

    wt, s, b = p["f4_proj4"]
    cq4 = wt.shape[-1]
    packed["wb_fp4"] = _band3x3(wt, s, w4)
    packed["b_fp4"] = _bias_row(b, w4)

    wt, s, b = p["f4_proj3"]
    cq3 = wt.shape[-1]
    packed["wb_fp3"] = _band3x3(wt, s, w4)
    packed["b_fp3"] = _bias_row(b, w4)

    packed["rw_fq5up"] = _up_col(w5, cq5)

    w, s, b = p["aggr"]                         # cat([fq3, fq4, fq5_up])
    packed["w_ag3"] = _kron_pw(w[:cq3], s, w4)
    packed["w_ag4"] = _kron_pw(w[cq3:cq3 + cq4], s, w4)
    packed["w_ag5"] = _kron_pw(w[cq3 + cq4:], s, w4)
    packed["b_ag"] = _bias_row(b, w4)

    wt, s, b = p["coord_conv1"]                 # last 2 input channels = coords
    packed["wb_cc1"] = _band3x3(wt[:, :, :-2, :], s, w4)
    packed["cb_cc1"] = _coord_term(wt, s, b, h4, w4)

    wt, s, b = p["coord_conv2"]
    packed["wb_cc2"] = _band3x3(wt, s, w4)
    packed["b_cc2"] = _bias_row(b, w4)

    wt, s, b = p["fvq_proj"]
    packed["wb_fvq"] = _band3x3(wt, s, w4)
    packed["b_fvq"] = _bias_row(b, w4)

    return packed


# ---------------------------------------------------------------------------
# Pure-JAX f32 reference (validation only).
# ---------------------------------------------------------------------------

def bilinear_up2_matrix(h, w):
    return jnp.asarray(np.kron(_bilinear_up2_1d(h), _bilinear_up2_1d(w)))


def add_coords(x):
    B, H, W, _ = x.shape
    xs = jnp.linspace(-1.0, 1.0, W, dtype=jnp.float32)
    ys = jnp.linspace(-1.0, 1.0, H, dtype=jnp.float32)
    yy, xx = jnp.meshgrid(ys, xs, indexing="ij")
    coord = jnp.broadcast_to(jnp.stack([xx, yy], axis=-1), (B, H, W, 2))
    return jnp.concatenate([x, coord], axis=-1)


def fqfpn_reference(v3, v4, v5, p):
    hp = jax.lax.Precision.HIGHEST

    def c1(x, w, s, b):
        y = jnp.einsum("bhwi,io->bhwo", x, w, precision=hp)
        return jnp.maximum(y * s + b, 0.0)

    def c3(x, wt, s, b):
        y = jax.lax.conv_general_dilated(
            x, wt, window_strides=(1, 1), padding="SAME",
            dimension_numbers=("NHWC", "HWIO", "NHWC"), precision=hp)
        return jnp.maximum(y * s + b, 0.0)

    def up2(x):
        B, H, W, C = x.shape
        m = bilinear_up2_matrix(H, W)
        y = jnp.einsum("oi,bic->boc", m, x.reshape(B, H * W, C), precision=hp)
        return y.reshape(B, 2 * H, 2 * W, C)

    def pool2(x):
        B, H, W, C = x.shape
        return x.reshape(B, H // 2, 2, W // 2, 2, C).mean(axis=(2, 4))

    v3 = jnp.transpose(v3, (0, 2, 3, 1))
    v4 = jnp.transpose(v4, (0, 2, 3, 1))
    v5 = jnp.transpose(v5, (0, 2, 3, 1))
    f5 = c1(v5, *p["f1_v_proj"])
    f4 = c3(v4, *p["f2_v_proj"])
    f4 = c1(jnp.concatenate([f4, up2(f5)], -1), *p["f2_cat"])
    f3 = c3(v3, *p["f3_v_proj"])
    f3 = pool2(f3)
    f3 = c1(jnp.concatenate([f3, f4], -1), *p["f3_cat"])
    fq5 = c3(f5, *p["f4_proj5"])
    fq4 = c3(f4, *p["f4_proj4"])
    fq3 = c3(f3, *p["f4_proj3"])
    fq = c1(jnp.concatenate([fq3, fq4, up2(fq5)], -1), *p["aggr"])
    fq = c3(add_coords(fq), *p["coord_conv1"])
    fq = c3(fq, *p["coord_conv2"])
    fvq = c3(fq, *p["fvq_proj"])
    return jnp.transpose(fvq, (0, 3, 1, 2)), jnp.transpose(fq, (0, 3, 1, 2))


# ---------------------------------------------------------------------------
# Parameters
# ---------------------------------------------------------------------------

def conv_bn_params(key, cin, cout, ksize):
    """Random Conv2d(bias=False) weight + BatchNorm2d folded (eval-mode running
    stats) into per-channel (scale, bias).  1x1 -> (Cin, Cout); 3x3 -> HWIO."""
    kw, kg, kb, km, kv = jax.random.split(key, 5)
    fan_in = cin * ksize * ksize
    if ksize == 1:
        w = jax.random.normal(kw, (cin, cout), jnp.float32) / math.sqrt(fan_in)
    else:
        w = jax.random.normal(kw, (ksize, ksize, cin, cout), jnp.float32) / math.sqrt(fan_in)
    gamma = 1.0 + 0.1 * jax.random.normal(kg, (cout,), jnp.float32)
    beta = 0.1 * jax.random.normal(kb, (cout,), jnp.float32)
    mean = 0.1 * jax.random.normal(km, (cout,), jnp.float32)
    var = 0.5 + jnp.abs(jax.random.normal(kv, (cout,), jnp.float32))
    scale = gamma * jax.lax.rsqrt(var + 1e-5)     # BN eps = 1e-5 (PyTorch default)
    bias = beta - mean * scale
    return w, scale, bias


if __name__ == "__main__":
    # Small shapes consistent with the FPN structure of the module:
    #   v3: (B, 8, 16, 16)   v4: (B, 16, 8, 8)   v5: (B, 16, 4, 4)
    # in_channels=[8, 16, 16], out_channels=[8, 16, 32], query_number=12.
    # (in_channels[1] == out_channels[1] so fvq_proj's declared input width
    #  matches the channels of fq it is applied to, as the forward requires.)
    B = 2
    in_ch = (8, 16, 16)
    out_ch = (8, 16, 32)
    qn = 12

    root = jax.random.PRNGKey(0)
    ks = jax.random.split(root, 16)
    params = {
        "f1_v_proj":   conv_bn_params(ks[0], in_ch[2], out_ch[2], 1),
        "f2_v_proj":   conv_bn_params(ks[1], in_ch[1], out_ch[1], 3),
        "f2_cat":      conv_bn_params(ks[2], out_ch[2] + out_ch[1], out_ch[1], 1),
        "f3_v_proj":   conv_bn_params(ks[3], in_ch[0], out_ch[0], 3),
        "f3_cat":      conv_bn_params(ks[4], out_ch[0] + out_ch[1], out_ch[1], 1),
        "f4_proj5":    conv_bn_params(ks[5], out_ch[2], out_ch[1], 3),
        "f4_proj4":    conv_bn_params(ks[6], out_ch[1], out_ch[1], 3),
        "f4_proj3":    conv_bn_params(ks[7], out_ch[1], out_ch[1], 3),
        "aggr":        conv_bn_params(ks[8], 3 * out_ch[1], out_ch[1], 1),
        "coord_conv1": conv_bn_params(ks[9], out_ch[1] + 2, out_ch[1], 3),
        "coord_conv2": conv_bn_params(ks[10], out_ch[1], out_ch[1], 3),
        "fvq_proj":    conv_bn_params(ks[11], out_ch[1], qn, 3),
    }

    v3 = jax.random.normal(ks[12], (B, in_ch[0], 16, 16), jnp.float32)
    v4 = jax.random.normal(ks[13], (B, in_ch[1], 8, 8), jnp.float32)
    v5 = jax.random.normal(ks[14], (B, in_ch[2], 4, 4), jnp.float32)

    # One-time host-side packing (BN folding, banded / kron weights, coord term).
    packed = pack_params(params, hw5=(4, 4), hw4=(8, 8), hw3=(16, 16))

    fwd = jax.jit(fqfpn_forward)
    fvq, fq = jax.block_until_ready(fwd(v3, v4, v5, packed))

    assert fvq.shape == (B, qn, 8, 8), fvq.shape
    assert fq.shape == (B, out_ch[1], 8, 8), fq.shape
    assert bool(jnp.all(jnp.isfinite(fvq))) and bool(jnp.all(jnp.isfinite(fq)))

    # Validate against the pure-JAX f32 reference.  Tolerance is loose because
    # the Pallas path quantizes matmul operands to bf16 (f32 accumulation).
    fvq_ref, fq_ref = jax.jit(fqfpn_reference)(v3, v4, v5, params)
    np.testing.assert_allclose(np.asarray(fvq), np.asarray(fvq_ref),
                               rtol=1e-1, atol=1e-1)
    np.testing.assert_allclose(np.asarray(fq), np.asarray(fq_ref),
                               rtol=1e-1, atol=1e-1)

    print("KERNEL_OK")
</pallas_src>

<mosaic_0001>
module attributes {stable_mosaic.version = 11 : i64} {
  func.func @fqfpn_kernel(%arg0: i32, %arg1: memref<1x4x64xf32, #tpu.memory_space<vmem>>, %arg2: memref<1x8x128xf32, #tpu.memory_space<vmem>>, %arg3: memref<1x16x128xf32, #tpu.memory_space<vmem>>, %arg4: memref<64x128xbf16, #tpu.memory_space<vmem>>, %arg5: memref<1x128xf32, #tpu.memory_space<vmem>>, %arg6: memref<3x128x128xbf16, #tpu.memory_space<vmem>>, %arg7: memref<1x128xf32, #tpu.memory_space<vmem>>, %arg8: memref<8x4xbf16, #tpu.memory_space<vmem>>, %arg9: memref<128x256xbf16, #tpu.memory_space<vmem>>, %arg10: memref<128x128xbf16, #tpu.memory_space<vmem>>, %arg11: memref<256x128xbf16, #tpu.memory_space<vmem>>, %arg12: memref<1x128xf32, #tpu.memory_space<vmem>>, %arg13: memref<3x128x128xbf16, #tpu.memory_space<vmem>>, %arg14: memref<1x128xf32, #tpu.memory_space<vmem>>, %arg15: memref<8x16xbf16, #tpu.memory_space<vmem>>, %arg16: memref<128x64xbf16, #tpu.memory_space<vmem>>, %arg17: memref<64x128xbf16, #tpu.memory_space<vmem>>, %arg18: memref<128x128xbf16, #tpu.memory_space<vmem>>, %arg19: memref<1x128xf32, #tpu.memory_space<vmem>>, %arg20: memref<3x128x64xbf16, #tpu.memory_space<vmem>>, %arg21: memref<1x64xf32, #tpu.memory_space<vmem>>, %arg22: memref<3x128x128xbf16, #tpu.memory_space<vmem>>, %arg23: memref<1x128xf32, #tpu.memory_space<vmem>>, %arg24: memref<3x128x128xbf16, #tpu.memory_space<vmem>>, %arg25: memref<1x128xf32, #tpu.memory_space<vmem>>, %arg26: memref<64x128xbf16, #tpu.memory_space<vmem>>, %arg27: memref<128x128xbf16, #tpu.memory_space<vmem>>, %arg28: memref<128x128xbf16, #tpu.memory_space<vmem>>, %arg29: memref<128x128xbf16, #tpu.memory_space<vmem>>, %arg30: memref<1x128xf32, #tpu.memory_space<vmem>>, %arg31: memref<3x128x128xbf16, #tpu.memory_space<vmem>>, %arg32: memref<8x128xf32, #tpu.memory_space<vmem>>, %arg33: memref<3x128x128xbf16, #tpu.memory_space<vmem>>, %arg34: memref<1x128xf32, #tpu.memory_space<vmem>>, %arg35: memref<3x128x96xbf16, #tpu.memory_space<vmem>>, %arg36: memref<1x96xf32, #tpu.memory_space<vmem>>, %arg37: memref<1x8x96xf32, #tpu.memory_space<vmem>>, %arg38: memref<1x8x128xf32, #tpu.memory_space<vmem>>, %arg39: memref<18x128xf32, #tpu.memory_space<vmem>>) attributes {dimension_semantics = [#tpu.dimension_semantics<parallel>], iteration_bounds = array<i64: 2>, scalar_prefetch = 0 : i64, scratch_operands = 1 : i64, tpu.core_type = #tpu.core_type<tc>, window_params = [{transform_indices = @transform_0, window_bounds = array<i64: 1, 4, 64>}, {transform_indices = @transform_1, window_bounds = array<i64: 1, 8, 128>}, {transform_indices = @transform_2, window_bounds = array<i64: 1, 16, 128>}, {pipeline_mode = #tpu.pipeline_mode<synchronous>, transform_indices = @transform_3, window_bounds = array<i64: 64, 128>}, {pipeline_mode = #tpu.pipeline_mode<synchronous>, transform_indices = @transform_4, window_bounds = array<i64: 1, 128>}, {pipeline_mode = #tpu.pipeline_mode<synchronous>, transform_indices = @transform_5, window_bounds = array<i64: 3, 128, 128>}, {pipeline_mode = #tpu.pipeline_mode<synchronous>, transform_indices = @transform_6, window_bounds = array<i64: 1, 128>}, {pipeline_mode = #tpu.pipeline_mode<synchronous>, transform_indices = @transform_7, window_bounds = array<i64: 8, 4>}, {pipeline_mode = #tpu.pipeline_mode<synchronous>, transform_indices = @transform_8, window_bounds = array<i64: 128, 256>}, {pipeline_mode = #tpu.pipeline_mode<synchronous>, transform_indices = @transform_9, window_bounds = array<i64: 128, 128>}, {pipeline_mode = #tpu.pipeline_mode<synchronous>, transform_indices = @transform_10, window_bounds = array<i64: 256, 128>}, {pipeline_mode = #tpu.pipeline_mode<synchronous>, transform_indices = @transform_11, window_bounds = array<i64: 1, 128>}, {pipeline_mode = #tpu.pipeline_mode<synchronous>, transform_indices = @transform_12, window_bounds = array<i64: 3, 128, 128>}, {pipeline_mode = #tpu.pipeline_mode<synchronous>, transform_indices = @transform_13, window_bounds = array<i64: 1, 128>}, {pipeline_mode = #tpu.pipeline_mode<synchronous>, transform_indices = @transform_14, window_bounds = array<i64: 8, 16>}, {pipeline_mode = #tpu.pipeline_mode<synchronous>, transform_indices = @transform_15, window_bounds = array<i64: 128, 64>}, {pipeline_mode = #tpu.pipeline_mode<synchronous>, transform_indices = @transform_16, window_bounds = array<i64: 64, 128>}, {pipeline_mode = #tpu.pipeline_mode<synchronous>, transform_indices = @transform_17, window_bounds = array<i64: 128, 128>}, {pipeline_mode = #tpu.pipeline_mode<synchronous>, transform_indices = @transform_18, window_bounds = array<i64: 1, 128>}, {pipeline_mode = #tpu.pipeline_mode<synchronous>, transform_indices = @transform_19, window_bounds = array<i64: 3, 128, 64>}, {pipeline_mode = #tpu.pipeline_mode<synchronous>, transform_indices = @transform_20, window_bounds = array<i64: 1, 64>}, {pipeline_mode = #tpu.pipeline_mode<synchronous>, transform_indices = @transform_21, window_bounds = array<i64: 3, 128, 128>}, {pipeline_mode = #tpu.pipeline_mode<synchronous>, transform_indices = @transform_22, window_bounds = array<i64: 1, 128>}, {pipeline_mode = #tpu.pipeline_mode<synchronous>, transform_indices = @transform_23, window_bounds = array<i64: 3, 128, 128>}, {pipeline_mode = #tpu.pipeline_mode<synchronous>, transform_indices = @transform_24, window_bounds = array<i64: 1, 128>}, {pipeline_mode = #tpu.pipeline_mode<synchronous>, transform_indices = @transform_25, window_bounds = array<i64: 64, 128>}, {pipeline_mode = #tpu.pipeline_mode<synchronous>, transform_indices = @transform_26, window_bounds = array<i64: 128, 128>}, {pipeline_mode = #tpu.pipeline_mode<synchronous>, transform_indices = @transform_27, window_bounds = array<i64: 128, 128>}, {pipeline_mode = #tpu.pipeline_mode<synchronous>, transform_indices = @transform_28, window_bounds = array<i64: 128, 128>}, {pipeline_mode = #tpu.pipeline_mode<synchronous>, transform_indices = @transform_29, window_bounds = array<i64: 1, 128>}, {pipeline_mode = #tpu.pipeline_mode<synchronous>, transform_indices = @transform_30, window_bounds = array<i64: 3, 128, 128>}, {pipeline_mode = #tpu.pipeline_mode<synchronous>, transform_indices = @transform_31, window_bounds = array<i64: 8, 128>}, {pipeline_mode = #tpu.pipeline_mode<synchronous>, transform_indices = @transform_32, window_bounds = array<i64: 3, 128, 128>}, {pipeline_mode = #tpu.pipeline_mode<synchronous>, transform_indices = @transform_33, window_bounds = array<i64: 1, 128>}, {pipeline_mode = #tpu.pipeline_mode<synchronous>, transform_indices = @transform_34, window_bounds = array<i64: 3, 128, 96>}, {pipeline_mode = #tpu.pipeline_mode<synchronous>, transform_indices = @transform_35, window_bounds = array<i64: 1, 96>}, {transform_indices = @transform_36, window_bounds = array<i64: 1, 8, 96>}, {transform_indices = @transform_37, window_bounds = array<i64: 1, 8, 128>}]} {
    %c0 = arith.constant 0 : index
    %c0_0 = arith.constant 0 : index
    %c0_1 = arith.constant 0 : index
    %0 = vector.load %arg1[%c0, %c0_0, %c0_1] : memref<1x4x64xf32, #tpu.memory_space<vmem>>, vector<1x4x64xf32>
    %1 = vector.shape_cast %0 : vector<1x4x64xf32> to vector<4x64xf32>
    %c0_2 = arith.constant 0 : index
    %c0_3 = arith.constant 0 : index
    %c0_4 = arith.constant 0 : index
    %2 = vector.load %arg2[%c0_2, %c0_3, %c0_4] : memref<1x8x128xf32, #tpu.memory_space<vmem>>, vector<1x8x128xf32>
    %3 = vector.shape_cast %2 : vector<1x8x128xf32> to vector<8x128xf32>
    %c0_5 = arith.constant 0 : index
    %c0_6 = arith.constant 0 : index
    %c0_7 = arith.constant 0 : index
    %4 = vector.load %arg3[%c0_5, %c0_6, %c0_7] : memref<1x16x128xf32, #tpu.memory_space<vmem>>, vector<1x16x128xf32>
    %5 = vector.shape_cast %4 : vector<1x16x128xf32> to vector<16x128xf32>
    %6 = arith.truncf %1 : vector<4x64xf32> to vector<4x64xbf16>
    %c0_8 = arith.constant 0 : index
    %c0_9 = arith.constant 0 : index
    %7 = vector.load %arg4[%c0_8, %c0_9] : memref<64x128xbf16, #tpu.memory_space<vmem>>, vector<64x128xbf16>
    %cst = arith.constant dense<0.000000e+00> : vector<4x128xf32>
    %8 = tpu.matmul %6, %7, %cst {dimension_numbers = #tpu.dot_dimension_numbers<[1], [0], [0], [1], [0, 0, 1, 1], [], []>} : vector<4x64xbf16>, vector<64x128xbf16>, vector<4x128xf32> -> vector<4x128xf32>
    %c0_10 = arith.constant 0 : index
    %c0_11 = arith.constant 0 : index
    %9 = vector.load %arg5[%c0_10, %c0_11] : memref<1x128xf32, #tpu.memory_space<vmem>>, vector<1x128xf32>
    %10 = vector.broadcast %9 : vector<1x128xf32> to vector<4x128xf32>
    %11 = arith.addf %8, %10 : vector<4x128xf32>
    %cst_12 = arith.constant 0.000000e+00 : f32
    %12 = vector.broadcast %cst_12 : f32 to vector<4x128xf32>
    %13 = arith.maximumf %11, %12 : vector<4x128xf32>
    %cst_13 = arith.constant 0.000000e+00 : f32
    %14 = vector.broadcast %cst_13 : f32 to vector<1x128xf32>
    %c0_14 = arith.constant 0 : index
    %c0_15 = arith.constant 0 : index
    %15 = vector.load %arg39[%c0_14, %c0_15] : memref<18x128xf32, #tpu.memory_space<vmem>>, vector<1x128xf32>
    tpu.vector_store %arg39[%c0_14, %c0_15], %14 {strides = array<i32>} : memref<18x128xf32, #tpu.memory_space<vmem>>, vector<1x128xf32>,
    %cst_16 = arith.constant 0.000000e+00 : f32
    %16 = vector.broadcast %cst_16 : f32 to vector<1x128xf32>
    %c9 = arith.constant 9 : index
    %c0_17 = arith.constant 0 : index
    %17 = vector.load %arg39[%c9, %c0_17] : memref<18x128xf32, #tpu.memory_space<vmem>>, vector<1x128xf32>
    tpu.vector_store %arg39[%c9, %c0_17], %16 {strides = array<i32>} : memref<18x128xf32, #tpu.memory_space<vmem>>, vector<1x128xf32>,
    %c1 = arith.constant 1 : index
    %c0_18 = arith.constant 0 : index
    %18 = vector.load %arg39[%c1, %c0_18] : memref<18x128xf32, #tpu.memory_space<vmem>>, vector<8x128xf32>
    tpu.vector_store %arg39[%c1, %c0_18], %3 {strides = array<i32>} : memref<18x128xf32, #tpu.memory_space<vmem>>, vector<8x128xf32>,
    %c0_19 = arith.constant 0 : index
    %c0_20 = arith.constant 0 : index
    %19 = vector.load %arg39[%c0_19, %c0_20] : memref<18x128xf32, #tpu.memory_space<vmem>>, vector<8x128xf32>
    %20 = arith.truncf %19 : vector<8x128xf32> to vector<8x128xbf16>
    %c0_21 = arith.constant 0 : index
    %c0_22 = arith.constant 0 : index
    %c0_23 = arith.constant 0 : index
    %21 = vector.load %arg6[%c0_21, %c0_22, %c0_23] : memref<3x128x128xbf16, #tpu.memory_space<vmem>>, vector<1x128x128xbf16>
    %22 = vector.shape_cast %21 : vector<1x128x128xbf16> to vector<128x128xbf16>
    %cst_24 = arith.constant dense<0.000000e+00> : vector<8x128xf32>
    %23 = tpu.matmul %20, %22, %cst_24 {dimension_numbers = #tpu.dot_dimension_numbers<[1], [0], [0], [1], [0, 0, 1, 1], [], []>} : vector<8x128xbf16>, vector<128x128xbf16>, vector<8x128xf32> -> vector<8x128xf32>
    %c1_25 = arith.constant 1 : index
    %c0_26 = arith.constant 0 : index
    %24 = vector.load %arg39[%c1_25, %c0_26] : memref<18x128xf32, #tpu.memory_space<vmem>>, vector<8x128xf32>
    %25 = arith.truncf %24 : vector<8x128xf32> to vector<8x128xbf16>
    %c1_27 = arith.constant 1 : index
    %c0_28 = arith.constant 0 : index
    %c0_29 = arith.constant 0 : index
    %26 = vector.load %arg6[%c1_27, %c0_28, %c0_29] : memref<3x128x128xbf16, #tpu.memory_space<vmem>>, vector<1x128x128xbf16>
    %27 = vector.shape_cast %26 : vector<1x128x128xbf16> to vector<128x128xbf16>
    %cst_30 = arith.constant dense<0.000000e+00> : vector<8x128xf32>
    %28 = tpu.matmul %25, %27, %cst_30 {dimension_numbers = #tpu.dot_dimension_numbers<[1], [0], [0], [1], [0, 0, 1, 1], [], []>} : vector<8x128xbf16>, vector<128x128xbf16>, vector<8x128xf32> -> vector<8x128xf32>
    %29 = arith.addf %23, %28 : vector<8x128xf32>
    %c2 = arith.constant 2 : index
    %c0_31 = arith.constant 0 : index
    %30 = vector.load %arg39[%c2, %c0_31] : memref<18x128xf32, #tpu.memory_space<vmem>>, vector<8x128xf32>
    %31 = arith.truncf %30 : vector<8x128xf32> to vector<8x128xbf16>
    %c2_32 = arith.constant 2 : index
    %c0_33 = arith.constant 0 : index
    %c0_34 = arith.constant 0 : index
    %32 = vector.load %arg6[%c2_32, %c0_33, %c0_34] : memref<3x128x128xbf16, #tpu.memory_space<vmem>>, vector<1x128x128xbf16>
    %33 = vector.shape_cast %32 : vector<1x128x128xbf16> to vector<128x128xbf16>
    %cst_35 = arith.constant dense<0.000000e+00> : vector<8x128xf32>
    %34 = tpu.matmul %31, %33, %cst_35 {dimension_numbers = #tpu.dot_dimension_numbers<[1], [0], [0], [1], [0, 0, 1, 1], [], []>} : vector<8x128xbf16>, vector<128x128xbf16>, vector<8x128xf32> -> vector<8x128xf32>
    %35 = arith.addf %29, %34 : vector<8x128xf32>
    %c0_36 = arith.constant 0 : index
    %c0_37 = arith.constant 0 : index
    %36 = vector.load %arg7[%c0_36, %c0_37] : memref<1x128xf32, #tpu.memory_space<vmem>>, vector<1x128xf32>
    %37 = vector.broadcast %36 : vector<1x128xf32> to vector<8x128xf32>
    %38 = arith.addf %35, %37 : vector<8x128xf32>
    %cst_38 = arith.constant 0.000000e+00 : f32
    %39 = vector.broadcast %cst_38 : f32 to vector<8x128xf32>
    %40 = arith.maximumf %38, %39 : vector<8x128xf32>
    %c0_39 = arith.constant 0 : index
    %c0_40 = arith.constant 0 : index
    %41 = vector.load %arg8[%c0_39, %c0_40] : memref<8x4xbf16, #tpu.memory_space<vmem>>, vector<8x4xbf16>
    %42 = arith.truncf %13 : vector<4x128xf32> to vector<4x128xbf16>
    %cst_41 = arith.constant dense<0.000000e+00> : vector<8x128xf32>
    %43 = tpu.matmul %41, %42, %cst_41 {dimension_numbers = #tpu.dot_dimension_numbers<[1], [0], [0], [1], [0, 0, 1, 1], [], []>} : vector<8x4xbf16>, vector<4x128xbf16>, vector<8x128xf32> -> vector<8x128xf32>
    %44 = arith.truncf %43 : vector<8x128xf32> to vector<8x128xbf16>
    %c0_42 = arith.constant 0 : index
    %c0_43 = arith.constant 0 : index
    %45 = vector.load %arg9[%c0_42, %c0_43] : memref<128x256xbf16, #tpu.memory_space<vmem>>, vector<128x256xbf16>
    %cst_44 = arith.constant dense<0.000000e+00> : vector<8x256xf32>
    %46 = tpu.matmul %44, %45, %cst_44 {dimension_numbers = #tpu.dot_dimension_numbers<[1], [0], [0], [1], [0, 0, 1, 1], [], []>} : vector<8x128xbf16>, vector<128x256xbf16>, vector<8x256xf32> -> vector<8x256xf32>
    %47 = arith.truncf %40 : vector<8x128xf32> to vector<8x128xbf16>
    %c0_45 = arith.constant 0 : index
    %c0_46 = arith.constant 0 : index
    %48 = vector.load %arg10[%c0_45, %c0_46] : memref<128x128xbf16, #tpu.memory_space<vmem>>, vector<128x128xbf16>
    %cst_47 = arith.constant dense<0.000000e+00> : vector<8x128xf32>
    %49 = tpu.matmul %47, %48, %cst_47 {dimension_numbers = #tpu.dot_dimension_numbers<[1], [0], [0], [1], [0, 0, 1, 1], [], []>} : vector<8x128xbf16>, vector<128x128xbf16>, vector<8x128xf32> -> vector<8x128xf32>
    %50 = arith.truncf %46 : vector<8x256xf32> to vector<8x256xbf16>
    %c0_48 = arith.constant 0 : index
    %c0_49 = arith.constant 0 : index
    %51 = vector.load %arg11[%c0_48, %c0_49] : memref<256x128xbf16, #tpu.memory_space<vmem>>, vector<256x128xbf16>
    %cst_50 = arith.constant dense<0.000000e+00> : vector<8x128xf32>
    %52 = tpu.matmul %50, %51, %cst_50 {dimension_numbers = #tpu.dot_dimension_numbers<[1], [0], [0], [1], [0, 0, 1, 1], [], []>} : vector<8x256xbf16>, vector<256x128xbf16>, vector<8x128xf32> -> vector<8x128xf32>
    %53 = arith.addf %49, %52 : vector<8x128xf32>
    %c0_51 = arith.constant 0 : index
    %c0_52 = arith.constant 0 : index
    %54 = vector.load %arg12[%c0_51, %c0_52] : memref<1x128xf32, #tpu.memory_space<vmem>>, vector<1x128xf32>
    %55 = vector.broadcast %54 : vector<1x128xf32> to vector<8x128xf32>
    %56 = arith.addf %53, %55 : vector<8x128xf32>
    %cst_53 = arith.constant 0.000000e+00 : f32
    %57 = vector.broadcast %cst_53 : f32 to vector<8x128xf32>
    %58 = arith.maximumf %56, %57 : vector<8x128xf32>
    %cst_54 = arith.constant 0.000000e+00 : f32
    %59 = vector.broadcast %cst_54 : f32 to vector<1x128xf32>
    %c0_55 = arith.constant 0 : index
    %c0_56 = arith.constant 0 : index
    %60 = vector.load %arg39[%c0_55, %c0_56] : memref<18x128xf32, #tpu.memory_space<vmem>>, vector<1x128xf32>
    tpu.vector_store %arg39[%c0_55, %c0_56], %59 {strides = array<i32>} : memref<18x128xf32, #tpu.memory_space<vmem>>, vector<1x128xf32>,
    %cst_57 = arith.constant 0.000000e+00 : f32
    %61 = vector.broadcast %cst_57 : f32 to vector<1x128xf32>
    %c17 = arith.constant 17 : index
    %c0_58 = arith.constant 0 : index
    %62 = vector.load %arg39[%c17, %c0_58] : memref<18x128xf32, #tpu.memory_space<vmem>>, vector<1x128xf32>
    tpu.vector_store %arg39[%c17, %c0_58], %61 {strides = array<i32>} : memref<18x128xf32, #tpu.memory_space<vmem>>, vector<1x128xf32>,
    %c1_59 = arith.constant 1 : index
    %c0_60 = arith.constant 0 : index
    %63 = vector.load %arg39[%c1_59, %c0_60] : memref<18x128xf32, #tpu.memory_space<vmem>>, vector<16x128xf32>
    tpu.vector_store %arg39[%c1_59, %c0_60], %5 {strides = array<i32>} : memref<18x128xf32, #tpu.memory_space<vmem>>, vector<16x128xf32>,
    %c0_61 = arith.constant 0 : index
    %c0_62 = arith.constant 0 : index
    %64 = vector.load %arg39[%c0_61, %c0_62] : memref<18x128xf32, #tpu.memory_space<vmem>>, vector<16x128xf32>
    %65 = arith.truncf %64 : vector<16x128xf32> to vector<16x128xbf16>
    %c0_63 = arith.constant 0 : index
    %c0_64 = arith.constant 0 : index
    %c0_65 = arith.constant 0 : index
    %66 = vector.load %arg13[%c0_63, %c0_64, %c0_65] : memref<3x128x128xbf16, #tpu.memory_space<vmem>>, vector<1x128x128xbf16>
    %67 = vector.shape_cast %66 : vector<1x128x128xbf16> to vector<128x128xbf16>
    %cst_66 = arith.constant dense<0.000000e+00> : vector<16x128xf32>
    %68 = tpu.matmul %65, %67, %cst_66 {dimension_numbers = #tpu.dot_dimension_numbers<[1], [0], [0], [1], [0, 0, 1, 1], [], []>} : vector<16x128xbf16>, vector<128x128xbf16>, vector<16x128xf32> -> vector<16x128xf32>
    %c1_67 = arith.constant 1 : index
    %c0_68 = arith.constant 0 : index
    %69 = vector.load %arg39[%c1_67, %c0_68] : memref<18x128xf32, #tpu.memory_space<vmem>>, vector<16x128xf32>
    %70 = arith.truncf %69 : vector<16x128xf32> to vector<16x128xbf16>
    %c1_69 = arith.constant 1 : index
    %c0_70 = arith.constant 0 : index
    %c0_71 = arith.constant 0 : index
    %71 = vector.load %arg13[%c1_69, %c0_70, %c0_71] : memref<3x128x128xbf16, #tpu.memory_space<vmem>>, vector<1x128x128xbf16>
    %72 = vector.shape_cast %71 : vector<1x128x128xbf16> to vector<128x128xbf16>
    %cst_72 = arith.constant dense<0.000000e+00> : vector<16x128xf32>
    %73 = tpu.matmul %70, %72, %cst_72 {dimension_numbers = #tpu.dot_dimension_numbers<[1], [0], [0], [1], [0, 0, 1, 1], [], []>} : vector<16x128xbf16>, vector<128x128xbf16>, vector<16x128xf32> -> vector<16x128xf32>
    %74 = arith.addf %68, %73 : vector<16x128xf32>
    %c2_73 = arith.constant 2 : index
    %c0_74 = arith.constant 0 : index
    %75 = vector.load %arg39[%c2_73, %c0_74] : memref<18x128xf32, #tpu.memory_space<vmem>>, vector<16x128xf32>
    %76 = arith.truncf %75 : vector<16x128xf32> to vector<16x128xbf16>
    %c2_75 = arith.constant 2 : index
    %c0_76 = arith.constant 0 : index
    %c0_77 = arith.constant 0 : index
    %77 = vector.load %arg13[%c2_75, %c0_76, %c0_77] : memref<3x128x128xbf16, #tpu.memory_space<vmem>>, vector<1x128x128xbf16>
    %78 = vector.shape_cast %77 : vector<1x128x128xbf16> to vector<128x128xbf16>
    %cst_78 = arith.constant dense<0.000000e+00> : vector<16x128xf32>
    %79 = tpu.matmul %76, %78, %cst_78 {dimension_numbers = #tpu.dot_dimension_numbers<[1], [0], [0], [1], [0, 0, 1, 1], [], []>} : vector<16x128xbf16>, vector<128x128xbf16>, vector<16x128xf32> -> vector<16x128xf32>
    %80 = arith.addf %74, %79 : vector<16x128xf32>
    %c0_79 = arith.constant 0 : index
    %c0_80 = arith.constant 0 : index
    %81 = vector.load %arg14[%c0_79, %c0_80] : memref<1x128xf32, #tpu.memory_space<vmem>>, vector<1x128xf32>
    %82 = vector.broadcast %81 : vector<1x128xf32> to vector<16x128xf32>
    %83 = arith.addf %80, %82 : vector<16x128xf32>
    %cst_81 = arith.constant 0.000000e+00 : f32
    %84 = vector.broadcast %cst_81 : f32 to vector<16x128xf32>
    %85 = arith.maximumf %83, %84 : vector<16x128xf32>
    %c0_82 = arith.constant 0 : index
    %c0_83 = arith.constant 0 : index
    %86 = vector.load %arg15[%c0_82, %c0_83] : memref<8x16xbf16, #tpu.memory_space<vmem>>, vector<8x16xbf16>
    %87 = arith.truncf %85 : vector<16x128xf32> to vector<16x128xbf16>
    %cst_84 = arith.constant dense<0.000000e+00> : vector<8x128xf32>
    %88 = tpu.matmul %86, %87, %cst_84 {dimension_numbers = #tpu.dot_dimension_numbers<[1], [0], [0], [1], [0, 0, 1, 1], [], []>} : vector<8x16xbf16>, vector<16x128xbf16>, vector<8x128xf32> -> vector<8x128xf32>
    %89 = arith.truncf %88 : vector<8x128xf32> to vector<8x128xbf16>
    %c0_85 = arith.constant 0 : index
    %c0_86 = arith.constant 0 : index
    %90 = vector.load %arg16[%c0_85, %c0_86] : memref<128x64xbf16, #tpu.memory_space<vmem>>, vector<128x64xbf16>
    %cst_87 = arith.constant dense<0.000000e+00> : vector<8x64xf32>
    %91 = tpu.matmul %89, %90, %cst_87 {dimension_numbers = #tpu.dot_dimension_numbers<[1], [0], [0], [1], [0, 0, 1, 1], [], []>} : vector<8x128xbf16>, vector<128x64xbf16>, vector<8x64xf32> -> vector<8x64xf32>
    %92 = arith.truncf %91 : vector<8x64xf32> to vector<8x64xbf16>
    %c0_88 = arith.constant 0 : index
    %c0_89 = arith.constant 0 : index
    %93 = vector.load %arg17[%c0_88, %c0_89] : memref<64x128xbf16, #tpu.memory_space<vmem>>, vector<64x128xbf16>
    %cst_90 = arith.constant dense<0.000000e+00> : vector<8x128xf32>
    %94 = tpu.matmul %92, %93, %cst_90 {dimension_numbers = #tpu.dot_dimension_numbers<[1], [0], [0], [1], [0, 0, 1, 1], [], []>} : vector<8x64xbf16>, vector<64x128xbf16>, vector<8x128xf32> -> vector<8x128xf32>
    %95 = arith.truncf %58 : vector<8x128xf32> to vector<8x128xbf16>
    %c0_91 = arith.constant 0 : index
    %c0_92 = arith.constant 0 : index
    %96 = vector.load %arg18[%c0_91, %c0_92] : memref<128x128xbf16, #tpu.memory_space<vmem>>, vector<128x128xbf16>
    %cst_93 = arith.constant dense<0.000000e+00> : vector<8x128xf32>
    %97 = tpu.matmul %95, %96, %cst_93 {dimension_numbers = #tpu.dot_dimension_numbers<[1], [0], [0], [1], [0, 0, 1, 1], [], []>} : vector<8x128xbf16>, vector<128x128xbf16>, vector<8x128xf32> -> vector<8x128xf32>
    %98 = arith.addf %94, %97 : vector<8x128xf32>
    %c0_94 = arith.constant 0 : index
    %c0_95 = arith.constant 0 : index
    %99 = vector.load %arg19[%c0_94, %c0_95] : memref<1x128xf32, #tpu.memory_space<vmem>>, vector<1x128xf32>
    %100 = vector.broadcast %99 : vector<1x128xf32> to vector<8x128xf32>
    %101 = arith.addf %98, %100 : vector<8x128xf32>
    %cst_96 = arith.constant 0.000000e+00 : f32
    %102 = vector.broadcast %cst_96 : f32 to vector<8x128xf32>
    %103 = arith.maximumf %101, %102 : vector<8x128xf32>
    %cst_97 = arith.constant 0.000000e+00 : f32
    %104 = vector.broadcast %cst_97 : f32 to vector<1x128xf32>
    %c0_98 = arith.constant 0 : index
    %c0_99 = arith.constant 0 : index
    %105 = vector.load %arg39[%c0_98, %c0_99] : memref<18x128xf32, #tpu.memory_space<vmem>>, vector<1x128xf32>
    tpu.vector_store %arg39[%c0_98, %c0_99], %104 {strides = array<i32>} : memref<18x128xf32, #tpu.memory_space<vmem>>, vector<1x128xf32>,
    %cst_100 = arith.constant 0.000000e+00 : f32
    %106 = vector.broadcast %cst_100 : f32 to vector<1x128xf32>
    %c5 = arith.constant 5 : index
    %c0_101 = arith.constant 0 : index
    %107 = vector.load %arg39[%c5, %c0_101] : memref<18x128xf32, #tpu.memory_space<vmem>>, vector<1x128xf32>
    tpu.vector_store %arg39[%c5, %c0_101], %106 {strides = array<i32>} : memref<18x128xf32, #tpu.memory_space<vmem>>, vector<1x128xf32>,
    %c1_102 = arith.constant 1 : index
    %c0_103 = arith.constant 0 : index
    %108 = vector.load %arg39[%c1_102, %c0_103] : memref<18x128xf32, #tpu.memory_space<vmem>>, vector<4x128xf32>
    tpu.vector_store %arg39[%c1_102, %c0_103], %13 {strides = array<i32>} : memref<18x128xf32, #tpu.memory_space<vmem>>, vector<4x128xf32>,
    %c0_104 = arith.constant 0 : index
    %c0_105 = arith.constant 0 : index
    %109 = vector.load %arg39[%c0_104, %c0_105] : memref<18x128xf32, #tpu.memory_space<vmem>>, vector<4x128xf32>
    %110 = arith.truncf %109 : vector<4x128xf32> to vector<4x128xbf16>
    %c0_106 = arith.constant 0 : index
    %c0_107 = arith.constant 0 : index
    %c0_108 = arith.constant 0 : index
    %111 = vector.load %arg20[%c0_106, %c0_107, %c0_108] : memref<3x128x64xbf16, #tpu.memory_space<vmem>>, vector<1x128x64xbf16>
    %112 = vector.shape_cast %111 : vector<1x128x64xbf16> to vector<128x64xbf16>
    %cst_109 = arith.constant dense<0.000000e+00> : vector<4x64xf32>
    %113 = tpu.matmul %110, %112, %cst_109 {dimension_numbers = #tpu.dot_dimension_numbers<[1], [0], [0], [1], [0, 0, 1, 1], [], []>} : vector<4x128xbf16>, vector<128x64xbf16>, vector<4x64xf32> -> vector<4x64xf32>
    %c1_110 = arith.constant 1 : index
    %c0_111 = arith.constant 0 : index
    %114 = vector.load %arg39[%c1_110, %c0_111] : memref<18x128xf32, #tpu.memory_space<vmem>>, vector<4x128xf32>
    %115 = arith.truncf %114 : vector<4x128xf32> to vector<4x128xbf16>
    %c1_112 = arith.constant 1 : index
    %c0_113 = arith.constant 0 : index
    %c0_114 = arith.constant 0 : index
    %116 = vector.load %arg20[%c1_112, %c0_113, %c0_114] : memref<3x128x64xbf16, #tpu.memory_space<vmem>>, vector<1x128x64xbf16>
    %117 = vector.shape_cast %116 : vector<1x128x64xbf16> to vector<128x64xbf16>
    %cst_115 = arith.constant dense<0.000000e+00> : vector<4x64xf32>
    %118 = tpu.matmul %115, %117, %cst_115 {dimension_numbers = #tpu.dot_dimension_numbers<[1], [0], [0], [1], [0, 0, 1, 1], [], []>} : vector<4x128xbf16>, vector<128x64xbf16>, vector<4x64xf32> -> vector<4x64xf32>
    %119 = arith.addf %113, %118 : vector<4x64xf32>
    %c2_116 = arith.constant 2 : index
    %c0_117 = arith.constant 0 : index
    %120 = vector.load %arg39[%c2_116, %c0_117] : memref<18x128xf32, #tpu.memory_space<vmem>>, vector<4x128xf32>
    %121 = arith.truncf %120 : vector<4x128xf32> to vector<4x128xbf16>
    %c2_118 = arith.constant 2 : index
    %c0_119 = arith.constant 0 : index
    %c0_120 = arith.constant 0 : index
    %122 = vector.load %arg20[%c2_118, %c0_119, %c0_120] : memref<3x128x64xbf16, #tpu.memory_space<vmem>>, vector<1x128x64xbf16>
    %123 = vector.shape_cast %122 : vector<1x128x64xbf16> to vector<128x64xbf16>
    %cst_121 = arith.constant dense<0.000000e+00> : vector<4x64xf32>
    %124 = tpu.matmul %121, %123, %cst_121 {dimension_numbers = #tpu.dot_dimension_numbers<[1], [0], [0], [1], [0, 0, 1, 1], [], []>} : vector<4x128xbf16>, vector<128x64xbf16>, vector<4x64xf32> -> vector<4x64xf32>
    %125 = arith.addf %119, %124 : vector<4x64xf32>
    %c0_122 = arith.constant 0 : index
    %c0_123 = arith.constant 0 : index
    %126 = vector.load %arg21[%c0_122, %c0_123] : memref<1x64xf32, #tpu.memory_space<vmem>>, vector<1x64xf32>
    %127 = vector.broadcast %126 : vector<1x64xf32> to vector<4x64xf32>
    %128 = arith.addf %125, %127 : vector<4x64xf32>
    %cst_124 = arith.constant 0.000000e+00 : f32
    %129 = vector.broadcast %cst_124 : f32 to vector<4x64xf32>
    %130 = arith.maximumf %128, %129 : vector<4x64xf32>
    %cst_125 = arith.constant 0.000000e+00 : f32
    %131 = vector.broadcast %cst_125 : f32 to vector<1x128xf32>
    %c0_126 = arith.constant 0 : index
    %c0_127 = arith.constant 0 : index
    %132 = vector.load %arg39[%c0_126, %c0_127] : memref<18x128xf32, #tpu.memory_space<vmem>>, vector<1x128xf32>
    tpu.vector_store %arg39[%c0_126, %c0_127], %131 {strides = array<i32>} : memref<18x128xf32, #tpu.memory_space<vmem>>, vector<1x128xf32>,
    %cst_128 = arith.constant 0.000000e+00 : f32
    %133 = vector.broadcast %cst_128 : f32 to vector<1x128xf32>
    %c9_129 = arith.constant 9 : index
    %c0_130 = arith.constant 0 : index
    %134 = vector.load %arg39[%c9_129, %c0_130] : memref<18x128xf32, #tpu.memory_space<vmem>>, vector<1x128xf32>
    tpu.vector_store %arg39[%c9_129, %c0_130], %133 {strides = array<i32>} : memref<18x128xf32, #tpu.memory_space<vmem>>, vector<1x128xf32>,
    %c1_131 = arith.constant 1 : index
    %c0_132 = arith.constant 0 : index
    %135 = vector.load %arg39[%c1_131, %c0_132] : memref<18x128xf32, #tpu.memory_space<vmem>>, vector<8x128xf32>
    tpu.vector_store %arg39[%c1_131, %c0_132], %58 {strides = array<i32>} : memref<18x128xf32, #tpu.memory_space<vmem>>, vector<8x128xf32>,
    %c0_133 = arith.constant 0 : index
    %c0_134 = arith.constant 0 : index
    %136 = vector.load %arg39[%c0_133, %c0_134] : memref<18x128xf32, #tpu.memory_space<vmem>>, vector<8x128xf32>
    %137 = arith.truncf %136 : vector<8x128xf32> to vector<8x128xbf16>
    %c0_135 = arith.constant 0 : index
    %c0_136 = arith.constant 0 : index
    %c0_137 = arith.constant 0 : index
    %138 = vector.load %arg22[%c0_135, %c0_136, %c0_137] : memref<3x128x128xbf16, #tpu.memory_space<vmem>>, vector<1x128x128xbf16>
    %139 = vector.shape_cast %138 : vector<1x128x128xbf16> to vector<128x128xbf16>
    %cst_138 = arith.constant dense<0.000000e+00> : vector<8x128xf32>
    %140 = tpu.matmul %137, %139, %cst_138 {dimension_numbers = #tpu.dot_dimension_numbers<[1], [0], [0], [1], [0, 0, 1, 1], [], []>} : vector<8x128xbf16>, vector<128x128xbf16>, vector<8x128xf32> -> vector<8x128xf32>
    %c1_139 = arith.constant 1 : index
    %c0_140 = arith.constant 0 : index
    %141 = vector.load %arg39[%c1_139, %c0_140] : memref<18x128xf32, #tpu.memory_space<vmem>>, vector<8x128xf32>
    %142 = arith.truncf %141 : vector<8x128xf32> to vector<8x128xbf16>
    %c1_141 = arith.constant 1 : index
    %c0_142 = arith.constant 0 : index
    %c0_143 = arith.constant 0 : index
    %143 = vector.load %arg22[%c1_141, %c0_142, %c0_143] : memref<3x128x128xbf16, #tpu.memory_space<vmem>>, vector<1x128x128xbf16>
    %144 = vector.shape_cast %143 : vector<1x128x128xbf16> to vector<128x128xbf16>
    %cst_144 = arith.constant dense<0.000000e+00> : vector<8x128xf32>
    %145 = tpu.matmul %142, %144, %cst_144 {dimension_numbers = #tpu.dot_dimension_numbers<[1], [0], [0], [1], [0, 0, 1, 1], [], []>} : vector<8x128xbf16>, vector<128x128xbf16>, vector<8x128xf32> -> vector<8x128xf32>
    %146 = arith.addf %140, %145 : vector<8x128xf32>
    %c2_145 = arith.constant 2 : index
    %c0_146 = arith.constant 0 : index
    %147 = vector.load %arg39[%c2_145, %c0_146] : memref<18x128xf32, #tpu.memory_space<vmem>>, vector<8x128xf32>
    %148 = arith.truncf %147 : vector<8x128xf32> to vector<8x128xbf16>
    %c2_147 = arith.constant 2 : index
    %c0_148 = arith.constant 0 : index
    %c0_149 = arith.constant 0 : index
    %149 = vector.load %arg22[%c2_147, %c0_148, %c0_149] : memref<3x128x128xbf16, #tpu.memory_space<vmem>>, vector<1x128x128xbf16>
    %150 = vector.shape_cast %149 : vector<1x128x128xbf16> to vector<128x128xbf16>
    %cst_150 = arith.constant dense<0.000000e+00> : vector<8x128xf32>
    %151 = tpu.matmul %148, %150, %cst_150 {dimension_numbers = #tpu.dot_dimension_numbers<[1], [0], [0], [1], [0, 0, 1, 1], [], []>} : vector<8x128xbf16>, vector<128x128xbf16>, vector<8x128xf32> -> vector<8x128xf32>
    %152 = arith.addf %146, %151 : vector<8x128xf32>
    %c0_151 = arith.constant 0 : index
    %c0_152 = arith.constant 0 : index
    %153 = vector.load %arg23[%c0_151, %c0_152] : memref<1x128xf32, #tpu.memory_space<vmem>>, vector<1x128xf32>
    %154 = vector.broadcast %153 : vector<1x128xf32> to vector<8x128xf32>
    %155 = arith.addf %152, %154 : vector<8x128xf32>
    %cst_153 = arith.constant 0.000000e+00 : f32
    %156 = vector.broadcast %cst_153 : f32 to vector<8x128xf32>
    %157 = arith.maximumf %155, %156 : vector<8x128xf32>
    %cst_154 = arith.constant 0.000000e+00 : f32
    %158 = vector.broadcast %cst_154 : f32 to vector<1x128xf32>
    %c0_155 = arith.constant 0 : index
    %c0_156 = arith.constant 0 : index
    %159 = vector.load %arg39[%c0_155, %c0_156] : memref<18x128xf32, #tpu.memory_space<vmem>>, vector<1x128xf32>
    tpu.vector_store %arg39[%c0_155, %c0_156], %158 {strides = array<i32>} : memref<18x128xf32, #tpu.memory_space<vmem>>, vector<1x128xf32>,
    %cst_157 = arith.constant 0.000000e+00 : f32
    %160 = vector.broadcast %cst_157 : f32 to vector<1x128xf32>
    %c9_158 = arith.constant 9 : index
    %c0_159 = arith.constant 0 : index
    %161 = vector.load %arg39[%c9_158, %c0_159] : memref<18x128xf32, #tpu.memory_space<vmem>>, vector<1x128xf32>
    tpu.vector_store %arg39[%c9_158, %c0_159], %160 {strides = array<i32>} : memref<18x128xf32, #tpu.memory_space<vmem>>, vector<1x128xf32>,
    %c1_160 = arith.constant 1 : index
    %c0_161 = arith.constant 0 : index
    %162 = vector.load %arg39[%c1_160, %c0_161] : memref<18x128xf32, #tpu.memory_space<vmem>>, vector<8x128xf32>
    tpu.vector_store %arg39[%c1_160, %c0_161], %103 {strides = array<i32>} : memref<18x128xf32, #tpu.memory_space<vmem>>, vector<8x128xf32>,
    %c0_162 = arith.constant 0 : index
    %c0_163 = arith.constant 0 : index
    %163 = vector.load %arg39[%c0_162, %c0_163] : memref<18x128xf32, #tpu.memory_space<vmem>>, vector<8x128xf32>
    %164 = arith.truncf %163 : vector<8x128xf32> to vector<8x128xbf16>
    %c0_164 = arith.constant 0 : index
    %c0_165 = arith.constant 0 : index
    %c0_166 = arith.constant 0 : index
    %165 = vector.load %arg24[%c0_164, %c0_165, %c0_166] : memref<3x128x128xbf16, #tpu.memory_space<vmem>>, vector<1x128x128xbf16>
    %166 = vector.shape_cast %165 : vector<1x128x128xbf16> to vector<128x128xbf16>
    %cst_167 = arith.constant dense<0.000000e+00> : vector<8x128xf32>
    %167 = tpu.matmul %164, %166, %cst_167 {dimension_numbers = #tpu.dot_dimension_numbers<[1], [0], [0], [1], [0, 0, 1, 1], [], []>} : vector<8x128xbf16>, vector<128x128xbf16>, vector<8x128xf32> -> vector<8x128xf32>
    %c1_168 = arith.constant 1 : index
    %c0_169 = arith.constant 0 : index
    %168 = vector.load %arg39[%c1_168, %c0_169] : memref<18x128xf32, #tpu.memory_space<vmem>>, vector<8x128xf32>
    %169 = arith.truncf %168 : vector<8x128xf32> to vector<8x128xbf16>
    %c1_170 = arith.constant 1 : index
    %c0_171 = arith.constant 0 : index
    %c0_172 = arith.constant 0 : index
    %170 = vector.load %arg24[%c1_170, %c0_171, %c0_172] : memref<3x128x128xbf16, #tpu.memory_space<vmem>>, vector<1x128x128xbf16>
    %171 = vector.shape_cast %170 : vector<1x128x128xbf16> to vector<128x128xbf16>
    %cst_173 = arith.constant dense<0.000000e+00> : vector<8x128xf32>
    %172 = tpu.matmul %169, %171, %cst_173 {dimension_numbers = #tpu.dot_dimension_numbers<[1], [0], [0], [1], [0, 0, 1, 1], [], []>} : vector<8x128xbf16>, vector<128x128xbf16>, vector<8x128xf32> -> vector<8x128xf32>
    %173 = arith.addf %167, %172 : vector<8x128xf32>
    %c2_174 = arith.constant 2 : index
    %c0_175 = arith.constant 0 : index
    %174 = vector.load %arg39[%c2_174, %c0_175] : memref<18x128xf32, #tpu.memory_space<vmem>>, vector<8x128xf32>
    %175 = arith.truncf %174 : vector<8x128xf32> to vector<8x128xbf16>
    %c2_176 = arith.constant 2 : index
    %c0_177 = arith.constant 0 : index
    %c0_178 = arith.constant 0 : index
    %176 = vector.load %arg24[%c2_176, %c0_177, %c0_178] : memref<3x128x128xbf16, #tpu.memory_space<vmem>>, vector<1x128x128xbf16>
    %177 = vector.shape_cast %176 : vector<1x128x128xbf16> to vector<128x128xbf16>
    %cst_179 = arith.constant dense<0.000000e+00> : vector<8x128xf32>
    %178 = tpu.matmul %175, %177, %cst_179 {dimension_numbers = #tpu.dot_dimension_numbers<[1], [0], [0], [1], [0, 0, 1, 1], [], []>} : vector<8x128xbf16>, vector<128x128xbf16>, vector<8x128xf32> -> vector<8x128xf32>
    %179 = arith.addf %173, %178 : vector<8x128xf32>
    %c0_180 = arith.constant 0 : index
    %c0_181 = arith.constant 0 : index
    %180 = vector.load %arg25[%c0_180, %c0_181] : memref<1x128xf32, #tpu.memory_space<vmem>>, vector<1x128xf32>
    %181 = vector.broadcast %180 : vector<1x128xf32> to vector<8x128xf32>
    %182 = arith.addf %179, %181 : vector<8x128xf32>
    %cst_182 = arith.constant 0.000000e+00 : f32
    %183 = vector.broadcast %cst_182 : f32 to vector<8x128xf32>
    %184 = arith.maximumf %182, %183 : vector<8x128xf32>
    %c0_183 = arith.constant 0 : index
    %c0_184 = arith.constant 0 : index
    %185 = vector.load %arg8[%c0_183, %c0_184] : memref<8x4xbf16, #tpu.memory_space<vmem>>, vector<8x4xbf16>
    %186 = arith.truncf %130 : vector<4x64xf32> to vector<4x64xbf16>
    %cst_185 = arith.constant dense<0.000000e+00> : vector<8x64xf32>
    %187 = tpu.matmul %185, %186, %cst_185 {dimension_numbers = #tpu.dot_dimension_numbers<[1], [0], [0], [1], [0, 0, 1, 1], [], []>} : vector<8x4xbf16>, vector<4x64xbf16>, vector<8x64xf32> -> vector<8x64xf32>
    %188 = arith.truncf %187 : vector<8x64xf32> to vector<8x64xbf16>
    %c0_186 = arith.constant 0 : index
    %c0_187 = arith.constant 0 : index
    %189 = vector.load %arg26[%c0_186, %c0_187] : memref<64x128xbf16, #tpu.memory_space<vmem>>, vector<64x128xbf16>
    %cst_188 = arith.constant dense<0.000000e+00> : vector<8x128xf32>
    %190 = tpu.matmul %188, %189, %cst_188 {dimension_numbers = #tpu.dot_dimension_numbers<[1], [0], [0], [1], [0, 0, 1, 1], [], []>} : vector<8x64xbf16>, vector<64x128xbf16>, vector<8x128xf32> -> vector<8x128xf32>
    %191 = arith.truncf %184 : vector<8x128xf32> to vector<8x128xbf16>
    %c0_189 = arith.constant 0 : index
    %c0_190 = arith.constant 0 : index
    %192 = vector.load %arg27[%c0_189, %c0_190] : memref<128x128xbf16, #tpu.memory_space<vmem>>, vector<128x128xbf16>
    %cst_191 = arith.constant dense<0.000000e+00> : vector<8x128xf32>
    %193 = tpu.matmul %191, %192, %cst_191 {dimension_numbers = #tpu.dot_dimension_numbers<[1], [0], [0], [1], [0, 0, 1, 1], [], []>} : vector<8x128xbf16>, vector<128x128xbf16>, vector<8x128xf32> -> vector<8x128xf32>
    %194 = arith.truncf %157 : vector<8x128xf32> to vector<8x128xbf16>
    %c0_192 = arith.constant 0 : index
    %c0_193 = arith.constant 0 : index
    %195 = vector.load %arg28[%c0_192, %c0_193] : memref<128x128xbf16, #tpu.memory_space<vmem>>, vector<128x128xbf16>
    %cst_194 = arith.constant dense<0.000000e+00> : vector<8x128xf32>
    %196 = tpu.matmul %194, %195, %cst_194 {dimension_numbers = #tpu.dot_dimension_numbers<[1], [0], [0], [1], [0, 0, 1, 1], [], []>} : vector<8x128xbf16>, vector<128x128xbf16>, vector<8x128xf32> -> vector<8x128xf32>
    %197 = arith.addf %193, %196 : vector<8x128xf32>
    %198 = arith.truncf %190 : vector<8x128xf32> to vector<8x128xbf16>
    %c0_195 = arith.constant 0 : index
    %c0_196 = arith.constant 0 : index
    %199 = vector.load %arg29[%c0_195, %c0_196] : memref<128x128xbf16, #tpu.memory_space<vmem>>, vector<128x128xbf16>
    %cst_197 = arith.constant dense<0.000000e+00> : vector<8x128xf32>
    %200 = tpu.matmul %198, %199, %cst_197 {dimension_numbers = #tpu.dot_dimension_numbers<[1], [0], [0], [1], [0, 0, 1, 1], [], []>} : vector<8x128xbf16>, vector<128x128xbf16>, vector<8x128xf32> -> vector<8x128xf32>
    %201 = arith.addf %197, %200 : vector<8x128xf32>
    %c0_198 = arith.constant 0 : index
    %c0_199 = arith.constant 0 : index
    %202 = vector.load %arg30[%c0_198, %c0_199] : memref<1x128xf32, #tpu.memory_space<vmem>>, vector<1x128xf32>
    %203 = vector.broadcast %202 : vector<1x128xf32> to vector<8x128xf32>
    %204 = arith.addf %201, %203 : vector<8x128xf32>
    %cst_200 = arith.constant 0.000000e+00 : f32
    %205 = vector.broadcast %cst_200 : f32 to vector<8x128xf32>
    %206 = arith.maximumf %204, %205 : vector<8x128xf32>
    %cst_201 = arith.constant 0.000000e+00 : f32
    %207 = vector.broadcast %cst_201 : f32 to vector<1x128xf32>
    %c0_202 = arith.constant 0 : index
    %c0_203 = arith.constant 0 : index
    %208 = vector.load %arg39[%c0_202, %c0_203] : memref<18x128xf32, #tpu.memory_space<vmem>>, vector<1x128xf32>
    tpu.vector_store %arg39[%c0_202, %c0_203], %207 {strides = array<i32>} : memref<18x128xf32, #tpu.memory_space<vmem>>, vector<1x128xf32>,
    %cst_204 = arith.constant 0.000000e+00 : f32
    %209 = vector.broadcast %cst_204 : f32 to vector<1x128xf32>
    %c9_205 = arith.constant 9 : index
    %c0_206 = arith.constant 0 : index
    %210 = vector.load %arg39[%c9_205, %c0_206] : memref<18x128xf32, #tpu.memory_space<vmem>>, vector<1x128xf32>
    tpu.vector_store %arg39[%c9_205, %c0_206], %209 {strides = array<i32>} : memref<18x128xf32, #tpu.memory_space<vmem>>, vector<1x128xf32>,
    %c1_207 = arith.constant 1 : index
    %c0_208 = arith.constant 0 : index
    %211 = vector.load %arg39[%c1_207, %c0_208] : memref<18x128xf32, #tpu.memory_space<vmem>>, vector<8x128xf32>
    tpu.vector_store %arg39[%c1_207, %c0_208], %206 {strides = array<i32>} : memref<18x128xf32, #tpu.memory_space<vmem>>, vector<8x128xf32>,
    %c0_209 = arith.constant 0 : index
    %c0_210 = arith.constant 0 : index
    %212 = vector.load %arg39[%c0_209, %c0_210] : memref<18x128xf32, #tpu.memory_space<vmem>>, vector<8x128xf32>
    %213 = arith.truncf %212 : vector<8x128xf32> to vector<8x128xbf16>
    %c0_211 = arith.constant 0 : index
    %c0_212 = arith.constant 0 : index
    %c0_213 = arith.constant 0 : index
    %214 = vector.load %arg31[%c0_211, %c0_212, %c0_213] : memref<3x128x128xbf16, #tpu.memory_space<vmem>>, vector<1x128x128xbf16>
    %215 = vector.shape_cast %214 : vector<1x128x128xbf16> to vector<128x128xbf16>
    %cst_214 = arith.constant dense<0.000000e+00> : vector<8x128xf32>
    %216 = tpu.matmul %213, %215, %cst_214 {dimension_numbers = #tpu.dot_dimension_numbers<[1], [0], [0], [1], [0, 0, 1, 1], [], []>} : vector<8x128xbf16>, vector<128x128xbf16>, vector<8x128xf32> -> vector<8x128xf32>
    %c1_215 = arith.constant 1 : index
    %c0_216 = arith.constant 0 : index
    %217 = vector.load %arg39[%c1_215, %c0_216] : memref<18x128xf32, #tpu.memory_space<vmem>>, vector<8x128xf32>
    %218 = arith.truncf %217 : vector<8x128xf32> to vector<8x128xbf16>
    %c1_217 = arith.constant 1 : index
    %c0_218 = arith.constant 0 : index
    %c0_219 = arith.constant 0 : index
    %219 = vector.load %arg31[%c1_217, %c0_218, %c0_219] : memref<3x128x128xbf16, #tpu.memory_space<vmem>>, vector<1x128x128xbf16>
    %220 = vector.shape_cast %219 : vector<1x128x128xbf16> to vector<128x128xbf16>
    %cst_220 = arith.constant dense<0.000000e+00> : vector<8x128xf32>
    %221 = tpu.matmul %218, %220, %cst_220 {dimension_numbers = #tpu.dot_dimension_numbers<[1], [0], [0], [1], [0, 0, 1, 1], [], []>} : vector<8x128xbf16>, vector<128x128xbf16>, vector<8x128xf32> -> vector<8x128xf32>
    %222 = arith.addf %216, %221 : vector<8x128xf32>
    %c2_221 = arith.constant 2 : index
    %c0_222 = arith.constant 0 : index
    %223 = vector.load %arg39[%c2_221, %c0_222] : memref<18x128xf32, #tpu.memory_space<vmem>>, vector<8x128xf32>
    %224 = arith.truncf %223 : vector<8x128xf32> to vector<8x128xbf16>
    %c2_223 = arith.constant 2 : index
    %c0_224 = arith.constant 0 : index
    %c0_225 = arith.constant 0 : index
    %225 = vector.load %arg31[%c2_223, %c0_224, %c0_225] : memref<3x128x128xbf16, #tpu.memory_space<vmem>>, vector<1x128x128xbf16>
    %226 = vector.shape_cast %225 : vector<1x128x128xbf16> to vector<128x128xbf16>
    %cst_226 = arith.constant dense<0.000000e+00> : vector<8x128xf32>
    %227 = tpu.matmul %224, %226, %cst_226 {dimension_numbers = #tpu.dot_dimension_numbers<[1], [0], [0], [1], [0, 0, 1, 1], [], []>} : vector<8x128xbf16>, vector<128x128xbf16>, vector<8x128xf32> -> vector<8x128xf32>
    %228 = arith.addf %222, %227 : vector<8x128xf32>
    %c0_227 = arith.constant 0 : index
    %c0_228 = arith.constant 0 : index
    %229 = vector.load %arg32[%c0_227, %c0_228] : memref<8x128xf32, #tpu.memory_space<vmem>>, vector<8x128xf32>
    %230 = arith.addf %228, %229 : vector<8x128xf32>
    %cst_229 = arith.constant 0.000000e+00 : f32
    %231 = vector.broadcast %cst_229 : f32 to vector<8x128xf32>
    %232 = arith.maximumf %230, %231 : vector<8x128xf32>
    %cst_230 = arith.constant 0.000000e+00 : f32
    %233 = vector.broadcast %cst_230 : f32 to vector<1x128xf32>
    %c0_231 = arith.constant 0 : index
    %c0_232 = arith.constant 0 : index
    %234 = vector.load %arg39[%c0_231, %c0_232] : memref<18x128xf32, #tpu.memory_space<vmem>>, vector<1x128xf32>
    tpu.vector_store %arg39[%c0_231, %c0_232], %233 {strides = array<i32>} : memref<18x128xf32, #tpu.memory_space<vmem>>, vector<1x128xf32>,
    %cst_233 = arith.constant 0.000000e+00 : f32
    %235 = vector.broadcast %cst_233 : f32 to vector<1x128xf32>
    %c9_234 = arith.constant 9 : index
    %c0_235 = arith.constant 0 : index
    %236 = vector.load %arg39[%c9_234, %c0_235] : memref<18x128xf32, #tpu.memory_space<vmem>>, vector<1x128xf32>
    tpu.vector_store %arg39[%c9_234, %c0_235], %235 {strides = array<i32>} : memref<18x128xf32, #tpu.memory_space<vmem>>, vector<1x128xf32>,
    %c1_236 = arith.constant 1 : index
    %c0_237 = arith.constant 0 : index
    %237 = vector.load %arg39[%c1_236, %c0_237] : memref<18x128xf32, #tpu.memory_space<vmem>>, vector<8x128xf32>
    tpu.vector_store %arg39[%c1_236, %c0_237], %232 {strides = array<i32>} : memref<18x128xf32, #tpu.memory_space<vmem>>, vector<8x128xf32>,
    %c0_238 = arith.constant 0 : index
    %c0_239 = arith.constant 0 : index
    %238 = vector.load %arg39[%c0_238, %c0_239] : memref<18x128xf32, #tpu.memory_space<vmem>>, vector<8x128xf32>
    %239 = arith.truncf %238 : vector<8x128xf32> to vector<8x128xbf16>
    %c0_240 = arith.constant 0 : index
    %c0_241 = arith.constant 0 : index
    %c0_242 = arith.constant 0 : index
    %240 = vector.load %arg33[%c0_240, %c0_241, %c0_242] : memref<3x128x128xbf16, #tpu.memory_space<vmem>>, vector<1x128x128xbf16>
    %241 = vector.shape_cast %240 : vector<1x128x128xbf16> to vector<128x128xbf16>
    %cst_243 = arith.constant dense<0.000000e+00> : vector<8x128xf32>
    %242 = tpu.matmul %239, %241, %cst_243 {dimension_numbers = #tpu.dot_dimension_numbers<[1], [0], [0], [1], [0, 0, 1, 1], [], []>} : vector<8x128xbf16>, vector<128x128xbf16>, vector<8x128xf32> -> vector<8x128xf32>
    %c1_244 = arith.constant 1 : index
    %c0_245 = arith.constant 0 : index
    %243 = vector.load %arg39[%c1_244, %c0_245] : memref<18x128xf32, #tpu.memory_space<vmem>>, vector<8x128xf32>
    %244 = arith.truncf %243 : vector<8x128xf32> to vector<8x128xbf16>
    %c1_246 = arith.constant 1 : index
    %c0_247 = arith.constant 0 : index
    %c0_248 = arith.constant 0 : index
    %245 = vector.load %arg33[%c1_246, %c0_247, %c0_248] : memref<3x128x128xbf16, #tpu.memory_space<vmem>>, vector<1x128x128xbf16>
    %246 = vector.shape_cast %245 : vector<1x128x128xbf16> to vector<128x128xbf16>
    %cst_249 = arith.constant dense<0.000000e+00> : vector<8x128xf32>
    %247 = tpu.matmul %244, %246, %cst_249 {dimension_numbers = #tpu.dot_dimension_numbers<[1], [0], [0], [1], [0, 0, 1, 1], [], []>} : vector<8x128xbf16>, vector<128x128xbf16>, vector<8x128xf32> -> vector<8x128xf32>
    %248 = arith.addf %242, %247 : vector<8x128xf32>
    %c2_250 = arith.constant 2 : index
    %c0_251 = arith.constant 0 : index
    %249 = vector.load %arg39[%c2_250, %c0_251] : memref<18x128xf32, #tpu.memory_space<vmem>>, vector<8x128xf32>
    %250 = arith.truncf %249 : vector<8x128xf32> to vector<8x128xbf16>
    %c2_252 = arith.constant 2 : index
    %c0_253 = arith.constant 0 : index
    %c0_254 = arith.constant 0 : index
    %251 = vector.load %arg33[%c2_252, %c0_253, %c0_254] : memref<3x128x128xbf16, #tpu.memory_space<vmem>>, vector<1x128x128xbf16>
    %252 = vector.shape_cast %251 : vector<1x128x128xbf16> to vector<128x128xbf16>
    %cst_255 = arith.constant dense<0.000000e+00> : vector<8x128xf32>
    %253 = tpu.matmul %250, %252, %cst_255 {dimension_numbers = #tpu.dot_dimension_numbers<[1], [0], [0], [1], [0, 0, 1, 1], [], []>} : vector<8x128xbf16>, vector<128x128xbf16>, vector<8x128xf32> -> vector<8x128xf32>
    %254 = arith.addf %248, %253 : vector<8x128xf32>
    %c0_256 = arith.constant 0 : index
    %c0_257 = arith.constant 0 : index
    %255 = vector.load %arg34[%c0_256, %c0_257] : memref<1x128xf32, #tpu.memory_space<vmem>>, vector<1x128xf32>
    %256 = vector.broadcast %255 : vector<1x128xf32> to vector<8x128xf32>
    %257 = arith.addf %254, %256 : vector<8x128xf32>
    %cst_258 = arith.constant 0.000000e+00 : f32
    %258 = vector.broadcast %cst_258 : f32 to vector<8x128xf32>
    %259 = arith.maximumf %257, %258 : vector<8x128xf32>
    %cst_259 = arith.constant 0.000000e+00 : f32
    %260 = vector.broadcast %cst_259 : f32 to vector<1x128xf32>
    %c0_260 = arith.constant 0 : index
    %c0_261 = arith.constant 0 : index
    %261 = vector.load %arg39[%c0_260, %c0_261] : memref<18x128xf32, #tpu.memory_space<vmem>>, vector<1x128xf32>
    tpu.vector_store %arg39[%c0_260, %c0_261], %260 {strides = array<i32>} : memref<18x128xf32, #tpu.memory_space<vmem>>, vector<1x128xf32>,
    %cst_262 = arith.constant 0.000000e+00 : f32
    %262 = vector.broadcast %cst_262 : f32 to vector<1x128xf32>
    %c9_263 = arith.constant 9 : index
    %c0_264 = arith.constant 0 : index
    %263 = vector.load %arg39[%c9_263, %c0_264] : memref<18x128xf32, #tpu.memory_space<vmem>>, vector<1x128xf32>
    tpu.vector_store %arg39[%c9_263, %c0_264], %262 {strides = array<i32>} : memref<18x128xf32, #tpu.memory_space<vmem>>, vector<1x128xf32>,
    %c1_265 = arith.constant 1 : index
    %c0_266 = arith.constant 0 : index
    %264 = vector.load %arg39[%c1_265, %c0_266] : memref<18x128xf32, #tpu.memory_space<vmem>>, vector<8x128xf32>
    tpu.vector_store %arg39[%c1_265, %c0_266], %259 {strides = array<i32>} : memref<18x128xf32, #tpu.memory_space<vmem>>, vector<8x128xf32>,
    %c0_267 = arith.constant 0 : index
    %c0_268 = arith.constant 0 : index
    %265 = vector.load %arg39[%c0_267, %c0_268] : memref<18x128xf32, #tpu.memory_space<vmem>>, vector<8x128xf32>
    %266 = arith.truncf %265 : vector<8x128xf32> to vector<8x128xbf16>
    %c0_269 = arith.constant 0 : index
    %c0_270 = arith.constant 0 : index
    %c0_271 = arith.constant 0 : index
    %267 = vector.load %arg35[%c0_269, %c0_270, %c0_271] : memref<3x128x96xbf16, #tpu.memory_space<vmem>>, vector<1x128x96xbf16>
    %268 = vector.shape_cast %267 : vector<1x128x96xbf16> to vector<128x96xbf16>
    %cst_272 = arith.constant dense<0.000000e+00> : vector<8x96xf32>
    %269 = tpu.matmul %266, %268, %cst_272 {dimension_numbers = #tpu.dot_dimension_numbers<[1], [0], [0], [1], [0, 0, 1, 1], [], []>} : vector<8x128xbf16>, vector<128x96xbf16>, vector<8x96xf32> -> vector<8x96xf32>
    %c1_273 = arith.constant 1 : index
    %c0_274 = arith.constant 0 : index
    %270 = vector.load %arg39[%c1_273, %c0_274] : memref<18x128xf32, #tpu.memory_space<vmem>>, vector<8x128xf32>
    %271 = arith.truncf %270 : vector<8x128xf32> to vector<8x128xbf16>
    %c1_275 = arith.constant 1 : index
    %c0_276 = arith.constant 0 : index
    %c0_277 = arith.constant 0 : index
    %272 = vector.load %arg35[%c1_275, %c0_276, %c0_277] : memref<3x128x96xbf16, #tpu.memory_space<vmem>>, vector<1x128x96xbf16>
    %273 = vector.shape_cast %272 : vector<1x128x96xbf16> to vector<128x96xbf16>
    %cst_278 = arith.constant dense<0.000000e+00> : vector<8x96xf32>
    %274 = tpu.matmul %271, %273, %cst_278 {dimension_numbers = #tpu.dot_dimension_numbers<[1], [0], [0], [1], [0, 0, 1, 1], [], []>} : vector<8x128xbf16>, vector<128x96xbf16>, vector<8x96xf32> -> vector<8x96xf32>
    %275 = arith.addf %269, %274 : vector<8x96xf32>
    %c2_279 = arith.constant 2 : index
    %c0_280 = arith.constant 0 : index
    %276 = vector.load %arg39[%c2_279, %c0_280] : memref<18x128xf32, #tpu.memory_space<vmem>>, vector<8x128xf32>
    %277 = arith.truncf %276 : vector<8x128xf32> to vector<8x128xbf16>
    %c2_281 = arith.constant 2 : index
    %c0_282 = arith.constant 0 : index
    %c0_283 = arith.constant 0 : index
    %278 = vector.load %arg35[%c2_281, %c0_282, %c0_283] : memref<3x128x96xbf16, #tpu.memory_space<vmem>>, vector<1x128x96xbf16>
    %279 = vector.shape_cast %278 : vector<1x128x96xbf16> to vector<128x96xbf16>
    %cst_284 = arith.constant dense<0.000000e+00> : vector<8x96xf32>
    %280 = tpu.matmul %277, %279, %cst_284 {dimension_numbers = #tpu.dot_dimension_numbers<[1], [0], [0], [1], [0, 0, 1, 1], [], []>} : vector<8x128xbf16>, vector<128x96xbf16>, vector<8x96xf32> -> vector<8x96xf32>
    %281 = arith.addf %275, %280 : vector<8x96xf32>
    %c0_285 = arith.constant 0 : index
    %c0_286 = arith.constant 0 : index
    %282 = vector.load %arg36[%c0_285, %c0_286] : memref<1x96xf32, #tpu.memory_space<vmem>>, vector<1x96xf32>
    %283 = vector.broadcast %282 : vector<1x96xf32> to vector<8x96xf32>
    %284 = arith.addf %281, %283 : vector<8x96xf32>
    %cst_287 = arith.constant 0.000000e+00 : f32
    %285 = vector.broadcast %cst_287 : f32 to vector<8x96xf32>
    %286 = arith.maximumf %284, %285 : vector<8x96xf32>
    %c0_288 = arith.constant 0 : index
    %c0_289 = arith.constant 0 : index
    %c0_290 = arith.constant 0 : index
    %287 = vector.load %arg37[%c0_288, %c0_289, %c0_290] : memref<1x8x96xf32, #tpu.memory_space<vmem>>, vector<1x8x96xf32>
    %288 = vector.shape_cast %287 : vector<1x8x96xf32> to vector<8x96xf32>
    %289 = vector.shape_cast %286 : vector<8x96xf32> to vector<1x8x96xf32>
    tpu.vector_store %arg37[%c0_288, %c0_289, %c0_290], %289 {strides = array<i32>} : memref<1x8x96xf32, #tpu.memory_space<vmem>>, vector<1x8x96xf32>,
    %c0_291 = arith.constant 0 : index
    %c0_292 = arith.constant 0 : index
    %c0_293 = arith.constant 0 : index
    %290 = vector.load %arg38[%c0_291, %c0_292, %c0_293] : memref<1x8x128xf32, #tpu.memory_space<vmem>>, vector<1x8x128xf32>
    %291 = vector.shape_cast %290 : vector<1x8x128xf32> to vector<8x128xf32>
    %292 = vector.shape_cast %259 : vector<8x128xf32> to vector<1x8x128xf32>
    tpu.vector_store %arg38[%c0_291, %c0_292, %c0_293], %292 {strides = array<i32>} : memref<1x8x128xf32, #tpu.memory_space<vmem>>, vector<1x8x128xf32>,
    return
  }
  func.func @transform_0(%arg0: i32) -> (i32, i32, i32) {
    %c0_i32 = arith.constant 0 : i32
    %c0_i32_0 = arith.constant 0 : i32
    %c0_i32_1 = arith.constant 0 : i32
    return %arg0, %c0_i32, %c0_i32_0 : i32, i32, i32
  }
  func.func @transform_1(%arg0: i32) -> (i32, i32, i32) {
    %c0_i32 = arith.constant 0 : i32
    %c0_i32_0 = arith.constant 0 : i32
    %c0_i32_1 = arith.constant 0 : i32
    return %arg0, %c0_i32, %c0_i32_0 : i32, i32, i32
  }
  func.func @transform_2(%arg0: i32) -> (i32, i32, i32) {
    %c0_i32 = arith.constant 0 : i32
    %c0_i32_0 = arith.constant 0 : i32
    %c0_i32_1 = arith.constant 0 : i32
    return %arg0, %c0_i32, %c0_i32_0 : i32, i32, i32
  }
  func.func @transform_3(%arg0: i32) -> (i32, i32) {
    %c0_i32 = arith.constant 0 : i32
    %c0_i32_0 = arith.constant 0 : i32
    %c0_i32_1 = arith.constant 0 : i32
    return %c0_i32, %c0_i32_0 : i32, i32
  }
  func.func @transform_4(%arg0: i32) -> (i32, i32) {
    %c0_i32 = arith.constant 0 : i32
    %c0_i32_0 = arith.constant 0 : i32
    %c0_i32_1 = arith.constant 0 : i32
    return %c0_i32, %c0_i32_0 : i32, i32
  }
  func.func @transform_5(%arg0: i32) -> (i32, i32, i32) {
    %c0_i32 = arith.constant 0 : i32
    %c0_i32_0 = arith.constant 0 : i32
    %c0_i32_1 = arith.constant 0 : i32
    %c0_i32_2 = arith.constant 0 : i32
    return %c0_i32, %c0_i32_0, %c0_i32_1 : i32, i32, i32
  }
  func.func @transform_6(%arg0: i32) -> (i32, i32) {
    %c0_i32 = arith.constant 0 : i32
    %c0_i32_0 = arith.constant 0 : i32
    %c0_i32_1 = arith.constant 0 : i32
    return %c0_i32, %c0_i32_0 : i32, i32
  }
  func.func @transform_7(%arg0: i32) -> (i32, i32) {
    %c0_i32 = arith.constant 0 : i32
    %c0_i32_0 = arith.constant 0 : i32
    %c0_i32_1 = arith.constant 0 : i32
    return %c0_i32, %c0_i32_0 : i32, i32
  }
  func.func @transform_8(%arg0: i32) -> (i32, i32) {
    %c0_i32 = arith.constant 0 : i32
    %c0_i32_0 = arith.constant 0 : i32
    %c0_i32_1 = arith.constant 0 : i32
    return %c0_i32, %c0_i32_0 : i32, i32
  }
  func.func @transform_9(%arg0: i32) -> (i32, i32) {
    %c0_i32 = arith.constant 0 : i32
    %c0_i32_0 = arith.constant 0 : i32
    %c0_i32_1 = arith.constant 0 : i32
    return %c0_i32, %c0_i32_0 : i32, i32
  }
  func.func @transform_10(%arg0: i32) -> (i32, i32) {
    %c0_i32 = arith.constant 0 : i32
    %c0_i32_0 = arith.constant 0 : i32
    %c0_i32_1 = arith.constant 0 : i32
    return %c0_i32, %c0_i32_0 : i32, i32
  }
  func.func @transform_11(%arg0: i32) -> (i32, i32) {
    %c0_i32 = arith.constant 0 : i32
    %c0_i32_0 = arith.constant 0 : i32
    %c0_i32_1 = arith.constant 0 : i32
    return %c0_i32, %c0_i32_0 : i32, i32
  }
  func.func @transform_12(%arg0: i32) -> (i32, i32, i32) {
    %c0_i32 = arith.constant 0 : i32
    %c0_i32_0 = arith.constant 0 : i32
    %c0_i32_1 = arith.constant 0 : i32
    %c0_i32_2 = arith.constant 0 : i32
    return %c0_i32, %c0_i32_0, %c0_i32_1 : i32, i32, i32
  }
  func.func @transform_13(%arg0: i32) -> (i32, i32) {
    %c0_i32 = arith.constant 0 : i32
    %c0_i32_0 = arith.constant 0 : i32
    %c0_i32_1 = arith.constant 0 : i32
    return %c0_i32, %c0_i32_0 : i32, i32
  }
  func.func @transform_14(%arg0: i32) -> (i32, i32) {
    %c0_i32 = arith.constant 0 : i32
    %c0_i32_0 = arith.constant 0 : i32
    %c0_i32_1 = arith.constant 0 : i32
    return %c0_i32, %c0_i32_0 : i32, i32
  }
  func.func @transform_15(%arg0: i32) -> (i32, i32) {
    %c0_i32 = arith.constant 0 : i32
    %c0_i32_0 = arith.constant 0 : i32
    %c0_i32_1 = arith.constant 0 : i32
    return %c0_i32, %c0_i32_0 : i32, i32
  }
  func.func @transform_16(%arg0: i32) -> (i32, i32) {
    %c0_i32 = arith.constant 0 : i32
    %c0_i32_0 = arith.constant 0 : i32
    %c0_i32_1 = arith.constant 0 : i32
    return %c0_i32, %c0_i32_0 : i32, i32
  }
  func.func @transform_17(%arg0: i32) -> (i32, i32) {
    %c0_i32 = arith.constant 0 : i32
    %c0_i32_0 = arith.constant 0 : i32
    %c0_i32_1 = arith.constant 0 : i32
    return %c0_i32, %c0_i32_0 : i32, i32
  }
  func.func @transform_18(%arg0: i32) -> (i32, i32) {
    %c0_i32 = arith.constant 0 : i32
    %c0_i32_0 = arith.constant 0 : i32
    %c0_i32_1 = arith.constant 0 : i32
    return %c0_i32, %c0_i32_0 : i32, i32
  }
  func.func @transform_19(%arg0: i32) -> (i32, i32, i32) {
    %c0_i32 = arith.constant 0 : i32
    %c0_i32_0 = arith.constant 0 : i32
    %c0_i32_1 = arith.constant 0 : i32
    %c0_i32_2 = arith.constant 0 : i32
    return %c0_i32, %c0_i32_0, %c0_i32_1 : i32, i32, i32
  }
  func.func @transform_20(%arg0: i32) -> (i32, i32) {
    %c0_i32 = arith.constant 0 : i32
    %c0_i32_0 = arith.constant 0 : i32
    %c0_i32_1 = arith.constant 0 : i32
    return %c0_i32, %c0_i32_0 : i32, i32
  }
  func.func @transform_21(%arg0: i32) -> (i32, i32, i32) {
    %c0_i32 = arith.constant 0 : i32
    %c0_i32_0 = arith.constant 0 : i32
    %c0_i32_1 = arith.constant 0 : i32
    %c0_i32_2 = arith.constant 0 : i32
    return %c0_i32, %c0_i32_0, %c0_i32_1 : i32, i32, i32
  }
  func.func @transform_22(%arg0: i32) -> (i32, i32) {
    %c0_i32 = arith.constant 0 : i32
    %c0_i32_0 = arith.constant 0 : i32
    %c0_i32_1 = arith.constant 0 : i32
    return %c0_i32, %c0_i32_0 : i32, i32
  }
  func.func @transform_23(%arg0: i32) -> (i32, i32, i32) {
    %c0_i32 = arith.constant 0 : i32
    %c0_i32_0 = arith.constant 0 : i32
    %c0_i32_1 = arith.constant 0 : i32
    %c0_i32_2 = arith.constant 0 : i32
    return %c0_i32, %c0_i32_0, %c0_i32_1 : i32, i32, i32
  }
  func.func @transform_24(%arg0: i32) -> (i32, i32) {
    %c0_i32 = arith.constant 0 : i32
    %c0_i32_0 = arith.constant 0 : i32
    %c0_i32_1 = arith.constant 0 : i32
    return %c0_i32, %c0_i32_0 : i32, i32
  }
  func.func @transform_25(%arg0: i32) -> (i32, i32) {
    %c0_i32 = arith.constant 0 : i32
    %c0_i32_0 = arith.constant 0 : i32
    %c0_i32_1 = arith.constant 0 : i32
    return %c0_i32, %c0_i32_0 : i32, i32
  }
  func.func @transform_26(%arg0: i32) -> (i32, i32) {
    %c0_i32 = arith.constant 0 : i32
    %c0_i32_0 = arith.constant 0 : i32
    %c0_i32_1 = arith.constant 0 : i32
    return %c0_i32, %c0_i32_0 : i32, i32
  }
  func.func @transform_27(%arg0: i32) -> (i32, i32) {
    %c0_i32 = arith.constant 0 : i32
    %c0_i32_0 = arith.constant 0 : i32
    %c0_i32_1 = arith.constant 0 : i32
    return %c0_i32, %c0_i32_0 : i32, i32
  }
  func.func @transform_28(%arg0: i32) -> (i32, i32) {
    %c0_i32 = arith.constant 0 : i32
    %c0_i32_0 = arith.constant 0 : i32
    %c0_i32_1 = arith.constant 0 : i32
    return %c0_i32, %c0_i32_0 : i32, i32
  }
  func.func @transform_29(%arg0: i32) -> (i32, i32) {
    %c0_i32 = arith.constant 0 : i32
    %c0_i32_0 = arith.constant 0 : i32
    %c0_i32_1 = arith.constant 0 : i32
    return %c0_i32, %c0_i32_0 : i32, i32
  }
  func.func @transform_30(%arg0: i32) -> (i32, i32, i32) {
    %c0_i32 = arith.constant 0 : i32
    %c0_i32_0 = arith.constant 0 : i32
    %c0_i32_1 = arith.constant 0 : i32
    %c0_i32_2 = arith.constant 0 : i32
    return %c0_i32, %c0_i32_0, %c0_i32_1 : i32, i32, i32
  }
  func.func @transform_31(%arg0: i32) -> (i32, i32) {
    %c0_i32 = arith.constant 0 : i32
    %c0_i32_0 = arith.constant 0 : i32
    %c0_i32_1 = arith.constant 0 : i32
    return %c0_i32, %c0_i32_0 : i32, i32
  }
  func.func @transform_32(%arg0: i32) -> (i32, i32, i32) {
    %c0_i32 = arith.constant 0 : i32
    %c0_i32_0 = arith.constant 0 : i32
    %c0_i32_1 = arith.constant 0 : i32
    %c0_i32_2 = arith.constant 0 : i32
    return %c0_i32, %c0_i32_0, %c0_i32_1 : i32, i32, i32
  }
  func.func @transform_33(%arg0: i32) -> (i32, i32) {
    %c0_i32 = arith.constant 0 : i32
    %c0_i32_0 = arith.constant 0 : i32
    %c0_i32_1 = arith.constant 0 : i32
    return %c0_i32, %c0_i32_0 : i32, i32
  }
  func.func @transform_34(%arg0: i32) -> (i32, i32, i32) {
    %c0_i32 = arith.constant 0 : i32
    %c0_i32_0 = arith.constant 0 : i32
    %c0_i32_1 = arith.constant 0 : i32
    %c0_i32_2 = arith.constant 0 : i32
    return %c0_i32, %c0_i32_0, %c0_i32_1 : i32, i32, i32
  }
  func.func @transform_35(%arg0: i32) -> (i32, i32) {
    %c0_i32 = arith.constant 0 : i32
    %c0_i32_0 = arith.constant 0 : i32
    %c0_i32_1 = arith.constant 0 : i32
    return %c0_i32, %c0_i32_0 : i32, i32
  }
  func.func @transform_36(%arg0: i32) -> (i32, i32, i32) {
    %c0_i32 = arith.constant 0 : i32
    %c0_i32_0 = arith.constant 0 : i32
    %c0_i32_1 = arith.constant 0 : i32
    return %arg0, %c0_i32, %c0_i32_0 : i32, i32, i32
  }
  func.func @transform_37(%arg0: i32) -> (i32, i32, i32) {
    %c0_i32 = arith.constant 0 : i32
    %c0_i32_0 = arith.constant 0 : i32
    %c0_i32_1 = arith.constant 0 : i32
    return %arg0, %c0_i32, %c0_i32_0 : i32, i32, i32
  }
}

</mosaic_0001>

<llo_original>
// kernel: fqfpn_forward.1
$region0: #{fqfpn_forward.1}
  #allocation0 [shape = 'u32[]', space=smem, size = 0x4, offset = 0x4, fixed_abs, tag = 'smem constant byte address 0x4 - core index']
  #allocation1 [shape = 'u32[144,128]{1,0:T(1,128)}', space=vmem, size = 0x12000, scoped, tag = 'internal scratch']
  #allocation2 [shape = 'f32[18,128]{1,0:T(8,128)}', space=vmem, size = 0x3000, scoped, tag = 'scratch operand']
  %s0 = inlined_call_operand.smem [shape: u32[38], index: -1, kind: input, shape index: {}]
  %s1 = sld [smem:[%s0]]
  %s2 = scalar_lea.smem %s0, 1
  %s3 = sld [smem:[%s2]]
  %s4 = scalar_lea.smem %s0, 2
  %s5 = sld [smem:[%s4]]
  %s6 = scalar_lea.smem %s0, 3
  %s7 = sld [smem:[%s6]]
  %s8 = scalar_lea.smem %s0, 4
  %s9 = sld [smem:[%s8]]
  %s10 = scalar_lea.smem %s0, 5
  %s11 = sld [smem:[%s10]]
  %s12 = scalar_lea.smem %s0, 6
  %s13 = sld [smem:[%s12]]
  %s14 = scalar_lea.smem %s0, 7
  %s15 = sld [smem:[%s14]]
  %s16 = scalar_lea.smem %s0, 8
  %s17 = sld [smem:[%s16]]
  %s18 = scalar_lea.smem %s0, 9
  %s19 = sld [smem:[%s18]]
  %s20 = scalar_lea.smem %s0, 10
  %s21 = sld [smem:[%s20]]
  %s22 = scalar_lea.smem %s0, 11
  %s23 = sld [smem:[%s22]]
  %s24 = scalar_lea.smem %s0, 12
  %s25 = sld [smem:[%s24]]
  %s26 = scalar_lea.smem %s0, 13
  %s27 = sld [smem:[%s26]]
  %s28 = scalar_lea.smem %s0, 14
  %s29 = sld [smem:[%s28]]
  %s30 = scalar_lea.smem %s0, 15
  %s31 = sld [smem:[%s30]]
  %s32 = scalar_lea.smem %s0, 16
  %s33 = sld [smem:[%s32]]
  %s34 = scalar_lea.smem %s0, 17
  %s35 = sld [smem:[%s34]]
  %s36 = scalar_lea.smem %s0, 18
  %s37 = sld [smem:[%s36]]
  %s38 = scalar_lea.smem %s0, 19
  %s39 = sld [smem:[%s38]]
  %s40 = scalar_lea.smem %s0, 20
  %s41 = sld [smem:[%s40]]
  %s42 = scalar_lea.smem %s0, 21
  %s43 = sld [smem:[%s42]]
  %s44 = scalar_lea.smem %s0, 22
  %s45 = sld [smem:[%s44]]
  %s46 = scalar_lea.smem %s0, 23
  %s47 = sld [smem:[%s46]]
  %s48 = scalar_lea.smem %s0, 24
  %s49 = sld [smem:[%s48]]
  %s50 = scalar_lea.smem %s0, 25
  %s51 = sld [smem:[%s50]]
  %s52 = scalar_lea.smem %s0, 26
  %s53 = sld [smem:[%s52]]
  %s54 = scalar_lea.smem %s0, 27
  %s55 = sld [smem:[%s54]]
  %s56 = scalar_lea.smem %s0, 28
  %s57 = sld [smem:[%s56]]
  %s58 = scalar_lea.smem %s0, 29
  %s59 = sld [smem:[%s58]]
  %s60 = scalar_lea.smem %s0, 30
  %s61 = sld [smem:[%s60]]
  %s62 = scalar_lea.smem %s0, 31
  %s63 = sld [smem:[%s62]]
  %s64 = scalar_lea.smem %s0, 32
  %s65 = sld [smem:[%s64]]
  %s66 = scalar_lea.smem %s0, 33
  %s67 = sld [smem:[%s66]]
  %s68 = scalar_lea.smem %s0, 34
  %s69 = sld [smem:[%s68]]
  %s70 = scalar_lea.smem %s0, 35
  %s71 = sld [smem:[%s70]]
  %s72 = scalar_lea.smem %s0, 36
  %s73 = sld [smem:[%s72]]
  %s74 = scalar_lea.smem %s0, 37
  %s75 = sld [smem:[%s74]]
  %76 = xla_tuple %s73, %s75
  %s77 = sld [smem:[#allocation0]]
  $region257: #{fqfpn_forward.1} parent=0
    _
  %s79 = ssub.s32 1, %s77
  %s80 = scalar_select 0, %s79, %s77
  $region1: #{fqfpn_forward.1} parent=0
    #allocation3 [shape = 'u8[16384]{0}', space=vmem, size = 0x4000, scoped, tag = 'input window, operand 3, single buffered']
    #allocation4 [shape = 's32[2]{0}', space=sflag, size = 0x8, scoped, tag = 'scoped memory for fqfpn_forward.1']
    #allocation5 [shape = 'u8[32768]{0}', space=vmem, size = 0x8000, scoped, tag = 'input window, operand 9, single buffered']
    #allocation6 [shape = 's32[1]{0}', space=sflag, size = 0x4, scoped, tag = 'scoped memory for fqfpn_forward.1']
    #allocation7 [shape = 'u8[512]{0}', space=vmem, size = 0x400, scoped, tag = 'input window, operand 11, single buffered']
    #allocation8 [shape = 'u8[512]{0}', space=vmem, size = 0x400, scoped, tag = 'input window, operand 13, single buffered']
    #allocation9 [shape = 's32[1]{0}', space=sflag, size = 0x4, scoped, tag = 'scoped memory for fqfpn_forward.1']
    #allocation10 [shape = 'u8[16384]{0}', space=vmem, size = 0x4000, scoped, tag = 'input window, operand 16, single buffered']
    #allocation11 [shape = 'u8[32768]{0}', space=vmem, size = 0x8000, scoped, tag = 'input window, operand 17, single buffered']
    #allocation12 [shape = 's32[1]{0}', space=sflag, size = 0x4, scoped, tag = 'scoped memory for fqfpn_forward.1']
    #allocation13 [shape = 'u8[512]{0}', space=vmem, size = 0x400, scoped, tag = 'input window, operand 18, single buffered']
    #allocation14 [shape = 'u8[512]{0}', space=vmem, size = 0x400, scoped, tag = 'input window, operand 20, single buffered']
    #allocation15 [shape = 's32[1]{0}', space=sflag, size = 0x4, scoped, tag = 'scoped memory for fqfpn_forward.1']
    #allocation16 [shape = 'u8[512]{0}', space=vmem, size = 0x400, scoped, tag = 'input window, operand 22, single buffered']
    #allocation17 [shape = 'u8[512]{0}', space=vmem, size = 0x400, scoped, tag = 'input window, operand 24, single buffered']
    #allocation18 [shape = 's32[1]{0}', space=sflag, size = 0x4, scoped, tag = 'scoped memory for fqfpn_forward.1']
    #allocation19 [shape = 'u8[16384]{0}', space=vmem, size = 0x4000, scoped, tag = 'input window, operand 25, single buffered']
    #allocation20 [shape = 'u8[32768]{0}', space=vmem, size = 0x8000, scoped, tag = 'input window, operand 26, single buffered']
    #allocation21 [shape = 's32[1]{0}', space=sflag, size = 0x4, scoped, tag = 'scoped memory for fqfpn_forward.1']
    #allocation22 [shape = 'u8[32768]{0}', space=vmem, size = 0x8000, scoped, tag = 'input window, operand 27, single buffered']
    #allocation23 [shape = 'u8[32768]{0}', space=vmem, size = 0x8000, scoped, tag = 'input window, operand 28, single buffered']
    #allocation24 [shape = 's32[1]{0}', space=sflag, size = 0x4, scoped, tag = 'scoped memory for fqfpn_forward.1']
    #allocation25 [shape = 'u8[512]{0}', space=vmem, size = 0x400, scoped, tag = 'input window, operand 29, single buffered']
    #allocation26 [shape = 'u8[4096]{0}', space=vmem, size = 0x1000, scoped, tag = 'input window, operand 31, single buffered']
    #allocation27 [shape = 's32[1]{0}', space=sflag, size = 0x4, scoped, tag = 'scoped memory for fqfpn_forward.1']
    #allocation28 [shape = 'u8[512]{0}', space=vmem, size = 0x400, scoped, tag = 'input window, operand 33, single buffered']
    #allocation29 [shape = 'u8[512]{0}', space=vmem, size = 0x400, scoped, tag = 'input window, operand 35, single buffered']
    #allocation30 [shape = 's32[1]{0}', space=sflag, size = 0x4, scoped, tag = 'scoped memory for fqfpn_forward.1']
    %81 = vsyncpa [#allocation4], 0
    %82 = vsyncpa [#allocation6], 0
    %83 = vsyncpa [#allocation9], 0
    %84 = vsyncpa [#allocation12], 0
    %85 = vsyncpa [#allocation15], 0
    %86 = vsyncpa [#allocation18], 0
    %87 = vsyncpa [#allocation21], 0
    %88 = vsyncpa [#allocation24], 0
    %89 = vsyncpa [#allocation27], 0
    %90 = vsyncpa [#allocation30], 0
    loop: start=0, step=1, limit=4
    $region2: #{fqfpn_forward.1} parent=1 // loop_pre_header
      _
    $region3: #{fqfpn_forward.1} parent=1 // loop_header
      %s92 = sphi 0, %s96
      %p93 = scmp.ge.s32.totalorder %s92, 4
      %s102 = sphi 0, %s104
      %s105 = sphi 0, %s102
      %s106 = sphi 0, %s105
      %s122 = sphi 0, %s106
      %s128 = sphi 0, %s130
      %s131 = sphi 0, %s128
      %s132 = sphi 0, %s131
      %s148 = sphi 0, %s132
      %s154 = sphi 0, %s156
      %s157 = sphi 0, %s154
      %s158 = sphi 0, %s157
      %s174 = sphi 0, %s158
      %s178 = sphi 0, %s178
      %s180 = sphi 0, %s178
      %s181 = sphi 0, %s180
      %s195 = sphi 0, %s181
      %s199 = sphi 0, %s199
      %s201 = sphi 0, %s199
      %s202 = sphi 0, %s201
      %s216 = sphi 0, %s202
      %s220 = sphi 0, %s220
      %s222 = sphi 0, %s220
      %s223 = sphi 0, %s222
      %s237 = sphi 0, %s223
      %s241 = sphi 0, %s241
      %s243 = sphi 0, %s241
      %s244 = sphi 0, %s243
      %s258 = sphi 0, %s244
      %s262 = sphi 0, %s262
      %s264 = sphi 0, %s262
      %s265 = sphi 0, %s264
      %s279 = sphi 0, %s265
      %s283 = sphi 0, %s283
      %s285 = sphi 0, %s283
      %s286 = sphi 0, %s285
      %s300 = sphi 0, %s286
      %s304 = sphi 0, %s304
      %s306 = sphi 0, %s304
      %s307 = sphi 0, %s306
      %s321 = sphi 0, %s307
      %s325 = sphi 0, %s325
      %s327 = sphi 0, %s325
      %s328 = sphi 0, %s327
      %s342 = sphi 0, %s328
      %s346 = sphi 0, %s346
      %s348 = sphi 0, %s346
      %s349 = sphi 0, %s348
      %s363 = sphi 0, %s349
      %s367 = sphi 0, %s367
      %s369 = sphi 0, %s367
      %s370 = sphi 0, %s369
      %s384 = sphi 0, %s370
      %s388 = sphi 0, %s388
      %s390 = sphi 0, %s388
      %s391 = sphi 0, %s390
      %s405 = sphi 0, %s391
      %s409 = sphi 0, %s409
      %s411 = sphi 0, %s409
      %s412 = sphi 0, %s411
      %s426 = sphi 0, %s412
      %s430 = sphi 0, %s430
      %s432 = sphi 0, %s430
      %s433 = sphi 0, %s432
      %s447 = sphi 0, %s433
      %s451 = sphi 0, %s451
      %s453 = sphi 0, %s451
      %s454 = sphi 0, %s453
      %s468 = sphi 0, %s454
      %s472 = sphi 0, %s472
      %s474 = sphi 0, %s472
      %s475 = sphi 0, %s474
      %s489 = sphi 0, %s475
      %s493 = sphi 0, %s493
      %s495 = sphi 0, %s493
      %s496 = sphi 0, %s495
      %s510 = sphi 0, %s496
      %s514 = sphi 0, %s514
      %s516 = sphi 0, %s514
      %s517 = sphi 0, %s516
      %s531 = sphi 0, %s517
      %s535 = sphi 0, %s535
      %s537 = sphi 0, %s535
      %s538 = sphi 0, %s537
      %s552 = sphi 0, %s538
      %s556 = sphi 0, %s556
      %s558 = sphi 0, %s556
      %s559 = sphi 0, %s558
      %s573 = sphi 0, %s559
      %s577 = sphi 0, %s577
      %s579 = sphi 0, %s577
      %s580 = sphi 0, %s579
      %s594 = sphi 0, %s580
      %s598 = sphi 0, %s598
      %s600 = sphi 0, %s598
      %s601 = sphi 0, %s600
      %s615 = sphi 0, %s601
      %s619 = sphi 0, %s619
      %s621 = sphi 0, %s619
      %s622 = sphi 0, %s621
      %s636 = sphi 0, %s622
      %s640 = sphi 0, %s640
      %s642 = sphi 0, %s640
      %s643 = sphi 0, %s642
      %s657 = sphi 0, %s643
      %s661 = sphi 0, %s661
      %s663 = sphi 0, %s661
      %s664 = sphi 0, %s663
      %s678 = sphi 0, %s664
      %s682 = sphi 0, %s682
      %s684 = sphi 0, %s682
      %s685 = sphi 0, %s684
      %s699 = sphi 0, %s685
      %s703 = sphi 0, %s703
      %s705 = sphi 0, %s703
      %s706 = sphi 0, %s705
      %s720 = sphi 0, %s706
      %s724 = sphi 0, %s724
      %s726 = sphi 0, %s724
      %s727 = sphi 0, %s726
      %s741 = sphi 0, %s727
      %s745 = sphi 0, %s745
      %s747 = sphi 0, %s745
      %s748 = sphi 0, %s747
      %s762 = sphi 0, %s748
      %s766 = sphi 0, %s766
      %s768 = sphi 0, %s766
      %s769 = sphi 0, %s768
      %s783 = sphi 0, %s769
      %s787 = sphi 0, %s787
      %s789 = sphi 0, %s787
      %s790 = sphi 0, %s789
      %s804 = sphi 0, %s790
      %s808 = sphi 0, %s808
      %s810 = sphi 0, %s808
      %s811 = sphi 0, %s810
      %s825 = sphi 0, %s811
      %s829 = sphi 0, %s829
      %s831 = sphi 0, %s829
      %s832 = sphi 0, %s831
      %s846 = sphi 0, %s832
      %s850 = sphi 0, %s850
      %s852 = sphi 0, %s850
      %s853 = sphi 0, %s852
      %s867 = sphi 0, %s853
      %s873 = sphi 0, %s875
      %s876 = sphi 0, %s873
      %s877 = sphi 0, %s876
      %s893 = sphi 0, %s877
      %s899 = sphi 0, %s901
      %s902 = sphi 0, %s899
      %s903 = sphi 0, %s902
      %s919 = sphi 0, %s903
    $region4: #{fqfpn_forward.1} parent=1 // loop_header_branch
      %95 = sbr.rel (%p93) target = $region8
    $region5: #{fqfpn_forward.1} parent=1 // loop_body
      %s97 = ssub.s32 %s92, 1
      %s98 = ssub.s32 %s92, 2
      %s99 = sadd.s32 %s92, 1
      %s100 = ssub.s32 %s92, %s99
      %p101 = scmp.eq.s32.totalorder %s100, 0
      %s103 = sadd.s32 %s102, 1
      %s104 = scalar_select %p101, %s102, %s103
      %p107 = pneg %p101
      %p108 = scmp.eq.s32.totalorder %s92, 1
      %p109 = por %p107, %p108
      %p110 = scmp.ne.s32.totalorder %s102, %s105
      %p111 = scmp.eq.s32.totalorder %s92, 0
      %p112 = por %p110, %p111
      %p113 = scmp.ne.s32.totalorder %s102, %s105
      %p114 = scmp.eq.s32.totalorder %s97, 1
      %p115 = por %p113, %p114
      %p116 = scmp.ne.s32.totalorder %s105, %s106
      %p117 = scmp.eq.s32.totalorder %s97, 0
      %p118 = por %p116, %p117
      %p119 = scmp.ne.s32.totalorder %s105, %s106
      %p120 = scmp.eq.s32.totalorder %s98, 1
      %p121 = por %p119, %p120
      %p123 = scmp.ne.s32.totalorder %s106, %s122
      %p124 = scmp.eq.s32.totalorder %s98, 0
      %p125 = por %p123, %p124
      %s126 = ssub.s32 %s92, %s99
      %p127 = scmp.eq.s32.totalorder %s126, 0
      %s129 = sadd.s32 %s128, 1
      %s130 = scalar_select %p127, %s128, %s129
      %p133 = pneg %p127
      %p134 = scmp.eq.s32.totalorder %s92, 1
      %p135 = por %p133, %p134
      %p136 = scmp.ne.s32.totalorder %s128, %s131
      %p137 = scmp.eq.s32.totalorder %s92, 0
      %p138 = por %p136, %p137
      %p139 = scmp.ne.s32.totalorder %s128, %s131
      %p140 = scmp.eq.s32.totalorder %s97, 1
      %p141 = por %p139, %p140
      %p142 = scmp.ne.s32.totalorder %s131, %s132
      %p143 = scmp.eq.s32.totalorder %s97, 0
      %p144 = por %p142, %p143
      %p145 = scmp.ne.s32.totalorder %s131, %s132
      %p146 = scmp.eq.s32.totalorder %s98, 1
      %p147 = por %p145, %p146
      %p149 = scmp.ne.s32.totalorder %s132, %s148
      %p150 = scmp.eq.s32.totalorder %s98, 0
      %p151 = por %p149, %p150
      %s152 = ssub.s32 %s92, %s99
      %p153 = scmp.eq.s32.totalorder %s152, 0
      %s155 = sadd.s32 %s154, 1
      %s156 = scalar_select %p153, %s154, %s155
      %p159 = pneg %p153
      %p160 = scmp.eq.s32.totalorder %s92, 1
      %p161 = por %p159, %p160
      %p162 = scmp.ne.s32.totalorder %s154, %s157
      %p163 = scmp.eq.s32.totalorder %s92, 0
      %p164 = por %p162, %p163
      %p165 = scmp.ne.s32.totalorder %s154, %s157
      %p166 = scmp.eq.s32.totalorder %s97, 1
      %p167 = por %p165, %p166
      %p168 = scmp.ne.s32.totalorder %s157, %s158
      %p169 = scmp.eq.s32.totalorder %s97, 0
      %p170 = por %p168, %p169
      %p171 = scmp.ne.s32.totalorder %s157, %s158
      %p172 = scmp.eq.s32.totalorder %s98, 1
      %p173 = por %p171, %p172
      %p175 = scmp.ne.s32.totalorder %s158, %s174
      %p176 = scmp.eq.s32.totalorder %s98, 0
      %p177 = por %p175, %p176
      %s179 = sadd.s32 %s178, 1
      %p182 = scmp.eq.s32.totalorder %s92, 1
      %p183 = scmp.ne.s32.totalorder %s178, %s180
      %p184 = scmp.eq.s32.totalorder %s92, 0
      %p185 = por %p183, %p184
      %p186 = scmp.ne.s32.totalorder %s178, %s180
      %p187 = scmp.eq.s32.totalorder %s97, 1
      %p188 = por %p186, %p187
      %p189 = scmp.ne.s32.totalorder %s180, %s181
      %p190 = scmp.eq.s32.totalorder %s97, 0
      %p191 = por %p189, %p190
      %p192 = scmp.ne.s32.totalorder %s180, %s181
      %p193 = scmp.eq.s32.totalorder %s98, 1
      %p194 = por %p192, %p193
      %p196 = scmp.ne.s32.totalorder %s181, %s195
      %p197 = scmp.eq.s32.totalorder %s98, 0
      %p198 = por %p196, %p197
      %s200 = sadd.s32 %s199, 1
      %p203 = scmp.eq.s32.totalorder %s92, 1
      %p204 = scmp.ne.s32.totalorder %s199, %s201
      %p205 = scmp.eq.s32.totalorder %s92, 0
      %p206 = por %p204, %p205
      %p207 = scmp.ne.s32.totalorder %s199, %s201
      %p208 = scmp.eq.s32.totalorder %s97, 1
      %p209 = por %p207, %p208
      %p210 = scmp.ne.s32.totalorder %s201, %s202
      %p211 = scmp.eq.s32.totalorder %s97, 0
      %p212 = por %p210, %p211
      %p213 = scmp.ne.s32.totalorder %s201, %s202
      %p214 = scmp.eq.s32.totalorder %s98, 1
      %p215 = por %p213, %p214
      %p217 = scmp.ne.s32.totalorder %s202, %s216
      %p218 = scmp.eq.s32.totalorder %s98, 0
      %p219 = por %p217, %p218
      %s221 = sadd.s32 %s220, 1
      %p224 = scmp.eq.s32.totalorder %s92, 1
      %p225 = scmp.ne.s32.totalorder %s220, %s222
      %p226 = scmp.eq.s32.totalorder %s92, 0
      %p227 = por %p225, %p226
      %p228 = scmp.ne.s32.totalorder %s220, %s222
      %p229 = scmp.eq.s32.totalorder %s97, 1
      %p230 = por %p228, %p229
      %p231 = scmp.ne.s32.totalorder %s222, %s223
      %p232 = scmp.eq.s32.totalorder %s97, 0
      %p233 = por %p231, %p232
      %p234 = scmp.ne.s32.totalorder %s222, %s223
      %p235 = scmp.eq.s32.totalorder %s98, 1
      %p236 = por %p234, %p235
      %p238 = scmp.ne.s32.totalorder %s223, %s237
      %p239 = scmp.eq.s32.totalorder %s98, 0
      %p240 = por %p238, %p239
      %s242 = sadd.s32 %s241, 1
      %p245 = scmp.eq.s32.totalorder %s92, 1
      %p246 = scmp.ne.s32.totalorder %s241, %s243
      %p247 = scmp.eq.s32.totalorder %s92, 0
      %p248 = por %p246, %p247
      %p249 = scmp.ne.s32.totalorder %s241, %s243
      %p250 = scmp.eq.s32.totalorder %s97, 1
      %p251 = por %p249, %p250
      %p252 = scmp.ne.s32.totalorder %s243, %s244
      %p253 = scmp.eq.s32.totalorder %s97, 0
      %p254 = por %p252, %p253
      %p255 = scmp.ne.s32.totalorder %s243, %s244
      %p256 = scmp.eq.s32.totalorder %s98, 1
      %p257 = por %p255, %p256
      %p259 = scmp.ne.s32.totalorder %s244, %s258
      %p260 = scmp.eq.s32.totalorder %s98, 0
      %p261 = por %p259, %p260
      %s263 = sadd.s32 %s262, 1
      %p266 = scmp.eq.s32.totalorder %s92, 1
      %p267 = scmp.ne.s32.totalorder %s262, %s264
      %p268 = scmp.eq.s32.totalorder %s92, 0
      %p269 = por %p267, %p268
      %p270 = scmp.ne.s32.totalorder %s262, %s264
      %p271 = scmp.eq.s32.totalorder %s97, 1
      %p272 = por %p270, %p271
      %p273 = scmp.ne.s32.totalorder %s264, %s265
      %p274 = scmp.eq.s32.totalorder %s97, 0
      %p275 = por %p273, %p274
      %p276 = scmp.ne.s32.totalorder %s264, %s265
      %p277 = scmp.eq.s32.totalorder %s98, 1
      %p278 = por %p276, %p277
      %p280 = scmp.ne.s32.totalorder %s265, %s279
      %p281 = scmp.eq.s32.totalorder %s98, 0
      %p282 = por %p280, %p281
      %s284 = sadd.s32 %s283, 1
      %p287 = scmp.eq.s32.totalorder %s92, 1
      %p288 = scmp.ne.s32.totalorder %s283, %s285
      %p289 = scmp.eq.s32.totalorder %s92, 0
      %p290 = por %p288, %p289
      %p291 = scmp.ne.s32.totalorder %s283, %s285
      %p292 = scmp.eq.s32.totalorder %s97, 1
      %p293 = por %p291, %p292
      %p294 = scmp.ne.s32.totalorder %s285, %s286
      %p295 = scmp.eq.s32.totalorder %s97, 0
      %p296 = por %p294, %p295
      %p297 = scmp.ne.s32.totalorder %s285, %s286
      %p298 = scmp.eq.s32.totalorder %s98, 1
      %p299 = por %p297, %p298
      %p301 = scmp.ne.s32.totalorder %s286, %s300
      %p302 = scmp.eq.s32.totalorder %s98, 0
      %p303 = por %p301, %p302
      %s305 = sadd.s32 %s304, 1
      %p308 = scmp.eq.s32.totalorder %s92, 1
      %p309 = scmp.ne.s32.totalorder %s304, %s306
      %p310 = scmp.eq.s32.totalorder %s92, 0
      %p311 = por %p309, %p310
      %p312 = scmp.ne.s32.totalorder %s304, %s306
      %p313 = scmp.eq.s32.totalorder %s97, 1
      %p314 = por %p312, %p313
      %p315 = scmp.ne.s32.totalorder %s306, %s307
      %p316 = scmp.eq.s32.totalorder %s97, 0
      %p317 = por %p315, %p316
      %p318 = scmp.ne.s32.totalorder %s306, %s307
      %p319 = scmp.eq.s32.totalorder %s98, 1
      %p320 = por %p318, %p319
      %p322 = scmp.ne.s32.totalorder %s307, %s321
      %p323 = scmp.eq.s32.totalorder %s98, 0
      %p324 = por %p322, %p323
      %s326 = sadd.s32 %s325, 1
      %p329 = scmp.eq.s32.totalorder %s92, 1
      %p330 = scmp.ne.s32.totalorder %s325, %s327
      %p331 = scmp.eq.s32.totalorder %s92, 0
      %p332 = por %p330, %p331
      %p333 = scmp.ne.s32.totalorder %s325, %s327
      %p334 = scmp.eq.s32.totalorder %s97, 1
      %p335 = por %p333, %p334
      %p336 = scmp.ne.s32.totalorder %s327, %s328
      %p337 = scmp.eq.s32.totalorder %s97, 0
      %p338 = por %p336, %p337
      %p339 = scmp.ne.s32.totalorder %s327, %s328
      %p340 = scmp.eq.s32.totalorder %s98, 1
      %p341 = por %p339, %p340
      %p343 = scmp.ne.s32.totalorder %s328, %s342
      %p344 = scmp.eq.s32.totalorder %s98, 0
      %p345 = por %p343, %p344
      %s347 = sadd.s32 %s346, 1
      %p350 = scmp.eq.s32.totalorder %s92, 1
      %p351 = scmp.ne.s32.totalorder %s346, %s348
      %p352 = scmp.eq.s32.totalorder %s92, 0
      %p353 = por %p351, %p352
      %p354 = scmp.ne.s32.totalorder %s346, %s348
      %p355 = scmp.eq.s32.totalorder %s97, 1
      %p356 = por %p354, %p355
      %p357 = scmp.ne.s32.totalorder %s348, %s349
      %p358 = scmp.eq.s32.totalorder %s97, 0
      %p359 = por %p357, %p358
      %p360 = scmp.ne.s32.totalorder %s348, %s349
      %p361 = scmp.eq.s32.totalorder %s98, 1
      %p362 = por %p360, %p361
      %p364 = scmp.ne.s32.totalorder %s349, %s363
      %p365 = scmp.eq.s32.totalorder %s98, 0
      %p366 = por %p364, %p365
      %s368 = sadd.s32 %s367, 1
      %p371 = scmp.eq.s32.totalorder %s92, 1
      %p372 = scmp.ne.s32.totalorder %s367, %s369
      %p373 = scmp.eq.s32.totalorder %s92, 0
      %p374 = por %p372, %p373
      %p375 = scmp.ne.s32.totalorder %s367, %s369
      %p376 = scmp.eq.s32.totalorder %s97, 1
      %p377 = por %p375, %p376
      %p378 = scmp.ne.s32.totalorder %s369, %s370
      %p379 = scmp.eq.s32.totalorder %s97, 0
      %p380 = por %p378, %p379
      %p381 = scmp.ne.s32.totalorder %s369, %s370
      %p382 = scmp.eq.s32.totalorder %s98, 1
      %p383 = por %p381, %p382
      %p385 = scmp.ne.s32.totalorder %s370, %s384
      %p386 = scmp.eq.s32.totalorder %s98, 0
      %p387 = por %p385, %p386
      %s389 = sadd.s32 %s388, 1
      %p392 = scmp.eq.s32.totalorder %s92, 1
      %p393 = scmp.ne.s32.totalorder %s388, %s390
      %p394 = scmp.eq.s32.totalorder %s92, 0
      %p395 = por %p393, %p394
      %p396 = scmp.ne.s32.totalorder %s388, %s390
      %p397 = scmp.eq.s32.totalorder %s97, 1
      %p398 = por %p396, %p397
      %p399 = scmp.ne.s32.totalorder %s390, %s391
      %p400 = scmp.eq.s32.totalorder %s97, 0
      %p401 = por %p399, %p400
      %p402 = scmp.ne.s32.totalorder %s390, %s391
      %p403 = scmp.eq.s32.totalorder %s98, 1
      %p404 = por %p402, %p403
      %p406 = scmp.ne.s32.totalorder %s391, %s405
      %p407 = scmp.eq.s32.totalorder %s98, 0
      %p408 = por %p406, %p407
      %s410 = sadd.s32 %s409, 1
      %p413 = scmp.eq.s32.totalorder %s92, 1
      %p414 = scmp.ne.s32.totalorder %s409, %s411
      %p415 = scmp.eq.s32.totalorder %s92, 0
      %p416 = por %p414, %p415
      %p417 = scmp.ne.s32.totalorder %s409, %s411
      %p418 = scmp.eq.s32.totalorder %s97, 1
      %p419 = por %p417, %p418
      %p420 = scmp.ne.s32.totalorder %s411, %s412
      %p421 = scmp.eq.s32.totalorder %s97, 0
      %p422 = por %p420, %p421
      %p423 = scmp.ne.s32.totalorder %s411, %s412
      %p424 = scmp.eq.s32.totalorder %s98, 1
      %p425 = por %p423, %p424
      %p427 = scmp.ne.s32.totalorder %s412, %s426
      %p428 = scmp.eq.s32.totalorder %s98, 0
      %p429 = por %p427, %p428
      %s431 = sadd.s32 %s430, 1
      %p434 = scmp.eq.s32.totalorder %s92, 1
      %p435 = scmp.ne.s32.totalorder %s430, %s432
      %p436 = scmp.eq.s32.totalorder %s92, 0
      %p437 = por %p435, %p436
      %p438 = scmp.ne.s32.totalorder %s430, %s432
      %p439 = scmp.eq.s32.totalorder %s97, 1
      %p440 = por %p438, %p439
      %p441 = scmp.ne.s32.totalorder %s432, %s433
      %p442 = scmp.eq.s32.totalorder %s97, 0
      %p443 = por %p441, %p442
      %p444 = scmp.ne.s32.totalorder %s432, %s433
      %p445 = scmp.eq.s32.totalorder %s98, 1
      %p446 = por %p444, %p445
      %p448 = scmp.ne.s32.totalorder %s433, %s447
      %p449 = scmp.eq.s32.totalorder %s98, 0
      %p450 = por %p448, %p449
      %s452 = sadd.s32 %s451, 1
      %p455 = scmp.eq.s32.totalorder %s92, 1
      %p456 = scmp.ne.s32.totalorder %s451, %s453
      %p457 = scmp.eq.s32.totalorder %s92, 0
      %p458 = por %p456, %p457
      %p459 = scmp.ne.s32.totalorder %s451, %s453
      %p460 = scmp.eq.s32.totalorder %s97, 1
      %p461 = por %p459, %p460
      %p462 = scmp.ne.s32.totalorder %s453, %s454
      %p463 = scmp.eq.s32.totalorder %s97, 0
      %p464 = por %p462, %p463
      %p465 = scmp.ne.s32.totalorder %s453, %s454
      %p466 = scmp.eq.s32.totalorder %s98, 1
      %p467 = por %p465, %p466
      %p469 = scmp.ne.s32.totalorder %s454, %s468
      %p470 = scmp.eq.s32.totalorder %s98, 0
      %p471 = por %p469, %p470
      %s473 = sadd.s32 %s472, 1
      %p476 = scmp.eq.s32.totalorder %s92, 1
      %p477 = scmp.ne.s32.totalorder %s472, %s474
      %p478 = scmp.eq.s32.totalorder %s92, 0
      %p479 = por %p477, %p478
      %p480 = scmp.ne.s32.totalorder %s472, %s474
      %p481 = scmp.eq.s32.totalorder %s97, 1
      %p482 = por %p480, %p481
      %p483 = scmp.ne.s32.totalorder %s474, %s475
      %p484 = scmp.eq.s32.totalorder %s97, 0
      %p485 = por %p483, %p484
      %p486 = scmp.ne.s32.totalorder %s474, %s475
      %p487 = scmp.eq.s32.totalorder %s98, 1
      %p488 = por %p486, %p487
      %p490 = scmp.ne.s32.totalorder %s475, %s489
      %p491 = scmp.eq.s32.totalorder %s98, 0
      %p492 = por %p490, %p491
      %s494 = sadd.s32 %s493, 1
      %p497 = scmp.eq.s32.totalorder %s92, 1
      %p498 = scmp.ne.s32.totalorder %s493, %s495
      %p499 = scmp.eq.s32.totalorder %s92, 0
      %p500 = por %p498, %p499
      %p501 = scmp.ne.s32.totalorder %s493, %s495
      %p502 = scmp.eq.s32.totalorder %s97, 1
      %p503 = por %p501, %p502
      %p504 = scmp.ne.s32.totalorder %s495, %s496
      %p505 = scmp.eq.s32.totalorder %s97, 0
      %p506 = por %p504, %p505
      %p507 = scmp.ne.s32.totalorder %s495, %s496
      %p508 = scmp.eq.s32.totalorder %s98, 1
      %p509 = por %p507, %p508
      %p511 = scmp.ne.s32.totalorder %s496, %s510
      %p512 = scmp.eq.s32.totalorder %s98, 0
      %p513 = por %p511, %p512
      %s515 = sadd.s32 %s514, 1
      %p518 = scmp.eq.s32.totalorder %s92, 1
      %p519 = scmp.ne.s32.totalorder %s514, %s516
      %p520 = scmp.eq.s32.totalorder %s92, 0
      %p521 = por %p519, %p520
      %p522 = scmp.ne.s32.totalorder %s514, %s516
      %p523 = scmp.eq.s32.totalorder %s97, 1
      %p524 = por %p522, %p523
      %p525 = scmp.ne.s32.totalorder %s516, %s517
      %p526 = scmp.eq.s32.totalorder %s97, 0
      %p527 = por %p525, %p526
      %p528 = scmp.ne.s32.totalorder %s516, %s517
      %p529 = scmp.eq.s32.totalorder %s98, 1
      %p530 = por %p528, %p529
      %p532 = scmp.ne.s32.totalorder %s517, %s531
      %p533 = scmp.eq.s32.totalorder %s98, 0
      %p534 = por %p532, %p533
      %s536 = sadd.s32 %s535, 1
      %p539 = scmp.eq.s32.totalorder %s92, 1
      %p540 = scmp.ne.s32.totalorder %s535, %s537
      %p541 = scmp.eq.s32.totalorder %s92, 0
      %p542 = por %p540, %p541
      %p543 = scmp.ne.s32.totalorder %s535, %s537
      %p544 = scmp.eq.s32.totalorder %s97, 1
      %p545 = por %p543, %p544
      %p546 = scmp.ne.s32.totalorder %s537, %s538
      %p547 = scmp.eq.s32.totalorder %s97, 0
      %p548 = por %p546, %p547
      %p549 = scmp.ne.s32.totalorder %s537, %s538
      %p550 = scmp.eq.s32.totalorder %s98, 1
      %p551 = por %p549, %p550
      %p553 = scmp.ne.s32.totalorder %s538, %s552
      %p554 = scmp.eq.s32.totalorder %s98, 0
      %p555 = por %p553, %p554
      %s557 = sadd.s32 %s556, 1
      %p560 = scmp.eq.s32.totalorder %s92, 1
      %p561 = scmp.ne.s32.totalorder %s556, %s558
      %p562 = scmp.eq.s32.totalorder %s92, 0
      %p563 = por %p561, %p562
      %p564 = scmp.ne.s32.totalorder %s556, %s558
      %p565 = scmp.eq.s32.totalorder %s97, 1
      %p566 = por %p564, %p565
      %p567 = scmp.ne.s32.totalorder %s558, %s559
      %p568 = scmp.eq.s32.totalorder %s97, 0
      %p569 = por %p567, %p568
      %p570 = scmp.ne.s32.totalorder %s558, %s559
      %p571 = scmp.eq.s32.totalorder %s98, 1
      %p572 = por %p570, %p571
      %p574 = scmp.ne.s32.totalorder %s559, %s573
      %p575 = scmp.eq.s32.totalorder %s98, 0
      %p576 = por %p574, %p575
      %s578 = sadd.s32 %s577, 1
      %p581 = scmp.eq.s32.totalorder %s92, 1
      %p582 = scmp.ne.s32.totalorder %s577, %s579
      %p583 = scmp.eq.s32.totalorder %s92, 0
      %p584 = por %p582, %p583
      %p585 = scmp.ne.s32.totalorder %s577, %s579
      %p586 = scmp.eq.s32.totalorder %s97, 1
      %p587 = por %p585, %p586
      %p588 = scmp.ne.s32.totalorder %s579, %s580
      %p589 = scmp.eq.s32.totalorder %s97, 0
      %p590 = por %p588, %p589
      %p591 = scmp.ne.s32.totalorder %s579, %s580
      %p592 = scmp.eq.s32.totalorder %s98, 1
      %p593 = por %p591, %p592
      %p595 = scmp.ne.s32.totalorder %s580, %s594
      %p596 = scmp.eq.s32.totalorder %s98, 0
      %p597 = por %p595, %p596
      %s599 = sadd.s32 %s598, 1
      %p602 = scmp.eq.s32.totalorder %s92, 1
      %p603 = scmp.ne.s32.totalorder %s598, %s600
      %p604 = scmp.eq.s32.totalorder %s92, 0
      %p605 = por %p603, %p604
      %p606 = scmp.ne.s32.totalorder %s598, %s600
      %p607 = scmp.eq.s32.totalorder %s97, 1
      %p608 = por %p606, %p607
      %p609 = scmp.ne.s32.totalorder %s600, %s601
      %p610 = scmp.eq.s32.totalorder %s97, 0
      %p611 = por %p609, %p610
      %p612 = scmp.ne.s32.totalorder %s600, %s601
      %p613 = scmp.eq.s32.totalorder %s98, 1
      %p614 = por %p612, %p613
      %p616 = scmp.ne.s32.totalorder %s601, %s615
      %p617 = scmp.eq.s32.totalorder %s98, 0
      %p618 = por %p616, %p617
      %s620 = sadd.s32 %s619, 1
      %p623 = scmp.eq.s32.totalorder %s92, 1
      %p624 = scmp.ne.s32.totalorder %s619, %s621
      %p625 = scmp.eq.s32.totalorder %s92, 0
      %p626 = por %p624, %p625
      %p627 = scmp.ne.s32.totalorder %s619, %s621
      %p628 = scmp.eq.s32.totalorder %s97, 1
      %p629 = por %p627, %p628
      %p630 = scmp.ne.s32.totalorder %s621, %s622
      %p631 = scmp.eq.s32.totalorder %s97, 0
      %p632 = por %p630, %p631
      %p633 = scmp.ne.s32.totalorder %s621, %s622
      %p634 = scmp.eq.s32.totalorder %s98, 1
      %p635 = por %p633, %p634
      %p637 = scmp.ne.s32.totalorder %s622, %s636
      %p638 = scmp.eq.s32.totalorder %s98, 0
      %p639 = por %p637, %p638
      %s641 = sadd.s32 %s640, 1
      %p644 = scmp.eq.s32.totalorder %s92, 1
      %p645 = scmp.ne.s32.totalorder %s640, %s642
      %p646 = scmp.eq.s32.totalorder %s92, 0
      %p647 = por %p645, %p646
      %p648 = scmp.ne.s32.totalorder %s640, %s642
      %p649 = scmp.eq.s32.totalorder %s97, 1
      %p650 = por %p648, %p649
      %p651 = scmp.ne.s32.totalorder %s642, %s643
      %p652 = scmp.eq.s32.totalorder %s97, 0
      %p653 = por %p651, %p652
      %p654 = scmp.ne.s32.totalorder %s642, %s643
      %p655 = scmp.eq.s32.totalorder %s98, 1
      %p656 = por %p654, %p655
      %p658 = scmp.ne.s32.totalorder %s643, %s657
      %p659 = scmp.eq.s32.totalorder %s98, 0
      %p660 = por %p658, %p659
      %s662 = sadd.s32 %s661, 1
      %p665 = scmp.eq.s32.totalorder %s92, 1
      %p666 = scmp.ne.s32.totalorder %s661, %s663
      %p667 = scmp.eq.s32.totalorder %s92, 0
      %p668 = por %p666, %p667
      %p669 = scmp.ne.s32.totalorder %s661, %s663
      %p670 = scmp.eq.s32.totalorder %s97, 1
      %p671 = por %p669, %p670
      %p672 = scmp.ne.s32.totalorder %s663, %s664
      %p673 = scmp.eq.s32.totalorder %s97, 0
      %p674 = por %p672, %p673
      %p675 = scmp.ne.s32.totalorder %s663, %s664
      %p676 = scmp.eq.s32.totalorder %s98, 1
      %p677 = por %p675, %p676
      %p679 = scmp.ne.s32.totalorder %s664, %s678
      %p680 = scmp.eq.s32.totalorder %s98, 0
      %p681 = por %p679, %p680
      %s683 = sadd.s32 %s682, 1
      %p686 = scmp.eq.s32.totalorder %s92, 1
      %p687 = scmp.ne.s32.totalorder %s682, %s684
      %p688 = scmp.eq.s32.totalorder %s92, 0
      %p689 = por %p687, %p688
      %p690 = scmp.ne.s32.totalorder %s682, %s684
      %p691 = scmp.eq.s32.totalorder %s97, 1
      %p692 = por %p690, %p691
      %p693 = scmp.ne.s32.totalorder %s684, %s685
      %p694 = scmp.eq.s32.totalorder %s97, 0
      %p695 = por %p693, %p694
      %p696 = scmp.ne.s32.totalorder %s684, %s685
      %p697 = scmp.eq.s32.totalorder %s98, 1
      %p698 = por %p696, %p697
      %p700 = scmp.ne.s32.totalorder %s685, %s699
      %p701 = scmp.eq.s32.totalorder %s98, 0
      %p702 = por %p700, %p701
      %s704 = sadd.s32 %s703, 1
      %p707 = scmp.eq.s32.totalorder %s92, 1
      %p708 = scmp.ne.s32.totalorder %s703, %s705
      %p709 = scmp.eq.s32.totalorder %s92, 0
      %p710 = por %p708, %p709
      %p711 = scmp.ne.s32.totalorder %s703, %s705
      %p712 = scmp.eq.s32.totalorder %s97, 1
      %p713 = por %p711, %p712
      %p714 = scmp.ne.s32.totalorder %s705, %s706
      %p715 = scmp.eq.s32.totalorder %s97, 0
      %p716 = por %p714, %p715
      %p717 = scmp.ne.s32.totalorder %s705, %s706
      %p718 = scmp.eq.s32.totalorder %s98, 1
      %p719 = por %p717, %p718
      %p721 = scmp.ne.s32.totalorder %s706, %s720
      %p722 = scmp.eq.s32.totalorder %s98, 0
      %p723 = por %p721, %p722
      %s725 = sadd.s32 %s724, 1
      %p728 = scmp.eq.s32.totalorder %s92, 1
      %p729 = scmp.ne.s32.totalorder %s724, %s726
      %p730 = scmp.eq.s32.totalorder %s92, 0
      %p731 = por %p729, %p730
      %p732 = scmp.ne.s32.totalorder %s724, %s726
      %p733 = scmp.eq.s32.totalorder %s97, 1
      %p734 = por %p732, %p733
      %p735 = scmp.ne.s32.totalorder %s726, %s727
      %p736 = scmp.eq.s32.totalorder %s97, 0
      %p737 = por %p735, %p736
      %p738 = scmp.ne.s32.totalorder %s726, %s727
      %p739 = scmp.eq.s32.totalorder %s98, 1
      %p740 = por %p738, %p739
      %p742 = scmp.ne.s32.totalorder %s727, %s741
      %p743 = scmp.eq.s32.totalorder %s98, 0
      %p744 = por %p742, %p743
      %s746 = sadd.s32 %s745, 1
      %p749 = scmp.eq.s32.totalorder %s92, 1
      %p750 = scmp.ne.s32.totalorder %s745, %s747
      %p751 = scmp.eq.s32.totalorder %s92, 0
      %p752 = por %p750, %p751
      %p753 = scmp.ne.s32.totalorder %s745, %s747
      %p754 = scmp.eq.s32.totalorder %s97, 1
      %p755 = por %p753, %p754
      %p756 = scmp.ne.s32.totalorder %s747, %s748
      %p757 = scmp.eq.s32.totalorder %s97, 0
      %p758 = por %p756, %p757
      %p759 = scmp.ne.s32.totalorder %s747, %s748
      %p760 = scmp.eq.s32.totalorder %s98, 1
      %p761 = por %p759, %p760
      %p763 = scmp.ne.s32.totalorder %s748, %s762
      %p764 = scmp.eq.s32.totalorder %s98, 0
      %p765 = por %p763, %p764
      %s767 = sadd.s32 %s766, 1
      %p770 = scmp.eq.s32.totalorder %s92, 1
      %p771 = scmp.ne.s32.totalorder %s766, %s768
      %p772 = scmp.eq.s32.totalorder %s92, 0
      %p773 = por %p771, %p772
      %p774 = scmp.ne.s32.totalorder %s766, %s768
      %p775 = scmp.eq.s32.totalorder %s97, 1
      %p776 = por %p774, %p775
      %p777 = scmp.ne.s32.totalorder %s768, %s769
      %p778 = scmp.eq.s32.totalorder %s97, 0
      %p779 = por %p777, %p778
      %p780 = scmp.ne.s32.totalorder %s768, %s769
      %p781 = scmp.eq.s32.totalorder %s98, 1
      %p782 = por %p780, %p781
      %p784 = scmp.ne.s32.totalorder %s769, %s783
      %p785 = scmp.eq.s32.totalorder %s98, 0
      %p786 = por %p784, %p785
      %s788 = sadd.s32 %s787, 1
      %p791 = scmp.eq.s32.totalorder %s92, 1
      %p792 = scmp.ne.s32.totalorder %s787, %s789
      %p793 = scmp.eq.s32.totalorder %s92, 0
      %p794 = por %p792, %p793
      %p795 = scmp.ne.s32.totalorder %s787, %s789
      %p796 = scmp.eq.s32.totalorder %s97, 1
      %p797 = por %p795, %p796
      %p798 = scmp.ne.s32.totalorder %s789, %s790
      %p799 = scmp.eq.s32.totalorder %s97, 0
      %p800 = por %p798, %p799
      %p801 = scmp.ne.s32.totalorder %s789, %s790
      %p802 = scmp.eq.s32.totalorder %s98, 1
      %p803 = por %p801, %p802
      %p805 = scmp.ne.s32.totalorder %s790, %s804
      %p806 = scmp.eq.s32.totalorder %s98, 0
      %p807 = por %p805, %p806
      %s809 = sadd.s32 %s808, 1
      %p812 = scmp.eq.s32.totalorder %s92, 1
      %p813 = scmp.ne.s32.totalorder %s808, %s810
      %p814 = scmp.eq.s32.totalorder %s92, 0
      %p815 = por %p813, %p814
      %p816 = scmp.ne.s32.totalorder %s808, %s810
      %p817 = scmp.eq.s32.totalorder %s97, 1
      %p818 = por %p816, %p817
      %p819 = scmp.ne.s32.totalorder %s810, %s811
      %p820 = scmp.eq.s32.totalorder %s97, 0
      %p821 = por %p819, %p820
      %p822 = scmp.ne.s32.totalorder %s810, %s811
      %p823 = scmp.eq.s32.totalorder %s98, 1
      %p824 = por %p822, %p823
      %p826 = scmp.ne.s32.totalorder %s811, %s825
      %p827 = scmp.eq.s32.totalorder %s98, 0
      %p828 = por %p826, %p827
      %s830 = sadd.s32 %s829, 1
      %p833 = scmp.eq.s32.totalorder %s92, 1
      %p834 = scmp.ne.s32.totalorder %s829, %s831
      %p835 = scmp.eq.s32.totalorder %s92, 0
      %p836 = por %p834, %p835
      %p837 = scmp.ne.s32.totalorder %s829, %s831
      %p838 = scmp.eq.s32.totalorder %s97, 1
      %p839 = por %p837, %p838
      %p840 = scmp.ne.s32.totalorder %s831, %s832
      %p841 = scmp.eq.s32.totalorder %s97, 0
      %p842 = por %p840, %p841
      %p843 = scmp.ne.s32.totalorder %s831, %s832
      %p844 = scmp.eq.s32.totalorder %s98, 1
      %p845 = por %p843, %p844
      %p847 = scmp.ne.s32.totalorder %s832, %s846
      %p848 = scmp.eq.s32.totalorder %s98, 0
      %p849 = por %p847, %p848
      %s851 = sadd.s32 %s850, 1
      %p854 = scmp.eq.s32.totalorder %s92, 1
      %p855 = scmp.ne.s32.totalorder %s850, %s852
      %p856 = scmp.eq.s32.totalorder %s92, 0
      %p857 = por %p855, %p856
      %p858 = scmp.ne.s32.totalorder %s850, %s852
      %p859 = scmp.eq.s32.totalorder %s97, 1
      %p860 = por %p858, %p859
      %p861 = scmp.ne.s32.totalorder %s852, %s853
      %p862 = scmp.eq.s32.totalorder %s97, 0
      %p863 = por %p861, %p862
      %p864 = scmp.ne.s32.totalorder %s852, %s853
      %p865 = scmp.eq.s32.totalorder %s98, 1
      %p866 = por %p864, %p865
      %p868 = scmp.ne.s32.totalorder %s853, %s867
      %p869 = scmp.eq.s32.totalorder %s98, 0
      %p870 = por %p868, %p869
      %s871 = ssub.s32 %s92, %s99
      %p872 = scmp.eq.s32.totalorder %s871, 0
      %s874 = sadd.s32 %s873, 1
      %s875 = scalar_select %p872, %s873, %s874
      %p878 = pneg %p872
      %p879 = scmp.eq.s32.totalorder %s92, 1
      %p880 = por %p878, %p879
      %p881 = scmp.ne.s32.totalorder %s873, %s876
      %p882 = scmp.eq.s32.totalorder %s92, 0
      %p883 = por %p881, %p882
      %p884 = scmp.ne.s32.totalorder %s873, %s876
      %p885 = scmp.eq.s32.totalorder %s97, 1
      %p886 = por %p884, %p885
      %p887 = scmp.ne.s32.totalorder %s876, %s877
      %p888 = scmp.eq.s32.totalorder %s97, 0
      %p889 = por %p887, %p888
      %p890 = scmp.ne.s32.totalorder %s876, %s877
      %p891 = scmp.eq.s32.totalorder %s98, 1
      %p892 = por %p890, %p891
      %p894 = scmp.ne.s32.totalorder %s877, %s893
      %p895 = scmp.eq.s32.totalorder %s98, 0
      %p896 = por %p894, %p895
      %s897 = ssub.s32 %s92, %s99
      %p898 = scmp.eq.s32.totalorder %s897, 0
      %s900 = sadd.s32 %s899, 1
      %s901 = scalar_select %p898, %s899, %s900
      %p904 = pneg %p898
      %p905 = scmp.eq.s32.totalorder %s92, 1
      %p906 = por %p904, %p905
      %p907 = scmp.ne.s32.totalorder %s899, %s902
      %p908 = scmp.eq.s32.totalorder %s92, 0
      %p909 = por %p907, %p908
      %p910 = scmp.ne.s32.totalorder %s899, %s902
      %p911 = scmp.eq.s32.totalorder %s97, 1
      %p912 = por %p910, %p911
      %p913 = scmp.ne.s32.totalorder %s902, %s903
      %p914 = scmp.eq.s32.totalorder %s97, 0
      %p915 = por %p913, %p914
      %p916 = scmp.ne.s32.totalorder %s902, %s903
      %p917 = scmp.eq.s32.totalorder %s98, 1
      %p918 = por %p916, %p917
      %p920 = scmp.ne.s32.totalorder %s903, %s919
      %p921 = scmp.eq.s32.totalorder %s98, 0
      %p922 = por %p920, %p921
      %p923 = scmp.le.s32.totalorder 1, %s92
      %p924 = scmp.lt.s32.totalorder %s92, 3
      %p925 = pnand %p923, %p924
      %p926 = pneg %p925
      // Predicated region
      $region9: #{fqfpn_forward.1} parent=5 // pred_check
        _
      $region10: #{fqfpn_forward.1} parent=5 // pred_check_branch
        %928 = sbr.rel (%p925) target = $region12
      $region11: #{fqfpn_forward.1} parent=5 // pred_region
        %s929 = ssub.s32 %s92, 1
        // Predicated region
        $region13: #{fqfpn_forward.1} parent=11 // pred_check
          %p930 = pneg %p191
        $region14: #{fqfpn_forward.1} parent=11 // pred_check_branch
          %932 = sbr.rel (%p930) target = $region16
        $region15: #{fqfpn_forward.1} parent=11 // pred_region
          %s934 = ssub.s32 512, 512
          %935 = vsyncadd [#allocation4], %s934
          %s936 = sshll.u32 [#allocation3], 4
          %s937 = int_to_ptr.vmem [resolvable:$true] %s936
          %942 = dma.hbm_to_vmem [thread:$0]  %s7, 512, %s937, [#allocation4], 64, 64, 4
        $region16: #{fqfpn_forward.1} parent=11 // pred_fallthru
          _
        // Predicated region
        $region17: #{fqfpn_forward.1} parent=11 // pred_check
          %p943 = pneg %p212
        $region18: #{fqfpn_forward.1} parent=11 // pred_check_branch
          %945 = sbr.rel (%p943) target = $region20
        $region19: #{fqfpn_forward.1} parent=11 // pred_region
          _
        $region20: #{fqfpn_forward.1} parent=11 // pred_fallthru
          _
        // Predicated region
        $region21: #{fqfpn_forward.1} parent=11 // pred_check
          %p946 = pneg %p233
        $region22: #{fqfpn_forward.1} parent=11 // pred_check_branch
          %948 = sbr.rel (%p946) target = $region24
        $region23: #{fqfpn_forward.1} parent=11 // pred_region
          _
        $region24: #{fqfpn_forward.1} parent=11 // pred_fallthru
          _
        // Predicated region
        $region25: #{fqfpn_forward.1} parent=11 // pred_check
          %p949 = pneg %p254
        $region26: #{fqfpn_forward.1} parent=11 // pred_check_branch
          %951 = sbr.rel (%p949) target = $region28
        $region27: #{fqfpn_forward.1} parent=11 // pred_region
          _
        $region28: #{fqfpn_forward.1} parent=11 // pred_fallthru
          _
        // Predicated region
        $region29: #{fqfpn_forward.1} parent=11 // pred_check
          %p952 = pneg %p275
        $region30: #{fqfpn_forward.1} parent=11 // pred_check_branch
          %954 = sbr.rel (%p952) target = $region32
        $region31: #{fqfpn_forward.1} parent=11 // pred_region
          _
        $region32: #{fqfpn_forward.1} parent=11 // pred_fallthru
          _
        // Predicated region
        $region33: #{fqfpn_forward.1} parent=11 // pred_check
          %p955 = pneg %p296
        $region34: #{fqfpn_forward.1} parent=11 // pred_check_branch
          %957 = sbr.rel (%p955) target = $region36
        $region35: #{fqfpn_forward.1} parent=11 // pred_region
          _
        $region36: #{fqfpn_forward.1} parent=11 // pred_fallthru
          _
        // Predicated region
        $region37: #{fqfpn_forward.1} parent=11 // pred_check
          %p958 = pneg %p317
        $region38: #{fqfpn_forward.1} parent=11 // pred_check_branch
          %960 = sbr.rel (%p958) target = $region40
        $region39: #{fqfpn_forward.1} parent=11 // pred_region
          %s962 = ssub.s32 1024, 1024
          %963 = vsyncadd [#allocation6], %s962
          %s964 = sshll.u32 [#allocation5], 4
          %s965 = int_to_ptr.vmem [resolvable:$true] %s964
          %970 = dma.hbm_to_vmem [thread:$0]  %s19, 1024, %s965, [#allocation6], 64, 64, 4
        $region40: #{fqfpn_forward.1} parent=11 // pred_fallthru
          _
        // Predicated region
        $region41: #{fqfpn_forward.1} parent=11 // pred_check
          %p971 = pneg %p338
        $region42: #{fqfpn_forward.1} parent=11 // pred_check_branch
          %973 = sbr.rel (%p971) target = $region44
        $region43: #{fqfpn_forward.1} parent=11 // pred_region
          _
        $region44: #{fqfpn_forward.1} parent=11 // pred_fallthru
          _
        // Predicated region
        $region45: #{fqfpn_forward.1} parent=11 // pred_check
          %p974 = pneg %p359
        $region46: #{fqfpn_forward.1} parent=11 // pred_check_branch
          %976 = sbr.rel (%p974) target = $region48
        $region47: #{fqfpn_forward.1} parent=11 // pred_region
          %s978 = ssub.s32 16, 16
          %979 = vsyncadd [#allocation6], %s978
          %s981 = sshll.u32 [#allocation7], 4
          %s982 = int_to_ptr.vmem [resolvable:$true] %s981
          %984 = dma.hbm_to_vmem [thread:$0]  %s23, 16, %s982, [#allocation6]
        $region48: #{fqfpn_forward.1} parent=11 // pred_fallthru
          _
        // Predicated region
        $region49: #{fqfpn_forward.1} parent=11 // pred_check
          %p985 = pneg %p380
        $region50: #{fqfpn_forward.1} parent=11 // pred_check_branch
          %987 = sbr.rel (%p985) target = $region52
        $region51: #{fqfpn_forward.1} parent=11 // pred_region
          _
        $region52: #{fqfpn_forward.1} parent=11 // pred_fallthru
          _
        // Predicated region
        $region53: #{fqfpn_forward.1} parent=11 // pred_check
          %p988 = pneg %p401
        $region54: #{fqfpn_forward.1} parent=11 // pred_check_branch
          %990 = sbr.rel (%p988) target = $region56
        $region55: #{fqfpn_forward.1} parent=11 // pred_region
          %s992 = ssub.s32 16, 16
          %993 = vsyncadd [#allocation9], %s992
          %s995 = sshll.u32 [#allocation8], 4
          %s996 = int_to_ptr.vmem [resolvable:$true] %s995
          %998 = dma.hbm_to_vmem [thread:$0]  %s27, 16, %s996, [#allocation9]
        $region56: #{fqfpn_forward.1} parent=11 // pred_fallthru
          _
        // Predicated region
        $region57: #{fqfpn_forward.1} parent=11 // pred_check
          %p999 = pneg %p422
        $region58: #{fqfpn_forward.1} parent=11 // pred_check_branch
          %1001 = sbr.rel (%p999) target = $region60
        $region59: #{fqfpn_forward.1} parent=11 // pred_region
          _
        $region60: #{fqfpn_forward.1} parent=11 // pred_fallthru
          _
        // Predicated region
        $region61: #{fqfpn_forward.1} parent=11 // pred_check
          %p1002 = pneg %p443
        $region62: #{fqfpn_forward.1} parent=11 // pred_check_branch
          %1004 = sbr.rel (%p1002) target = $region64
        $region63: #{fqfpn_forward.1} parent=11 // pred_region
          _
        $region64: #{fqfpn_forward.1} parent=11 // pred_fallthru
          _
        // Predicated region
        $region65: #{fqfpn_forward.1} parent=11 // pred_check
          %p1005 = pneg %p464
        $region66: #{fqfpn_forward.1} parent=11 // pred_check_branch
          %1007 = sbr.rel (%p1005) target = $region68
        $region67: #{fqfpn_forward.1} parent=11 // pred_region
          %s1009 = ssub.s32 512, 512
          %1010 = vsyncadd [#allocation9], %s1009
          %s1011 = sshll.u32 [#allocation10], 4
          %s1012 = int_to_ptr.vmem [resolvable:$true] %s1011
          %1017 = dma.hbm_to_vmem [thread:$0]  %s33, 512, %s1012, [#allocation9], 64, 64, 4
        $region68: #{fqfpn_forward.1} parent=11 // pred_fallthru
          _
        // Predicated region
        $region69: #{fqfpn_forward.1} parent=11 // pred_check
          %p1018 = pneg %p485
        $region70: #{fqfpn_forward.1} parent=11 // pred_check_branch
          %1020 = sbr.rel (%p1018) target = $region72
        $region71: #{fqfpn_forward.1} parent=11 // pred_region
          %s1022 = ssub.s32 1024, 1024
          %1023 = vsyncadd [#allocation12], %s1022
          %s1024 = sshll.u32 [#allocation11], 4
          %s1025 = int_to_ptr.vmem [resolvable:$true] %s1024
          %1030 = dma.hbm_to_vmem [thread:$0]  %s35, 1024, %s1025, [#allocation12], 64, 64, 4
        $region72: #{fqfpn_forward.1} parent=11 // pred_fallthru
          _
        // Predicated region
        $region73: #{fqfpn_forward.1} parent=11 // pred_check
          %p1031 = pneg %p506
        $region74: #{fqfpn_forward.1} parent=11 // pred_check_branch
          %1033 = sbr.rel (%p1031) target = $region76
        $region75: #{fqfpn_forward.1} parent=11 // pred_region
          %s1035 = ssub.s32 16, 16
          %1036 = vsyncadd [#allocation12], %s1035
          %s1038 = sshll.u32 [#allocation13], 4
          %s1039 = int_to_ptr.vmem [resolvable:$true] %s1038
          %1041 = dma.hbm_to_vmem [thread:$0]  %s37, 16, %s1039, [#allocation12]
        $region76: #{fqfpn_forward.1} parent=11 // pred_fallthru
          _
        // Predicated region
        $region77: #{fqfpn_forward.1} parent=11 // pred_check
          %p1042 = pneg %p527
        $region78: #{fqfpn_forward.1} parent=11 // pred_check_branch
          %1044 = sbr.rel (%p1042) target = $region80
        $region79: #{fqfpn_forward.1} parent=11 // pred_region
          _
        $region80: #{fqfpn_forward.1} parent=11 // pred_fallthru
          _
        // Predicated region
        $region81: #{fqfpn_forward.1} parent=11 // pred_check
          %p1045 = pneg %p548
        $region82: #{fqfpn_forward.1} parent=11 // pred_check_branch
          %1047 = sbr.rel (%p1045) target = $region84
        $region83: #{fqfpn_forward.1} parent=11 // pred_region
          %s1049 = ssub.s32 16, 16
          %1050 = vsyncadd [#allocation15], %s1049
          %s1052 = sshll.u32 [#allocation14], 4
          %s1053 = int_to_ptr.vmem [resolvable:$true] %s1052
          %1055 = dma.hbm_to_vmem [thread:$0]  %s41, 16, %s1053, [#allocation15]
        $region84: #{fqfpn_forward.1} parent=11 // pred_fallthru
          _
        // Predicated region
        $region85: #{fqfpn_forward.1} parent=11 // pred_check
          %p1056 = pneg %p569
        $region86: #{fqfpn_forward.1} parent=11 // pred_check_branch
          %1058 = sbr.rel (%p1056) target = $region88
        $region87: #{fqfpn_forward.1} parent=11 // pred_region
          _
        $region88: #{fqfpn_forward.1} parent=11 // pred_fallthru
          _
        // Predicated region
        $region89: #{fqfpn_forward.1} parent=11 // pred_check
          %p1059 = pneg %p590
        $region90: #{fqfpn_forward.1} parent=11 // pred_check_branch
          %1061 = sbr.rel (%p1059) target = $region92
        $region91: #{fqfpn_forward.1} parent=11 // pred_region
          %s1063 = ssub.s32 16, 16
          %1064 = vsyncadd [#allocation15], %s1063
          %s1066 = sshll.u32 [#allocation16], 4
          %s1067 = int_to_ptr.vmem [resolvable:$true] %s1066
          %1069 = dma.hbm_to_vmem [thread:$0]  %s45, 16, %s1067, [#allocation15]
        $region92: #{fqfpn_forward.1} parent=11 // pred_fallthru
          _
        // Predicated region
        $region93: #{fqfpn_forward.1} parent=11 // pred_check
          %p1070 = pneg %p611
        $region94: #{fqfpn_forward.1} parent=11 // pred_check_branch
          %1072 = sbr.rel (%p1070) target = $region96
        $region95: #{fqfpn_forward.1} parent=11 // pred_region
          _
        $region96: #{fqfpn_forward.1} parent=11 // pred_fallthru
          _
        // Predicated region
        $region97: #{fqfpn_forward.1} parent=11 // pred_check
          %p1073 = pneg %p632
        $region98: #{fqfpn_forward.1} parent=11 // pred_check_branch
          %1075 = sbr.rel (%p1073) target = $region100
        $region99: #{fqfpn_forward.1} parent=11 // pred_region
          %s1077 = ssub.s32 16, 16
          %1078 = vsyncadd [#allocation18], %s1077
          %s1080 = sshll.u32 [#allocation17], 4
          %s1081 = int_to_ptr.vmem [resolvable:$true] %s1080
          %1083 = dma.hbm_to_vmem [thread:$0]  %s49, 16, %s1081, [#allocation18]
        $region100: #{fqfpn_forward.1} parent=11 // pred_fallthru
          _
        // Predicated region
        $region101: #{fqfpn_forward.1} parent=11 // pred_check
          %p1084 = pneg %p653
        $region102: #{fqfpn_forward.1} parent=11 // pred_check_branch
          %1086 = sbr.rel (%p1084) target = $region104
        $region103: #{fqfpn_forward.1} parent=11 // pred_region
          %s1088 = ssub.s32 512, 512
          %1089 = vsyncadd [#allocation18], %s1088
          %s1090 = sshll.u32 [#allocation19], 4
          %s1091 = int_to_ptr.vmem [resolvable:$true] %s1090
          %1096 = dma.hbm_to_vmem [thread:$0]  %s51, 512, %s1091, [#allocation18], 64, 64, 4
        $region104: #{fqfpn_forward.1} parent=11 // pred_fallthru
          _
        // Predicated region
        $region105: #{fqfpn_forward.1} parent=11 // pred_check
          %p1097 = pneg %p674
        $region106: #{fqfpn_forward.1} parent=11 // pred_check_branch
          %1099 = sbr.rel (%p1097) target = $region108
        $region107: #{fqfpn_forward.1} parent=11 // pred_region
          %s1101 = ssub.s32 1024, 1024
          %1102 = vsyncadd [#allocation21], %s1101
          %s1103 = sshll.u32 [#allocation20], 4
          %s1104 = int_to_ptr.vmem [resolvable:$true] %s1103
          %1109 = dma.hbm_to_vmem [thread:$0]  %s53, 1024, %s1104, [#allocation21], 64, 64, 4
        $region108: #{fqfpn_forward.1} parent=11 // pred_fallthru
          _
        // Predicated region
        $region109: #{fqfpn_forward.1} parent=11 // pred_check
          %p1110 = pneg %p695
        $region110: #{fqfpn_forward.1} parent=11 // pred_check_branch
          %1112 = sbr.rel (%p1110) target = $region112
        $region111: #{fqfpn_forward.1} parent=11 // pred_region
          %s1114 = ssub.s32 1024, 1024
          %1115 = vsyncadd [#allocation21], %s1114
          %s1116 = sshll.u32 [#allocation22], 4
          %s1117 = int_to_ptr.vmem [resolvable:$true] %s1116
          %1122 = dma.hbm_to_vmem [thread:$0]  %s55, 1024, %s1117, [#allocation21], 64, 64, 4
        $region112: #{fqfpn_forward.1} parent=11 // pred_fallthru
          _
        // Predicated region
        $region113: #{fqfpn_forward.1} parent=11 // pred_check
          %p1123 = pneg %p716
        $region114: #{fqfpn_forward.1} parent=11 // pred_check_branch
          %1125 = sbr.rel (%p1123) target = $region116
        $region115: #{fqfpn_forward.1} parent=11 // pred_region
          %s1127 = ssub.s32 1024, 1024
          %1128 = vsyncadd [#allocation24], %s1127
          %s1129 = sshll.u32 [#allocation23], 4
          %s1130 = int_to_ptr.vmem [resolvable:$true] %s1129
          %1135 = dma.hbm_to_vmem [thread:$0]  %s57, 1024, %s1130, [#allocation24], 64, 64, 4
        $region116: #{fqfpn_forward.1} parent=11 // pred_fallthru
          _
        // Predicated region
        $region117: #{fqfpn_forward.1} parent=11 // pred_check
          %p1136 = pneg %p737
        $region118: #{fqfpn_forward.1} parent=11 // pred_check_branch
          %1138 = sbr.rel (%p1136) target = $region120
        $region119: #{fqfpn_forward.1} parent=11 // pred_region
          %s1140 = ssub.s32 16, 16
          %1141 = vsyncadd [#allocation24], %s1140
          %s1143 = sshll.u32 [#allocation25], 4
          %s1144 = int_to_ptr.vmem [resolvable:$true] %s1143
          %1146 = dma.hbm_to_vmem [thread:$0]  %s59, 16, %s1144, [#allocation24]
        $region120: #{fqfpn_forward.1} parent=11 // pred_fallthru
          _
        // Predicated region
        $region121: #{fqfpn_forward.1} parent=11 // pred_check
          %p1147 = pneg %p758
        $region122: #{fqfpn_forward.1} parent=11 // pred_check_branch
          %1149 = sbr.rel (%p1147) target = $region124
        $region123: #{fqfpn_forward.1} parent=11 // pred_region
          _
        $region124: #{fqfpn_forward.1} parent=11 // pred_fallthru
          _
        // Predicated region
        $region125: #{fqfpn_forward.1} parent=11 // pred_check
          %p1150 = pneg %p779
        $region126: #{fqfpn_forward.1} parent=11 // pred_check_branch
          %1152 = sbr.rel (%p1150) target = $region128
        $region127: #{fqfpn_forward.1} parent=11 // pred_region
          %s1154 = ssub.s32 128, 128
          %1155 = vsyncadd [#allocation27], %s1154
          %s1157 = sshll.u32 [#allocation26], 4
          %s1158 = int_to_ptr.vmem [resolvable:$true] %s1157
          %1160 = dma.hbm_to_vmem [thread:$0]  %s63, 128, %s1158, [#allocation27]
        $region128: #{fqfpn_forward.1} parent=11 // pred_fallthru
          _
        // Predicated region
        $region129: #{fqfpn_forward.1} parent=11 // pred_check
          %p1161 = pneg %p800
        $region130: #{fqfpn_forward.1} parent=11 // pred_check_branch
          %1163 = sbr.rel (%p1161) target = $region132
        $region131: #{fqfpn_forward.1} parent=11 // pred_region
          _
        $region132: #{fqfpn_forward.1} parent=11 // pred_fallthru
          _
        // Predicated region
        $region133: #{fqfpn_forward.1} parent=11 // pred_check
          %p1164 = pneg %p821
        $region134: #{fqfpn_forward.1} parent=11 // pred_check_branch
          %1166 = sbr.rel (%p1164) target = $region136
        $region135: #{fqfpn_forward.1} parent=11 // pred_region
          %s1168 = ssub.s32 16, 16
          %1169 = vsyncadd [#allocation27], %s1168
          %s1171 = sshll.u32 [#allocation28], 4
          %s1172 = int_to_ptr.vmem [resolvable:$true] %s1171
          %1174 = dma.hbm_to_vmem [thread:$0]  %s67, 16, %s1172, [#allocation27]
        $region136: #{fqfpn_forward.1} parent=11 // pred_fallthru
          _
        // Predicated region
        $region137: #{fqfpn_forward.1} parent=11 // pred_check
          %p1175 = pneg %p842
        $region138: #{fqfpn_forward.1} parent=11 // pred_check_branch
          %1177 = sbr.rel (%p1175) target = $region140
        $region139: #{fqfpn_forward.1} parent=11 // pred_region
          _
        $region140: #{fqfpn_forward.1} parent=11 // pred_fallthru
          _
        // Predicated region
        $region141: #{fqfpn_forward.1} parent=11 // pred_check
          %p1178 = pneg %p863
        $region142: #{fqfpn_forward.1} parent=11 // pred_check_branch
          %1180 = sbr.rel (%p1178) target = $region144
        $region143: #{fqfpn_forward.1} parent=11 // pred_region
          %s1182 = ssub.s32 16, 16
          %1183 = vsyncadd [#allocation30], %s1182
          %s1185 = sshll.u32 [#allocation29], 4
          %s1186 = int_to_ptr.vmem [resolvable:$true] %s1185
          %1188 = dma.hbm_to_vmem [thread:$0]  %s71, 16, %s1186, [#allocation30]
        $region144: #{fqfpn_forward.1} parent=11 // pred_fallthru
          _
      $region12: #{fqfpn_forward.1} parent=5 // pred_fallthru
        _
      %p1189 = scmp.lt.s32.totalorder %s92, 2
      // Predicated region
      $region145: #{fqfpn_forward.1} parent=5 // pred_check
        %p1190 = pneg %p1189
      $region146: #{fqfpn_forward.1} parent=5 // pred_check_branch
        %1192 = sbr.rel (%p1190) target = $region148
      $region147: #{fqfpn_forward.1} parent=5 // pred_region
        // Predicated region
        $region149: #{fqfpn_forward.1} parent=147 // pred_check
          %p1193 = pneg %p112
        $region150: #{fqfpn_forward.1} parent=147 // pred_check_branch
          %1195 = sbr.rel (%p1193) target = $region152
        $region151: #{fqfpn_forward.1} parent=147 // pred_region
          %p1196 = scmp.lt.s32.totalorder %s92, 1
          %s1197 = scalar_select %p1196, %s92, 1
          %s1198 = smul.addr %s1197, 4
          %s1199 = scalar_lea.vmem %s1, %s1198
        $region152: #{fqfpn_forward.1} parent=147 // pred_fallthru
          _
        // Predicated region
        $region153: #{fqfpn_forward.1} parent=147 // pred_check
          %p1200 = pneg %p138
        $region154: #{fqfpn_forward.1} parent=147 // pred_check_branch
          %1202 = sbr.rel (%p1200) target = $region156
        $region155: #{fqfpn_forward.1} parent=147 // pred_region
          %p1203 = scmp.lt.s32.totalorder %s92, 1
          %s1204 = scalar_select %p1203, %s92, 1
          %s1205 = smul.addr %s1204, 8
          %s1206 = scalar_lea.vmem %s3, %s1205
        $region156: #{fqfpn_forward.1} parent=147 // pred_fallthru
          _
        // Predicated region
        $region157: #{fqfpn_forward.1} parent=147 // pred_check
          %p1207 = pneg %p164
        $region158: #{fqfpn_forward.1} parent=147 // pred_check_branch
          %1209 = sbr.rel (%p1207) target = $region160
        $region159: #{fqfpn_forward.1} parent=147 // pred_region
          %p1210 = scmp.lt.s32.totalorder %s92, 1
          %s1211 = scalar_select %p1210, %s92, 1
          %s1212 = smul.addr %s1211, 2
          %s1213 = smul.addr %s1212, 8
          %s1214 = scalar_lea.vmem %s5, %s1213
        $region160: #{fqfpn_forward.1} parent=147 // pred_fallthru
          _
      $region148: #{fqfpn_forward.1} parent=5 // pred_fallthru
        _
      %p1215 = scmp.le.s32.totalorder 1, %s92
      %p1216 = scmp.lt.s32.totalorder %s92, 3
      %p1217 = pnand %p1215, %p1216
      %p1218 = pneg %p1217
      // Predicated region
      $region161: #{fqfpn_forward.1} parent=5 // pred_check
        _
      $region162: #{fqfpn_forward.1} parent=5 // pred_check_branch
        %1220 = sbr.rel (%p1217) target = $region164
      $region163: #{fqfpn_forward.1} parent=5 // pred_region
        %s1221 = ssub.s32 %s92, 1
        // Predicated region
        $region165: #{fqfpn_forward.1} parent=163 // pred_check
          %p1222 = pneg %p191
        $region166: #{fqfpn_forward.1} parent=163 // pred_check_branch
          %1224 = sbr.rel (%p1222) target = $region168
        $region167: #{fqfpn_forward.1} parent=163 // pred_region
          %1225 = dma.done [#allocation4], 512
        $region168: #{fqfpn_forward.1} parent=163 // pred_fallthru
          _
        // Predicated region
        $region169: #{fqfpn_forward.1} parent=163 // pred_check
          %p1226 = pneg %p317
        $region170: #{fqfpn_forward.1} parent=163 // pred_check_branch
          %1228 = sbr.rel (%p1226) target = $region172
        $region171: #{fqfpn_forward.1} parent=163 // pred_region
          %1229 = dma.done [#allocation6], 1024
        $region172: #{fqfpn_forward.1} parent=163 // pred_fallthru
          _
        // Predicated region
        $region173: #{fqfpn_forward.1} parent=163 // pred_check
          %p1230 = pneg %p359
        $region174: #{fqfpn_forward.1} parent=163 // pred_check_branch
          %1232 = sbr.rel (%p1230) target = $region176
        $region175: #{fqfpn_forward.1} parent=163 // pred_region
          %1233 = dma.done [#allocation6], 16
        $region176: #{fqfpn_forward.1} parent=163 // pred_fallthru
          _
        // Predicated region
        $region177: #{fqfpn_forward.1} parent=163 // pred_check
          %p1234 = pneg %p401
        $region178: #{fqfpn_forward.1} parent=163 // pred_check_branch
          %1236 = sbr.rel (%p1234) target = $region180
        $region179: #{fqfpn_forward.1} parent=163 // pred_region
          %1237 = dma.done [#allocation9], 16
        $region180: #{fqfpn_forward.1} parent=163 // pred_fallthru
          _
        // Predicated region
        $region181: #{fqfpn_forward.1} parent=163 // pred_check
          %p1238 = pneg %p464
        $region182: #{fqfpn_forward.1} parent=163 // pred_check_branch
          %1240 = sbr.rel (%p1238) target = $region184
        $region183: #{fqfpn_forward.1} parent=163 // pred_region
          %1241 = dma.done [#allocation9], 512
        $region184: #{fqfpn_forward.1} parent=163 // pred_fallthru
          _
        // Predicated region
        $region185: #{fqfpn_forward.1} parent=163 // pred_check
          %p1242 = pneg %p485
        $region186: #{fqfpn_forward.1} parent=163 // pred_check_branch
          %1244 = sbr.rel (%p1242) target = $region188
        $region187: #{fqfpn_forward.1} parent=163 // pred_region
          %1245 = dma.done [#allocation12], 1024
        $region188: #{fqfpn_forward.1} parent=163 // pred_fallthru
          _
        // Predicated region
        $region189: #{fqfpn_forward.1} parent=163 // pred_check
          %p1246 = pneg %p506
        $region190: #{fqfpn_forward.1} parent=163 // pred_check_branch
          %1248 = sbr.rel (%p1246) target = $region192
        $region191: #{fqfpn_forward.1} parent=163 // pred_region
          %1249 = dma.done [#allocation12], 16
        $region192: #{fqfpn_forward.1} parent=163 // pred_fallthru
          _
        // Predicated region
        $region193: #{fqfpn_forward.1} parent=163 // pred_check
          %p1250 = pneg %p548
        $region194: #{fqfpn_forward.1} parent=163 // pred_check_branch
          %1252 = sbr.rel (%p1250) target = $region196
        $region195: #{fqfpn_forward.1} parent=163 // pred_region
          %1253 = dma.done [#allocation15], 16
        $region196: #{fqfpn_forward.1} parent=163 // pred_fallthru
          _
        // Predicated region
        $region197: #{fqfpn_forward.1} parent=163 // pred_check
          %p1254 = pneg %p590
        $region198: #{fqfpn_forward.1} parent=163 // pred_check_branch
          %1256 = sbr.rel (%p1254) target = $region200
        $region199: #{fqfpn_forward.1} parent=163 // pred_region
          %1257 = dma.done [#allocation15], 16
        $region200: #{fqfpn_forward.1} parent=163 // pred_fallthru
          _
        // Predicated region
        $region201: #{fqfpn_forward.1} parent=163 // pred_check
          %p1258 = pneg %p632
        $region202: #{fqfpn_forward.1} parent=163 // pred_check_branch
          %1260 = sbr.rel (%p1258) target = $region204
        $region203: #{fqfpn_forward.1} parent=163 // pred_region
          %1261 = dma.done [#allocation18], 16
        $region204: #{fqfpn_forward.1} parent=163 // pred_fallthru
          _
        // Predicated region
        $region205: #{fqfpn_forward.1} parent=163 // pred_check
          %p1262 = pneg %p653
        $region206: #{fqfpn_forward.1} parent=163 // pred_check_branch
          %1264 = sbr.rel (%p1262) target = $region208
        $region207: #{fqfpn_forward.1} parent=163 // pred_region
          %1265 = dma.done [#allocation18], 512
        $region208: #{fqfpn_forward.1} parent=163 // pred_fallthru
          _
        // Predicated region
        $region209: #{fqfpn_forward.1} parent=163 // pred_check
          %p1266 = pneg %p674
        $region210: #{fqfpn_forward.1} parent=163 // pred_check_branch
          %1268 = sbr.rel (%p1266) target = $region212
        $region211: #{fqfpn_forward.1} parent=163 // pred_region
          %1269 = dma.done [#allocation21], 1024
        $region212: #{fqfpn_forward.1} parent=163 // pred_fallthru
          _
        // Predicated region
        $region213: #{fqfpn_forward.1} parent=163 // pred_check
          %p1270 = pneg %p695
        $region214: #{fqfpn_forward.1} parent=163 // pred_check_branch
          %1272 = sbr.rel (%p1270) target = $region216
        $region215: #{fqfpn_forward.1} parent=163 // pred_region
          %1273 = dma.done [#allocation21], 1024
        $region216: #{fqfpn_forward.1} parent=163 // pred_fallthru
          _
        // Predicated region
        $region217: #{fqfpn_forward.1} parent=163 // pred_check
          %p1274 = pneg %p716
        $region218: #{fqfpn_forward.1} parent=163 // pred_check_branch
          %1276 = sbr.rel (%p1274) target = $region220
        $region219: #{fqfpn_forward.1} parent=163 // pred_region
          %1277 = dma.done [#allocation24], 1024
        $region220: #{fqfpn_forward.1} parent=163 // pred_fallthru
          _
        // Predicated region
        $region221: #{fqfpn_forward.1} parent=163 // pred_check
          %p1278 = pneg %p737
        $region222: #{fqfpn_forward.1} parent=163 // pred_check_branch
          %1280 = sbr.rel (%p1278) target = $region224
        $region223: #{fqfpn_forward.1} parent=163 // pred_region
          %1281 = dma.done [#allocation24], 16
        $region224: #{fqfpn_forward.1} parent=163 // pred_fallthru
          _
        // Predicated region
        $region225: #{fqfpn_forward.1} parent=163 // pred_check
          %p1282 = pneg %p779
        $region226: #{fqfpn_forward.1} parent=163 // pred_check_branch
          %1284 = sbr.rel (%p1282) target = $region228
        $region227: #{fqfpn_forward.1} parent=163 // pred_region
          %1285 = dma.done [#allocation27], 128
        $region228: #{fqfpn_forward.1} parent=163 // pred_fallthru
          _
        // Predicated region
        $region229: #{fqfpn_forward.1} parent=163 // pred_check
          %p1286 = pneg %p821
        $region230: #{fqfpn_forward.1} parent=163 // pred_check_branch
          %1288 = sbr.rel (%p1286) target = $region232
        $region231: #{fqfpn_forward.1} parent=163 // pred_region
          %1289 = dma.done [#allocation27], 16
        $region232: #{fqfpn_forward.1} parent=163 // pred_fallthru
          _
        // Predicated region
        $region233: #{fqfpn_forward.1} parent=163 // pred_check
          %p1290 = pneg %p863
        $region234: #{fqfpn_forward.1} parent=163 // pred_check_branch
          %1292 = sbr.rel (%p1290) target = $region236
        $region235: #{fqfpn_forward.1} parent=163 // pred_region
          %1293 = dma.done [#allocation30], 16
        $region236: #{fqfpn_forward.1} parent=163 // pred_fallthru
          _
        %p1294 = scmp.lt.s32.totalorder %s97, 1
        %s1295 = scalar_select %p1294, %s97, 1
        %s1296 = smul.addr %s1295, 4
        %s1297 = scalar_lea.vmem %s1, %s1296
        %p1298 = pneg %p118
        %p1299 = pneg %p115
        %p1300 = scmp.lt.s32.totalorder %s97, 1
        %s1301 = scalar_select %p1300, %s97, 1
        %s1302 = smul.addr %s1301, 8
        %s1303 = scalar_lea.vmem %s3, %s1302
        %p1304 = pneg %p144
        %p1305 = pneg %p141
        %p1306 = scmp.lt.s32.totalorder %s97, 1
        %s1307 = scalar_select %p1306, %s97, 1
        %s1308 = smul.addr %s1307, 2
        %s1309 = smul.addr %s1308, 8
        %s1310 = scalar_lea.vmem %s5, %s1309
        %p1311 = pneg %p170
        %p1312 = pneg %p167
        %p1313 = pneg %p191
        %p1314 = pneg %p188
        %p1315 = pneg %p212
        %p1316 = pneg %p209
        %p1317 = pneg %p233
        %p1318 = pneg %p230
        %p1319 = pneg %p254
        %p1320 = pneg %p251
        %p1321 = pneg %p275
        %p1322 = pneg %p272
        %p1323 = pneg %p296
        %p1324 = pneg %p293
        %p1325 = pneg %p317
        %p1326 = pneg %p314
        %p1327 = pneg %p338
        %p1328 = pneg %p335
        %p1329 = pneg %p359
        %p1330 = pneg %p356
        %p1331 = pneg %p380
        %p1332 = pneg %p377
        %p1333 = pneg %p401
        %p1334 = pneg %p398
        %p1335 = pneg %p422
        %p1336 = pneg %p419
        %p1337 = pneg %p443
        %p1338 = pneg %p440
        %p1339 = pneg %p464
        %p1340 = pneg %p461
        %p1341 = pneg %p485
        %p1342 = pneg %p482
        %p1343 = pneg %p506
        %p1344 = pneg %p503
        %p1345 = pneg %p527
        %p1346 = pneg %p524
        %p1347 = pneg %p548
        %p1348 = pneg %p545
        %p1349 = pneg %p569
        %p1350 = pneg %p566
        %p1351 = pneg %p590
        %p1352 = pneg %p587
        %p1353 = pneg %p611
        %p1354 = pneg %p608
        %p1355 = pneg %p632
        %p1356 = pneg %p629
        %p1357 = pneg %p653
        %p1358 = pneg %p650
        %p1359 = pneg %p674
        %p1360 = pneg %p671
        %p1361 = pneg %p695
        %p1362 = pneg %p692
        %p1363 = pneg %p716
        %p1364 = pneg %p713
        %p1365 = pneg %p737
        %p1366 = pneg %p734
        %p1367 = pneg %p758
        %p1368 = pneg %p755
        %p1369 = pneg %p779
        %p1370 = pneg %p776
        %p1371 = pneg %p800
        %p1372 = pneg %p797
        %p1373 = pneg %p821
        %p1374 = pneg %p818
        %p1375 = pneg %p842
        %p1376 = pneg %p839
        %p1377 = pneg %p863
        %p1378 = pneg %p860
        %p1379 = pneg %p889
        %p1380 = pneg %p886
        %p1381 = scmp.lt.s32.totalorder %s97, 1
        %s1382 = scalar_select %p1381, %s97, 1
        %s1383 = smul.addr %s1382, 8
        %s1384 = scalar_lea.vmem %s73, %s1383
        %p1385 = pneg %p915
        %p1386 = pneg %p912
        %p1387 = scmp.lt.s32.totalorder %s97, 1
        %s1388 = scalar_select %p1387, %s97, 1
        %s1389 = smul.addr %s1388, 8
        %s1390 = scalar_lea.vmem %s75, %s1389
        %p1391 = scmp.lt.s32.totalorder %s97, 1
        %s1392 = scalar_select %p1391, %s97, 1
        %s1393 = smul.addr %s1392, 4
        %s1394 = scalar_lea.vmem %s1, %s1393
        %p1395 = scmp.lt.s32.totalorder %s97, 1
        %s1396 = scalar_select %p1395, %s97, 1
        %s1397 = smul.addr %s1396, 8
        %s1398 = scalar_lea.vmem %s3, %s1397
        %p1399 = scmp.lt.s32.totalorder %s97, 1
        %s1400 = scalar_select %p1399, %s97, 1
        %s1401 = smul.addr %s1400, 2
        %s1402 = smul.addr %s1401, 8
        %s1403 = scalar_lea.vmem %s5, %s1402
        %p1404 = scmp.lt.s32.totalorder %s97, 1
        %s1405 = scalar_select %p1404, %s97, 1
        %s1406 = smul.addr %s1405, 8
        %s1407 = scalar_lea.vmem %s73, %s1406
        %p1408 = scmp.lt.s32.totalorder %s97, 1
        %s1409 = scalar_select %p1408, %s97, 1
        %s1410 = smul.addr %s1409, 8
        %s1411 = scalar_lea.vmem %s75, %s1410
        %v1413 = vld [vmem:[%s1394] sm:$0xf]
        %v1414 = vld [vmem:[%s1398] sm:$0xff]
        %v1415 = vld [vmem:[%s1403] sm:$0xff]
        %v1416 = vld [vmem:[%s1403 + $0x8] sm:$0xff]
        %v1417 = vpack.c.bf16 %v1413, %v1413
        %v1418 = vld [vmem:[#allocation3] sm:$0xf]
        %v1419 = vld [vmem:[#allocation3 + $0x4] sm:$0xf]
        %v1420 = vld [vmem:[#allocation3 + $0x8] sm:$0xf]
        %v1421 = vld [vmem:[#allocation3 + $0xc] sm:$0xf]
        %v1422 = vld [vmem:[#allocation3 + $0x10] sm:$0xf]
        %v1423 = vld [vmem:[#allocation3 + $0x14] sm:$0xf]
        %v1424 = vld [vmem:[#allocation3 + $0x18] sm:$0xf]
        %v1425 = vld [vmem:[#allocation3 + $0x1c] sm:$0xf]
        %v1426 = vld [vmem:[%s9] sm:$0x1]
        %v1428 = vlaneseq
        %v1429 = vshrl.u32 %v1428, 7
        %v1430 = vsub.s32 0, %v1429
        %v1431 = vrot.slane %v1426, %v1430
        %v1441 = vunpack.c.l.b16 %v1418
        %v1442 = vunpack.c.l.b16 %v1419
        %v1443 = vunpack.c.l.b16 %v1420
        %v1444 = vunpack.c.l.b16 %v1421
        %v1445 = vunpack.c.l.b16 %v1422
        %v1446 = vunpack.c.l.b16 %v1423
        %v1447 = vunpack.c.l.b16 %v1424
        %v1448 = vunpack.c.l.b16 %v1425
        %v1449 = vpack.c.b16 %v1442, %v1441
        %v1450 = vpack.c.b16 %v1444, %v1443
        %v1451 = vpack.c.b16 %v1446, %v1445
        %v1452 = vpack.c.b16 %v1448, %v1447
        %vm1457 = vcmask 523264
        %v1459 = vsel %vm1457, %v1417, 0
        %1461 = vmatprep.subr.bf16.mxu0 0
        %1462 = vmatpush1.bf16.msra.mxu0 0
        %1463 = vmatprep.subr.bf16.mxu0 0
        %1464 = vmatpush1.bf16.msra.mxu0 0
        %1465 = vmatprep.subr.bf16.mxu0 0
        %1466 = vmatpush1.bf16.msra.mxu0 0
        %1467 = vmatprep.subr.bf16.mxu0 0
        %1468 = vmatpush1.bf16.msra.mxu0 0
        %1469 = vmatprep.subr.bf16.mxu0 0
        %1470 = vmatpush1.bf16.msra.mxu0 %v1452
        %1471 = vmatprep.subr.bf16.mxu0 0
        %1472 = vmatpush1.bf16.msra.mxu0 %v1451
        %1473 = vmatprep.subr.bf16.mxu0 0
        %1474 = vmatpush1.bf16.msra.mxu0 %v1450
        %1475 = vmatprep.subr.bf16.mxu0 0
        %1476 = vmatpush1.bf16.msra.mxu0 %v1449
        %1477 = vmatprep.subr.bf16.mxu0 0
        %1478 = vmatpush2.bf16.msra.mxu0 0
        %1479 = vmatprep.subr.bf16.mxu0 0
        %1480 = vmatpush2.bf16.msra.mxu0 0
        %1481 = vmatprep.subr.bf16.mxu0 0
        %1482 = vmatpush2.bf16.msra.mxu0 0
        %1483 = vmatprep.subr.bf16.mxu0 0
        %1484 = vmatpush2.bf16.msra.mxu0 0
        %1485 = vmatprep.subr.bf16.mxu0 0
        %1486 = vmatpush2.bf16.msra.mxu0 0
        %1487 = vmatprep.subr.bf16.mxu0 0
        %1488 = vmatpush2.bf16.msra.mxu0 0
        %1489 = vmatprep.subr.bf16.mxu0 0
        %1490 = vmatpush2.bf16.msra.mxu0 0
        %1491 = vmatprep.subr.bf16.mxu0 0
        %1492 = vmatpush2.bf16.msra.mxu0 0
        %1493 = vmatprep.mubr.bf16.mxu0 0
        %1494 = vmatmul.mubr.bf16.gmra.mxu0 %v1459
        %v1495 = vpop.f32.mrf.mxu0
        %v1496 = vadd.f32 %v1431, %v1495
        %v1497 = vpop.f32.mrf.mxu0
        %v1498 = vpop.f32.mrf.mxu0
        %v1499 = vpop.f32.mrf.mxu0
        %1500 = vdwg.mxu0
        %v1501 = vmax.f32 %v1496, 0.0
        %1502 = vst [vmem:[#allocation2] sm:$0x1] 0.0
        %1503 = vst [vmem:[#allocation2 + $0x9] sm:$0x1] 0.0
        %1504 = vst [vmem:[#allocation2 + $0x1] sm:$0xff] %v1414
        %v1505 = vld [vmem:[#allocation2] sm:$0xff]
        %v1506 = vpack.c.bf16 %v1505, %v1505
        %v1507 = vld [vmem:[%s11] sm:$0xf]
        %v1508 = vld [vmem:[%s11 + $0x4] sm:$0xf]
        %v1509 = vld [vmem:[%s11 + $0x8] sm:$0xf]
        %v1510 = vld [vmem:[%s11 + $0xc] sm:$0xf]
        %v1511 = vld [vmem:[%s11 + $0x10] sm:$0xf]
        %v1512 = vld [vmem:[%s11 + $0x14] sm:$0xf]
        %v1513 = vld [vmem:[%s11 + $0x18] sm:$0xf]
        %v1514 = vld [vmem:[%s11 + $0x1c] sm:$0xf]
        %v1515 = vld [vmem:[%s11 + $0x20] sm:$0xf]
        %v1516 = vld [vmem:[%s11 + $0x24] sm:$0xf]
        %v1517 = vld [vmem:[%s11 + $0x28] sm:$0xf]
        %v1518 = vld [vmem:[%s11 + $0x2c] sm:$0xf]
        %v1519 = vld [vmem:[%s11 + $0x30] sm:$0xf]
        %v1520 = vld [vmem:[%s11 + $0x34] sm:$0xf]
        %v1521 = vld [vmem:[%s11 + $0x38] sm:$0xf]
        %v1522 = vld [vmem:[%s11 + $0x3c] sm:$0xf]
        %v1523 = vld [vmem:[#allocation2 + $0x1] sm:$0xff]
        %v1524 = vpack.c.bf16 %v1523, %v1523
        %s1525 = scalar_lea.vmem %s11, 64
        %v1526 = vld [vmem:[%s1525] sm:$0xf]
        %v1527 = vld [vmem:[%s1525 + $0x4] sm:$0xf]
        %v1528 = vld [vmem:[%s1525 + $0x8] sm:$0xf]
        %v1529 = vld [vmem:[%s1525 + $0xc] sm:$0xf]
        %v1530 = vld [vmem:[%s1525 + $0x10] sm:$0xf]
        %v1531 = vld [vmem:[%s1525 + $0x14] sm:$0xf]
        %v1532 = vld [vmem:[%s1525 + $0x18] sm:$0xf]
        %v1533 = vld [vmem:[%s1525 + $0x1c] sm:$0xf]
        %v1534 = vld [vmem:[%s1525 + $0x20] sm:$0xf]
        %v1535 = vld [vmem:[%s1525 + $0x24] sm:$0xf]
        %v1536 = vld [vmem:[%s1525 + $0x28] sm:$0xf]
        %v1537 = vld [vmem:[%s1525 + $0x2c] sm:$0xf]
        %v1538 = vld [vmem:[%s1525 + $0x30] sm:$0xf]
        %v1539 = vld [vmem:[%s1525 + $0x34] sm:$0xf]
        %v1540 = vld [vmem:[%s1525 + $0x38] sm:$0xf]
        %v1541 = vld [vmem:[%s1525 + $0x3c] sm:$0xf]
        %v1558 = vunpack.c.l.b16 %v1526
        %v1559 = vunpack.c.l.b16 %v1527
        %v1560 = vunpack.c.l.b16 %v1528
        %v1561 = vunpack.c.l.b16 %v1529
        %v1562 = vunpack.c.l.b16 %v1530
        %v1563 = vunpack.c.l.b16 %v1531
        %v1564 = vunpack.c.l.b16 %v1532
        %v1565 = vunpack.c.l.b16 %v1533
        %v1566 = vunpack.c.l.b16 %v1534
        %v1567 = vunpack.c.l.b16 %v1535
        %v1568 = vunpack.c.l.b16 %v1536
        %v1569 = vunpack.c.l.b16 %v1537
        %v1570 = vunpack.c.l.b16 %v1538
        %v1571 = vunpack.c.l.b16 %v1539
        %v1572 = vunpack.c.l.b16 %v1540
        %v1573 = vunpack.c.l.b16 %v1541
        %v1574 = vpack.c.b16 %v1559, %v1558
        %v1575 = vpack.c.b16 %v1561, %v1560
        %v1576 = vpack.c.b16 %v1563, %v1562
        %v1577 = vpack.c.b16 %v1565, %v1564
        %v1578 = vpack.c.b16 %v1567, %v1566
        %v1579 = vpack.c.b16 %v1569, %v1568
        %v1580 = vpack.c.b16 %v1571, %v1570
        %v1581 = vpack.c.b16 %v1573, %v1572
        %1590 = vmatprep.subr.bf16.mxu0 0
        %1591 = vmatpush1.bf16.msra.mxu0 %v1581
        %1592 = vmatprep.subr.bf16.mxu0 0
        %1593 = vmatpush1.bf16.msra.mxu0 %v1580
        %1594 = vmatprep.subr.bf16.mxu0 0
        %1595 = vmatpush1.bf16.msra.mxu0 %v1579
        %1596 = vmatprep.subr.bf16.mxu0 0
        %1597 = vmatpush1.bf16.msra.mxu0 %v1578
        %1598 = vmatprep.subr.bf16.mxu0 0
        %1599 = vmatpush1.bf16.msra.mxu0 %v1577
        %1600 = vmatprep.subr.bf16.mxu0 0
        %1601 = vmatpush1.bf16.msra.mxu0 %v1576
        %1602 = vmatprep.subr.bf16.mxu0 0
        %1603 = vmatpush1.bf16.msra.mxu0 %v1575
        %1604 = vmatprep.subr.bf16.mxu0 0
        %1605 = vmatpush1.bf16.msra.mxu0 %v1574
        %1606 = vmatprep.subr.bf16.mxu0 0
        %1607 = vmatpush2.bf16.msra.mxu0 0
        %1608 = vmatprep.subr.bf16.mxu0 0
        %1609 = vmatpush2.bf16.msra.mxu0 0
        %1610 = vmatprep.subr.bf16.mxu0 0
        %1611 = vmatpush2.bf16.msra.mxu0 0
        %1612 = vmatprep.subr.bf16.mxu0 0
        %1613 = vmatpush2.bf16.msra.mxu0 0
        %1614 = vmatprep.subr.bf16.mxu0 0
        %1615 = vmatpush2.bf16.msra.mxu0 0
        %1616 = vmatprep.subr.bf16.mxu0 0
        %1617 = vmatpush2.bf16.msra.mxu0 0
        %1618 = vmatprep.subr.bf16.mxu0 0
        %1619 = vmatpush2.bf16.msra.mxu0 0
        %1620 = vmatprep.subr.bf16.mxu0 0
        %1621 = vmatpush2.bf16.msra.mxu0 0
        %1622 = vmatprep.mubr.bf16.mxu0 0
        %1623 = vmatmul.mubr.bf16.gmra.mxu0 %v1524
        %v1624 = vpop.f32.mrf.mxu0
        %v1625 = vadd.f32 0.0, %v1624
        %v1626 = vpop.f32.mrf.mxu0
        %v1627 = vpop.f32.mrf.mxu0
        %v1628 = vpop.f32.mrf.mxu0
        %1629 = vdwg.mxu0
        %v1646 = vunpack.c.l.b16 %v1507
        %v1647 = vunpack.c.l.b16 %v1508
        %v1648 = vunpack.c.l.b16 %v1509
        %v1649 = vunpack.c.l.b16 %v1510
        %v1650 = vunpack.c.l.b16 %v1511
        %v1651 = vunpack.c.l.b16 %v1512
        %v1652 = vunpack.c.l.b16 %v1513
        %v1653 = vunpack.c.l.b16 %v1514
        %v1654 = vunpack.c.l.b16 %v1515
        %v1655 = vunpack.c.l.b16 %v1516
        %v1656 = vunpack.c.l.b16 %v1517
        %v1657 = vunpack.c.l.b16 %v1518
        %v1658 = vunpack.c.l.b16 %v1519
        %v1659 = vunpack.c.l.b16 %v1520
        %v1660 = vunpack.c.l.b16 %v1521
        %v1661 = vunpack.c.l.b16 %v1522
        %v1662 = vpack.c.b16 %v1647, %v1646
        %v1663 = vpack.c.b16 %v1649, %v1648
        %v1664 = vpack.c.b16 %v1651, %v1650
        %v1665 = vpack.c.b16 %v1653, %v1652
        %v1666 = vpack.c.b16 %v1655, %v1654
        %v1667 = vpack.c.b16 %v1657, %v1656
        %v1668 = vpack.c.b16 %v1659, %v1658
        %v1669 = vpack.c.b16 %v1661, %v1660
        %1678 = vmatprep.subr.bf16.mxu0 0
        %1679 = vmatpush1.bf16.msra.mxu0 %v1669
        %1680 = vmatprep.subr.bf16.mxu0 0
        %1681 = vmatpush1.bf16.msra.mxu0 %v1668
        %1682 = vmatprep.subr.bf16.mxu0 0
        %1683 = vmatpush1.bf16.msra.mxu0 %v1667
        %1684 = vmatprep.subr.bf16.mxu0 0
        %1685 = vmatpush1.bf16.msra.mxu0 %v1666
        %1686 = vmatprep.subr.bf16.mxu0 0
        %1687 = vmatpush1.bf16.msra.mxu0 %v1665
        %1688 = vmatprep.subr.bf16.mxu0 0
        %1689 = vmatpush1.bf16.msra.mxu0 %v1664
        %1690 = vmatprep.subr.bf16.mxu0 0
        %1691 = vmatpush1.bf16.msra.mxu0 %v1663
        %1692 = vmatprep.subr.bf16.mxu0 0
        %1693 = vmatpush1.bf16.msra.mxu0 %v1662
        %1694 = vmatprep.subr.bf16.mxu0 0
        %1695 = vmatpush2.bf16.msra.mxu0 0
        %1696 = vmatprep.subr.bf16.mxu0 0
        %1697 = vmatpush2.bf16.msra.mxu0 0
        %1698 = vmatprep.subr.bf16.mxu0 0
        %1699 = vmatpush2.bf16.msra.mxu0 0
        %1700 = vmatprep.subr.bf16.mxu0 0
        %1701 = vmatpush2.bf16.msra.mxu0 0
        %1702 = vmatprep.subr.bf16.mxu0 0
        %1703 = vmatpush2.bf16.msra.mxu0 0
        %1704 = vmatprep.subr.bf16.mxu0 0
        %1705 = vmatpush2.bf16.msra.mxu0 0
        %1706 = vmatprep.subr.bf16.mxu0 0
        %1707 = vmatpush2.bf16.msra.mxu0 0
        %1708 = vmatprep.subr.bf16.mxu0 0
        %1709 = vmatpush2.bf16.msra.mxu0 0
        %1710 = vmatprep.mubr.bf16.mxu0 0
        %1711 = vmatmul.mubr.bf16.gmra.mxu0 %v1506
        %v1712 = vpop.f32.mrf.mxu0
        %v1713 = vadd.f32 %v1625, %v1712
        %v1714 = vpop.f32.mrf.mxu0
        %v1715 = vpop.f32.mrf.mxu0
        %v1716 = vpop.f32.mrf.mxu0
        %1717 = vdwg.mxu0
        %v1718 = vld [vmem:[#allocation2 + $0x2] sm:$0xff]
        %v1719 = vpack.c.bf16 %v1718, %v1718
        %s1720 = scalar_lea.vmem %s11, 128
        %v1721 = vld [vmem:[%s1720] sm:$0xf]
        %v1722 = vld [vmem:[%s1720 + $0x4] sm:$0xf]
        %v1723 = vld [vmem:[%s1720 + $0x8] sm:$0xf]
        %v1724 = vld [vmem:[%s1720 + $0xc] sm:$0xf]
        %v1725 = vld [vmem:[%s1720 + $0x10] sm:$0xf]
        %v1726 = vld [vmem:[%s1720 + $0x14] sm:$0xf]
        %v1727 = vld [vmem:[%s1720 + $0x18] sm:$0xf]
        %v1728 = vld [vmem:[%s1720 + $0x1c] sm:$0xf]
        %v1729 = vld [vmem:[%s1720 + $0x20] sm:$0xf]
        %v1730 = vld [vmem:[%s1720 + $0x24] sm:$0xf]
        %v1731 = vld [vmem:[%s1720 + $0x28] sm:$0xf]
        %v1732 = vld [vmem:[%s1720 + $0x2c] sm:$0xf]
        %v1733 = vld [vmem:[%s1720 + $0x30] sm:$0xf]
        %v1734 = vld [vmem:[%s1720 + $0x34] sm:$0xf]
        %v1735 = vld [vmem:[%s1720 + $0x38] sm:$0xf]
        %v1736 = vld [vmem:[%s1720 + $0x3c] sm:$0xf]
        %v1753 = vunpack.c.l.b16 %v1721
        %v1754 = vunpack.c.l.b16 %v1722
        %v1755 = vunpack.c.l.b16 %v1723
        %v1756 = vunpack.c.l.b16 %v1724
        %v1757 = vunpack.c.l.b16 %v1725
        %v1758 = vunpack.c.l.b16 %v1726
        %v1759 = vunpack.c.l.b16 %v1727
        %v1760 = vunpack.c.l.b16 %v1728
        %v1761 = vunpack.c.l.b16 %v1729
        %v1762 = vunpack.c.l.b16 %v1730
        %v1763 = vunpack.c.l.b16 %v1731
        %v1764 = vunpack.c.l.b16 %v1732
        %v1765 = vunpack.c.l.b16 %v1733
        %v1766 = vunpack.c.l.b16 %v1734
        %v1767 = vunpack.c.l.b16 %v1735
        %v1768 = vunpack.c.l.b16 %v1736
        %v1769 = vpack.c.b16 %v1754, %v1753
        %v1770 = vpack.c.b16 %v1756, %v1755
        %v1771 = vpack.c.b16 %v1758, %v1757
        %v1772 = vpack.c.b16 %v1760, %v1759
        %v1773 = vpack.c.b16 %v1762, %v1761
        %v1774 = vpack.c.b16 %v1764, %v1763
        %v1775 = vpack.c.b16 %v1766, %v1765
        %v1776 = vpack.c.b16 %v1768, %v1767
        %1785 = vmatprep.subr.bf16.mxu0 0
        %1786 = vmatpush1.bf16.msra.mxu0 %v1776
        %1787 = vmatprep.subr.bf16.mxu0 0
        %1788 = vmatpush1.bf16.msra.mxu0 %v1775
        %1789 = vmatprep.subr.bf16.mxu0 0
        %1790 = vmatpush1.bf16.msra.mxu0 %v1774
        %1791 = vmatprep.subr.bf16.mxu0 0
        %1792 = vmatpush1.bf16.msra.mxu0 %v1773
        %1793 = vmatprep.subr.bf16.mxu0 0
        %1794 = vmatpush1.bf16.msra.mxu0 %v1772
        %1795 = vmatprep.subr.bf16.mxu0 0
        %1796 = vmatpush1.bf16.msra.mxu0 %v1771
        %1797 = vmatprep.subr.bf16.mxu0 0
        %1798 = vmatpush1.bf16.msra.mxu0 %v1770
        %1799 = vmatprep.subr.bf16.mxu0 0
        %1800 = vmatpush1.bf16.msra.mxu0 %v1769
        %1801 = vmatprep.subr.bf16.mxu0 0
        %1802 = vmatpush2.bf16.msra.mxu0 0
        %1803 = vmatprep.subr.bf16.mxu0 0
        %1804 = vmatpush2.bf16.msra.mxu0 0
        %1805 = vmatprep.subr.bf16.mxu0 0
        %1806 = vmatpush2.bf16.msra.mxu0 0
        %1807 = vmatprep.subr.bf16.mxu0 0
        %1808 = vmatpush2.bf16.msra.mxu0 0
        %1809 = vmatprep.subr.bf16.mxu0 0
        %1810 = vmatpush2.bf16.msra.mxu0 0
        %1811 = vmatprep.subr.bf16.mxu0 0
        %1812 = vmatpush2.bf16.msra.mxu0 0
        %1813 = vmatprep.subr.bf16.mxu0 0
        %1814 = vmatpush2.bf16.msra.mxu0 0
        %1815 = vmatprep.subr.bf16.mxu0 0
        %1816 = vmatpush2.bf16.msra.mxu0 0
        %1817 = vmatprep.mubr.bf16.mxu0 0
        %1818 = vmatmul.mubr.bf16.gmra.mxu0 %v1719
        %v1819 = vpop.f32.mrf.mxu0
        %v1820 = vadd.f32 0.0, %v1819
        %v1821 = vpop.f32.mrf.mxu0
        %v1822 = vpop.f32.mrf.mxu0
        %v1823 = vpop.f32.mrf.mxu0
        %1824 = vdwg.mxu0
        %v1825 = vadd.f32 %v1713, %v1820
        %v1826 = vld [vmem:[%s13] sm:$0x1]
        %v1828 = vlaneseq
        %v1829 = vshrl.u32 %v1828, 7
        %v1830 = vsub.s32 0, %v1829
        %v1831 = vrot.slane %v1826, %v1830
        %v1833 = vadd.f32 %v1825, %v1831
        %v1834 = vmax.f32 %v1833, 0.0
        %v1835 = vld [vmem:[%s15] sm:$0xf]
        %v1836 = vpack.c.bf16 %v1501, %v1501
        %vm1837 = vcmask 31744
        %v1839 = vsel %vm1837, %v1835, 0
        %vm1841 = vcmask 1041408
        %v1843 = vsel %vm1841, %v1836, 0
        %1845 = vmatprep.subr.bf16.mxu0 0
        %1846 = vmatpush1.bf16.msra.mxu0 0
        %1847 = vmatprep.subr.bf16.mxu0 0
        %1848 = vmatpush1.bf16.msra.mxu0 0
        %1849 = vmatprep.subr.bf16.mxu0 0
        %1850 = vmatpush1.bf16.msra.mxu0 0
        %1851 = vmatprep.subr.bf16.mxu0 0
        %1852 = vmatpush1.bf16.msra.mxu0 0
        %1853 = vmatprep.subr.bf16.mxu0 0
        %1854 = vmatpush1.bf16.msra.mxu0 0
        %1855 = vmatprep.subr.bf16.mxu0 0
        %1856 = vmatpush1.bf16.msra.mxu0 0
        %1857 = vmatprep.subr.bf16.mxu0 0
        %1858 = vmatpush1.bf16.msra.mxu0 0
        %1859 = vmatprep.subr.bf16.mxu0 0
        %1860 = vmatpush1.bf16.msra.mxu0 %v1843
        %1861 = vmatprep.subr.bf16.mxu0 0
        %1862 = vmatpush2.bf16.msra.mxu0 0
        %1863 = vmatprep.subr.bf16.mxu0 0
        %1864 = vmatpush2.bf16.msra.mxu0 0
        %1865 = vmatprep.subr.bf16.mxu0 0
        %1866 = vmatpush2.bf16.msra.mxu0 0
        %1867 = vmatprep.subr.bf16.mxu0 0
        %1868 = vmatpush2.bf16.msra.mxu0 0
        %1869 = vmatprep.subr.bf16.mxu0 0
        %1870 = vmatpush2.bf16.msra.mxu0 0
        %1871 = vmatprep.subr.bf16.mxu0 0
        %1872 = vmatpush2.bf16.msra.mxu0 0
        %1873 = vmatprep.subr.bf16.mxu0 0
        %1874 = vmatpush2.bf16.msra.mxu0 0
        %1875 = vmatprep.subr.bf16.mxu0 0
        %1876 = vmatpush2.bf16.msra.mxu0 0
        %1877 = vmatprep.mubr.bf16.mxu0 0
        %1878 = vmatmul.mubr.bf16.gmra.mxu0 %v1839
        %v1879 = vpop.f32.mrf.mxu0
        %v1880 = vadd.f32 0.0, %v1879
        %v1881 = vpop.f32.mrf.mxu0
        %v1882 = vpop.f32.mrf.mxu0
        %v1883 = vpop.f32.mrf.mxu0
        %1884 = vdwg.mxu0
        %v1885 = vpack.c.bf16 %v1880, %v1880
        %v1886 = vld [vmem:[%s17] sm:$0xff]
        %v1887 = vld [vmem:[%s17 + $0x8] sm:$0xff]
        %v1888 = vld [vmem:[%s17 + $0x10] sm:$0xff]
        %v1889 = vld [vmem:[%s17 + $0x18] sm:$0xff]
        %v1890 = vld [vmem:[%s17 + $0x20] sm:$0xff]
        %v1891 = vld [vmem:[%s17 + $0x28] sm:$0xff]
        %v1892 = vld [vmem:[%s17 + $0x30] sm:$0xff]
        %v1893 = vld [vmem:[%s17 + $0x38] sm:$0xff]
        %v1894 = vld [vmem:[%s17 + $0x40] sm:$0xff]
        %v1895 = vld [vmem:[%s17 + $0x48] sm:$0xff]
        %v1896 = vld [vmem:[%s17 + $0x50] sm:$0xff]
        %v1897 = vld [vmem:[%s17 + $0x58] sm:$0xff]
        %v1898 = vld [vmem:[%s17 + $0x60] sm:$0xff]
        %v1899 = vld [vmem:[%s17 + $0x68] sm:$0xff]
        %v1900 = vld [vmem:[%s17 + $0x70] sm:$0xff]
        %v1901 = vld [vmem:[%s17 + $0x78] sm:$0xff]
        %v1918 = vunpack.c.l.b16 %v1886
        %v1919 = vunpack.c.h.b16 %v1886
        %v1920 = vunpack.c.l.b16 %v1887
        %v1921 = vunpack.c.h.b16 %v1887
        %v1922 = vunpack.c.l.b16 %v1888
        %v1923 = vunpack.c.h.b16 %v1888
        %v1924 = vunpack.c.l.b16 %v1889
        %v1925 = vunpack.c.h.b16 %v1889
        %v1926 = vunpack.c.l.b16 %v1890
        %v1927 = vunpack.c.h.b16 %v1890
        %v1928 = vunpack.c.l.b16 %v1891
        %v1929 = vunpack.c.h.b16 %v1891
        %v1930 = vunpack.c.l.b16 %v1892
        %v1931 = vunpack.c.h.b16 %v1892
        %v1932 = vunpack.c.l.b16 %v1893
        %v1933 = vunpack.c.h.b16 %v1893
        %v1934 = vunpack.c.l.b16 %v1894
        %v1935 = vunpack.c.h.b16 %v1894
        %v1936 = vunpack.c.l.b16 %v1895
        %v1937 = vunpack.c.h.b16 %v1895
        %v1938 = vunpack.c.l.b16 %v1896
        %v1939 = vunpack.c.h.b16 %v1896
        %v1940 = vunpack.c.l.b16 %v1897
        %v1941 = vunpack.c.h.b16 %v1897
        %v1942 = vunpack.c.l.b16 %v1898
        %v1943 = vunpack.c.h.b16 %v1898
        %v1944 = vunpack.c.l.b16 %v1899
        %v1945 = vunpack.c.h.b16 %v1899
        %v1946 = vunpack.c.l.b16 %v1900
        %v1947 = vunpack.c.h.b16 %v1900
        %v1948 = vunpack.c.l.b16 %v1901
        %v1949 = vunpack.c.h.b16 %v1901
        %v1950 = vpack.c.b16 %v1920, %v1918
        %v1951 = vpack.c.b16 %v1921, %v1919
        %v1952 = vpack.c.b16 %v1924, %v1922
        %v1953 = vpack.c.b16 %v1925, %v1923
        %v1954 = vpack.c.b16 %v1928, %v1926
        %v1955 = vpack.c.b16 %v1929, %v1927
        %v1956 = vpack.c.b16 %v1932, %v1930
        %v1957 = vpack.c.b16 %v1933, %v1931
        %v1958 = vpack.c.b16 %v1936, %v1934
        %v1959 = vpack.c.b16 %v1937, %v1935
        %v1960 = vpack.c.b16 %v1940, %v1938
        %v1961 = vpack.c.b16 %v1941, %v1939
        %v1962 = vpack.c.b16 %v1944, %v1942
        %v1963 = vpack.c.b16 %v1945, %v1943
        %v1964 = vpack.c.b16 %v1948, %v1946
        %v1965 = vpack.c.b16 %v1949, %v1947
        %1982 = vmatprep.subr.bf16.mxu0 %v1965
        %1983 = vmatpush1.bf16.msra.mxu0 %v1964
        %1984 = vmatprep.subr.bf16.mxu0 %v1963
        %1985 = vmatpush1.bf16.msra.mxu0 %v1962
        %1986 = vmatprep.subr.bf16.mxu0 %v1961
        %1987 = vmatpush1.bf16.msra.mxu0 %v1960
        %1988 = vmatprep.subr.bf16.mxu0 %v1959
        %1989 = vmatpush1.bf16.msra.mxu0 %v1958
        %1990 = vmatprep.subr.bf16.mxu0 %v1957
        %1991 = vmatpush1.bf16.msra.mxu0 %v1956
        %1992 = vmatprep.subr.bf16.mxu0 %v1955
        %1993 = vmatpush1.bf16.msra.mxu0 %v1954
        %1994 = vmatprep.subr.bf16.mxu0 %v1953
        %1995 = vmatpush1.bf16.msra.mxu0 %v1952
        %1996 = vmatprep.subr.bf16.mxu0 %v1951
        %1997 = vmatpush1.bf16.msra.mxu0 %v1950
        %1998 = vmatprep.subr.bf16.mxu0 0
        %1999 = vmatpush2.bf16.msra.mxu0 0
        %2000 = vmatprep.subr.bf16.mxu0 0
        %2001 = vmatpush2.bf16.msra.mxu0 0
        %2002 = vmatprep.subr.bf16.mxu0 0
        %2003 = vmatpush2.bf16.msra.mxu0 0
        %2004 = vmatprep.subr.bf16.mxu0 0
        %2005 = vmatpush2.bf16.msra.mxu0 0
        %2006 = vmatprep.subr.bf16.mxu0 0
        %2007 = vmatpush2.bf16.msra.mxu0 0
        %2008 = vmatprep.subr.bf16.mxu0 0
        %2009 = vmatpush2.bf16.msra.mxu0 0
        %2010 = vmatprep.subr.bf16.mxu0 0
        %2011 = vmatpush2.bf16.msra.mxu0 0
        %2012 = vmatprep.subr.bf16.mxu0 0
        %2013 = vmatpush2.bf16.msra.mxu0 0
        %2014 = vmatprep.mubr.bf16.mxu0 0
        %2015 = vmatmul.mubr.bf16.gmra.mxu0 %v1885
        %v2016 = vpop.f32.mrf.mxu0
        %v2017 = vadd.f32 0.0, %v2016
        %v2018 = vpop.f32.mrf.mxu0
        %v2019 = vadd.f32 0.0, %v2018
        %v2020 = vpop.f32.mrf.mxu0
        %v2021 = vpop.f32.mrf.mxu0
        %2022 = vdwg.mxu0
        %v2023 = vpack.c.bf16 %v1834, %v1834
        %v2024 = vld [vmem:[#allocation5] sm:$0xf]
        %v2025 = vld [vmem:[#allocation5 + $0x4] sm:$0xf]
        %v2026 = vld [vmem:[#allocation5 + $0x8] sm:$0xf]
        %v2027 = vld [vmem:[#allocation5 + $0xc] sm:$0xf]
        %v2028 = vld [vmem:[#allocation5 + $0x10] sm:$0xf]
        %v2029 = vld [vmem:[#allocation5 + $0x14] sm:$0xf]
        %v2030 = vld [vmem:[#allocation5 + $0x18] sm:$0xf]
        %v2031 = vld [vmem:[#allocation5 + $0x1c] sm:$0xf]
        %v2032 = vld [vmem:[#allocation5 + $0x20] sm:$0xf]
        %v2033 = vld [vmem:[#allocation5 + $0x24] sm:$0xf]
        %v2034 = vld [vmem:[#allocation5 + $0x28] sm:$0xf]
        %v2035 = vld [vmem:[#allocation5 + $0x2c] sm:$0xf]
        %v2036 = vld [vmem:[#allocation5 + $0x30] sm:$0xf]
        %v2037 = vld [vmem:[#allocation5 + $0x34] sm:$0xf]
        %v2038 = vld [vmem:[#allocation5 + $0x38] sm:$0xf]
        %v2039 = vld [vmem:[#allocation5 + $0x3c] sm:$0xf]
        %v2040 = vpack.c.bf16 %v2017, %v2017
        %v2041 = vpack.c.bf16 %v2019, %v2019
        %v2042 = vld [vmem:[%s21] sm:$0xf]
        %v2043 = vld [vmem:[%s21 + $0x4] sm:$0xf]
        %v2044 = vld [vmem:[%s21 + $0x8] sm:$0xf]
        %v2045 = vld [vmem:[%s21 + $0xc] sm:$0xf]
        %v2046 = vld [vmem:[%s21 + $0x10] sm:$0xf]
        %v2047 = vld [vmem:[%s21 + $0x14] sm:$0xf]
        %v2048 = vld [vmem:[%s21 + $0x18] sm:$0xf]
        %v2049 = vld [vmem:[%s21 + $0x1c] sm:$0xf]
        %v2050 = vld [vmem:[%s21 + $0x20] sm:$0xf]
        %v2051 = vld [vmem:[%s21 + $0x24] sm:$0xf]
        %v2052 = vld [vmem:[%s21 + $0x28] sm:$0xf]
        %v2053 = vld [vmem:[%s21 + $0x2c] sm:$0xf]
        %v2054 = vld [vmem:[%s21 + $0x30] sm:$0xf]
        %v2055 = vld [vmem:[%s21 + $0x34] sm:$0xf]
        %v2056 = vld [vmem:[%s21 + $0x38] sm:$0xf]
        %v2057 = vld [vmem:[%s21 + $0x3c] sm:$0xf]
        %v2058 = vld [vmem:[%s21 + $0x40] sm:$0xf]
        %v2059 = vld [vmem:[%s21 + $0x44] sm:$0xf]
        %v2060 = vld [vmem:[%s21 + $0x48] sm:$0xf]
        %v2061 = vld [vmem:[%s21 + $0x4c] sm:$0xf]
        %v2062 = vld [vmem:[%s21 + $0x50] sm:$0xf]
        %v2063 = vld [vmem:[%s21 + $0x54] sm:$0xf]
        %v2064 = vld [vmem:[%s21 + $0x58] sm:$0xf]
        %v2065 = vld [vmem:[%s21 + $0x5c] sm:$0xf]
        %v2066 = vld [vmem:[%s21 + $0x60] sm:$0xf]
        %v2067 = vld [vmem:[%s21 + $0x64] sm:$0xf]
        %v2068 = vld [vmem:[%s21 + $0x68] sm:$0xf]
        %v2069 = vld [vmem:[%s21 + $0x6c] sm:$0xf]
        %v2070 = vld [vmem:[%s21 + $0x70] sm:$0xf]
        %v2071 = vld [vmem:[%s21 + $0x74] sm:$0xf]
        %v2072 = vld [vmem:[%s21 + $0x78] sm:$0xf]
        %v2073 = vld [vmem:[%s21 + $0x7c] sm:$0xf]
        %v2106 = vunpack.c.l.b16 %v2042
        %v2107 = vunpack.c.l.b16 %v2043
        %v2108 = vunpack.c.l.b16 %v2044
        %v2109 = vunpack.c.l.b16 %v2045
        %v2110 = vunpack.c.l.b16 %v2046
        %v2111 = vunpack.c.l.b16 %v2047
        %v2112 = vunpack.c.l.b16 %v2048
        %v2113 = vunpack.c.l.b16 %v2049
        %v2114 = vunpack.c.l.b16 %v2050
        %v2115 = vunpack.c.l.b16 %v2051
        %v2116 = vunpack.c.l.b16 %v2052
        %v2117 = vunpack.c.l.b16 %v2053
        %v2118 = vunpack.c.l.b16 %v2054
        %v2119 = vunpack.c.l.b16 %v2055
        %v2120 = vunpack.c.l.b16 %v2056
        %v2121 = vunpack.c.l.b16 %v2057
        %v2122 = vunpack.c.l.b16 %v2058
        %v2123 = vunpack.c.l.b16 %v2059
        %v2124 = vunpack.c.l.b16 %v2060
        %v2125 = vunpack.c.l.b16 %v2061
        %v2126 = vunpack.c.l.b16 %v2062
        %v2127 = vunpack.c.l.b16 %v2063
        %v2128 = vunpack.c.l.b16 %v2064
        %v2129 = vunpack.c.l.b16 %v2065
        %v2130 = vunpack.c.l.b16 %v2066
        %v2131 = vunpack.c.l.b16 %v2067
        %v2132 = vunpack.c.l.b16 %v2068
        %v2133 = vunpack.c.l.b16 %v2069
        %v2134 = vunpack.c.l.b16 %v2070
        %v2135 = vunpack.c.l.b16 %v2071
        %v2136 = vunpack.c.l.b16 %v2072
        %v2137 = vunpack.c.l.b16 %v2073
        %v2138 = vpack.c.b16 %v2107, %v2106
        %v2139 = vpack.c.b16 %v2109, %v2108
        %v2140 = vpack.c.b16 %v2111, %v2110
        %v2141 = vpack.c.b16 %v2113, %v2112
        %v2142 = vpack.c.b16 %v2115, %v2114
        %v2143 = vpack.c.b16 %v2117, %v2116
        %v2144 = vpack.c.b16 %v2119, %v2118
        %v2145 = vpack.c.b16 %v2121, %v2120
        %v2146 = vpack.c.b16 %v2123, %v2122
        %v2147 = vpack.c.b16 %v2125, %v2124
        %v2148 = vpack.c.b16 %v2127, %v2126
        %v2149 = vpack.c.b16 %v2129, %v2128
        %v2150 = vpack.c.b16 %v2131, %v2130
        %v2151 = vpack.c.b16 %v2133, %v2132
        %v2152 = vpack.c.b16 %v2135, %v2134
        %v2153 = vpack.c.b16 %v2137, %v2136
        %2170 = vmatprep.subr.bf16.mxu0 0
        %2171 = vmatpush1.bf16.msra.mxu0 %v2145
        %2172 = vmatprep.subr.bf16.mxu0 0
        %2173 = vmatpush1.bf16.msra.mxu0 %v2144
        %2174 = vmatprep.subr.bf16.mxu0 0
        %2175 = vmatpush1.bf16.msra.mxu0 %v2143
        %2176 = vmatprep.subr.bf16.mxu0 0
        %2177 = vmatpush1.bf16.msra.mxu0 %v2142
        %2178 = vmatprep.subr.bf16.mxu0 0
        %2179 = vmatpush1.bf16.msra.mxu0 %v2141
        %2180 = vmatprep.subr.bf16.mxu0 0
        %2181 = vmatpush1.bf16.msra.mxu0 %v2140
        %2182 = vmatprep.subr.bf16.mxu0 0
        %2183 = vmatpush1.bf16.msra.mxu0 %v2139
        %2184 = vmatprep.subr.bf16.mxu0 0
        %2185 = vmatpush1.bf16.msra.mxu0 %v2138
        %2186 = vmatprep.subr.bf16.mxu0 0
        %2187 = vmatpush2.bf16.msra.mxu0 %v2153
        %2188 = vmatprep.subr.bf16.mxu0 0
        %2189 = vmatpush2.bf16.msra.mxu0 %v2152
        %2190 = vmatprep.subr.bf16.mxu0 0
        %2191 = vmatpush2.bf16.msra.mxu0 %v2151
        %2192 = vmatprep.subr.bf16.mxu0 0
        %2193 = vmatpush2.bf16.msra.mxu0 %v2150
        %2194 = vmatprep.subr.bf16.mxu0 0
        %2195 = vmatpush2.bf16.msra.mxu0 %v2149
        %2196 = vmatprep.subr.bf16.mxu0 0
        %2197 = vmatpush2.bf16.msra.mxu0 %v2148
        %2198 = vmatprep.subr.bf16.mxu0 0
        %2199 = vmatpush2.bf16.msra.mxu0 %v2147
        %2200 = vmatprep.subr.bf16.mxu0 0
        %2201 = vmatpush2.bf16.msra.mxu0 %v2146
        %2202 = vmatprep.mubr.bf16.mxu0 %v2041
        %2203 = vmatmul.mubr.bf16.gmra.mxu0 %v2040
        %v2204 = vpop.f32.mrf.mxu0
        %v2205 = vadd.f32 0.0, %v2204
        %v2206 = vpop.f32.mrf.mxu0
        %v2207 = vpop.f32.mrf.mxu0
        %v2208 = vpop.f32.mrf.mxu0
        %2209 = vdwg.mxu0
        %v2226 = vunpack.c.l.b16 %v2024
        %v2227 = vunpack.c.l.b16 %v2025
        %v2228 = vunpack.c.l.b16 %v2026
        %v2229 = vunpack.c.l.b16 %v2027
        %v2230 = vunpack.c.l.b16 %v2028
        %v2231 = vunpack.c.l.b16 %v2029
        %v2232 = vunpack.c.l.b16 %v2030
        %v2233 = vunpack.c.l.b16 %v2031
        %v2234 = vunpack.c.l.b16 %v2032
        %v2235 = vunpack.c.l.b16 %v2033
        %v2236 = vunpack.c.l.b16 %v2034
        %v2237 = vunpack.c.l.b16 %v2035
        %v2238 = vunpack.c.l.b16 %v2036
        %v2239 = vunpack.c.l.b16 %v2037
        %v2240 = vunpack.c.l.b16 %v2038
        %v2241 = vunpack.c.l.b16 %v2039
        %v2242 = vpack.c.b16 %v2227, %v2226
        %v2243 = vpack.c.b16 %v2229, %v2228
        %v2244 = vpack.c.b16 %v2231, %v2230
        %v2245 = vpack.c.b16 %v2233, %v2232
        %v2246 = vpack.c.b16 %v2235, %v2234
        %v2247 = vpack.c.b16 %v2237, %v2236
        %v2248 = vpack.c.b16 %v2239, %v2238
        %v2249 = vpack.c.b16 %v2241, %v2240
        %2258 = vmatprep.subr.bf16.mxu0 0
        %2259 = vmatpush1.bf16.msra.mxu0 %v2249
        %2260 = vmatprep.subr.bf16.mxu0 0
        %2261 = vmatpush1.bf16.msra.mxu0 %v2248
        %2262 = vmatprep.subr.bf16.mxu0 0
        %2263 = vmatpush1.bf16.msra.mxu0 %v2247
        %2264 = vmatprep.subr.bf16.mxu0 0
        %2265 = vmatpush1.bf16.msra.mxu0 %v2246
        %2266 = vmatprep.subr.bf16.mxu0 0
        %2267 = vmatpush1.bf16.msra.mxu0 %v2245
        %2268 = vmatprep.subr.bf16.mxu0 0
        %2269 = vmatpush1.bf16.msra.mxu0 %v2244
        %2270 = vmatprep.subr.bf16.mxu0 0
        %2271 = vmatpush1.bf16.msra.mxu0 %v2243
        %2272 = vmatprep.subr.bf16.mxu0 0
        %2273 = vmatpush1.bf16.msra.mxu0 %v2242
        %2274 = vmatprep.subr.bf16.mxu0 0
        %2275 = vmatpush2.bf16.msra.mxu0 0
        %2276 = vmatprep.subr.bf16.mxu0 0
        %2277 = vmatpush2.bf16.msra.mxu0 0
        %2278 = vmatprep.subr.bf16.mxu0 0
        %2279 = vmatpush2.bf16.msra.mxu0 0
        %2280 = vmatprep.subr.bf16.mxu0 0
        %2281 = vmatpush2.bf16.msra.mxu0 0
        %2282 = vmatprep.subr.bf16.mxu0 0
        %2283 = vmatpush2.bf16.msra.mxu0 0
        %2284 = vmatprep.subr.bf16.mxu0 0
        %2285 = vmatpush2.bf16.msra.mxu0 0
        %2286 = vmatprep.subr.bf16.mxu0 0
        %2287 = vmatpush2.bf16.msra.mxu0 0
        %2288 = vmatprep.subr.bf16.mxu0 0
        %2289 = vmatpush2.bf16.msra.mxu0 0
        %2290 = vmatprep.mubr.bf16.mxu0 0
        %2291 = vmatmul.mubr.bf16.gmra.mxu0 %v2023
        %v2292 = vpop.f32.mrf.mxu0
        %v2293 = vadd.f32 %v2205, %v2292
        %v2294 = vpop.f32.mrf.mxu0
        %v2295 = vpop.f32.mrf.mxu0
        %v2296 = vpop.f32.mrf.mxu0
        %2297 = vdwg.mxu0
        %v2298 = vld [vmem:[#allocation7] sm:$0x1]
        %v2300 = vlaneseq
        %v2301 = vshrl.u32 %v2300, 7
        %v2302 = vsub.s32 0, %v2301
        %v2303 = vrot.slane %v2298, %v2302
        %v2305 = vadd.f32 %v2293, %v2303
        %v2306 = vmax.f32 %v2305, 0.0
        %2307 = vst [vmem:[#allocation2] sm:$0x1] 0.0
        %2308 = vst [vmem:[#allocation2 + $0x11] sm:$0x1] 0.0
        %2309 = vst [vmem:[#allocation2 + $0x1] sm:$0xff] %v1415
        %2310 = vst [vmem:[#allocation2 + $0x9] sm:$0xff] %v1416
        %v2311 = vld [vmem:[#allocation2] sm:$0xff]
        %v2312 = vld [vmem:[#allocation2 + $0x8] sm:$0xff]
        %v2313 = vpack.c.bf16 %v2312, %v2311
        %v2314 = vld [vmem:[%s25] sm:$0xf]
        %v2315 = vld [vmem:[%s25 + $0x4] sm:$0xf]
        %v2316 = vld [vmem:[%s25 + $0x8] sm:$0xf]
        %v2317 = vld [vmem:[%s25 + $0xc] sm:$0xf]
        %v2318 = vld [vmem:[%s25 + $0x10] sm:$0xf]
        %v2319 = vld [vmem:[%s25 + $0x14] sm:$0xf]
        %v2320 = vld [vmem:[%s25 + $0x18] sm:$0xf]
        %v2321 = vld [vmem:[%s25 + $0x1c] sm:$0xf]
        %v2322 = vld [vmem:[%s25 + $0x20] sm:$0xf]
        %v2323 = vld [vmem:[%s25 + $0x24] sm:$0xf]
        %v2324 = vld [vmem:[%s25 + $0x28] sm:$0xf]
        %v2325 = vld [vmem:[%s25 + $0x2c] sm:$0xf]
        %v2326 = vld [vmem:[%s25 + $0x30] sm:$0xf]
        %v2327 = vld [vmem:[%s25 + $0x34] sm:$0xf]
        %v2328 = vld [vmem:[%s25 + $0x38] sm:$0xf]
        %v2329 = vld [vmem:[%s25 + $0x3c] sm:$0xf]
        %v2330 = vld [vmem:[#allocation2 + $0x1] sm:$0xff]
        %v2331 = vld [vmem:[#allocation2 + $0x9] sm:$0xff]
        %v2332 = vpack.c.bf16 %v2331, %v2330
        %s2333 = scalar_lea.vmem %s25, 64
        %v2334 = vld [vmem:[%s2333] sm:$0xf]
        %v2335 = vld [vmem:[%s2333 + $0x4] sm:$0xf]
        %v2336 = vld [vmem:[%s2333 + $0x8] sm:$0xf]
        %v2337 = vld [vmem:[%s2333 + $0xc] sm:$0xf]
        %v2338 = vld [vmem:[%s2333 + $0x10] sm:$0xf]
        %v2339 = vld [vmem:[%s2333 + $0x14] sm:$0xf]
        %v2340 = vld [vmem:[%s2333 + $0x18] sm:$0xf]
        %v2341 = vld [vmem:[%s2333 + $0x1c] sm:$0xf]
        %v2342 = vld [vmem:[%s2333 + $0x20] sm:$0xf]
        %v2343 = vld [vmem:[%s2333 + $0x24] sm:$0xf]
        %v2344 = vld [vmem:[%s2333 + $0x28] sm:$0xf]
        %v2345 = vld [vmem:[%s2333 + $0x2c] sm:$0xf]
        %v2346 = vld [vmem:[%s2333 + $0x30] sm:$0xf]
        %v2347 = vld [vmem:[%s2333 + $0x34] sm:$0xf]
        %v2348 = vld [vmem:[%s2333 + $0x38] sm:$0xf]
        %v2349 = vld [vmem:[%s2333 + $0x3c] sm:$0xf]
        %v2366 = vunpack.c.l.b16 %v2334
        %v2367 = vunpack.c.l.b16 %v2335
        %v2368 = vunpack.c.l.b16 %v2336
        %v2369 = vunpack.c.l.b16 %v2337
        %v2370 = vunpack.c.l.b16 %v2338
        %v2371 = vunpack.c.l.b16 %v2339
        %v2372 = vunpack.c.l.b16 %v2340
        %v2373 = vunpack.c.l.b16 %v2341
        %v2374 = vunpack.c.l.b16 %v2342
        %v2375 = vunpack.c.l.b16 %v2343
        %v2376 = vunpack.c.l.b16 %v2344
        %v2377 = vunpack.c.l.b16 %v2345
        %v2378 = vunpack.c.l.b16 %v2346
        %v2379 = vunpack.c.l.b16 %v2347
        %v2380 = vunpack.c.l.b16 %v2348
        %v2381 = vunpack.c.l.b16 %v2349
        %v2382 = vpack.c.b16 %v2367, %v2366
        %v2383 = vpack.c.b16 %v2369, %v2368
        %v2384 = vpack.c.b16 %v2371, %v2370
        %v2385 = vpack.c.b16 %v2373, %v2372
        %v2386 = vpack.c.b16 %v2375, %v2374
        %v2387 = vpack.c.b16 %v2377, %v2376
        %v2388 = vpack.c.b16 %v2379, %v2378
        %v2389 = vpack.c.b16 %v2381, %v2380
        %2398 = vmatprep.subr.bf16.mxu0 0
        %2399 = vmatpush1.bf16.msra.mxu0 %v2389
        %2400 = vmatprep.subr.bf16.mxu0 0
        %2401 = vmatpush1.bf16.msra.mxu0 %v2388
        %2402 = vmatprep.subr.bf16.mxu0 0
        %2403 = vmatpush1.bf16.msra.mxu0 %v2387
        %2404 = vmatprep.subr.bf16.mxu0 0
        %2405 = vmatpush1.bf16.msra.mxu0 %v2386
        %2406 = vmatprep.subr.bf16.mxu0 0
        %2407 = vmatpush1.bf16.msra.mxu0 %v2385
        %2408 = vmatprep.subr.bf16.mxu0 0
        %2409 = vmatpush1.bf16.msra.mxu0 %v2384
        %2410 = vmatprep.subr.bf16.mxu0 0
        %2411 = vmatpush1.bf16.msra.mxu0 %v2383
        %2412 = vmatprep.subr.bf16.mxu0 0
        %2413 = vmatpush1.bf16.msra.mxu0 %v2382
        %2414 = vmatprep.subr.bf16.mxu0 0
        %2415 = vmatpush2.bf16.msra.mxu0 0
        %2416 = vmatprep.subr.bf16.mxu0 0
        %2417 = vmatpush2.bf16.msra.mxu0 0
        %2418 = vmatprep.subr.bf16.mxu0 0
        %2419 = vmatpush2.bf16.msra.mxu0 0
        %2420 = vmatprep.subr.bf16.mxu0 0
        %2421 = vmatpush2.bf16.msra.mxu0 0
        %2422 = vmatprep.subr.bf16.mxu0 0
        %2423 = vmatpush2.bf16.msra.mxu0 0
        %2424 = vmatprep.subr.bf16.mxu0 0
        %2425 = vmatpush2.bf16.msra.mxu0 0
        %2426 = vmatprep.subr.bf16.mxu0 0
        %2427 = vmatpush2.bf16.msra.mxu0 0
        %2428 = vmatprep.subr.bf16.mxu0 0
        %2429 = vmatpush2.bf16.msra.mxu0 0
        %2430 = vmatprep.mubr.bf16.mxu0 0
        %2431 = vmatmul.mubr.bf16.gmra.mxu0 %v2332
        %v2432 = vpop.f32.mrf.mxu0
        %v2433 = vadd.f32 0.0, %v2432
        %v2434 = vpop.f32.mrf.mxu0
        %v2435 = vpop.f32.mrf.mxu0
        %v2436 = vadd.f32 0.0, %v2435
        %v2437 = vpop.f32.mrf.mxu0
        %2438 = vdwg.mxu0
        %v2455 = vunpack.c.l.b16 %v2314
        %v2456 = vunpack.c.l.b16 %v2315
        %v2457 = vunpack.c.l.b16 %v2316
        %v2458 = vunpack.c.l.b16 %v2317
        %v2459 = vunpack.c.l.b16 %v2318
        %v2460 = vunpack.c.l.b16 %v2319
        %v2461 = vunpack.c.l.b16 %v2320
        %v2462 = vunpack.c.l.b16 %v2321
        %v2463 = vunpack.c.l.b16 %v2322
        %v2464 = vunpack.c.l.b16 %v2323
        %v2465 = vunpack.c.l.b16 %v2324
        %v2466 = vunpack.c.l.b16 %v2325
        %v2467 = vunpack.c.l.b16 %v2326
        %v2468 = vunpack.c.l.b16 %v2327
        %v2469 = vunpack.c.l.b16 %v2328
        %v2470 = vunpack.c.l.b16 %v2329
        %v2471 = vpack.c.b16 %v2456, %v2455
        %v2472 = vpack.c.b16 %v2458, %v2457
        %v2473 = vpack.c.b16 %v2460, %v2459
        %v2474 = vpack.c.b16 %v2462, %v2461
        %v2475 = vpack.c.b16 %v2464, %v2463
        %v2476 = vpack.c.b16 %v2466, %v2465
        %v2477 = vpack.c.b16 %v2468, %v2467
        %v2478 = vpack.c.b16 %v2470, %v2469
        %2487 = vmatprep.subr.bf16.mxu0 0
        %2488 = vmatpush1.bf16.msra.mxu0 %v2478
        %2489 = vmatprep.subr.bf16.mxu0 0
        %2490 = vmatpush1.bf16.msra.mxu0 %v2477
        %2491 = vmatprep.subr.bf16.mxu0 0
        %2492 = vmatpush1.bf16.msra.mxu0 %v2476
        %2493 = vmatprep.subr.bf16.mxu0 0
        %2494 = vmatpush1.bf16.msra.mxu0 %v2475
        %2495 = vmatprep.subr.bf16.mxu0 0
        %2496 = vmatpush1.bf16.msra.mxu0 %v2474
        %2497 = vmatprep.subr.bf16.mxu0 0
        %2498 = vmatpush1.bf16.msra.mxu0 %v2473
        %2499 = vmatprep.subr.bf16.mxu0 0
        %2500 = vmatpush1.bf16.msra.mxu0 %v2472
        %2501 = vmatprep.subr.bf16.mxu0 0
        %2502 = vmatpush1.bf16.msra.mxu0 %v2471
        %2503 = vmatprep.subr.bf16.mxu0 0
        %2504 = vmatpush2.bf16.msra.mxu0 0
        %2505 = vmatprep.subr.bf16.mxu0 0
        %2506 = vmatpush2.bf16.msra.mxu0 0
        %2507 = vmatprep.subr.bf16.mxu0 0
        %2508 = vmatpush2.bf16.msra.mxu0 0
        %2509 = vmatprep.subr.bf16.mxu0 0
        %2510 = vmatpush2.bf16.msra.mxu0 0
        %2511 = vmatprep.subr.bf16.mxu0 0
        %2512 = vmatpush2.bf16.msra.mxu0 0
        %2513 = vmatprep.subr.bf16.mxu0 0
        %2514 = vmatpush2.bf16.msra.mxu0 0
        %2515 = vmatprep.subr.bf16.mxu0 0
        %2516 = vmatpush2.bf16.msra.mxu0 0
        %2517 = vmatprep.subr.bf16.mxu0 0
        %2518 = vmatpush2.bf16.msra.mxu0 0
        %2519 = vmatprep.mubr.bf16.mxu0 0
        %2520 = vmatmul.mubr.bf16.gmra.mxu0 %v2313
        %v2521 = vpop.f32.mrf.mxu0
        %v2522 = vadd.f32 %v2433, %v2521
        %v2523 = vpop.f32.mrf.mxu0
        %v2524 = vpop.f32.mrf.mxu0
        %v2525 = vadd.f32 %v2436, %v2524
        %v2526 = vpop.f32.mrf.mxu0
        %2527 = vdwg.mxu0
        %v2528 = vld [vmem:[#allocation2 + $0x2] sm:$0xff]
        %v2529 = vld [vmem:[#allocation2 + $0xa] sm:$0xff]
        %v2530 = vpack.c.bf16 %v2529, %v2528
        %s2531 = scalar_lea.vmem %s25, 128
        %v2532 = vld [vmem:[%s2531] sm:$0xf]
        %v2533 = vld [vmem:[%s2531 + $0x4] sm:$0xf]
        %v2534 = vld [vmem:[%s2531 + $0x8] sm:$0xf]
        %v2535 = vld [vmem:[%s2531 + $0xc] sm:$0xf]
        %v2536 = vld [vmem:[%s2531 + $0x10] sm:$0xf]
        %v2537 = vld [vmem:[%s2531 + $0x14] sm:$0xf]
        %v2538 = vld [vmem:[%s2531 + $0x18] sm:$0xf]
        %v2539 = vld [vmem:[%s2531 + $0x1c] sm:$0xf]
        %v2540 = vld [vmem:[%s2531 + $0x20] sm:$0xf]
        %v2541 = vld [vmem:[%s2531 + $0x24] sm:$0xf]
        %v2542 = vld [vmem:[%s2531 + $0x28] sm:$0xf]
        %v2543 = vld [vmem:[%s2531 + $0x2c] sm:$0xf]
        %v2544 = vld [vmem:[%s2531 + $0x30] sm:$0xf]
        %v2545 = vld [vmem:[%s2531 + $0x34] sm:$0xf]
        %v2546 = vld [vmem:[%s2531 + $0x38] sm:$0xf]
        %v2547 = vld [vmem:[%s2531 + $0x3c] sm:$0xf]
        %v2564 = vunpack.c.l.b16 %v2532
        %v2565 = vunpack.c.l.b16 %v2533
        %v2566 = vunpack.c.l.b16 %v2534
        %v2567 = vunpack.c.l.b16 %v2535
        %v2568 = vunpack.c.l.b16 %v2536
        %v2569 = vunpack.c.l.b16 %v2537
        %v2570 = vunpack.c.l.b16 %v2538
        %v2571 = vunpack.c.l.b16 %v2539
        %v2572 = vunpack.c.l.b16 %v2540
        %v2573 = vunpack.c.l.b16 %v2541
        %v2574 = vunpack.c.l.b16 %v2542
        %v2575 = vunpack.c.l.b16 %v2543
        %v2576 = vunpack.c.l.b16 %v2544
        %v2577 = vunpack.c.l.b16 %v2545
        %v2578 = vunpack.c.l.b16 %v2546
        %v2579 = vunpack.c.l.b16 %v2547
        %v2580 = vpack.c.b16 %v2565, %v2564
        %v2581 = vpack.c.b16 %v2567, %v2566
        %v2582 = vpack.c.b16 %v2569, %v2568
        %v2583 = vpack.c.b16 %v2571, %v2570
        %v2584 = vpack.c.b16 %v2573, %v2572
        %v2585 = vpack.c.b16 %v2575, %v2574
        %v2586 = vpack.c.b16 %v2577, %v2576
        %v2587 = vpack.c.b16 %v2579, %v2578
        %2596 = vmatprep.subr.bf16.mxu0 0
        %2597 = vmatpush1.bf16.msra.mxu0 %v2587
        %2598 = vmatprep.subr.bf16.mxu0 0
        %2599 = vmatpush1.bf16.msra.mxu0 %v2586
        %2600 = vmatprep.subr.bf16.mxu0 0
        %2601 = vmatpush1.bf16.msra.mxu0 %v2585
        %2602 = vmatprep.subr.bf16.mxu0 0
        %2603 = vmatpush1.bf16.msra.mxu0 %v2584
        %2604 = vmatprep.subr.bf16.mxu0 0
        %2605 = vmatpush1.bf16.msra.mxu0 %v2583
        %2606 = vmatprep.subr.bf16.mxu0 0
        %2607 = vmatpush1.bf16.msra.mxu0 %v2582
        %2608 = vmatprep.subr.bf16.mxu0 0
        %2609 = vmatpush1.bf16.msra.mxu0 %v2581
        %2610 = vmatprep.subr.bf16.mxu0 0
        %2611 = vmatpush1.bf16.msra.mxu0 %v2580
        %2612 = vmatprep.subr.bf16.mxu0 0
        %2613 = vmatpush2.bf16.msra.mxu0 0
        %2614 = vmatprep.subr.bf16.mxu0 0
        %2615 = vmatpush2.bf16.msra.mxu0 0
        %2616 = vmatprep.subr.bf16.mxu0 0
        %2617 = vmatpush2.bf16.msra.mxu0 0
        %2618 = vmatprep.subr.bf16.mxu0 0
        %2619 = vmatpush2.bf16.msra.mxu0 0
        %2620 = vmatprep.subr.bf16.mxu0 0
        %2621 = vmatpush2.bf16.msra.mxu0 0
        %2622 = vmatprep.subr.bf16.mxu0 0
        %2623 = vmatpush2.bf16.msra.mxu0 0
        %2624 = vmatprep.subr.bf16.mxu0 0
        %2625 = vmatpush2.bf16.msra.mxu0 0
        %2626 = vmatprep.subr.bf16.mxu0 0
        %2627 = vmatpush2.bf16.msra.mxu0 0
        %2628 = vmatprep.mubr.bf16.mxu0 0
        %2629 = vmatmul.mubr.bf16.gmra.mxu0 %v2530
        %v2630 = vpop.f32.mrf.mxu0
        %v2631 = vadd.f32 0.0, %v2630
        %v2632 = vpop.f32.mrf.mxu0
        %v2633 = vpop.f32.mrf.mxu0
        %v2634 = vadd.f32 0.0, %v2633
        %v2635 = vpop.f32.mrf.mxu0
        %2636 = vdwg.mxu0
        %v2637 = vadd.f32 %v2522, %v2631
        %v2638 = vadd.f32 %v2525, %v2634
        %v2639 = vld [vmem:[#allocation8] sm:$0x1]
        %v2641 = vlaneseq
        %v2642 = vshrl.u32 %v2641, 7
        %v2643 = vsub.s32 0, %v2642
        %v2644 = vrot.slane %v2639, %v2643
        %v2646 = vadd.f32 %v2637, %v2644
        %v2647 = vadd.f32 %v2638, %v2644
        %v2648 = vmax.f32 %v2646, 0.0
        %v2649 = vmax.f32 %v2647, 0.0
        %v2650 = vld [vmem:[%s29] sm:$0xf]
        %v2651 = vpack.c.bf16 %v2649, %v2648
        %vm2652 = vcmask 130048
        %v2654 = vsel %vm2652, %v2650, 0
        %2656 = vmatprep.subr.bf16.mxu0 0
        %2657 = vmatpush1.bf16.msra.mxu0 0
        %2658 = vmatprep.subr.bf16.mxu0 0
        %2659 = vmatpush1.bf16.msra.mxu0 0
        %2660 = vmatprep.subr.bf16.mxu0 0
        %2661 = vmatpush1.bf16.msra.mxu0 0
        %2662 = vmatprep.subr.bf16.mxu0 0
        %2663 = vmatpush1.bf16.msra.mxu0 0
        %2664 = vmatprep.subr.bf16.mxu0 0
        %2665 = vmatpush1.bf16.msra.mxu0 0
        %2666 = vmatprep.subr.bf16.mxu0 0
        %2667 = vmatpush1.bf16.msra.mxu0 0
        %2668 = vmatprep.subr.bf16.mxu0 0
        %2669 = vmatpush1.bf16.msra.mxu0 0
        %2670 = vmatprep.subr.bf16.mxu0 0
        %2671 = vmatpush1.bf16.msra.mxu0 %v2651
        %2672 = vmatprep.subr.bf16.mxu0 0
        %2673 = vmatpush2.bf16.msra.mxu0 0
        %2674 = vmatprep.subr.bf16.mxu0 0
        %2675 = vmatpush2.bf16.msra.mxu0 0
        %2676 = vmatprep.subr.bf16.mxu0 0
        %2677 = vmatpush2.bf16.msra.mxu0 0
        %2678 = vmatprep.subr.bf16.mxu0 0
        %2679 = vmatpush2.bf16.msra.mxu0 0
        %2680 = vmatprep.subr.bf16.mxu0 0
        %2681 = vmatpush2.bf16.msra.mxu0 0
        %2682 = vmatprep.subr.bf16.mxu0 0
        %2683 = vmatpush2.bf16.msra.mxu0 0
        %2684 = vmatprep.subr.bf16.mxu0 0
        %2685 = vmatpush2.bf16.msra.mxu0 0
        %2686 = vmatprep.subr.bf16.mxu0 0
        %2687 = vmatpush2.bf16.msra.mxu0 0
        %2688 = vmatprep.mubr.bf16.mxu0 0
        %2689 = vmatmul.mubr.bf16.gmra.mxu0 %v2654
        %v2690 = vpop.f32.mrf.mxu0
        %v2691 = vadd.f32 0.0, %v2690
        %v2692 = vpop.f32.mrf.mxu0
        %v2693 = vpop.f32.mrf.mxu0
        %v2694 = vpop.f32.mrf.mxu0
        %2695 = vdwg.mxu0
        %v2696 = vpack.c.bf16 %v2691, %v2691
        %v2697 = vld [vmem:[%s31] sm:$0xf]
        %v2698 = vld [vmem:[%s31 + $0x4] sm:$0xf]
        %v2699 = vld [vmem:[%s31 + $0x8] sm:$0xf]
        %v2700 = vld [vmem:[%s31 + $0xc] sm:$0xf]
        %v2701 = vld [vmem:[%s31 + $0x10] sm:$0xf]
        %v2702 = vld [vmem:[%s31 + $0x14] sm:$0xf]
        %v2703 = vld [vmem:[%s31 + $0x18] sm:$0xf]
        %v2704 = vld [vmem:[%s31 + $0x1c] sm:$0xf]
        %v2705 = vld [vmem:[%s31 + $0x20] sm:$0xf]
        %v2706 = vld [vmem:[%s31 + $0x24] sm:$0xf]
        %v2707 = vld [vmem:[%s31 + $0x28] sm:$0xf]
        %v2708 = vld [vmem:[%s31 + $0x2c] sm:$0xf]
        %v2709 = vld [vmem:[%s31 + $0x30] sm:$0xf]
        %v2710 = vld [vmem:[%s31 + $0x34] sm:$0xf]
        %v2711 = vld [vmem:[%s31 + $0x38] sm:$0xf]
        %v2712 = vld [vmem:[%s31 + $0x3c] sm:$0xf]
        %v2729 = vunpack.c.l.b16 %v2697
        %v2730 = vunpack.c.l.b16 %v2698
        %v2731 = vunpack.c.l.b16 %v2699
        %v2732 = vunpack.c.l.b16 %v2700
        %v2733 = vunpack.c.l.b16 %v2701
        %v2734 = vunpack.c.l.b16 %v2702
        %v2735 = vunpack.c.l.b16 %v2703
        %v2736 = vunpack.c.l.b16 %v2704
        %v2737 = vunpack.c.l.b16 %v2705
        %v2738 = vunpack.c.l.b16 %v2706
        %v2739 = vunpack.c.l.b16 %v2707
        %v2740 = vunpack.c.l.b16 %v2708
        %v2741 = vunpack.c.l.b16 %v2709
        %v2742 = vunpack.c.l.b16 %v2710
        %v2743 = vunpack.c.l.b16 %v2711
        %v2744 = vunpack.c.l.b16 %v2712
        %v2745 = vpack.c.b16 %v2730, %v2729
        %v2746 = vpack.c.b16 %v2732, %v2731
        %v2747 = vpack.c.b16 %v2734, %v2733
        %v2748 = vpack.c.b16 %v2736, %v2735
        %v2749 = vpack.c.b16 %v2738, %v2737
        %v2750 = vpack.c.b16 %v2740, %v2739
        %v2751 = vpack.c.b16 %v2742, %v2741
        %v2752 = vpack.c.b16 %v2744, %v2743
        %2761 = vmatprep.subr.bf16.mxu0 0
        %2762 = vmatpush1.bf16.msra.mxu0 %v2752
        %2763 = vmatprep.subr.bf16.mxu0 0
        %2764 = vmatpush1.bf16.msra.mxu0 %v2751
        %2765 = vmatprep.subr.bf16.mxu0 0
        %2766 = vmatpush1.bf16.msra.mxu0 %v2750
        %2767 = vmatprep.subr.bf16.mxu0 0
        %2768 = vmatpush1.bf16.msra.mxu0 %v2749
        %2769 = vmatprep.subr.bf16.mxu0 0
        %2770 = vmatpush1.bf16.msra.mxu0 %v2748
        %2771 = vmatprep.subr.bf16.mxu0 0
        %2772 = vmatpush1.bf16.msra.mxu0 %v2747
        %2773 = vmatprep.subr.bf16.mxu0 0
        %2774 = vmatpush1.bf16.msra.mxu0 %v2746
        %2775 = vmatprep.subr.bf16.mxu0 0
        %2776 = vmatpush1.bf16.msra.mxu0 %v2745
        %2777 = vmatprep.subr.bf16.mxu0 0
        %2778 = vmatpush2.bf16.msra.mxu0 0
        %2779 = vmatprep.subr.bf16.mxu0 0
        %2780 = vmatpush2.bf16.msra.mxu0 0
        %2781 = vmatprep.subr.bf16.mxu0 0
        %2782 = vmatpush2.bf16.msra.mxu0 0
        %2783 = vmatprep.subr.bf16.mxu0 0
        %2784 = vmatpush2.bf16.msra.mxu0 0
        %2785 = vmatprep.subr.bf16.mxu0 0
        %2786 = vmatpush2.bf16.msra.mxu0 0
        %2787 = vmatprep.subr.bf16.mxu0 0
        %2788 = vmatpush2.bf16.msra.mxu0 0
        %2789 = vmatprep.subr.bf16.mxu0 0
        %2790 = vmatpush2.bf16.msra.mxu0 0
        %2791 = vmatprep.subr.bf16.mxu0 0
        %2792 = vmatpush2.bf16.msra.mxu0 0
        %2793 = vmatprep.mubr.bf16.mxu0 0
        %2794 = vmatmul.mubr.bf16.gmra.mxu0 %v2696
        %v2795 = vpop.f32.mrf.mxu0
        %v2796 = vadd.f32 0.0, %v2795
        %v2797 = vpop.f32.mrf.mxu0
        %v2798 = vpop.f32.mrf.mxu0
        %v2799 = vpop.f32.mrf.mxu0
        %2800 = vdwg.mxu0
        %v2801 = vpack.c.bf16 %v2796, %v2796
        %v2802 = vld [vmem:[#allocation10] sm:$0xf]
        %v2803 = vld [vmem:[#allocation10 + $0x4] sm:$0xf]
        %v2804 = vld [vmem:[#allocation10 + $0x8] sm:$0xf]
        %v2805 = vld [vmem:[#allocation10 + $0xc] sm:$0xf]
        %v2806 = vld [vmem:[#allocation10 + $0x10] sm:$0xf]
        %v2807 = vld [vmem:[#allocation10 + $0x14] sm:$0xf]
        %v2808 = vld [vmem:[#allocation10 + $0x18] sm:$0xf]
        %v2809 = vld [vmem:[#allocation10 + $0x1c] sm:$0xf]
        %v2810 = vpack.c.bf16 %v2306, %v2306
        %v2811 = vld [vmem:[#allocation11] sm:$0xf]
        %v2812 = vld [vmem:[#allocation11 + $0x4] sm:$0xf]
        %v2813 = vld [vmem:[#allocation11 + $0x8] sm:$0xf]
        %v2814 = vld [vmem:[#allocation11 + $0xc] sm:$0xf]
        %v2815 = vld [vmem:[#allocation11 + $0x10] sm:$0xf]
        %v2816 = vld [vmem:[#allocation11 + $0x14] sm:$0xf]
        %v2817 = vld [vmem:[#allocation11 + $0x18] sm:$0xf]
        %v2818 = vld [vmem:[#allocation11 + $0x1c] sm:$0xf]
        %v2819 = vld [vmem:[#allocation11 + $0x20] sm:$0xf]
        %v2820 = vld [vmem:[#allocation11 + $0x24] sm:$0xf]
        %v2821 = vld [vmem:[#allocation11 + $0x28] sm:$0xf]
        %v2822 = vld [vmem:[#allocation11 + $0x2c] sm:$0xf]
        %v2823 = vld [vmem:[#allocation11 + $0x30] sm:$0xf]
        %v2824 = vld [vmem:[#allocation11 + $0x34] sm:$0xf]
        %v2825 = vld [vmem:[#allocation11 + $0x38] sm:$0xf]
        %v2826 = vld [vmem:[#allocation11 + $0x3c] sm:$0xf]
        %v2843 = vunpack.c.l.b16 %v2811
        %v2844 = vunpack.c.l.b16 %v2812
        %v2845 = vunpack.c.l.b16 %v2813
        %v2846 = vunpack.c.l.b16 %v2814
        %v2847 = vunpack.c.l.b16 %v2815
        %v2848 = vunpack.c.l.b16 %v2816
        %v2849 = vunpack.c.l.b16 %v2817
        %v2850 = vunpack.c.l.b16 %v2818
        %v2851 = vunpack.c.l.b16 %v2819
        %v2852 = vunpack.c.l.b16 %v2820
        %v2853 = vunpack.c.l.b16 %v2821
        %v2854 = vunpack.c.l.b16 %v2822
        %v2855 = vunpack.c.l.b16 %v2823
        %v2856 = vunpack.c.l.b16 %v2824
        %v2857 = vunpack.c.l.b16 %v2825
        %v2858 = vunpack.c.l.b16 %v2826
        %v2859 = vpack.c.b16 %v2844, %v2843
        %v2860 = vpack.c.b16 %v2846, %v2845
        %v2861 = vpack.c.b16 %v2848, %v2847
        %v2862 = vpack.c.b16 %v2850, %v2849
        %v2863 = vpack.c.b16 %v2852, %v2851
        %v2864 = vpack.c.b16 %v2854, %v2853
        %v2865 = vpack.c.b16 %v2856, %v2855
        %v2866 = vpack.c.b16 %v2858, %v2857
        %2875 = vmatprep.subr.bf16.mxu0 0
        %2876 = vmatpush1.bf16.msra.mxu0 %v2866
        %2877 = vmatprep.subr.bf16.mxu0 0
        %2878 = vmatpush1.bf16.msra.mxu0 %v2865
        %2879 = vmatprep.subr.bf16.mxu0 0
        %2880 = vmatpush1.bf16.msra.mxu0 %v2864
        %2881 = vmatprep.subr.bf16.mxu0 0
        %2882 = vmatpush1.bf16.msra.mxu0 %v2863
        %2883 = vmatprep.subr.bf16.mxu0 0
        %2884 = vmatpush1.bf16.msra.mxu0 %v2862
        %2885 = vmatprep.subr.bf16.mxu0 0
        %2886 = vmatpush1.bf16.msra.mxu0 %v2861
        %2887 = vmatprep.subr.bf16.mxu0 0
        %2888 = vmatpush1.bf16.msra.mxu0 %v2860
        %2889 = vmatprep.subr.bf16.mxu0 0
        %2890 = vmatpush1.bf16.msra.mxu0 %v2859
        %2891 = vmatprep.subr.bf16.mxu0 0
        %2892 = vmatpush2.bf16.msra.mxu0 0
        %2893 = vmatprep.subr.bf16.mxu0 0
        %2894 = vmatpush2.bf16.msra.mxu0 0
        %2895 = vmatprep.subr.bf16.mxu0 0
        %2896 = vmatpush2.bf16.msra.mxu0 0
        %2897 = vmatprep.subr.bf16.mxu0 0
        %2898 = vmatpush2.bf16.msra.mxu0 0
        %2899 = vmatprep.subr.bf16.mxu0 0
        %2900 = vmatpush2.bf16.msra.mxu0 0
        %2901 = vmatprep.subr.bf16.mxu0 0
        %2902 = vmatpush2.bf16.msra.mxu0 0
        %2903 = vmatprep.subr.bf16.mxu0 0
        %2904 = vmatpush2.bf16.msra.mxu0 0
        %2905 = vmatprep.subr.bf16.mxu0 0
        %2906 = vmatpush2.bf16.msra.mxu0 0
        %2907 = vmatprep.mubr.bf16.mxu0 0
        %2908 = vmatmul.mubr.bf16.gmra.mxu0 %v2810
        %v2909 = vpop.f32.mrf.mxu0
        %v2910 = vadd.f32 0.0, %v2909
        %v2911 = vpop.f32.mrf.mxu0
        %v2912 = vpop.f32.mrf.mxu0
        %v2913 = vpop.f32.mrf.mxu0
        %2914 = vdwg.mxu0
        %v2923 = vunpack.c.l.b16 %v2802
        %v2924 = vunpack.c.l.b16 %v2803
        %v2925 = vunpack.c.l.b16 %v2804
        %v2926 = vunpack.c.l.b16 %v2805
        %v2927 = vunpack.c.l.b16 %v2806
        %v2928 = vunpack.c.l.b16 %v2807
        %v2929 = vunpack.c.l.b16 %v2808
        %v2930 = vunpack.c.l.b16 %v2809
        %v2931 = vpack.c.b16 %v2924, %v2923
        %v2932 = vpack.c.b16 %v2926, %v2925
        %v2933 = vpack.c.b16 %v2928, %v2927
        %v2934 = vpack.c.b16 %v2930, %v2929
        %v2940 = vsel %vm1457, %v2801, 0
        %2942 = vmatprep.subr.bf16.mxu0 0
        %2943 = vmatpush1.bf16.msra.mxu0 0
        %2944 = vmatprep.subr.bf16.mxu0 0
        %2945 = vmatpush1.bf16.msra.mxu0 0
        %2946 = vmatprep.subr.bf16.mxu0 0
        %2947 = vmatpush1.bf16.msra.mxu0 0
        %2948 = vmatprep.subr.bf16.mxu0 0
        %2949 = vmatpush1.bf16.msra.mxu0 0
        %2950 = vmatprep.subr.bf16.mxu0 0
        %2951 = vmatpush1.bf16.msra.mxu0 %v2934
        %2952 = vmatprep.subr.bf16.mxu0 0
        %2953 = vmatpush1.bf16.msra.mxu0 %v2933
        %2954 = vmatprep.subr.bf16.mxu0 0
        %2955 = vmatpush1.bf16.msra.mxu0 %v2932
        %2956 = vmatprep.subr.bf16.mxu0 0
        %2957 = vmatpush1.bf16.msra.mxu0 %v2931
        %2958 = vmatprep.subr.bf16.mxu0 0
        %2959 = vmatpush2.bf16.msra.mxu0 0
        %2960 = vmatprep.subr.bf16.mxu0 0
        %2961 = vmatpush2.bf16.msra.mxu0 0
        %2962 = vmatprep.subr.bf16.mxu0 0
        %2963 = vmatpush2.bf16.msra.mxu0 0
        %2964 = vmatprep.subr.bf16.mxu0 0
        %2965 = vmatpush2.bf16.msra.mxu0 0
        %2966 = vmatprep.subr.bf16.mxu0 0
        %2967 = vmatpush2.bf16.msra.mxu0 0
        %2968 = vmatprep.subr.bf16.mxu0 0
        %2969 = vmatpush2.bf16.msra.mxu0 0
        %2970 = vmatprep.subr.bf16.mxu0 0
        %2971 = vmatpush2.bf16.msra.mxu0 0
        %2972 = vmatprep.subr.bf16.mxu0 0
        %2973 = vmatpush2.bf16.msra.mxu0 0
        %2974 = vmatprep.mubr.bf16.mxu0 0
        %2975 = vmatmul.mubr.bf16.gmra.mxu0 %v2940
        %v2976 = vpop.f32.mrf.mxu0
        %v2977 = vadd.f32 %v2910, %v2976
        %v2978 = vpop.f32.mrf.mxu0
        %v2979 = vpop.f32.mrf.mxu0
        %v2980 = vpop.f32.mrf.mxu0
        %2981 = vdwg.mxu0
        %v2982 = vld [vmem:[#allocation13] sm:$0x1]
        %v2984 = vlaneseq
        %v2985 = vshrl.u32 %v2984, 7
        %v2986 = vsub.s32 0, %v2985
        %v2987 = vrot.slane %v2982, %v2986
        %v2989 = vadd.f32 %v2977, %v2987
        %v2990 = vmax.f32 %v2989, 0.0
        %2991 = vst [vmem:[#allocation2] sm:$0x1] 0.0
        %2992 = vst [vmem:[#allocation2 + $0x5] sm:$0x1] 0.0
        %2993 = vst [vmem:[#allocation2 + $0x1] sm:$0xf] %v1501
        %v2994 = vld [vmem:[#allocation2] sm:$0xf]
        %v2995 = vpack.c.bf16 %v2994, %v2994
        %v2996 = vld [vmem:[%s39] sm:$0xf]
        %v2997 = vld [vmem:[%s39 + $0x4] sm:$0xf]
        %v2998 = vld [vmem:[%s39 + $0x8] sm:$0xf]
        %v2999 = vld [vmem:[%s39 + $0xc] sm:$0xf]
        %v3000 = vld [vmem:[%s39 + $0x10] sm:$0xf]
        %v3001 = vld [vmem:[%s39 + $0x14] sm:$0xf]
        %v3002 = vld [vmem:[%s39 + $0x18] sm:$0xf]
        %v3003 = vld [vmem:[%s39 + $0x1c] sm:$0xf]
        %v3004 = vld [vmem:[%s39 + $0x20] sm:$0xf]
        %v3005 = vld [vmem:[%s39 + $0x24] sm:$0xf]
        %v3006 = vld [vmem:[%s39 + $0x28] sm:$0xf]
        %v3007 = vld [vmem:[%s39 + $0x2c] sm:$0xf]
        %v3008 = vld [vmem:[%s39 + $0x30] sm:$0xf]
        %v3009 = vld [vmem:[%s39 + $0x34] sm:$0xf]
        %v3010 = vld [vmem:[%s39 + $0x38] sm:$0xf]
        %v3011 = vld [vmem:[%s39 + $0x3c] sm:$0xf]
        %v3012 = vld [vmem:[#allocation2 + $0x1] sm:$0xf]
        %v3013 = vpack.c.bf16 %v3012, %v3012
        %s3014 = scalar_lea.vmem %s39, 64
        %v3015 = vld [vmem:[%s3014] sm:$0xf]
        %v3016 = vld [vmem:[%s3014 + $0x4] sm:$0xf]
        %v3017 = vld [vmem:[%s3014 + $0x8] sm:$0xf]
        %v3018 = vld [vmem:[%s3014 + $0xc] sm:$0xf]
        %v3019 = vld [vmem:[%s3014 + $0x10] sm:$0xf]
        %v3020 = vld [vmem:[%s3014 + $0x14] sm:$0xf]
        %v3021 = vld [vmem:[%s3014 + $0x18] sm:$0xf]
        %v3022 = vld [vmem:[%s3014 + $0x1c] sm:$0xf]
        %v3023 = vld [vmem:[%s3014 + $0x20] sm:$0xf]
        %v3024 = vld [vmem:[%s3014 + $0x24] sm:$0xf]
        %v3025 = vld [vmem:[%s3014 + $0x28] sm:$0xf]
        %v3026 = vld [vmem:[%s3014 + $0x2c] sm:$0xf]
        %v3027 = vld [vmem:[%s3014 + $0x30] sm:$0xf]
        %v3028 = vld [vmem:[%s3014 + $0x34] sm:$0xf]
        %v3029 = vld [vmem:[%s3014 + $0x38] sm:$0xf]
        %v3030 = vld [vmem:[%s3014 + $0x3c] sm:$0xf]
        %v3047 = vunpack.c.l.b16 %v3015
        %v3048 = vunpack.c.l.b16 %v3016
        %v3049 = vunpack.c.l.b16 %v3017
        %v3050 = vunpack.c.l.b16 %v3018
        %v3051 = vunpack.c.l.b16 %v3019
        %v3052 = vunpack.c.l.b16 %v3020
        %v3053 = vunpack.c.l.b16 %v3021
        %v3054 = vunpack.c.l.b16 %v3022
        %v3055 = vunpack.c.l.b16 %v3023
        %v3056 = vunpack.c.l.b16 %v3024
        %v3057 = vunpack.c.l.b16 %v3025
        %v3058 = vunpack.c.l.b16 %v3026
        %v3059 = vunpack.c.l.b16 %v3027
        %v3060 = vunpack.c.l.b16 %v3028
        %v3061 = vunpack.c.l.b16 %v3029
        %v3062 = vunpack.c.l.b16 %v3030
        %v3063 = vpack.c.b16 %v3048, %v3047
        %v3064 = vpack.c.b16 %v3050, %v3049
        %v3065 = vpack.c.b16 %v3052, %v3051
        %v3066 = vpack.c.b16 %v3054, %v3053
        %v3067 = vpack.c.b16 %v3056, %v3055
        %v3068 = vpack.c.b16 %v3058, %v3057
        %v3069 = vpack.c.b16 %v3060, %v3059
        %v3070 = vpack.c.b16 %v3062, %v3061
        %3079 = vmatprep.subr.bf16.mxu0 0
        %3080 = vmatpush1.bf16.msra.mxu0 %v3070
        %3081 = vmatprep.subr.bf16.mxu0 0
        %3082 = vmatpush1.bf16.msra.mxu0 %v3069
        %3083 = vmatprep.subr.bf16.mxu0 0
        %3084 = vmatpush1.bf16.msra.mxu0 %v3068
        %3085 = vmatprep.subr.bf16.mxu0 0
        %3086 = vmatpush1.bf16.msra.mxu0 %v3067
        %3087 = vmatprep.subr.bf16.mxu0 0
        %3088 = vmatpush1.bf16.msra.mxu0 %v3066
        %3089 = vmatprep.subr.bf16.mxu0 0
        %3090 = vmatpush1.bf16.msra.mxu0 %v3065
        %3091 = vmatprep.subr.bf16.mxu0 0
        %3092 = vmatpush1.bf16.msra.mxu0 %v3064
        %3093 = vmatprep.subr.bf16.mxu0 0
        %3094 = vmatpush1.bf16.msra.mxu0 %v3063
        %3095 = vmatprep.subr.bf16.mxu0 0
        %3096 = vmatpush2.bf16.msra.mxu0 0
        %3097 = vmatprep.subr.bf16.mxu0 0
        %3098 = vmatpush2.bf16.msra.mxu0 0
        %3099 = vmatprep.subr.bf16.mxu0 0
        %3100 = vmatpush2.bf16.msra.mxu0 0
        %3101 = vmatprep.subr.bf16.mxu0 0
        %3102 = vmatpush2.bf16.msra.mxu0 0
        %3103 = vmatprep.subr.bf16.mxu0 0
        %3104 = vmatpush2.bf16.msra.mxu0 0
        %3105 = vmatprep.subr.bf16.mxu0 0
        %3106 = vmatpush2.bf16.msra.mxu0 0
        %3107 = vmatprep.subr.bf16.mxu0 0
        %3108 = vmatpush2.bf16.msra.mxu0 0
        %3109 = vmatprep.subr.bf16.mxu0 0
        %3110 = vmatpush2.bf16.msra.mxu0 0
        %3111 = vmatprep.mubr.bf16.mxu0 0
        %3112 = vmatmul.mubr.bf16.gmra.mxu0 %v3013
        %v3113 = vpop.f32.mrf.mxu0
        %v3114 = vadd.f32 0.0, %v3113
        %v3115 = vpop.f32.mrf.mxu0
        %v3116 = vpop.f32.mrf.mxu0
        %v3117 = vpop.f32.mrf.mxu0
        %3118 = vdwg.mxu0
        %v3135 = vunpack.c.l.b16 %v2996
        %v3136 = vunpack.c.l.b16 %v2997
        %v3137 = vunpack.c.l.b16 %v2998
        %v3138 = vunpack.c.l.b16 %v2999
        %v3139 = vunpack.c.l.b16 %v3000
        %v3140 = vunpack.c.l.b16 %v3001
        %v3141 = vunpack.c.l.b16 %v3002
        %v3142 = vunpack.c.l.b16 %v3003
        %v3143 = vunpack.c.l.b16 %v3004
        %v3144 = vunpack.c.l.b16 %v3005
        %v3145 = vunpack.c.l.b16 %v3006
        %v3146 = vunpack.c.l.b16 %v3007
        %v3147 = vunpack.c.l.b16 %v3008
        %v3148 = vunpack.c.l.b16 %v3009
        %v3149 = vunpack.c.l.b16 %v3010
        %v3150 = vunpack.c.l.b16 %v3011
        %v3151 = vpack.c.b16 %v3136, %v3135
        %v3152 = vpack.c.b16 %v3138, %v3137
        %v3153 = vpack.c.b16 %v3140, %v3139
        %v3154 = vpack.c.b16 %v3142, %v3141
        %v3155 = vpack.c.b16 %v3144, %v3143
        %v3156 = vpack.c.b16 %v3146, %v3145
        %v3157 = vpack.c.b16 %v3148, %v3147
        %v3158 = vpack.c.b16 %v3150, %v3149
        %3167 = vmatprep.subr.bf16.mxu0 0
        %3168 = vmatpush1.bf16.msra.mxu0 %v3158
        %3169 = vmatprep.subr.bf16.mxu0 0
        %3170 = vmatpush1.bf16.msra.mxu0 %v3157
        %3171 = vmatprep.subr.bf16.mxu0 0
        %3172 = vmatpush1.bf16.msra.mxu0 %v3156
        %3173 = vmatprep.subr.bf16.mxu0 0
        %3174 = vmatpush1.bf16.msra.mxu0 %v3155
        %3175 = vmatprep.subr.bf16.mxu0 0
        %3176 = vmatpush1.bf16.msra.mxu0 %v3154
        %3177 = vmatprep.subr.bf16.mxu0 0
        %3178 = vmatpush1.bf16.msra.mxu0 %v3153
        %3179 = vmatprep.subr.bf16.mxu0 0
        %3180 = vmatpush1.bf16.msra.mxu0 %v3152
        %3181 = vmatprep.subr.bf16.mxu0 0
        %3182 = vmatpush1.bf16.msra.mxu0 %v3151
        %3183 = vmatprep.subr.bf16.mxu0 0
        %3184 = vmatpush2.bf16.msra.mxu0 0
        %3185 = vmatprep.subr.bf16.mxu0 0
        %3186 = vmatpush2.bf16.msra.mxu0 0
        %3187 = vmatprep.subr.bf16.mxu0 0
        %3188 = vmatpush2.bf16.msra.mxu0 0
        %3189 = vmatprep.subr.bf16.mxu0 0
        %3190 = vmatpush2.bf16.msra.mxu0 0
        %3191 = vmatprep.subr.bf16.mxu0 0
        %3192 = vmatpush2.bf16.msra.mxu0 0
        %3193 = vmatprep.subr.bf16.mxu0 0
        %3194 = vmatpush2.bf16.msra.mxu0 0
        %3195 = vmatprep.subr.bf16.mxu0 0
        %3196 = vmatpush2.bf16.msra.mxu0 0
        %3197 = vmatprep.subr.bf16.mxu0 0
        %3198 = vmatpush2.bf16.msra.mxu0 0
        %3199 = vmatprep.mubr.bf16.mxu0 0
        %3200 = vmatmul.mubr.bf16.gmra.mxu0 %v2995
        %v3201 = vpop.f32.mrf.mxu0
        %v3202 = vadd.f32 %v3114, %v3201
        %v3203 = vpop.f32.mrf.mxu0
        %v3204 = vpop.f32.mrf.mxu0
        %v3205 = vpop.f32.mrf.mxu0
        %3206 = vdwg.mxu0
        %v3207 = vld [vmem:[#allocation2 + $0x2] sm:$0xf]
        %v3208 = vpack.c.bf16 %v3207, %v3207
        %s3209 = scalar_lea.vmem %s39, 128
        %v3210 = vld [vmem:[%s3209] sm:$0xf]
        %v3211 = vld [vmem:[%s3209 + $0x4] sm:$0xf]
        %v3212 = vld [vmem:[%s3209 + $0x8] sm:$0xf]
        %v3213 = vld [vmem:[%s3209 + $0xc] sm:$0xf]
        %v3214 = vld [vmem:[%s3209 + $0x10] sm:$0xf]
        %v3215 = vld [vmem:[%s3209 + $0x14] sm:$0xf]
        %v3216 = vld [vmem:[%s3209 + $0x18] sm:$0xf]
        %v3217 = vld [vmem:[%s3209 + $0x1c] sm:$0xf]
        %v3218 = vld [vmem:[%s3209 + $0x20] sm:$0xf]
        %v3219 = vld [vmem:[%s3209 + $0x24] sm:$0xf]
        %v3220 = vld [vmem:[%s3209 + $0x28] sm:$0xf]
        %v3221 = vld [vmem:[%s3209 + $0x2c] sm:$0xf]
        %v3222 = vld [vmem:[%s3209 + $0x30] sm:$0xf]
        %v3223 = vld [vmem:[%s3209 + $0x34] sm:$0xf]
        %v3224 = vld [vmem:[%s3209 + $0x38] sm:$0xf]
        %v3225 = vld [vmem:[%s3209 + $0x3c] sm:$0xf]
        %v3242 = vunpack.c.l.b16 %v3210
        %v3243 = vunpack.c.l.b16 %v3211
        %v3244 = vunpack.c.l.b16 %v3212
        %v3245 = vunpack.c.l.b16 %v3213
        %v3246 = vunpack.c.l.b16 %v3214
        %v3247 = vunpack.c.l.b16 %v3215
        %v3248 = vunpack.c.l.b16 %v3216
        %v3249 = vunpack.c.l.b16 %v3217
        %v3250 = vunpack.c.l.b16 %v3218
        %v3251 = vunpack.c.l.b16 %v3219
        %v3252 = vunpack.c.l.b16 %v3220
        %v3253 = vunpack.c.l.b16 %v3221
        %v3254 = vunpack.c.l.b16 %v3222
        %v3255 = vunpack.c.l.b16 %v3223
        %v3256 = vunpack.c.l.b16 %v3224
        %v3257 = vunpack.c.l.b16 %v3225
        %v3258 = vpack.c.b16 %v3243, %v3242
        %v3259 = vpack.c.b16 %v3245, %v3244
        %v3260 = vpack.c.b16 %v3247, %v3246
        %v3261 = vpack.c.b16 %v3249, %v3248
        %v3262 = vpack.c.b16 %v3251, %v3250
        %v3263 = vpack.c.b16 %v3253, %v3252
        %v3264 = vpack.c.b16 %v3255, %v3254
        %v3265 = vpack.c.b16 %v3257, %v3256
        %3274 = vmatprep.subr.bf16.mxu0 0
        %3275 = vmatpush1.bf16.msra.mxu0 %v3265
        %3276 = vmatprep.subr.bf16.mxu0 0
        %3277 = vmatpush1.bf16.msra.mxu0 %v3264
        %3278 = vmatprep.subr.bf16.mxu0 0
        %3279 = vmatpush1.bf16.msra.mxu0 %v3263
        %3280 = vmatprep.subr.bf16.mxu0 0
        %3281 = vmatpush1.bf16.msra.mxu0 %v3262
        %3282 = vmatprep.subr.bf16.mxu0 0
        %3283 = vmatpush1.bf16.msra.mxu0 %v3261
        %3284 = vmatprep.subr.bf16.mxu0 0
        %3285 = vmatpush1.bf16.msra.mxu0 %v3260
        %3286 = vmatprep.subr.bf16.mxu0 0
        %3287 = vmatpush1.bf16.msra.mxu0 %v3259
        %3288 = vmatprep.subr.bf16.mxu0 0
        %3289 = vmatpush1.bf16.msra.mxu0 %v3258
        %3290 = vmatprep.subr.bf16.mxu0 0
        %3291 = vmatpush2.bf16.msra.mxu0 0
        %3292 = vmatprep.subr.bf16.mxu0 0
        %3293 = vmatpush2.bf16.msra.mxu0 0
        %3294 = vmatprep.subr.bf16.mxu0 0
        %3295 = vmatpush2.bf16.msra.mxu0 0
        %3296 = vmatprep.subr.bf16.mxu0 0
        %3297 = vmatpush2.bf16.msra.mxu0 0
        %3298 = vmatprep.subr.bf16.mxu0 0
        %3299 = vmatpush2.bf16.msra.mxu0 0
        %3300 = vmatprep.subr.bf16.mxu0 0
        %3301 = vmatpush2.bf16.msra.mxu0 0
        %3302 = vmatprep.subr.bf16.mxu0 0
        %3303 = vmatpush2.bf16.msra.mxu0 0
        %3304 = vmatprep.subr.bf16.mxu0 0
        %3305 = vmatpush2.bf16.msra.mxu0 0
        %3306 = vmatprep.mubr.bf16.mxu0 0
        %3307 = vmatmul.mubr.bf16.gmra.mxu0 %v3208
        %v3308 = vpop.f32.mrf.mxu0
        %v3309 = vadd.f32 0.0, %v3308
        %v3310 = vpop.f32.mrf.mxu0
        %v3311 = vpop.f32.mrf.mxu0
        %v3312 = vpop.f32.mrf.mxu0
        %3313 = vdwg.mxu0
        %v3314 = vadd.f32 %v3202, %v3309
        %v3315 = vld [vmem:[#allocation14] sm:$0x1]
        %v3317 = vlaneseq
        %v3318 = vshrl.u32 %v3317, 7
        %v3319 = vsub.s32 0, %v3318
        %v3320 = vrot.slane %v3315, %v3319
        %v3322 = vadd.f32 %v3314, %v3320
        %v3323 = vmax.f32 %v3322, 0.0
        %3324 = vst [vmem:[#allocation2] sm:$0x1] 0.0
        %3325 = vst [vmem:[#allocation2 + $0x9] sm:$0x1] 0.0
        %3326 = vst [vmem:[#allocation2 + $0x1] sm:$0xff] %v2306
        %v3327 = vld [vmem:[#allocation2] sm:$0xff]
        %v3328 = vpack.c.bf16 %v3327, %v3327
        %v3329 = vld [vmem:[%s43] sm:$0xf]
        %v3330 = vld [vmem:[%s43 + $0x4] sm:$0xf]
        %v3331 = vld [vmem:[%s43 + $0x8] sm:$0xf]
        %v3332 = vld [vmem:[%s43 + $0xc] sm:$0xf]
        %v3333 = vld [vmem:[%s43 + $0x10] sm:$0xf]
        %v3334 = vld [vmem:[%s43 + $0x14] sm:$0xf]
        %v3335 = vld [vmem:[%s43 + $0x18] sm:$0xf]
        %v3336 = vld [vmem:[%s43 + $0x1c] sm:$0xf]
        %v3337 = vld [vmem:[%s43 + $0x20] sm:$0xf]
        %v3338 = vld [vmem:[%s43 + $0x24] sm:$0xf]
        %v3339 = vld [vmem:[%s43 + $0x28] sm:$0xf]
        %v3340 = vld [vmem:[%s43 + $0x2c] sm:$0xf]
        %v3341 = vld [vmem:[%s43 + $0x30] sm:$0xf]
        %v3342 = vld [vmem:[%s43 + $0x34] sm:$0xf]
        %v3343 = vld [vmem:[%s43 + $0x38] sm:$0xf]
        %v3344 = vld [vmem:[%s43 + $0x3c] sm:$0xf]
        %v3345 = vld [vmem:[#allocation2 + $0x1] sm:$0xff]
        %v3346 = vpack.c.bf16 %v3345, %v3345
        %s3347 = scalar_lea.vmem %s43, 64
        %v3348 = vld [vmem:[%s3347] sm:$0xf]
        %v3349 = vld [vmem:[%s3347 + $0x4] sm:$0xf]
        %v3350 = vld [vmem:[%s3347 + $0x8] sm:$0xf]
        %v3351 = vld [vmem:[%s3347 + $0xc] sm:$0xf]
        %v3352 = vld [vmem:[%s3347 + $0x10] sm:$0xf]
        %v3353 = vld [vmem:[%s3347 + $0x14] sm:$0xf]
        %v3354 = vld [vmem:[%s3347 + $0x18] sm:$0xf]
        %v3355 = vld [vmem:[%s3347 + $0x1c] sm:$0xf]
        %v3356 = vld [vmem:[%s3347 + $0x20] sm:$0xf]
        %v3357 = vld [vmem:[%s3347 + $0x24] sm:$0xf]
        %v3358 = vld [vmem:[%s3347 + $0x28] sm:$0xf]
        %v3359 = vld [vmem:[%s3347 + $0x2c] sm:$0xf]
        %v3360 = vld [vmem:[%s3347 + $0x30] sm:$0xf]
        %v3361 = vld [vmem:[%s3347 + $0x34] sm:$0xf]
        %v3362 = vld [vmem:[%s3347 + $0x38] sm:$0xf]
        %v3363 = vld [vmem:[%s3347 + $0x3c] sm:$0xf]
        %v3380 = vunpack.c.l.b16 %v3348
        %v3381 = vunpack.c.l.b16 %v3349
        %v3382 = vunpack.c.l.b16 %v3350
        %v3383 = vunpack.c.l.b16 %v3351
        %v3384 = vunpack.c.l.b16 %v3352
        %v3385 = vunpack.c.l.b16 %v3353
        %v3386 = vunpack.c.l.b16 %v3354
        %v3387 = vunpack.c.l.b16 %v3355
        %v3388 = vunpack.c.l.b16 %v3356
        %v3389 = vunpack.c.l.b16 %v3357
        %v3390 = vunpack.c.l.b16 %v3358
        %v3391 = vunpack.c.l.b16 %v3359
        %v3392 = vunpack.c.l.b16 %v3360
        %v3393 = vunpack.c.l.b16 %v3361
        %v3394 = vunpack.c.l.b16 %v3362
        %v3395 = vunpack.c.l.b16 %v3363
        %v3396 = vpack.c.b16 %v3381, %v3380
        %v3397 = vpack.c.b16 %v3383, %v3382
        %v3398 = vpack.c.b16 %v3385, %v3384
        %v3399 = vpack.c.b16 %v3387, %v3386
        %v3400 = vpack.c.b16 %v3389, %v3388
        %v3401 = vpack.c.b16 %v3391, %v3390
        %v3402 = vpack.c.b16 %v3393, %v3392
        %v3403 = vpack.c.b16 %v3395, %v3394
        %3412 = vmatprep.subr.bf16.mxu0 0
        %3413 = vmatpush1.bf16.msra.mxu0 %v3403
        %3414 = vmatprep.subr.bf16.mxu0 0
        %3415 = vmatpush1.bf16.msra.mxu0 %v3402
        %3416 = vmatprep.subr.bf16.mxu0 0
        %3417 = vmatpush1.bf16.msra.mxu0 %v3401
        %3418 = vmatprep.subr.bf16.mxu0 0
        %3419 = vmatpush1.bf16.msra.mxu0 %v3400
        %3420 = vmatprep.subr.bf16.mxu0 0
        %3421 = vmatpush1.bf16.msra.mxu0 %v3399
        %3422 = vmatprep.subr.bf16.mxu0 0
        %3423 = vmatpush1.bf16.msra.mxu0 %v3398
        %3424 = vmatprep.subr.bf16.mxu0 0
        %3425 = vmatpush1.bf16.msra.mxu0 %v3397
        %3426 = vmatprep.subr.bf16.mxu0 0
        %3427 = vmatpush1.bf16.msra.mxu0 %v3396
        %3428 = vmatprep.subr.bf16.mxu0 0
        %3429 = vmatpush2.bf16.msra.mxu0 0
        %3430 = vmatprep.subr.bf16.mxu0 0
        %3431 = vmatpush2.bf16.msra.mxu0 0
        %3432 = vmatprep.subr.bf16.mxu0 0
        %3433 = vmatpush2.bf16.msra.mxu0 0
        %3434 = vmatprep.subr.bf16.mxu0 0
        %3435 = vmatpush2.bf16.msra.mxu0 0
        %3436 = vmatprep.subr.bf16.mxu0 0
        %3437 = vmatpush2.bf16.msra.mxu0 0
        %3438 = vmatprep.subr.bf16.mxu0 0
        %3439 = vmatpush2.bf16.msra.mxu0 0
        %3440 = vmatprep.subr.bf16.mxu0 0
        %3441 = vmatpush2.bf16.msra.mxu0 0
        %3442 = vmatprep.subr.bf16.mxu0 0
        %3443 = vmatpush2.bf16.msra.mxu0 0
        %3444 = vmatprep.mubr.bf16.mxu0 0
        %3445 = vmatmul.mubr.bf16.gmra.mxu0 %v3346
        %v3446 = vpop.f32.mrf.mxu0
        %v3447 = vadd.f32 0.0, %v3446
        %v3448 = vpop.f32.mrf.mxu0
        %v3449 = vpop.f32.mrf.mxu0
        %v3450 = vpop.f32.mrf.mxu0
        %3451 = vdwg.mxu0
        %v3468 = vunpack.c.l.b16 %v3329
        %v3469 = vunpack.c.l.b16 %v3330
        %v3470 = vunpack.c.l.b16 %v3331
        %v3471 = vunpack.c.l.b16 %v3332
        %v3472 = vunpack.c.l.b16 %v3333
        %v3473 = vunpack.c.l.b16 %v3334
        %v3474 = vunpack.c.l.b16 %v3335
        %v3475 = vunpack.c.l.b16 %v3336
        %v3476 = vunpack.c.l.b16 %v3337
        %v3477 = vunpack.c.l.b16 %v3338
        %v3478 = vunpack.c.l.b16 %v3339
        %v3479 = vunpack.c.l.b16 %v3340
        %v3480 = vunpack.c.l.b16 %v3341
        %v3481 = vunpack.c.l.b16 %v3342
        %v3482 = vunpack.c.l.b16 %v3343
        %v3483 = vunpack.c.l.b16 %v3344
        %v3484 = vpack.c.b16 %v3469, %v3468
        %v3485 = vpack.c.b16 %v3471, %v3470
        %v3486 = vpack.c.b16 %v3473, %v3472
        %v3487 = vpack.c.b16 %v3475, %v3474
        %v3488 = vpack.c.b16 %v3477, %v3476
        %v3489 = vpack.c.b16 %v3479, %v3478
        %v3490 = vpack.c.b16 %v3481, %v3480
        %v3491 = vpack.c.b16 %v3483, %v3482
        %3500 = vmatprep.subr.bf16.mxu0 0
        %3501 = vmatpush1.bf16.msra.mxu0 %v3491
        %3502 = vmatprep.subr.bf16.mxu0 0
        %3503 = vmatpush1.bf16.msra.mxu0 %v3490
        %3504 = vmatprep.subr.bf16.mxu0 0
        %3505 = vmatpush1.bf16.msra.mxu0 %v3489
        %3506 = vmatprep.subr.bf16.mxu0 0
        %3507 = vmatpush1.bf16.msra.mxu0 %v3488
        %3508 = vmatprep.subr.bf16.mxu0 0
        %3509 = vmatpush1.bf16.msra.mxu0 %v3487
        %3510 = vmatprep.subr.bf16.mxu0 0
        %3511 = vmatpush1.bf16.msra.mxu0 %v3486
        %3512 = vmatprep.subr.bf16.mxu0 0
        %3513 = vmatpush1.bf16.msra.mxu0 %v3485
        %3514 = vmatprep.subr.bf16.mxu0 0
        %3515 = vmatpush1.bf16.msra.mxu0 %v3484
        %3516 = vmatprep.subr.bf16.mxu0 0
        %3517 = vmatpush2.bf16.msra.mxu0 0
        %3518 = vmatprep.subr.bf16.mxu0 0
        %3519 = vmatpush2.bf16.msra.mxu0 0
        %3520 = vmatprep.subr.bf16.mxu0 0
        %3521 = vmatpush2.bf16.msra.mxu0 0
        %3522 = vmatprep.subr.bf16.mxu0 0
        %3523 = vmatpush2.bf16.msra.mxu0 0
        %3524 = vmatprep.subr.bf16.mxu0 0
        %3525 = vmatpush2.bf16.msra.mxu0 0
        %3526 = vmatprep.subr.bf16.mxu0 0
        %3527 = vmatpush2.bf16.msra.mxu0 0
        %3528 = vmatprep.subr.bf16.mxu0 0
        %3529 = vmatpush2.bf16.msra.mxu0 0
        %3530 = vmatprep.subr.bf16.mxu0 0
        %3531 = vmatpush2.bf16.msra.mxu0 0
        %3532 = vmatprep.mubr.bf16.mxu0 0
        %3533 = vmatmul.mubr.bf16.gmra.mxu0 %v3328
        %v3534 = vpop.f32.mrf.mxu0
        %v3535 = vadd.f32 %v3447, %v3534
        %v3536 = vpop.f32.mrf.mxu0
        %v3537 = vpop.f32.mrf.mxu0
        %v3538 = vpop.f32.mrf.mxu0
        %3539 = vdwg.mxu0
        %v3540 = vld [vmem:[#allocation2 + $0x2] sm:$0xff]
        %v3541 = vpack.c.bf16 %v3540, %v3540
        %s3542 = scalar_lea.vmem %s43, 128
        %v3543 = vld [vmem:[%s3542] sm:$0xf]
        %v3544 = vld [vmem:[%s3542 + $0x4] sm:$0xf]
        %v3545 = vld [vmem:[%s3542 + $0x8] sm:$0xf]
        %v3546 = vld [vmem:[%s3542 + $0xc] sm:$0xf]
        %v3547 = vld [vmem:[%s3542 + $0x10] sm:$0xf]
        %v3548 = vld [vmem:[%s3542 + $0x14] sm:$0xf]
        %v3549 = vld [vmem:[%s3542 + $0x18] sm:$0xf]
        %v3550 = vld [vmem:[%s3542 + $0x1c] sm:$0xf]
        %v3551 = vld [vmem:[%s3542 + $0x20] sm:$0xf]
        %v3552 = vld [vmem:[%s3542 + $0x24] sm:$0xf]
        %v3553 = vld [vmem:[%s3542 + $0x28] sm:$0xf]
        %v3554 = vld [vmem:[%s3542 + $0x2c] sm:$0xf]
        %v3555 = vld [vmem:[%s3542 + $0x30] sm:$0xf]
        %v3556 = vld [vmem:[%s3542 + $0x34] sm:$0xf]
        %v3557 = vld [vmem:[%s3542 + $0x38] sm:$0xf]
        %v3558 = vld [vmem:[%s3542 + $0x3c] sm:$0xf]
        %v3575 = vunpack.c.l.b16 %v3543
        %v3576 = vunpack.c.l.b16 %v3544
        %v3577 = vunpack.c.l.b16 %v3545
        %v3578 = vunpack.c.l.b16 %v3546
        %v3579 = vunpack.c.l.b16 %v3547
        %v3580 = vunpack.c.l.b16 %v3548
        %v3581 = vunpack.c.l.b16 %v3549
        %v3582 = vunpack.c.l.b16 %v3550
        %v3583 = vunpack.c.l.b16 %v3551
        %v3584 = vunpack.c.l.b16 %v3552
        %v3585 = vunpack.c.l.b16 %v3553
        %v3586 = vunpack.c.l.b16 %v3554
        %v3587 = vunpack.c.l.b16 %v3555
        %v3588 = vunpack.c.l.b16 %v3556
        %v3589 = vunpack.c.l.b16 %v3557
        %v3590 = vunpack.c.l.b16 %v3558
        %v3591 = vpack.c.b16 %v3576, %v3575
        %v3592 = vpack.c.b16 %v3578, %v3577
        %v3593 = vpack.c.b16 %v3580, %v3579
        %v3594 = vpack.c.b16 %v3582, %v3581
        %v3595 = vpack.c.b16 %v3584, %v3583
        %v3596 = vpack.c.b16 %v3586, %v3585
        %v3597 = vpack.c.b16 %v3588, %v3587
        %v3598 = vpack.c.b16 %v3590, %v3589
        %3607 = vmatprep.subr.bf16.mxu0 0
        %3608 = vmatpush1.bf16.msra.mxu0 %v3598
        %3609 = vmatprep.subr.bf16.mxu0 0
        %3610 = vmatpush1.bf16.msra.mxu0 %v3597
        %3611 = vmatprep.subr.bf16.mxu0 0
        %3612 = vmatpush1.bf16.msra.mxu0 %v3596
        %3613 = vmatprep.subr.bf16.mxu0 0
        %3614 = vmatpush1.bf16.msra.mxu0 %v3595
        %3615 = vmatprep.subr.bf16.mxu0 0
        %3616 = vmatpush1.bf16.msra.mxu0 %v3594
        %3617 = vmatprep.subr.bf16.mxu0 0
        %3618 = vmatpush1.bf16.msra.mxu0 %v3593
        %3619 = vmatprep.subr.bf16.mxu0 0
        %3620 = vmatpush1.bf16.msra.mxu0 %v3592
        %3621 = vmatprep.subr.bf16.mxu0 0
        %3622 = vmatpush1.bf16.msra.mxu0 %v3591
        %3623 = vmatprep.subr.bf16.mxu0 0
        %3624 = vmatpush2.bf16.msra.mxu0 0
        %3625 = vmatprep.subr.bf16.mxu0 0
        %3626 = vmatpush2.bf16.msra.mxu0 0
        %3627 = vmatprep.subr.bf16.mxu0 0
        %3628 = vmatpush2.bf16.msra.mxu0 0
        %3629 = vmatprep.subr.bf16.mxu0 0
        %3630 = vmatpush2.bf16.msra.mxu0 0
        %3631 = vmatprep.subr.bf16.mxu0 0
        %3632 = vmatpush2.bf16.msra.mxu0 0
        %3633 = vmatprep.subr.bf16.mxu0 0
        %3634 = vmatpush2.bf16.msra.mxu0 0
        %3635 = vmatprep.subr.bf16.mxu0 0
        %3636 = vmatpush2.bf16.msra.mxu0 0
        %3637 = vmatprep.subr.bf16.mxu0 0
        %3638 = vmatpush2.bf16.msra.mxu0 0
        %3639 = vmatprep.mubr.bf16.mxu0 0
        %3640 = vmatmul.mubr.bf16.gmra.mxu0 %v3541
        %v3641 = vpop.f32.mrf.mxu0
        %v3642 = vadd.f32 0.0, %v3641
        %v3643 = vpop.f32.mrf.mxu0
        %v3644 = vpop.f32.mrf.mxu0
        %v3645 = vpop.f32.mrf.mxu0
        %3646 = vdwg.mxu0
        %v3647 = vadd.f32 %v3535, %v3642
        %v3648 = vld [vmem:[#allocation16] sm:$0x1]
        %v3650 = vlaneseq
        %v3651 = vshrl.u32 %v3650, 7
        %v3652 = vsub.s32 0, %v3651
        %v3653 = vrot.slane %v3648, %v3652
        %v3655 = vadd.f32 %v3647, %v3653
        %v3656 = vmax.f32 %v3655, 0.0
        %3657 = vst [vmem:[#allocation2] sm:$0x1] 0.0
        %3658 = vst [vmem:[#allocation2 + $0x9] sm:$0x1] 0.0
        %3659 = vst [vmem:[#allocation2 + $0x1] sm:$0xff] %v2990
        %v3660 = vld [vmem:[#allocation2] sm:$0xff]
        %v3661 = vpack.c.bf16 %v3660, %v3660
        %v3662 = vld [vmem:[%s47] sm:$0xf]
        %v3663 = vld [vmem:[%s47 + $0x4] sm:$0xf]
        %v3664 = vld [vmem:[%s47 + $0x8] sm:$0xf]
        %v3665 = vld [vmem:[%s47 + $0xc] sm:$0xf]
        %v3666 = vld [vmem:[%s47 + $0x10] sm:$0xf]
        %v3667 = vld [vmem:[%s47 + $0x14] sm:$0xf]
        %v3668 = vld [vmem:[%s47 + $0x18] sm:$0xf]
        %v3669 = vld [vmem:[%s47 + $0x1c] sm:$0xf]
        %v3670 = vld [vmem:[%s47 + $0x20] sm:$0xf]
        %v3671 = vld [vmem:[%s47 + $0x24] sm:$0xf]
        %v3672 = vld [vmem:[%s47 + $0x28] sm:$0xf]
        %v3673 = vld [vmem:[%s47 + $0x2c] sm:$0xf]
        %v3674 = vld [vmem:[%s47 + $0x30] sm:$0xf]
        %v3675 = vld [vmem:[%s47 + $0x34] sm:$0xf]
        %v3676 = vld [vmem:[%s47 + $0x38] sm:$0xf]
        %v3677 = vld [vmem:[%s47 + $0x3c] sm:$0xf]
        %v3678 = vld [vmem:[#allocation2 + $0x1] sm:$0xff]
        %v3679 = vpack.c.bf16 %v3678, %v3678
        %s3680 = scalar_lea.vmem %s47, 64
        %v3681 = vld [vmem:[%s3680] sm:$0xf]
        %v3682 = vld [vmem:[%s3680 + $0x4] sm:$0xf]
        %v3683 = vld [vmem:[%s3680 + $0x8] sm:$0xf]
        %v3684 = vld [vmem:[%s3680 + $0xc] sm:$0xf]
        %v3685 = vld [vmem:[%s3680 + $0x10] sm:$0xf]
        %v3686 = vld [vmem:[%s3680 + $0x14] sm:$0xf]
        %v3687 = vld [vmem:[%s3680 + $0x18] sm:$0xf]
        %v3688 = vld [vmem:[%s3680 + $0x1c] sm:$0xf]
        %v3689 = vld [vmem:[%s3680 + $0x20] sm:$0xf]
        %v3690 = vld [vmem:[%s3680 + $0x24] sm:$0xf]
        %v3691 = vld [vmem:[%s3680 + $0x28] sm:$0xf]
        %v3692 = vld [vmem:[%s3680 + $0x2c] sm:$0xf]
        %v3693 = vld [vmem:[%s3680 + $0x30] sm:$0xf]
        %v3694 = vld [vmem:[%s3680 + $0x34] sm:$0xf]
        %v3695 = vld [vmem:[%s3680 + $0x38] sm:$0xf]
        %v3696 = vld [vmem:[%s3680 + $0x3c] sm:$0xf]
        %v3713 = vunpack.c.l.b16 %v3681
        %v3714 = vunpack.c.l.b16 %v3682
        %v3715 = vunpack.c.l.b16 %v3683
        %v3716 = vunpack.c.l.b16 %v3684
        %v3717 = vunpack.c.l.b16 %v3685
        %v3718 = vunpack.c.l.b16 %v3686
        %v3719 = vunpack.c.l.b16 %v3687
        %v3720 = vunpack.c.l.b16 %v3688
        %v3721 = vunpack.c.l.b16 %v3689
        %v3722 = vunpack.c.l.b16 %v3690
        %v3723 = vunpack.c.l.b16 %v3691
        %v3724 = vunpack.c.l.b16 %v3692
        %v3725 = vunpack.c.l.b16 %v3693
        %v3726 = vunpack.c.l.b16 %v3694
        %v3727 = vunpack.c.l.b16 %v3695
        %v3728 = vunpack.c.l.b16 %v3696
        %v3729 = vpack.c.b16 %v3714, %v3713
        %v3730 = vpack.c.b16 %v3716, %v3715
        %v3731 = vpack.c.b16 %v3718, %v3717
        %v3732 = vpack.c.b16 %v3720, %v3719
        %v3733 = vpack.c.b16 %v3722, %v3721
        %v3734 = vpack.c.b16 %v3724, %v3723
        %v3735 = vpack.c.b16 %v3726, %v3725
        %v3736 = vpack.c.b16 %v3728, %v3727
        %3745 = vmatprep.subr.bf16.mxu0 0
        %3746 = vmatpush1.bf16.msra.mxu0 %v3736
        %3747 = vmatprep.subr.bf16.mxu0 0
        %3748 = vmatpush1.bf16.msra.mxu0 %v3735
        %3749 = vmatprep.subr.bf16.mxu0 0
        %3750 = vmatpush1.bf16.msra.mxu0 %v3734
        %3751 = vmatprep.subr.bf16.mxu0 0
        %3752 = vmatpush1.bf16.msra.mxu0 %v3733
        %3753 = vmatprep.subr.bf16.mxu0 0
        %3754 = vmatpush1.bf16.msra.mxu0 %v3732
        %3755 = vmatprep.subr.bf16.mxu0 0
        %3756 = vmatpush1.bf16.msra.mxu0 %v3731
        %3757 = vmatprep.subr.bf16.mxu0 0
        %3758 = vmatpush1.bf16.msra.mxu0 %v3730
        %3759 = vmatprep.subr.bf16.mxu0 0
        %3760 = vmatpush1.bf16.msra.mxu0 %v3729
        %3761 = vmatprep.subr.bf16.mxu0 0
        %3762 = vmatpush2.bf16.msra.mxu0 0
        %3763 = vmatprep.subr.bf16.mxu0 0
        %3764 = vmatpush2.bf16.msra.mxu0 0
        %3765 = vmatprep.subr.bf16.mxu0 0
        %3766 = vmatpush2.bf16.msra.mxu0 0
        %3767 = vmatprep.subr.bf16.mxu0 0
        %3768 = vmatpush2.bf16.msra.mxu0 0
        %3769 = vmatprep.subr.bf16.mxu0 0
        %3770 = vmatpush2.bf16.msra.mxu0 0
        %3771 = vmatprep.subr.bf16.mxu0 0
        %3772 = vmatpush2.bf16.msra.mxu0 0
        %3773 = vmatprep.subr.bf16.mxu0 0
        %3774 = vmatpush2.bf16.msra.mxu0 0
        %3775 = vmatprep.subr.bf16.mxu0 0
        %3776 = vmatpush2.bf16.msra.mxu0 0
        %3777 = vmatprep.mubr.bf16.mxu0 0
        %3778 = vmatmul.mubr.bf16.gmra.mxu0 %v3679
        %v3779 = vpop.f32.mrf.mxu0
        %v3780 = vadd.f32 0.0, %v3779
        %v3781 = vpop.f32.mrf.mxu0
        %v3782 = vpop.f32.mrf.mxu0
        %v3783 = vpop.f32.mrf.mxu0
        %3784 = vdwg.mxu0
        %v3801 = vunpack.c.l.b16 %v3662
        %v3802 = vunpack.c.l.b16 %v3663
        %v3803 = vunpack.c.l.b16 %v3664
        %v3804 = vunpack.c.l.b16 %v3665
        %v3805 = vunpack.c.l.b16 %v3666
        %v3806 = vunpack.c.l.b16 %v3667
        %v3807 = vunpack.c.l.b16 %v3668
        %v3808 = vunpack.c.l.b16 %v3669
        %v3809 = vunpack.c.l.b16 %v3670
        %v3810 = vunpack.c.l.b16 %v3671
        %v3811 = vunpack.c.l.b16 %v3672
        %v3812 = vunpack.c.l.b16 %v3673
        %v3813 = vunpack.c.l.b16 %v3674
        %v3814 = vunpack.c.l.b16 %v3675
        %v3815 = vunpack.c.l.b16 %v3676
        %v3816 = vunpack.c.l.b16 %v3677
        %v3817 = vpack.c.b16 %v3802, %v3801
        %v3818 = vpack.c.b16 %v3804, %v3803
        %v3819 = vpack.c.b16 %v3806, %v3805
        %v3820 = vpack.c.b16 %v3808, %v3807
        %v3821 = vpack.c.b16 %v3810, %v3809
        %v3822 = vpack.c.b16 %v3812, %v3811
        %v3823 = vpack.c.b16 %v3814, %v3813
        %v3824 = vpack.c.b16 %v3816, %v3815
        %3833 = vmatprep.subr.bf16.mxu0 0
        %3834 = vmatpush1.bf16.msra.mxu0 %v3824
        %3835 = vmatprep.subr.bf16.mxu0 0
        %3836 = vmatpush1.bf16.msra.mxu0 %v3823
        %3837 = vmatprep.subr.bf16.mxu0 0
        %3838 = vmatpush1.bf16.msra.mxu0 %v3822
        %3839 = vmatprep.subr.bf16.mxu0 0
        %3840 = vmatpush1.bf16.msra.mxu0 %v3821
        %3841 = vmatprep.subr.bf16.mxu0 0
        %3842 = vmatpush1.bf16.msra.mxu0 %v3820
        %3843 = vmatprep.subr.bf16.mxu0 0
        %3844 = vmatpush1.bf16.msra.mxu0 %v3819
        %3845 = vmatprep.subr.bf16.mxu0 0
        %3846 = vmatpush1.bf16.msra.mxu0 %v3818
        %3847 = vmatprep.subr.bf16.mxu0 0
        %3848 = vmatpush1.bf16.msra.mxu0 %v3817
        %3849 = vmatprep.subr.bf16.mxu0 0
        %3850 = vmatpush2.bf16.msra.mxu0 0
        %3851 = vmatprep.subr.bf16.mxu0 0
        %3852 = vmatpush2.bf16.msra.mxu0 0
        %3853 = vmatprep.subr.bf16.mxu0 0
        %3854 = vmatpush2.bf16.msra.mxu0 0
        %3855 = vmatprep.subr.bf16.mxu0 0
        %3856 = vmatpush2.bf16.msra.mxu0 0
        %3857 = vmatprep.subr.bf16.mxu0 0
        %3858 = vmatpush2.bf16.msra.mxu0 0
        %3859 = vmatprep.subr.bf16.mxu0 0
        %3860 = vmatpush2.bf16.msra.mxu0 0
        %3861 = vmatprep.subr.bf16.mxu0 0
        %3862 = vmatpush2.bf16.msra.mxu0 0
        %3863 = vmatprep.subr.bf16.mxu0 0
        %3864 = vmatpush2.bf16.msra.mxu0 0
        %3865 = vmatprep.mubr.bf16.mxu0 0
        %3866 = vmatmul.mubr.bf16.gmra.mxu0 %v3661
        %v3867 = vpop.f32.mrf.mxu0
        %v3868 = vadd.f32 %v3780, %v3867
        %v3869 = vpop.f32.mrf.mxu0
        %v3870 = vpop.f32.mrf.mxu0
        %v3871 = vpop.f32.mrf.mxu0
        %3872 = vdwg.mxu0
        %v3873 = vld [vmem:[#allocation2 + $0x2] sm:$0xff]
        %v3874 = vpack.c.bf16 %v3873, %v3873
        %s3875 = scalar_lea.vmem %s47, 128
        %v3876 = vld [vmem:[%s3875] sm:$0xf]
        %v3877 = vld [vmem:[%s3875 + $0x4] sm:$0xf]
        %v3878 = vld [vmem:[%s3875 + $0x8] sm:$0xf]
        %v3879 = vld [vmem:[%s3875 + $0xc] sm:$0xf]
        %v3880 = vld [vmem:[%s3875 + $0x10] sm:$0xf]
        %v3881 = vld [vmem:[%s3875 + $0x14] sm:$0xf]
        %v3882 = vld [vmem:[%s3875 + $0x18] sm:$0xf]
        %v3883 = vld [vmem:[%s3875 + $0x1c] sm:$0xf]
        %v3884 = vld [vmem:[%s3875 + $0x20] sm:$0xf]
        %v3885 = vld [vmem:[%s3875 + $0x24] sm:$0xf]
        %v3886 = vld [vmem:[%s3875 + $0x28] sm:$0xf]
        %v3887 = vld [vmem:[%s3875 + $0x2c] sm:$0xf]
        %v3888 = vld [vmem:[%s3875 + $0x30] sm:$0xf]
        %v3889 = vld [vmem:[%s3875 + $0x34] sm:$0xf]
        %v3890 = vld [vmem:[%s3875 + $0x38] sm:$0xf]
        %v3891 = vld [vmem:[%s3875 + $0x3c] sm:$0xf]
        %v3908 = vunpack.c.l.b16 %v3876
        %v3909 = vunpack.c.l.b16 %v3877
        %v3910 = vunpack.c.l.b16 %v3878
        %v3911 = vunpack.c.l.b16 %v3879
        %v3912 = vunpack.c.l.b16 %v3880
        %v3913 = vunpack.c.l.b16 %v3881
        %v3914 = vunpack.c.l.b16 %v3882
        %v3915 = vunpack.c.l.b16 %v3883
        %v3916 = vunpack.c.l.b16 %v3884
        %v3917 = vunpack.c.l.b16 %v3885
        %v3918 = vunpack.c.l.b16 %v3886
        %v3919 = vunpack.c.l.b16 %v3887
        %v3920 = vunpack.c.l.b16 %v3888
        %v3921 = vunpack.c.l.b16 %v3889
        %v3922 = vunpack.c.l.b16 %v3890
        %v3923 = vunpack.c.l.b16 %v3891
        %v3924 = vpack.c.b16 %v3909, %v3908
        %v3925 = vpack.c.b16 %v3911, %v3910
        %v3926 = vpack.c.b16 %v3913, %v3912
        %v3927 = vpack.c.b16 %v3915, %v3914
        %v3928 = vpack.c.b16 %v3917, %v3916
        %v3929 = vpack.c.b16 %v3919, %v3918
        %v3930 = vpack.c.b16 %v3921, %v3920
        %v3931 = vpack.c.b16 %v3923, %v3922
        %3940 = vmatprep.subr.bf16.mxu0 0
        %3941 = vmatpush1.bf16.msra.mxu0 %v3931
        %3942 = vmatprep.subr.bf16.mxu0 0
        %3943 = vmatpush1.bf16.msra.mxu0 %v3930
        %3944 = vmatprep.subr.bf16.mxu0 0
        %3945 = vmatpush1.bf16.msra.mxu0 %v3929
        %3946 = vmatprep.subr.bf16.mxu0 0
        %3947 = vmatpush1.bf16.msra.mxu0 %v3928
        %3948 = vmatprep.subr.bf16.mxu0 0
        %3949 = vmatpush1.bf16.msra.mxu0 %v3927
        %3950 = vmatprep.subr.bf16.mxu0 0
        %3951 = vmatpush1.bf16.msra.mxu0 %v3926
        %3952 = vmatprep.subr.bf16.mxu0 0
        %3953 = vmatpush1.bf16.msra.mxu0 %v3925
        %3954 = vmatprep.subr.bf16.mxu0 0
        %3955 = vmatpush1.bf16.msra.mxu0 %v3924
        %3956 = vmatprep.subr.bf16.mxu0 0
        %3957 = vmatpush2.bf16.msra.mxu0 0
        %3958 = vmatprep.subr.bf16.mxu0 0
        %3959 = vmatpush2.bf16.msra.mxu0 0
        %3960 = vmatprep.subr.bf16.mxu0 0
        %3961 = vmatpush2.bf16.msra.mxu0 0
        %3962 = vmatprep.subr.bf16.mxu0 0
        %3963 = vmatpush2.bf16.msra.mxu0 0
        %3964 = vmatprep.subr.bf16.mxu0 0
        %3965 = vmatpush2.bf16.msra.mxu0 0
        %3966 = vmatprep.subr.bf16.mxu0 0
        %3967 = vmatpush2.bf16.msra.mxu0 0
        %3968 = vmatprep.subr.bf16.mxu0 0
        %3969 = vmatpush2.bf16.msra.mxu0 0
        %3970 = vmatprep.subr.bf16.mxu0 0
        %3971 = vmatpush2.bf16.msra.mxu0 0
        %3972 = vmatprep.mubr.bf16.mxu0 0
        %3973 = vmatmul.mubr.bf16.gmra.mxu0 %v3874
        %v3974 = vpop.f32.mrf.mxu0
        %v3975 = vadd.f32 0.0, %v3974
        %v3976 = vpop.f32.mrf.mxu0
        %v3977 = vpop.f32.mrf.mxu0
        %v3978 = vpop.f32.mrf.mxu0
        %3979 = vdwg.mxu0
        %v3980 = vadd.f32 %v3868, %v3975
        %v3981 = vld [vmem:[#allocation17] sm:$0x1]
        %v3983 = vlaneseq
        %v3984 = vshrl.u32 %v3983, 7
        %v3985 = vsub.s32 0, %v3984
        %v3986 = vrot.slane %v3981, %v3985
        %v3988 = vadd.f32 %v3980, %v3986
        %v3989 = vmax.f32 %v3988, 0.0
        %v3990 = vld [vmem:[%s15] sm:$0xf]
        %v3991 = vpack.c.bf16 %v3323, %v3323
        %v3993 = vsel %vm1837, %v3990, 0
        %v3996 = vsel %vm1841, %v3991, 0
        %3998 = vmatprep.subr.bf16.mxu0 0
        %3999 = vmatpush1.bf16.msra.mxu0 0
        %4000 = vmatprep.subr.bf16.mxu0 0
        %4001 = vmatpush1.bf16.msra.mxu0 0
        %4002 = vmatprep.subr.bf16.mxu0 0
        %4003 = vmatpush1.bf16.msra.mxu0 0
        %4004 = vmatprep.subr.bf16.mxu0 0
        %4005 = vmatpush1.bf16.msra.mxu0 0
        %4006 = vmatprep.subr.bf16.mxu0 0
        %4007 = vmatpush1.bf16.msra.mxu0 0
        %4008 = vmatprep.subr.bf16.mxu0 0
        %4009 = vmatpush1.bf16.msra.mxu0 0
        %4010 = vmatprep.subr.bf16.mxu0 0
        %4011 = vmatpush1.bf16.msra.mxu0 0
        %4012 = vmatprep.subr.bf16.mxu0 0
        %4013 = vmatpush1.bf16.msra.mxu0 %v3996
        %4014 = vmatprep.subr.bf16.mxu0 0
        %4015 = vmatpush2.bf16.msra.mxu0 0
        %4016 = vmatprep.subr.bf16.mxu0 0
        %4017 = vmatpush2.bf16.msra.mxu0 0
        %4018 = vmatprep.subr.bf16.mxu0 0
        %4019 = vmatpush2.bf16.msra.mxu0 0
        %4020 = vmatprep.subr.bf16.mxu0 0
        %4021 = vmatpush2.bf16.msra.mxu0 0
        %4022 = vmatprep.subr.bf16.mxu0 0
        %4023 = vmatpush2.bf16.msra.mxu0 0
        %4024 = vmatprep.subr.bf16.mxu0 0
        %4025 = vmatpush2.bf16.msra.mxu0 0
        %4026 = vmatprep.subr.bf16.mxu0 0
        %4027 = vmatpush2.bf16.msra.mxu0 0
        %4028 = vmatprep.subr.bf16.mxu0 0
        %4029 = vmatpush2.bf16.msra.mxu0 0
        %4030 = vmatprep.mubr.bf16.mxu0 0
        %4031 = vmatmul.mubr.bf16.gmra.mxu0 %v3993
        %v4032 = vpop.f32.mrf.mxu0
        %v4033 = vadd.f32 0.0, %v4032
        %v4034 = vpop.f32.mrf.mxu0
        %v4035 = vpop.f32.mrf.mxu0
        %v4036 = vpop.f32.mrf.mxu0
        %4037 = vdwg.mxu0
        %v4038 = vpack.c.bf16 %v4033, %v4033
        %v4039 = vld [vmem:[#allocation19] sm:$0xf]
        %v4040 = vld [vmem:[#allocation19 + $0x4] sm:$0xf]
        %v4041 = vld [vmem:[#allocation19 + $0x8] sm:$0xf]
        %v4042 = vld [vmem:[#allocation19 + $0xc] sm:$0xf]
        %v4043 = vld [vmem:[#allocation19 + $0x10] sm:$0xf]
        %v4044 = vld [vmem:[#allocation19 + $0x14] sm:$0xf]
        %v4045 = vld [vmem:[#allocation19 + $0x18] sm:$0xf]
        %v4046 = vld [vmem:[#allocation19 + $0x1c] sm:$0xf]
        %v4055 = vunpack.c.l.b16 %v4039
        %v4056 = vunpack.c.l.b16 %v4040
        %v4057 = vunpack.c.l.b16 %v4041
        %v4058 = vunpack.c.l.b16 %v4042
        %v4059 = vunpack.c.l.b16 %v4043
        %v4060 = vunpack.c.l.b16 %v4044
        %v4061 = vunpack.c.l.b16 %v4045
        %v4062 = vunpack.c.l.b16 %v4046
        %v4063 = vpack.c.b16 %v4056, %v4055
        %v4064 = vpack.c.b16 %v4058, %v4057
        %v4065 = vpack.c.b16 %v4060, %v4059
        %v4066 = vpack.c.b16 %v4062, %v4061
        %v4072 = vsel %vm1457, %v4038, 0
        %4074 = vmatprep.subr.bf16.mxu0 0
        %4075 = vmatpush1.bf16.msra.mxu0 0
        %4076 = vmatprep.subr.bf16.mxu0 0
        %4077 = vmatpush1.bf16.msra.mxu0 0
        %4078 = vmatprep.subr.bf16.mxu0 0
        %4079 = vmatpush1.bf16.msra.mxu0 0
        %4080 = vmatprep.subr.bf16.mxu0 0
        %4081 = vmatpush1.bf16.msra.mxu0 0
        %4082 = vmatprep.subr.bf16.mxu0 0
        %4083 = vmatpush1.bf16.msra.mxu0 %v4066
        %4084 = vmatprep.subr.bf16.mxu0 0
        %4085 = vmatpush1.bf16.msra.mxu0 %v4065
        %4086 = vmatprep.subr.bf16.mxu0 0
        %4087 = vmatpush1.bf16.msra.mxu0 %v4064
        %4088 = vmatprep.subr.bf16.mxu0 0
        %4089 = vmatpush1.bf16.msra.mxu0 %v4063
        %4090 = vmatprep.subr.bf16.mxu0 0
        %4091 = vmatpush2.bf16.msra.mxu0 0
        %4092 = vmatprep.subr.bf16.mxu0 0
        %4093 = vmatpush2.bf16.msra.mxu0 0
        %4094 = vmatprep.subr.bf16.mxu0 0
        %4095 = vmatpush2.bf16.msra.mxu0 0
        %4096 = vmatprep.subr.bf16.mxu0 0
        %4097 = vmatpush2.bf16.msra.mxu0 0
        %4098 = vmatprep.subr.bf16.mxu0 0
        %4099 = vmatpush2.bf16.msra.mxu0 0
        %4100 = vmatprep.subr.bf16.mxu0 0
        %4101 = vmatpush2.bf16.msra.mxu0 0
        %4102 = vmatprep.subr.bf16.mxu0 0
        %4103 = vmatpush2.bf16.msra.mxu0 0
        %4104 = vmatprep.subr.bf16.mxu0 0
        %4105 = vmatpush2.bf16.msra.mxu0 0
        %4106 = vmatprep.mubr.bf16.mxu0 0
        %4107 = vmatmul.mubr.bf16.gmra.mxu0 %v4072
        %v4108 = vpop.f32.mrf.mxu0
        %v4109 = vadd.f32 0.0, %v4108
        %v4110 = vpop.f32.mrf.mxu0
        %v4111 = vpop.f32.mrf.mxu0
        %v4112 = vpop.f32.mrf.mxu0
        %4113 = vdwg.mxu0
        %v4114 = vpack.c.bf16 %v3989, %v3989
        %v4115 = vld [vmem:[#allocation20] sm:$0xf]
        %v4116 = vld [vmem:[#allocation20 + $0x4] sm:$0xf]
        %v4117 = vld [vmem:[#allocation20 + $0x8] sm:$0xf]
        %v4118 = vld [vmem:[#allocation20 + $0xc] sm:$0xf]
        %v4119 = vld [vmem:[#allocation20 + $0x10] sm:$0xf]
        %v4120 = vld [vmem:[#allocation20 + $0x14] sm:$0xf]
        %v4121 = vld [vmem:[#allocation20 + $0x18] sm:$0xf]
        %v4122 = vld [vmem:[#allocation20 + $0x1c] sm:$0xf]
        %v4123 = vld [vmem:[#allocation20 + $0x20] sm:$0xf]
        %v4124 = vld [vmem:[#allocation20 + $0x24] sm:$0xf]
        %v4125 = vld [vmem:[#allocation20 + $0x28] sm:$0xf]
        %v4126 = vld [vmem:[#allocation20 + $0x2c] sm:$0xf]
        %v4127 = vld [vmem:[#allocation20 + $0x30] sm:$0xf]
        %v4128 = vld [vmem:[#allocation20 + $0x34] sm:$0xf]
        %v4129 = vld [vmem:[#allocation20 + $0x38] sm:$0xf]
        %v4130 = vld [vmem:[#allocation20 + $0x3c] sm:$0xf]
        %v4131 = vpack.c.bf16 %v3656, %v3656
        %v4132 = vld [vmem:[#allocation22] sm:$0xf]
        %v4133 = vld [vmem:[#allocation22 + $0x4] sm:$0xf]
        %v4134 = vld [vmem:[#allocation22 + $0x8] sm:$0xf]
        %v4135 = vld [vmem:[#allocation22 + $0xc] sm:$0xf]
        %v4136 = vld [vmem:[#allocation22 + $0x10] sm:$0xf]
        %v4137 = vld [vmem:[#allocation22 + $0x14] sm:$0xf]
        %v4138 = vld [vmem:[#allocation22 + $0x18] sm:$0xf]
        %v4139 = vld [vmem:[#allocation22 + $0x1c] sm:$0xf]
        %v4140 = vld [vmem:[#allocation22 + $0x20] sm:$0xf]
        %v4141 = vld [vmem:[#allocation22 + $0x24] sm:$0xf]
        %v4142 = vld [vmem:[#allocation22 + $0x28] sm:$0xf]
        %v4143 = vld [vmem:[#allocation22 + $0x2c] sm:$0xf]
        %v4144 = vld [vmem:[#allocation22 + $0x30] sm:$0xf]
        %v4145 = vld [vmem:[#allocation22 + $0x34] sm:$0xf]
        %v4146 = vld [vmem:[#allocation22 + $0x38] sm:$0xf]
        %v4147 = vld [vmem:[#allocation22 + $0x3c] sm:$0xf]
        %v4164 = vunpack.c.l.b16 %v4132
        %v4165 = vunpack.c.l.b16 %v4133
        %v4166 = vunpack.c.l.b16 %v4134
        %v4167 = vunpack.c.l.b16 %v4135
        %v4168 = vunpack.c.l.b16 %v4136
        %v4169 = vunpack.c.l.b16 %v4137
        %v4170 = vunpack.c.l.b16 %v4138
        %v4171 = vunpack.c.l.b16 %v4139
        %v4172 = vunpack.c.l.b16 %v4140
        %v4173 = vunpack.c.l.b16 %v4141
        %v4174 = vunpack.c.l.b16 %v4142
        %v4175 = vunpack.c.l.b16 %v4143
        %v4176 = vunpack.c.l.b16 %v4144
        %v4177 = vunpack.c.l.b16 %v4145
        %v4178 = vunpack.c.l.b16 %v4146
        %v4179 = vunpack.c.l.b16 %v4147
        %v4180 = vpack.c.b16 %v4165, %v4164
        %v4181 = vpack.c.b16 %v4167, %v4166
        %v4182 = vpack.c.b16 %v4169, %v4168
        %v4183 = vpack.c.b16 %v4171, %v4170
        %v4184 = vpack.c.b16 %v4173, %v4172
        %v4185 = vpack.c.b16 %v4175, %v4174
        %v4186 = vpack.c.b16 %v4177, %v4176
        %v4187 = vpack.c.b16 %v4179, %v4178
        %4196 = vmatprep.subr.bf16.mxu0 0
        %4197 = vmatpush1.bf16.msra.mxu0 %v4187
        %4198 = vmatprep.subr.bf16.mxu0 0
        %4199 = vmatpush1.bf16.msra.mxu0 %v4186
        %4200 = vmatprep.subr.bf16.mxu0 0
        %4201 = vmatpush1.bf16.msra.mxu0 %v4185
        %4202 = vmatprep.subr.bf16.mxu0 0
        %4203 = vmatpush1.bf16.msra.mxu0 %v4184
        %4204 = vmatprep.subr.bf16.mxu0 0
        %4205 = vmatpush1.bf16.msra.mxu0 %v4183
        %4206 = vmatprep.subr.bf16.mxu0 0
        %4207 = vmatpush1.bf16.msra.mxu0 %v4182
        %4208 = vmatprep.subr.bf16.mxu0 0
        %4209 = vmatpush1.bf16.msra.mxu0 %v4181
        %4210 = vmatprep.subr.bf16.mxu0 0
        %4211 = vmatpush1.bf16.msra.mxu0 %v4180
        %4212 = vmatprep.subr.bf16.mxu0 0
        %4213 = vmatpush2.bf16.msra.mxu0 0
        %4214 = vmatprep.subr.bf16.mxu0 0
        %4215 = vmatpush2.bf16.msra.mxu0 0
        %4216 = vmatprep.subr.bf16.mxu0 0
        %4217 = vmatpush2.bf16.msra.mxu0 0
        %4218 = vmatprep.subr.bf16.mxu0 0
        %4219 = vmatpush2.bf16.msra.mxu0 0
        %4220 = vmatprep.subr.bf16.mxu0 0
        %4221 = vmatpush2.bf16.msra.mxu0 0
        %4222 = vmatprep.subr.bf16.mxu0 0
        %4223 = vmatpush2.bf16.msra.mxu0 0
        %4224 = vmatprep.subr.bf16.mxu0 0
        %4225 = vmatpush2.bf16.msra.mxu0 0
        %4226 = vmatprep.subr.bf16.mxu0 0
        %4227 = vmatpush2.bf16.msra.mxu0 0
        %4228 = vmatprep.mubr.bf16.mxu0 0
        %4229 = vmatmul.mubr.bf16.gmra.mxu0 %v4131
        %v4230 = vpop.f32.mrf.mxu0
        %v4231 = vadd.f32 0.0, %v4230
        %v4232 = vpop.f32.mrf.mxu0
        %v4233 = vpop.f32.mrf.mxu0
        %v4234 = vpop.f32.mrf.mxu0
        %4235 = vdwg.mxu0
        %v4252 = vunpack.c.l.b16 %v4115
        %v4253 = vunpack.c.l.b16 %v4116
        %v4254 = vunpack.c.l.b16 %v4117
        %v4255 = vunpack.c.l.b16 %v4118
        %v4256 = vunpack.c.l.b16 %v4119
        %v4257 = vunpack.c.l.b16 %v4120
        %v4258 = vunpack.c.l.b16 %v4121
        %v4259 = vunpack.c.l.b16 %v4122
        %v4260 = vunpack.c.l.b16 %v4123
        %v4261 = vunpack.c.l.b16 %v4124
        %v4262 = vunpack.c.l.b16 %v4125
        %v4263 = vunpack.c.l.b16 %v4126
        %v4264 = vunpack.c.l.b16 %v4127
        %v4265 = vunpack.c.l.b16 %v4128
        %v4266 = vunpack.c.l.b16 %v4129
        %v4267 = vunpack.c.l.b16 %v4130
        %v4268 = vpack.c.b16 %v4253, %v4252
        %v4269 = vpack.c.b16 %v4255, %v4254
        %v4270 = vpack.c.b16 %v4257, %v4256
        %v4271 = vpack.c.b16 %v4259, %v4258
        %v4272 = vpack.c.b16 %v4261, %v4260
        %v4273 = vpack.c.b16 %v4263, %v4262
        %v4274 = vpack.c.b16 %v4265, %v4264
        %v4275 = vpack.c.b16 %v4267, %v4266
        %4284 = vmatprep.subr.bf16.mxu0 0
        %4285 = vmatpush1.bf16.msra.mxu0 %v4275
        %4286 = vmatprep.subr.bf16.mxu0 0
        %4287 = vmatpush1.bf16.msra.mxu0 %v4274
        %4288 = vmatprep.subr.bf16.mxu0 0
        %4289 = vmatpush1.bf16.msra.mxu0 %v4273
        %4290 = vmatprep.subr.bf16.mxu0 0
        %4291 = vmatpush1.bf16.msra.mxu0 %v4272
        %4292 = vmatprep.subr.bf16.mxu0 0
        %4293 = vmatpush1.bf16.msra.mxu0 %v4271
        %4294 = vmatprep.subr.bf16.mxu0 0
        %4295 = vmatpush1.bf16.msra.mxu0 %v4270
        %4296 = vmatprep.subr.bf16.mxu0 0
        %4297 = vmatpush1.bf16.msra.mxu0 %v4269
        %4298 = vmatprep.subr.bf16.mxu0 0
        %4299 = vmatpush1.bf16.msra.mxu0 %v4268
        %4300 = vmatprep.subr.bf16.mxu0 0
        %4301 = vmatpush2.bf16.msra.mxu0 0
        %4302 = vmatprep.subr.bf16.mxu0 0
        %4303 = vmatpush2.bf16.msra.mxu0 0
        %4304 = vmatprep.subr.bf16.mxu0 0
        %4305 = vmatpush2.bf16.msra.mxu0 0
        %4306 = vmatprep.subr.bf16.mxu0 0
        %4307 = vmatpush2.bf16.msra.mxu0 0
        %4308 = vmatprep.subr.bf16.mxu0 0
        %4309 = vmatpush2.bf16.msra.mxu0 0
        %4310 = vmatprep.subr.bf16.mxu0 0
        %4311 = vmatpush2.bf16.msra.mxu0 0
        %4312 = vmatprep.subr.bf16.mxu0 0
        %4313 = vmatpush2.bf16.msra.mxu0 0
        %4314 = vmatprep.subr.bf16.mxu0 0
        %4315 = vmatpush2.bf16.msra.mxu0 0
        %4316 = vmatprep.mubr.bf16.mxu0 0
        %4317 = vmatmul.mubr.bf16.gmra.mxu0 %v4114
        %v4318 = vpop.f32.mrf.mxu0
        %v4319 = vadd.f32 %v4231, %v4318
        %v4320 = vpop.f32.mrf.mxu0
        %v4321 = vpop.f32.mrf.mxu0
        %v4322 = vpop.f32.mrf.mxu0
        %4323 = vdwg.mxu0
        %v4324 = vpack.c.bf16 %v4109, %v4109
        %v4325 = vld [vmem:[#allocation23] sm:$0xf]
        %v4326 = vld [vmem:[#allocation23 + $0x4] sm:$0xf]
        %v4327 = vld [vmem:[#allocation23 + $0x8] sm:$0xf]
        %v4328 = vld [vmem:[#allocation23 + $0xc] sm:$0xf]
        %v4329 = vld [vmem:[#allocation23 + $0x10] sm:$0xf]
        %v4330 = vld [vmem:[#allocation23 + $0x14] sm:$0xf]
        %v4331 = vld [vmem:[#allocation23 + $0x18] sm:$0xf]
        %v4332 = vld [vmem:[#allocation23 + $0x1c] sm:$0xf]
        %v4333 = vld [vmem:[#allocation23 + $0x20] sm:$0xf]
        %v4334 = vld [vmem:[#allocation23 + $0x24] sm:$0xf]
        %v4335 = vld [vmem:[#allocation23 + $0x28] sm:$0xf]
        %v4336 = vld [vmem:[#allocation23 + $0x2c] sm:$0xf]
        %v4337 = vld [vmem:[#allocation23 + $0x30] sm:$0xf]
        %v4338 = vld [vmem:[#allocation23 + $0x34] sm:$0xf]
        %v4339 = vld [vmem:[#allocation23 + $0x38] sm:$0xf]
        %v4340 = vld [vmem:[#allocation23 + $0x3c] sm:$0xf]
        %v4357 = vunpack.c.l.b16 %v4325
        %v4358 = vunpack.c.l.b16 %v4326
        %v4359 = vunpack.c.l.b16 %v4327
        %v4360 = vunpack.c.l.b16 %v4328
        %v4361 = vunpack.c.l.b16 %v4329
        %v4362 = vunpack.c.l.b16 %v4330
        %v4363 = vunpack.c.l.b16 %v4331
        %v4364 = vunpack.c.l.b16 %v4332
        %v4365 = vunpack.c.l.b16 %v4333
        %v4366 = vunpack.c.l.b16 %v4334
        %v4367 = vunpack.c.l.b16 %v4335
        %v4368 = vunpack.c.l.b16 %v4336
        %v4369 = vunpack.c.l.b16 %v4337
        %v4370 = vunpack.c.l.b16 %v4338
        %v4371 = vunpack.c.l.b16 %v4339
        %v4372 = vunpack.c.l.b16 %v4340
        %v4373 = vpack.c.b16 %v4358, %v4357
        %v4374 = vpack.c.b16 %v4360, %v4359
        %v4375 = vpack.c.b16 %v4362, %v4361
        %v4376 = vpack.c.b16 %v4364, %v4363
        %v4377 = vpack.c.b16 %v4366, %v4365
        %v4378 = vpack.c.b16 %v4368, %v4367
        %v4379 = vpack.c.b16 %v4370, %v4369
        %v4380 = vpack.c.b16 %v4372, %v4371
        %4389 = vmatprep.subr.bf16.mxu0 0
        %4390 = vmatpush1.bf16.msra.mxu0 %v4380
        %4391 = vmatprep.subr.bf16.mxu0 0
        %4392 = vmatpush1.bf16.msra.mxu0 %v4379
        %4393 = vmatprep.subr.bf16.mxu0 0
        %4394 = vmatpush1.bf16.msra.mxu0 %v4378
        %4395 = vmatprep.subr.bf16.mxu0 0
        %4396 = vmatpush1.bf16.msra.mxu0 %v4377
        %4397 = vmatprep.subr.bf16.mxu0 0
        %4398 = vmatpush1.bf16.msra.mxu0 %v4376
        %4399 = vmatprep.subr.bf16.mxu0 0
        %4400 = vmatpush1.bf16.msra.mxu0 %v4375
        %4401 = vmatprep.subr.bf16.mxu0 0
        %4402 = vmatpush1.bf16.msra.mxu0 %v4374
        %4403 = vmatprep.subr.bf16.mxu0 0
        %4404 = vmatpush1.bf16.msra.mxu0 %v4373
        %4405 = vmatprep.subr.bf16.mxu0 0
        %4406 = vmatpush2.bf16.msra.mxu0 0
        %4407 = vmatprep.subr.bf16.mxu0 0
        %4408 = vmatpush2.bf16.msra.mxu0 0
        %4409 = vmatprep.subr.bf16.mxu0 0
        %4410 = vmatpush2.bf16.msra.mxu0 0
        %4411 = vmatprep.subr.bf16.mxu0 0
        %4412 = vmatpush2.bf16.msra.mxu0 0
        %4413 = vmatprep.subr.bf16.mxu0 0
        %4414 = vmatpush2.bf16.msra.mxu0 0
        %4415 = vmatprep.subr.bf16.mxu0 0
        %4416 = vmatpush2.bf16.msra.mxu0 0
        %4417 = vmatprep.subr.bf16.mxu0 0
        %4418 = vmatpush2.bf16.msra.mxu0 0
        %4419 = vmatprep.subr.bf16.mxu0 0
        %4420 = vmatpush2.bf16.msra.mxu0 0
        %4421 = vmatprep.mubr.bf16.mxu0 0
        %4422 = vmatmul.mubr.bf16.gmra.mxu0 %v4324
        %v4423 = vpop.f32.mrf.mxu0
        %v4424 = vadd.f32 0.0, %v4423
        %v4425 = vpop.f32.mrf.mxu0
        %v4426 = vpop.f32.mrf.mxu0
        %v4427 = vpop.f32.mrf.mxu0
        %4428 = vdwg.mxu0
        %v4429 = vadd.f32 %v4319, %v4424
        %v4430 = vld [vmem:[#allocation25] sm:$0x1]
        %v4432 = vlaneseq
        %v4433 = vshrl.u32 %v4432, 7
        %v4434 = vsub.s32 0, %v4433
        %v4435 = vrot.slane %v4430, %v4434
        %v4437 = vadd.f32 %v4429, %v4435
        %v4438 = vmax.f32 %v4437, 0.0
        %4439 = vst [vmem:[#allocation2] sm:$0x1] 0.0
        %4440 = vst [vmem:[#allocation2 + $0x9] sm:$0x1] 0.0
        %4441 = vst [vmem:[#allocation2 + $0x1] sm:$0xff] %v4438
        %v4442 = vld [vmem:[#allocation2] sm:$0xff]
        %v4443 = vpack.c.bf16 %v4442, %v4442
        %v4444 = vld [vmem:[%s61] sm:$0xf]
        %v4445 = vld [vmem:[%s61 + $0x4] sm:$0xf]
        %v4446 = vld [vmem:[%s61 + $0x8] sm:$0xf]
        %v4447 = vld [vmem:[%s61 + $0xc] sm:$0xf]
        %v4448 = vld [vmem:[%s61 + $0x10] sm:$0xf]
        %v4449 = vld [vmem:[%s61 + $0x14] sm:$0xf]
        %v4450 = vld [vmem:[%s61 + $0x18] sm:$0xf]
        %v4451 = vld [vmem:[%s61 + $0x1c] sm:$0xf]
        %v4452 = vld [vmem:[%s61 + $0x20] sm:$0xf]
        %v4453 = vld [vmem:[%s61 + $0x24] sm:$0xf]
        %v4454 = vld [vmem:[%s61 + $0x28] sm:$0xf]
        %v4455 = vld [vmem:[%s61 + $0x2c] sm:$0xf]
        %v4456 = vld [vmem:[%s61 + $0x30] sm:$0xf]
        %v4457 = vld [vmem:[%s61 + $0x34] sm:$0xf]
        %v4458 = vld [vmem:[%s61 + $0x38] sm:$0xf]
        %v4459 = vld [vmem:[%s61 + $0x3c] sm:$0xf]
        %v4460 = vld [vmem:[#allocation2 + $0x1] sm:$0xff]
        %v4461 = vpack.c.bf16 %v4460, %v4460
        %s4462 = scalar_lea.vmem %s61, 64
        %v4463 = vld [vmem:[%s4462] sm:$0xf]
        %v4464 = vld [vmem:[%s4462 + $0x4] sm:$0xf]
        %v4465 = vld [vmem:[%s4462 + $0x8] sm:$0xf]
        %v4466 = vld [vmem:[%s4462 + $0xc] sm:$0xf]
        %v4467 = vld [vmem:[%s4462 + $0x10] sm:$0xf]
        %v4468 = vld [vmem:[%s4462 + $0x14] sm:$0xf]
        %v4469 = vld [vmem:[%s4462 + $0x18] sm:$0xf]
        %v4470 = vld [vmem:[%s4462 + $0x1c] sm:$0xf]
        %v4471 = vld [vmem:[%s4462 + $0x20] sm:$0xf]
        %v4472 = vld [vmem:[%s4462 + $0x24] sm:$0xf]
        %v4473 = vld [vmem:[%s4462 + $0x28] sm:$0xf]
        %v4474 = vld [vmem:[%s4462 + $0x2c] sm:$0xf]
        %v4475 = vld [vmem:[%s4462 + $0x30] sm:$0xf]
        %v4476 = vld [vmem:[%s4462 + $0x34] sm:$0xf]
        %v4477 = vld [vmem:[%s4462 + $0x38] sm:$0xf]
        %v4478 = vld [vmem:[%s4462 + $0x3c] sm:$0xf]
        %v4495 = vunpack.c.l.b16 %v4463
        %v4496 = vunpack.c.l.b16 %v4464
        %v4497 = vunpack.c.l.b16 %v4465
        %v4498 = vunpack.c.l.b16 %v4466
        %v4499 = vunpack.c.l.b16 %v4467
        %v4500 = vunpack.c.l.b16 %v4468
        %v4501 = vunpack.c.l.b16 %v4469
        %v4502 = vunpack.c.l.b16 %v4470
        %v4503 = vunpack.c.l.b16 %v4471
        %v4504 = vunpack.c.l.b16 %v4472
        %v4505 = vunpack.c.l.b16 %v4473
        %v4506 = vunpack.c.l.b16 %v4474
        %v4507 = vunpack.c.l.b16 %v4475
        %v4508 = vunpack.c.l.b16 %v4476
        %v4509 = vunpack.c.l.b16 %v4477
        %v4510 = vunpack.c.l.b16 %v4478
        %v4511 = vpack.c.b16 %v4496, %v4495
        %v4512 = vpack.c.b16 %v4498, %v4497
        %v4513 = vpack.c.b16 %v4500, %v4499
        %v4514 = vpack.c.b16 %v4502, %v4501
        %v4515 = vpack.c.b16 %v4504, %v4503
        %v4516 = vpack.c.b16 %v4506, %v4505
        %v4517 = vpack.c.b16 %v4508, %v4507
        %v4518 = vpack.c.b16 %v4510, %v4509
        %4527 = vmatprep.subr.bf16.mxu0 0
        %4528 = vmatpush1.bf16.msra.mxu0 %v4518
        %4529 = vmatprep.subr.bf16.mxu0 0
        %4530 = vmatpush1.bf16.msra.mxu0 %v4517
        %4531 = vmatprep.subr.bf16.mxu0 0
        %4532 = vmatpush1.bf16.msra.mxu0 %v4516
        %4533 = vmatprep.subr.bf16.mxu0 0
        %4534 = vmatpush1.bf16.msra.mxu0 %v4515
        %4535 = vmatprep.subr.bf16.mxu0 0
        %4536 = vmatpush1.bf16.msra.mxu0 %v4514
        %4537 = vmatprep.subr.bf16.mxu0 0
        %4538 = vmatpush1.bf16.msra.mxu0 %v4513
        %4539 = vmatprep.subr.bf16.mxu0 0
        %4540 = vmatpush1.bf16.msra.mxu0 %v4512
        %4541 = vmatprep.subr.bf16.mxu0 0
        %4542 = vmatpush1.bf16.msra.mxu0 %v4511
        %4543 = vmatprep.subr.bf16.mxu0 0
        %4544 = vmatpush2.bf16.msra.mxu0 0
        %4545 = vmatprep.subr.bf16.mxu0 0
        %4546 = vmatpush2.bf16.msra.mxu0 0
        %4547 = vmatprep.subr.bf16.mxu0 0
        %4548 = vmatpush2.bf16.msra.mxu0 0
        %4549 = vmatprep.subr.bf16.mxu0 0
        %4550 = vmatpush2.bf16.msra.mxu0 0
        %4551 = vmatprep.subr.bf16.mxu0 0
        %4552 = vmatpush2.bf16.msra.mxu0 0
        %4553 = vmatprep.subr.bf16.mxu0 0
        %4554 = vmatpush2.bf16.msra.mxu0 0
        %4555 = vmatprep.subr.bf16.mxu0 0
        %4556 = vmatpush2.bf16.msra.mxu0 0
        %4557 = vmatprep.subr.bf16.mxu0 0
        %4558 = vmatpush2.bf16.msra.mxu0 0
        %4559 = vmatprep.mubr.bf16.mxu0 0
        %4560 = vmatmul.mubr.bf16.gmra.mxu0 %v4461
        %v4561 = vpop.f32.mrf.mxu0
        %v4562 = vadd.f32 0.0, %v4561
        %v4563 = vpop.f32.mrf.mxu0
        %v4564 = vpop.f32.mrf.mxu0
        %v4565 = vpop.f32.mrf.mxu0
        %4566 = vdwg.mxu0
        %v4583 = vunpack.c.l.b16 %v4444
        %v4584 = vunpack.c.l.b16 %v4445
        %v4585 = vunpack.c.l.b16 %v4446
        %v4586 = vunpack.c.l.b16 %v4447
        %v4587 = vunpack.c.l.b16 %v4448
        %v4588 = vunpack.c.l.b16 %v4449
        %v4589 = vunpack.c.l.b16 %v4450
        %v4590 = vunpack.c.l.b16 %v4451
        %v4591 = vunpack.c.l.b16 %v4452
        %v4592 = vunpack.c.l.b16 %v4453
        %v4593 = vunpack.c.l.b16 %v4454
        %v4594 = vunpack.c.l.b16 %v4455
        %v4595 = vunpack.c.l.b16 %v4456
        %v4596 = vunpack.c.l.b16 %v4457
        %v4597 = vunpack.c.l.b16 %v4458
        %v4598 = vunpack.c.l.b16 %v4459
        %v4599 = vpack.c.b16 %v4584, %v4583
        %v4600 = vpack.c.b16 %v4586, %v4585
        %v4601 = vpack.c.b16 %v4588, %v4587
        %v4602 = vpack.c.b16 %v4590, %v4589
        %v4603 = vpack.c.b16 %v4592, %v4591
        %v4604 = vpack.c.b16 %v4594, %v4593
        %v4605 = vpack.c.b16 %v4596, %v4595
        %v4606 = vpack.c.b16 %v4598, %v4597
        %4615 = vmatprep.subr.bf16.mxu0 0
        %4616 = vmatpush1.bf16.msra.mxu0 %v4606
        %4617 = vmatprep.subr.bf16.mxu0 0
        %4618 = vmatpush1.bf16.msra.mxu0 %v4605
        %4619 = vmatprep.subr.bf16.mxu0 0
        %4620 = vmatpush1.bf16.msra.mxu0 %v4604
        %4621 = vmatprep.subr.bf16.mxu0 0
        %4622 = vmatpush1.bf16.msra.mxu0 %v4603
        %4623 = vmatprep.subr.bf16.mxu0 0
        %4624 = vmatpush1.bf16.msra.mxu0 %v4602
        %4625 = vmatprep.subr.bf16.mxu0 0
        %4626 = vmatpush1.bf16.msra.mxu0 %v4601
        %4627 = vmatprep.subr.bf16.mxu0 0
        %4628 = vmatpush1.bf16.msra.mxu0 %v4600
        %4629 = vmatprep.subr.bf16.mxu0 0
        %4630 = vmatpush1.bf16.msra.mxu0 %v4599
        %4631 = vmatprep.subr.bf16.mxu0 0
        %4632 = vmatpush2.bf16.msra.mxu0 0
        %4633 = vmatprep.subr.bf16.mxu0 0
        %4634 = vmatpush2.bf16.msra.mxu0 0
        %4635 = vmatprep.subr.bf16.mxu0 0
        %4636 = vmatpush2.bf16.msra.mxu0 0
        %4637 = vmatprep.subr.bf16.mxu0 0
        %4638 = vmatpush2.bf16.msra.mxu0 0
        %4639 = vmatprep.subr.bf16.mxu0 0
        %4640 = vmatpush2.bf16.msra.mxu0 0
        %4641 = vmatprep.subr.bf16.mxu0 0
        %4642 = vmatpush2.bf16.msra.mxu0 0
        %4643 = vmatprep.subr.bf16.mxu0 0
        %4644 = vmatpush2.bf16.msra.mxu0 0
        %4645 = vmatprep.subr.bf16.mxu0 0
        %4646 = vmatpush2.bf16.msra.mxu0 0
        %4647 = vmatprep.mubr.bf16.mxu0 0
        %4648 = vmatmul.mubr.bf16.gmra.mxu0 %v4443
        %v4649 = vpop.f32.mrf.mxu0
        %v4650 = vadd.f32 %v4562, %v4649
        %v4651 = vpop.f32.mrf.mxu0
        %v4652 = vpop.f32.mrf.mxu0
        %v4653 = vpop.f32.mrf.mxu0
        %4654 = vdwg.mxu0
        %v4655 = vld [vmem:[#allocation2 + $0x2] sm:$0xff]
        %v4656 = vpack.c.bf16 %v4655, %v4655
        %s4657 = scalar_lea.vmem %s61, 128
        %v4658 = vld [vmem:[%s4657] sm:$0xf]
        %v4659 = vld [vmem:[%s4657 + $0x4] sm:$0xf]
        %v4660 = vld [vmem:[%s4657 + $0x8] sm:$0xf]
        %v4661 = vld [vmem:[%s4657 + $0xc] sm:$0xf]
        %v4662 = vld [vmem:[%s4657 + $0x10] sm:$0xf]
        %v4663 = vld [vmem:[%s4657 + $0x14] sm:$0xf]
        %v4664 = vld [vmem:[%s4657 + $0x18] sm:$0xf]
        %v4665 = vld [vmem:[%s4657 + $0x1c] sm:$0xf]
        %v4666 = vld [vmem:[%s4657 + $0x20] sm:$0xf]
        %v4667 = vld [vmem:[%s4657 + $0x24] sm:$0xf]
        %v4668 = vld [vmem:[%s4657 + $0x28] sm:$0xf]
        %v4669 = vld [vmem:[%s4657 + $0x2c] sm:$0xf]
        %v4670 = vld [vmem:[%s4657 + $0x30] sm:$0xf]
        %v4671 = vld [vmem:[%s4657 + $0x34] sm:$0xf]
        %v4672 = vld [vmem:[%s4657 + $0x38] sm:$0xf]
        %v4673 = vld [vmem:[%s4657 + $0x3c] sm:$0xf]
        %v4690 = vunpack.c.l.b16 %v4658
        %v4691 = vunpack.c.l.b16 %v4659
        %v4692 = vunpack.c.l.b16 %v4660
        %v4693 = vunpack.c.l.b16 %v4661
        %v4694 = vunpack.c.l.b16 %v4662
        %v4695 = vunpack.c.l.b16 %v4663
        %v4696 = vunpack.c.l.b16 %v4664
        %v4697 = vunpack.c.l.b16 %v4665
        %v4698 = vunpack.c.l.b16 %v4666
        %v4699 = vunpack.c.l.b16 %v4667
        %v4700 = vunpack.c.l.b16 %v4668
        %v4701 = vunpack.c.l.b16 %v4669
        %v4702 = vunpack.c.l.b16 %v4670
        %v4703 = vunpack.c.l.b16 %v4671
        %v4704 = vunpack.c.l.b16 %v4672
        %v4705 = vunpack.c.l.b16 %v4673
        %v4706 = vpack.c.b16 %v4691, %v4690
        %v4707 = vpack.c.b16 %v4693, %v4692
        %v4708 = vpack.c.b16 %v4695, %v4694
        %v4709 = vpack.c.b16 %v4697, %v4696
        %v4710 = vpack.c.b16 %v4699, %v4698
        %v4711 = vpack.c.b16 %v4701, %v4700
        %v4712 = vpack.c.b16 %v4703, %v4702
        %v4713 = vpack.c.b16 %v4705, %v4704
        %4722 = vmatprep.subr.bf16.mxu0 0
        %4723 = vmatpush1.bf16.msra.mxu0 %v4713
        %4724 = vmatprep.subr.bf16.mxu0 0
        %4725 = vmatpush1.bf16.msra.mxu0 %v4712
        %4726 = vmatprep.subr.bf16.mxu0 0
        %4727 = vmatpush1.bf16.msra.mxu0 %v4711
        %4728 = vmatprep.subr.bf16.mxu0 0
        %4729 = vmatpush1.bf16.msra.mxu0 %v4710
        %4730 = vmatprep.subr.bf16.mxu0 0
        %4731 = vmatpush1.bf16.msra.mxu0 %v4709
        %4732 = vmatprep.subr.bf16.mxu0 0
        %4733 = vmatpush1.bf16.msra.mxu0 %v4708
        %4734 = vmatprep.subr.bf16.mxu0 0
        %4735 = vmatpush1.bf16.msra.mxu0 %v4707
        %4736 = vmatprep.subr.bf16.mxu0 0
        %4737 = vmatpush1.bf16.msra.mxu0 %v4706
        %4738 = vmatprep.subr.bf16.mxu0 0
        %4739 = vmatpush2.bf16.msra.mxu0 0
        %4740 = vmatprep.subr.bf16.mxu0 0
        %4741 = vmatpush2.bf16.msra.mxu0 0
        %4742 = vmatprep.subr.bf16.mxu0 0
        %4743 = vmatpush2.bf16.msra.mxu0 0
        %4744 = vmatprep.subr.bf16.mxu0 0
        %4745 = vmatpush2.bf16.msra.mxu0 0
        %4746 = vmatprep.subr.bf16.mxu0 0
        %4747 = vmatpush2.bf16.msra.mxu0 0
        %4748 = vmatprep.subr.bf16.mxu0 0
        %4749 = vmatpush2.bf16.msra.mxu0 0
        %4750 = vmatprep.subr.bf16.mxu0 0
        %4751 = vmatpush2.bf16.msra.mxu0 0
        %4752 = vmatprep.subr.bf16.mxu0 0
        %4753 = vmatpush2.bf16.msra.mxu0 0
        %4754 = vmatprep.mubr.bf16.mxu0 0
        %4755 = vmatmul.mubr.bf16.gmra.mxu0 %v4656
        %v4756 = vpop.f32.mrf.mxu0
        %v4757 = vadd.f32 0.0, %v4756
        %v4758 = vpop.f32.mrf.mxu0
        %v4759 = vpop.f32.mrf.mxu0
        %v4760 = vpop.f32.mrf.mxu0
        %4761 = vdwg.mxu0
        %v4762 = vadd.f32 %v4650, %v4757
        %v4763 = vld [vmem:[#allocation26] sm:$0xff]
        %v4764 = vadd.f32 %v4762, %v4763
        %v4765 = vmax.f32 %v4764, 0.0
        %4766 = vst [vmem:[#allocation2] sm:$0x1] 0.0
        %4767 = vst [vmem:[#allocation2 + $0x9] sm:$0x1] 0.0
        %4768 = vst [vmem:[#allocation2 + $0x1] sm:$0xff] %v4765
        %v4769 = vld [vmem:[#allocation2] sm:$0xff]
        %v4770 = vpack.c.bf16 %v4769, %v4769
        %v4771 = vld [vmem:[%s65] sm:$0xf]
        %v4772 = vld [vmem:[%s65 + $0x4] sm:$0xf]
        %v4773 = vld [vmem:[%s65 + $0x8] sm:$0xf]
        %v4774 = vld [vmem:[%s65 + $0xc] sm:$0xf]
        %v4775 = vld [vmem:[%s65 + $0x10] sm:$0xf]
        %v4776 = vld [vmem:[%s65 + $0x14] sm:$0xf]
        %v4777 = vld [vmem:[%s65 + $0x18] sm:$0xf]
        %v4778 = vld [vmem:[%s65 + $0x1c] sm:$0xf]
        %v4779 = vld [vmem:[%s65 + $0x20] sm:$0xf]
        %v4780 = vld [vmem:[%s65 + $0x24] sm:$0xf]
        %v4781 = vld [vmem:[%s65 + $0x28] sm:$0xf]
        %v4782 = vld [vmem:[%s65 + $0x2c] sm:$0xf]
        %v4783 = vld [vmem:[%s65 + $0x30] sm:$0xf]
        %v4784 = vld [vmem:[%s65 + $0x34] sm:$0xf]
        %v4785 = vld [vmem:[%s65 + $0x38] sm:$0xf]
        %v4786 = vld [vmem:[%s65 + $0x3c] sm:$0xf]
        %v4787 = vld [vmem:[#allocation2 + $0x1] sm:$0xff]
        %v4788 = vpack.c.bf16 %v4787, %v4787
        %s4789 = scalar_lea.vmem %s65, 64
        %v4790 = vld [vmem:[%s4789] sm:$0xf]
        %v4791 = vld [vmem:[%s4789 + $0x4] sm:$0xf]
        %v4792 = vld [vmem:[%s4789 + $0x8] sm:$0xf]
        %v4793 = vld [vmem:[%s4789 + $0xc] sm:$0xf]
        %v4794 = vld [vmem:[%s4789 + $0x10] sm:$0xf]
        %v4795 = vld [vmem:[%s4789 + $0x14] sm:$0xf]
        %v4796 = vld [vmem:[%s4789 + $0x18] sm:$0xf]
        %v4797 = vld [vmem:[%s4789 + $0x1c] sm:$0xf]
        %v4798 = vld [vmem:[%s4789 + $0x20] sm:$0xf]
        %v4799 = vld [vmem:[%s4789 + $0x24] sm:$0xf]
        %v4800 = vld [vmem:[%s4789 + $0x28] sm:$0xf]
        %v4801 = vld [vmem:[%s4789 + $0x2c] sm:$0xf]
        %v4802 = vld [vmem:[%s4789 + $0x30] sm:$0xf]
        %v4803 = vld [vmem:[%s4789 + $0x34] sm:$0xf]
        %v4804 = vld [vmem:[%s4789 + $0x38] sm:$0xf]
        %v4805 = vld [vmem:[%s4789 + $0x3c] sm:$0xf]
        %v4822 = vunpack.c.l.b16 %v4790
        %v4823 = vunpack.c.l.b16 %v4791
        %v4824 = vunpack.c.l.b16 %v4792
        %v4825 = vunpack.c.l.b16 %v4793
        %v4826 = vunpack.c.l.b16 %v4794
        %v4827 = vunpack.c.l.b16 %v4795
        %v4828 = vunpack.c.l.b16 %v4796
        %v4829 = vunpack.c.l.b16 %v4797
        %v4830 = vunpack.c.l.b16 %v4798
        %v4831 = vunpack.c.l.b16 %v4799
        %v4832 = vunpack.c.l.b16 %v4800
        %v4833 = vunpack.c.l.b16 %v4801
        %v4834 = vunpack.c.l.b16 %v4802
        %v4835 = vunpack.c.l.b16 %v4803
        %v4836 = vunpack.c.l.b16 %v4804
        %v4837 = vunpack.c.l.b16 %v4805
        %v4838 = vpack.c.b16 %v4823, %v4822
        %v4839 = vpack.c.b16 %v4825, %v4824
        %v4840 = vpack.c.b16 %v4827, %v4826
        %v4841 = vpack.c.b16 %v4829, %v4828
        %v4842 = vpack.c.b16 %v4831, %v4830
        %v4843 = vpack.c.b16 %v4833, %v4832
        %v4844 = vpack.c.b16 %v4835, %v4834
        %v4845 = vpack.c.b16 %v4837, %v4836
        %4854 = vmatprep.subr.bf16.mxu0 0
        %4855 = vmatpush1.bf16.msra.mxu0 %v4845
        %4856 = vmatprep.subr.bf16.mxu0 0
        %4857 = vmatpush1.bf16.msra.mxu0 %v4844
        %4858 = vmatprep.subr.bf16.mxu0 0
        %4859 = vmatpush1.bf16.msra.mxu0 %v4843
        %4860 = vmatprep.subr.bf16.mxu0 0
        %4861 = vmatpush1.bf16.msra.mxu0 %v4842
        %4862 = vmatprep.subr.bf16.mxu0 0
        %4863 = vmatpush1.bf16.msra.mxu0 %v4841
        %4864 = vmatprep.subr.bf16.mxu0 0
        %4865 = vmatpush1.bf16.msra.mxu0 %v4840
        %4866 = vmatprep.subr.bf16.mxu0 0
        %4867 = vmatpush1.bf16.msra.mxu0 %v4839
        %4868 = vmatprep.subr.bf16.mxu0 0
        %4869 = vmatpush1.bf16.msra.mxu0 %v4838
        %4870 = vmatprep.subr.bf16.mxu0 0
        %4871 = vmatpush2.bf16.msra.mxu0 0
        %4872 = vmatprep.subr.bf16.mxu0 0
        %4873 = vmatpush2.bf16.msra.mxu0 0
        %4874 = vmatprep.subr.bf16.mxu0 0
        %4875 = vmatpush2.bf16.msra.mxu0 0
        %4876 = vmatprep.subr.bf16.mxu0 0
        %4877 = vmatpush2.bf16.msra.mxu0 0
        %4878 = vmatprep.subr.bf16.mxu0 0
        %4879 = vmatpush2.bf16.msra.mxu0 0
        %4880 = vmatprep.subr.bf16.mxu0 0
        %4881 = vmatpush2.bf16.msra.mxu0 0
        %4882 = vmatprep.subr.bf16.mxu0 0
        %4883 = vmatpush2.bf16.msra.mxu0 0
        %4884 = vmatprep.subr.bf16.mxu0 0
        %4885 = vmatpush2.bf16.msra.mxu0 0
        %4886 = vmatprep.mubr.bf16.mxu0 0
        %4887 = vmatmul.mubr.bf16.gmra.mxu0 %v4788
        %v4888 = vpop.f32.mrf.mxu0
        %v4889 = vadd.f32 0.0, %v4888
        %v4890 = vpop.f32.mrf.mxu0
        %v4891 = vpop.f32.mrf.mxu0
        %v4892 = vpop.f32.mrf.mxu0
        %4893 = vdwg.mxu0
        %v4910 = vunpack.c.l.b16 %v4771
        %v4911 = vunpack.c.l.b16 %v4772
        %v4912 = vunpack.c.l.b16 %v4773
        %v4913 = vunpack.c.l.b16 %v4774
        %v4914 = vunpack.c.l.b16 %v4775
        %v4915 = vunpack.c.l.b16 %v4776
        %v4916 = vunpack.c.l.b16 %v4777
        %v4917 = vunpack.c.l.b16 %v4778
        %v4918 = vunpack.c.l.b16 %v4779
        %v4919 = vunpack.c.l.b16 %v4780
        %v4920 = vunpack.c.l.b16 %v4781
        %v4921 = vunpack.c.l.b16 %v4782
        %v4922 = vunpack.c.l.b16 %v4783
        %v4923 = vunpack.c.l.b16 %v4784
        %v4924 = vunpack.c.l.b16 %v4785
        %v4925 = vunpack.c.l.b16 %v4786
        %v4926 = vpack.c.b16 %v4911, %v4910
        %v4927 = vpack.c.b16 %v4913, %v4912
        %v4928 = vpack.c.b16 %v4915, %v4914
        %v4929 = vpack.c.b16 %v4917, %v4916
        %v4930 = vpack.c.b16 %v4919, %v4918
        %v4931 = vpack.c.b16 %v4921, %v4920
        %v4932 = vpack.c.b16 %v4923, %v4922
        %v4933 = vpack.c.b16 %v4925, %v4924
        %4942 = vmatprep.subr.bf16.mxu0 0
        %4943 = vmatpush1.bf16.msra.mxu0 %v4933
        %4944 = vmatprep.subr.bf16.mxu0 0
        %4945 = vmatpush1.bf16.msra.mxu0 %v4932
        %4946 = vmatprep.subr.bf16.mxu0 0
        %4947 = vmatpush1.bf16.msra.mxu0 %v4931
        %4948 = vmatprep.subr.bf16.mxu0 0
        %4949 = vmatpush1.bf16.msra.mxu0 %v4930
        %4950 = vmatprep.subr.bf16.mxu0 0
        %4951 = vmatpush1.bf16.msra.mxu0 %v4929
        %4952 = vmatprep.subr.bf16.mxu0 0
        %4953 = vmatpush1.bf16.msra.mxu0 %v4928
        %4954 = vmatprep.subr.bf16.mxu0 0
        %4955 = vmatpush1.bf16.msra.mxu0 %v4927
        %4956 = vmatprep.subr.bf16.mxu0 0
        %4957 = vmatpush1.bf16.msra.mxu0 %v4926
        %4958 = vmatprep.subr.bf16.mxu0 0
        %4959 = vmatpush2.bf16.msra.mxu0 0
        %4960 = vmatprep.subr.bf16.mxu0 0
        %4961 = vmatpush2.bf16.msra.mxu0 0
        %4962 = vmatprep.subr.bf16.mxu0 0
        %4963 = vmatpush2.bf16.msra.mxu0 0
        %4964 = vmatprep.subr.bf16.mxu0 0
        %4965 = vmatpush2.bf16.msra.mxu0 0
        %4966 = vmatprep.subr.bf16.mxu0 0
        %4967 = vmatpush2.bf16.msra.mxu0 0
        %4968 = vmatprep.subr.bf16.mxu0 0
        %4969 = vmatpush2.bf16.msra.mxu0 0
        %4970 = vmatprep.subr.bf16.mxu0 0
        %4971 = vmatpush2.bf16.msra.mxu0 0
        %4972 = vmatprep.subr.bf16.mxu0 0
        %4973 = vmatpush2.bf16.msra.mxu0 0
        %4974 = vmatprep.mubr.bf16.mxu0 0
        %4975 = vmatmul.mubr.bf16.gmra.mxu0 %v4770
        %v4976 = vpop.f32.mrf.mxu0
        %v4977 = vadd.f32 %v4889, %v4976
        %v4978 = vpop.f32.mrf.mxu0
        %v4979 = vpop.f32.mrf.mxu0
        %v4980 = vpop.f32.mrf.mxu0
        %4981 = vdwg.mxu0
        %v4982 = vld [vmem:[#allocation2 + $0x2] sm:$0xff]
        %v4983 = vpack.c.bf16 %v4982, %v4982
        %s4984 = scalar_lea.vmem %s65, 128
        %v4985 = vld [vmem:[%s4984] sm:$0xf]
        %v4986 = vld [vmem:[%s4984 + $0x4] sm:$0xf]
        %v4987 = vld [vmem:[%s4984 + $0x8] sm:$0xf]
        %v4988 = vld [vmem:[%s4984 + $0xc] sm:$0xf]
        %v4989 = vld [vmem:[%s4984 + $0x10] sm:$0xf]
        %v4990 = vld [vmem:[%s4984 + $0x14] sm:$0xf]
        %v4991 = vld [vmem:[%s4984 + $0x18] sm:$0xf]
        %v4992 = vld [vmem:[%s4984 + $0x1c] sm:$0xf]
        %v4993 = vld [vmem:[%s4984 + $0x20] sm:$0xf]
        %v4994 = vld [vmem:[%s4984 + $0x24] sm:$0xf]
        %v4995 = vld [vmem:[%s4984 + $0x28] sm:$0xf]
        %v4996 = vld [vmem:[%s4984 + $0x2c] sm:$0xf]
        %v4997 = vld [vmem:[%s4984 + $0x30] sm:$0xf]
        %v4998 = vld [vmem:[%s4984 + $0x34] sm:$0xf]
        %v4999 = vld [vmem:[%s4984 + $0x38] sm:$0xf]
        %v5000 = vld [vmem:[%s4984 + $0x3c] sm:$0xf]
        %v5017 = vunpack.c.l.b16 %v4985
        %v5018 = vunpack.c.l.b16 %v4986
        %v5019 = vunpack.c.l.b16 %v4987
        %v5020 = vunpack.c.l.b16 %v4988
        %v5021 = vunpack.c.l.b16 %v4989
        %v5022 = vunpack.c.l.b16 %v4990
        %v5023 = vunpack.c.l.b16 %v4991
        %v5024 = vunpack.c.l.b16 %v4992
        %v5025 = vunpack.c.l.b16 %v4993
        %v5026 = vunpack.c.l.b16 %v4994
        %v5027 = vunpack.c.l.b16 %v4995
        %v5028 = vunpack.c.l.b16 %v4996
        %v5029 = vunpack.c.l.b16 %v4997
        %v5030 = vunpack.c.l.b16 %v4998
        %v5031 = vunpack.c.l.b16 %v4999
        %v5032 = vunpack.c.l.b16 %v5000
        %v5033 = vpack.c.b16 %v5018, %v5017
        %v5034 = vpack.c.b16 %v5020, %v5019
        %v5035 = vpack.c.b16 %v5022, %v5021
        %v5036 = vpack.c.b16 %v5024, %v5023
        %v5037 = vpack.c.b16 %v5026, %v5025
        %v5038 = vpack.c.b16 %v5028, %v5027
        %v5039 = vpack.c.b16 %v5030, %v5029
        %v5040 = vpack.c.b16 %v5032, %v5031
        %5049 = vmatprep.subr.bf16.mxu0 0
        %5050 = vmatpush1.bf16.msra.mxu0 %v5040
        %5051 = vmatprep.subr.bf16.mxu0 0
        %5052 = vmatpush1.bf16.msra.mxu0 %v5039
        %5053 = vmatprep.subr.bf16.mxu0 0
        %5054 = vmatpush1.bf16.msra.mxu0 %v5038
        %5055 = vmatprep.subr.bf16.mxu0 0
        %5056 = vmatpush1.bf16.msra.mxu0 %v5037
        %5057 = vmatprep.subr.bf16.mxu0 0
        %5058 = vmatpush1.bf16.msra.mxu0 %v5036
        %5059 = vmatprep.subr.bf16.mxu0 0
        %5060 = vmatpush1.bf16.msra.mxu0 %v5035
        %5061 = vmatprep.subr.bf16.mxu0 0
        %5062 = vmatpush1.bf16.msra.mxu0 %v5034
        %5063 = vmatprep.subr.bf16.mxu0 0
        %5064 = vmatpush1.bf16.msra.mxu0 %v5033
        %5065 = vmatprep.subr.bf16.mxu0 0
        %5066 = vmatpush2.bf16.msra.mxu0 0
        %5067 = vmatprep.subr.bf16.mxu0 0
        %5068 = vmatpush2.bf16.msra.mxu0 0
        %5069 = vmatprep.subr.bf16.mxu0 0
        %5070 = vmatpush2.bf16.msra.mxu0 0
        %5071 = vmatprep.subr.bf16.mxu0 0
        %5072 = vmatpush2.bf16.msra.mxu0 0
        %5073 = vmatprep.subr.bf16.mxu0 0
        %5074 = vmatpush2.bf16.msra.mxu0 0
        %5075 = vmatprep.subr.bf16.mxu0 0
        %5076 = vmatpush2.bf16.msra.mxu0 0
        %5077 = vmatprep.subr.bf16.mxu0 0
        %5078 = vmatpush2.bf16.msra.mxu0 0
        %5079 = vmatprep.subr.bf16.mxu0 0
        %5080 = vmatpush2.bf16.msra.mxu0 0
        %5081 = vmatprep.mubr.bf16.mxu0 0
        %5082 = vmatmul.mubr.bf16.gmra.mxu0 %v4983
        %v5083 = vpop.f32.mrf.mxu0
        %v5084 = vadd.f32 0.0, %v5083
        %v5085 = vpop.f32.mrf.mxu0
        %v5086 = vpop.f32.mrf.mxu0
        %v5087 = vpop.f32.mrf.mxu0
        %5088 = vdwg.mxu0
        %v5089 = vadd.f32 %v4977, %v5084
        %v5090 = vld [vmem:[#allocation28] sm:$0x1]
        %v5092 = vlaneseq
        %v5093 = vshrl.u32 %v5092, 7
        %v5094 = vsub.s32 0, %v5093
        %v5095 = vrot.slane %v5090, %v5094
        %v5097 = vadd.f32 %v5089, %v5095
        %v5098 = vmax.f32 %v5097, 0.0
        %5099 = vst [vmem:[#allocation2] sm:$0x1] 0.0
        %5100 = vst [vmem:[#allocation2 + $0x9] sm:$0x1] 0.0
        %5101 = vst [vmem:[#allocation2 + $0x1] sm:$0xff] %v5098
        %v5102 = vld [vmem:[#allocation2] sm:$0xff]
        %v5103 = vpack.c.bf16 %v5102, %v5102
        %v5104 = vld [vmem:[%s69] sm:$0xf]
        %v5105 = vld [vmem:[%s69 + $0x4] sm:$0xf]
        %v5106 = vld [vmem:[%s69 + $0x8] sm:$0xf]
        %v5107 = vld [vmem:[%s69 + $0xc] sm:$0xf]
        %v5108 = vld [vmem:[%s69 + $0x10] sm:$0xf]
        %v5109 = vld [vmem:[%s69 + $0x14] sm:$0xf]
        %v5110 = vld [vmem:[%s69 + $0x18] sm:$0xf]
        %v5111 = vld [vmem:[%s69 + $0x1c] sm:$0xf]
        %v5112 = vld [vmem:[%s69 + $0x20] sm:$0xf]
        %v5113 = vld [vmem:[%s69 + $0x24] sm:$0xf]
        %v5114 = vld [vmem:[%s69 + $0x28] sm:$0xf]
        %v5115 = vld [vmem:[%s69 + $0x2c] sm:$0xf]
        %v5116 = vld [vmem:[%s69 + $0x30] sm:$0xf]
        %v5117 = vld [vmem:[%s69 + $0x34] sm:$0xf]
        %v5118 = vld [vmem:[%s69 + $0x38] sm:$0xf]
        %v5119 = vld [vmem:[%s69 + $0x3c] sm:$0xf]
        %v5120 = vld [vmem:[#allocation2 + $0x1] sm:$0xff]
        %v5121 = vpack.c.bf16 %v5120, %v5120
        %s5122 = scalar_lea.vmem %s69, 64
        %v5123 = vld [vmem:[%s5122] sm:$0xf]
        %v5124 = vld [vmem:[%s5122 + $0x4] sm:$0xf]
        %v5125 = vld [vmem:[%s5122 + $0x8] sm:$0xf]
        %v5126 = vld [vmem:[%s5122 + $0xc] sm:$0xf]
        %v5127 = vld [vmem:[%s5122 + $0x10] sm:$0xf]
        %v5128 = vld [vmem:[%s5122 + $0x14] sm:$0xf]
        %v5129 = vld [vmem:[%s5122 + $0x18] sm:$0xf]
        %v5130 = vld [vmem:[%s5122 + $0x1c] sm:$0xf]
        %v5131 = vld [vmem:[%s5122 + $0x20] sm:$0xf]
        %v5132 = vld [vmem:[%s5122 + $0x24] sm:$0xf]
        %v5133 = vld [vmem:[%s5122 + $0x28] sm:$0xf]
        %v5134 = vld [vmem:[%s5122 + $0x2c] sm:$0xf]
        %v5135 = vld [vmem:[%s5122 + $0x30] sm:$0xf]
        %v5136 = vld [vmem:[%s5122 + $0x34] sm:$0xf]
        %v5137 = vld [vmem:[%s5122 + $0x38] sm:$0xf]
        %v5138 = vld [vmem:[%s5122 + $0x3c] sm:$0xf]
        %v5155 = vunpack.c.l.b16 %v5123
        %v5156 = vunpack.c.l.b16 %v5124
        %v5157 = vunpack.c.l.b16 %v5125
        %v5158 = vunpack.c.l.b16 %v5126
        %v5159 = vunpack.c.l.b16 %v5127
        %v5160 = vunpack.c.l.b16 %v5128
        %v5161 = vunpack.c.l.b16 %v5129
        %v5162 = vunpack.c.l.b16 %v5130
        %v5163 = vunpack.c.l.b16 %v5131
        %v5164 = vunpack.c.l.b16 %v5132
        %v5165 = vunpack.c.l.b16 %v5133
        %v5166 = vunpack.c.l.b16 %v5134
        %v5167 = vunpack.c.l.b16 %v5135
        %v5168 = vunpack.c.l.b16 %v5136
        %v5169 = vunpack.c.l.b16 %v5137
        %v5170 = vunpack.c.l.b16 %v5138
        %v5171 = vpack.c.b16 %v5156, %v5155
        %v5172 = vpack.c.b16 %v5158, %v5157
        %v5173 = vpack.c.b16 %v5160, %v5159
        %v5174 = vpack.c.b16 %v5162, %v5161
        %v5175 = vpack.c.b16 %v5164, %v5163
        %v5176 = vpack.c.b16 %v5166, %v5165
        %v5177 = vpack.c.b16 %v5168, %v5167
        %v5178 = vpack.c.b16 %v5170, %v5169
        %5187 = vmatprep.subr.bf16.mxu0 0
        %5188 = vmatpush1.bf16.msra.mxu0 %v5178
        %5189 = vmatprep.subr.bf16.mxu0 0
        %5190 = vmatpush1.bf16.msra.mxu0 %v5177
        %5191 = vmatprep.subr.bf16.mxu0 0
        %5192 = vmatpush1.bf16.msra.mxu0 %v5176
        %5193 = vmatprep.subr.bf16.mxu0 0
        %5194 = vmatpush1.bf16.msra.mxu0 %v5175
        %5195 = vmatprep.subr.bf16.mxu0 0
        %5196 = vmatpush1.bf16.msra.mxu0 %v5174
        %5197 = vmatprep.subr.bf16.mxu0 0
        %5198 = vmatpush1.bf16.msra.mxu0 %v5173
        %5199 = vmatprep.subr.bf16.mxu0 0
        %5200 = vmatpush1.bf16.msra.mxu0 %v5172
        %5201 = vmatprep.subr.bf16.mxu0 0
        %5202 = vmatpush1.bf16.msra.mxu0 %v5171
        %5203 = vmatprep.subr.bf16.mxu0 0
        %5204 = vmatpush2.bf16.msra.mxu0 0
        %5205 = vmatprep.subr.bf16.mxu0 0
        %5206 = vmatpush2.bf16.msra.mxu0 0
        %5207 = vmatprep.subr.bf16.mxu0 0
        %5208 = vmatpush2.bf16.msra.mxu0 0
        %5209 = vmatprep.subr.bf16.mxu0 0
        %5210 = vmatpush2.bf16.msra.mxu0 0
        %5211 = vmatprep.subr.bf16.mxu0 0
        %5212 = vmatpush2.bf16.msra.mxu0 0
        %5213 = vmatprep.subr.bf16.mxu0 0
        %5214 = vmatpush2.bf16.msra.mxu0 0
        %5215 = vmatprep.subr.bf16.mxu0 0
        %5216 = vmatpush2.bf16.msra.mxu0 0
        %5217 = vmatprep.subr.bf16.mxu0 0
        %5218 = vmatpush2.bf16.msra.mxu0 0
        %5219 = vmatprep.mubr.bf16.mxu0 0
        %5220 = vmatmul.mubr.bf16.gmra.mxu0 %v5121
        %v5221 = vpop.f32.mrf.mxu0
        %v5222 = vadd.f32 0.0, %v5221
        %v5223 = vpop.f32.mrf.mxu0
        %v5224 = vpop.f32.mrf.mxu0
        %v5225 = vpop.f32.mrf.mxu0
        %5226 = vdwg.mxu0
        %v5243 = vunpack.c.l.b16 %v5104
        %v5244 = vunpack.c.l.b16 %v5105
        %v5245 = vunpack.c.l.b16 %v5106
        %v5246 = vunpack.c.l.b16 %v5107
        %v5247 = vunpack.c.l.b16 %v5108
        %v5248 = vunpack.c.l.b16 %v5109
        %v5249 = vunpack.c.l.b16 %v5110
        %v5250 = vunpack.c.l.b16 %v5111
        %v5251 = vunpack.c.l.b16 %v5112
        %v5252 = vunpack.c.l.b16 %v5113
        %v5253 = vunpack.c.l.b16 %v5114
        %v5254 = vunpack.c.l.b16 %v5115
        %v5255 = vunpack.c.l.b16 %v5116
        %v5256 = vunpack.c.l.b16 %v5117
        %v5257 = vunpack.c.l.b16 %v5118
        %v5258 = vunpack.c.l.b16 %v5119
        %v5259 = vpack.c.b16 %v5244, %v5243
        %v5260 = vpack.c.b16 %v5246, %v5245
        %v5261 = vpack.c.b16 %v5248, %v5247
        %v5262 = vpack.c.b16 %v5250, %v5249
        %v5263 = vpack.c.b16 %v5252, %v5251
        %v5264 = vpack.c.b16 %v5254, %v5253
        %v5265 = vpack.c.b16 %v5256, %v5255
        %v5266 = vpack.c.b16 %v5258, %v5257
        %5275 = vmatprep.subr.bf16.mxu0 0
        %5276 = vmatpush1.bf16.msra.mxu0 %v5266
        %5277 = vmatprep.subr.bf16.mxu0 0
        %5278 = vmatpush1.bf16.msra.mxu0 %v5265
        %5279 = vmatprep.subr.bf16.mxu0 0
        %5280 = vmatpush1.bf16.msra.mxu0 %v5264
        %5281 = vmatprep.subr.bf16.mxu0 0
        %5282 = vmatpush1.bf16.msra.mxu0 %v5263
        %5283 = vmatprep.subr.bf16.mxu0 0
        %5284 = vmatpush1.bf16.msra.mxu0 %v5262
        %5285 = vmatprep.subr.bf16.mxu0 0
        %5286 = vmatpush1.bf16.msra.mxu0 %v5261
        %5287 = vmatprep.subr.bf16.mxu0 0
        %5288 = vmatpush1.bf16.msra.mxu0 %v5260
        %5289 = vmatprep.subr.bf16.mxu0 0
        %5290 = vmatpush1.bf16.msra.mxu0 %v5259
        %5291 = vmatprep.subr.bf16.mxu0 0
        %5292 = vmatpush2.bf16.msra.mxu0 0
        %5293 = vmatprep.subr.bf16.mxu0 0
        %5294 = vmatpush2.bf16.msra.mxu0 0
        %5295 = vmatprep.subr.bf16.mxu0 0
        %5296 = vmatpush2.bf16.msra.mxu0 0
        %5297 = vmatprep.subr.bf16.mxu0 0
        %5298 = vmatpush2.bf16.msra.mxu0 0
        %5299 = vmatprep.subr.bf16.mxu0 0
        %5300 = vmatpush2.bf16.msra.mxu0 0
        %5301 = vmatprep.subr.bf16.mxu0 0
        %5302 = vmatpush2.bf16.msra.mxu0 0
        %5303 = vmatprep.subr.bf16.mxu0 0
        %5304 = vmatpush2.bf16.msra.mxu0 0
        %5305 = vmatprep.subr.bf16.mxu0 0
        %5306 = vmatpush2.bf16.msra.mxu0 0
        %5307 = vmatprep.mubr.bf16.mxu0 0
        %5308 = vmatmul.mubr.bf16.gmra.mxu0 %v5103
        %v5309 = vpop.f32.mrf.mxu0
        %v5310 = vadd.f32 %v5222, %v5309
        %v5311 = vpop.f32.mrf.mxu0
        %v5312 = vpop.f32.mrf.mxu0
        %v5313 = vpop.f32.mrf.mxu0
        %5314 = vdwg.mxu0
        %v5315 = vld [vmem:[#allocation2 + $0x2] sm:$0xff]
        %v5316 = vpack.c.bf16 %v5315, %v5315
        %s5317 = scalar_lea.vmem %s69, 128
        %v5318 = vld [vmem:[%s5317] sm:$0xf]
        %v5319 = vld [vmem:[%s5317 + $0x4] sm:$0xf]
        %v5320 = vld [vmem:[%s5317 + $0x8] sm:$0xf]
        %v5321 = vld [vmem:[%s5317 + $0xc] sm:$0xf]
        %v5322 = vld [vmem:[%s5317 + $0x10] sm:$0xf]
        %v5323 = vld [vmem:[%s5317 + $0x14] sm:$0xf]
        %v5324 = vld [vmem:[%s5317 + $0x18] sm:$0xf]
        %v5325 = vld [vmem:[%s5317 + $0x1c] sm:$0xf]
        %v5326 = vld [vmem:[%s5317 + $0x20] sm:$0xf]
        %v5327 = vld [vmem:[%s5317 + $0x24] sm:$0xf]
        %v5328 = vld [vmem:[%s5317 + $0x28] sm:$0xf]
        %v5329 = vld [vmem:[%s5317 + $0x2c] sm:$0xf]
        %v5330 = vld [vmem:[%s5317 + $0x30] sm:$0xf]
        %v5331 = vld [vmem:[%s5317 + $0x34] sm:$0xf]
        %v5332 = vld [vmem:[%s5317 + $0x38] sm:$0xf]
        %v5333 = vld [vmem:[%s5317 + $0x3c] sm:$0xf]
        %v5350 = vunpack.c.l.b16 %v5318
        %v5351 = vunpack.c.l.b16 %v5319
        %v5352 = vunpack.c.l.b16 %v5320
        %v5353 = vunpack.c.l.b16 %v5321
        %v5354 = vunpack.c.l.b16 %v5322
        %v5355 = vunpack.c.l.b16 %v5323
        %v5356 = vunpack.c.l.b16 %v5324
        %v5357 = vunpack.c.l.b16 %v5325
        %v5358 = vunpack.c.l.b16 %v5326
        %v5359 = vunpack.c.l.b16 %v5327
        %v5360 = vunpack.c.l.b16 %v5328
        %v5361 = vunpack.c.l.b16 %v5329
        %v5362 = vunpack.c.l.b16 %v5330
        %v5363 = vunpack.c.l.b16 %v5331
        %v5364 = vunpack.c.l.b16 %v5332
        %v5365 = vunpack.c.l.b16 %v5333
        %v5366 = vpack.c.b16 %v5351, %v5350
        %v5367 = vpack.c.b16 %v5353, %v5352
        %v5368 = vpack.c.b16 %v5355, %v5354
        %v5369 = vpack.c.b16 %v5357, %v5356
        %v5370 = vpack.c.b16 %v5359, %v5358
        %v5371 = vpack.c.b16 %v5361, %v5360
        %v5372 = vpack.c.b16 %v5363, %v5362
        %v5373 = vpack.c.b16 %v5365, %v5364
        %5382 = vmatprep.subr.bf16.mxu0 0
        %5383 = vmatpush1.bf16.msra.mxu0 %v5373
        %5384 = vmatprep.subr.bf16.mxu0 0
        %5385 = vmatpush1.bf16.msra.mxu0 %v5372
        %5386 = vmatprep.subr.bf16.mxu0 0
        %5387 = vmatpush1.bf16.msra.mxu0 %v5371
        %5388 = vmatprep.subr.bf16.mxu0 0
        %5389 = vmatpush1.bf16.msra.mxu0 %v5370
        %5390 = vmatprep.subr.bf16.mxu0 0
        %5391 = vmatpush1.bf16.msra.mxu0 %v5369
        %5392 = vmatprep.subr.bf16.mxu0 0
        %5393 = vmatpush1.bf16.msra.mxu0 %v5368
        %5394 = vmatprep.subr.bf16.mxu0 0
        %5395 = vmatpush1.bf16.msra.mxu0 %v5367
        %5396 = vmatprep.subr.bf16.mxu0 0
        %5397 = vmatpush1.bf16.msra.mxu0 %v5366
        %5398 = vmatprep.subr.bf16.mxu0 0
        %5399 = vmatpush2.bf16.msra.mxu0 0
        %5400 = vmatprep.subr.bf16.mxu0 0
        %5401 = vmatpush2.bf16.msra.mxu0 0
        %5402 = vmatprep.subr.bf16.mxu0 0
        %5403 = vmatpush2.bf16.msra.mxu0 0
        %5404 = vmatprep.subr.bf16.mxu0 0
        %5405 = vmatpush2.bf16.msra.mxu0 0
        %5406 = vmatprep.subr.bf16.mxu0 0
        %5407 = vmatpush2.bf16.msra.mxu0 0
        %5408 = vmatprep.subr.bf16.mxu0 0
        %5409 = vmatpush2.bf16.msra.mxu0 0
        %5410 = vmatprep.subr.bf16.mxu0 0
        %5411 = vmatpush2.bf16.msra.mxu0 0
        %5412 = vmatprep.subr.bf16.mxu0 0
        %5413 = vmatpush2.bf16.msra.mxu0 0
        %5414 = vmatprep.mubr.bf16.mxu0 0
        %5415 = vmatmul.mubr.bf16.gmra.mxu0 %v5316
        %v5416 = vpop.f32.mrf.mxu0
        %v5417 = vadd.f32 0.0, %v5416
        %v5418 = vpop.f32.mrf.mxu0
        %v5419 = vpop.f32.mrf.mxu0
        %v5420 = vpop.f32.mrf.mxu0
        %5421 = vdwg.mxu0
        %v5422 = vadd.f32 %v5310, %v5417
        %v5423 = vld [vmem:[#allocation29] sm:$0x1]
        %v5425 = vlaneseq
        %v5426 = vshrl.u32 %v5425, 7
        %v5427 = vsub.s32 0, %v5426
        %v5428 = vrot.slane %v5423, %v5427
        %v5430 = vadd.f32 %v5422, %v5428
        %v5431 = vmax.f32 %v5430, 0.0
        %vm5432 = vcmask 785408
        %5433 = vst.msk [vmem:[%s1407] sm:$0xff] %vm5432, %v5431
        %5434 = vst [vmem:[%s1411] sm:$0xff] %v5098
        %p5435 = scmp.lt.s32.totalorder %s97, 1
        %s5436 = scalar_select %p5435, %s97, 1
        %s5437 = smul.addr %s5436, 8
        %s5438 = scalar_lea.vmem %s73, %s5437
        %p5439 = scmp.lt.s32.totalorder %s97, 1
        %s5440 = scalar_select %p5439, %s97, 1
        %s5441 = smul.addr %s5440, 8
        %s5442 = scalar_lea.vmem %s75, %s5441
        // Predicated region
        $region237: #{fqfpn_forward.1} parent=163 // pred_check
          %p5443 = pneg %p886
        $region238: #{fqfpn_forward.1} parent=163 // pred_check_branch
          %5445 = sbr.rel (%p5443) target = $region240
        $region239: #{fqfpn_forward.1} parent=163 // pred_region
          _
        $region240: #{fqfpn_forward.1} parent=163 // pred_fallthru
          _
        // Predicated region
        $region241: #{fqfpn_forward.1} parent=163 // pred_check
          %p5446 = pneg %p912
        $region242: #{fqfpn_forward.1} parent=163 // pred_check_branch
          %5448 = sbr.rel (%p5446) target = $region244
        $region243: #{fqfpn_forward.1} parent=163 // pred_region
          _
        $region244: #{fqfpn_forward.1} parent=163 // pred_fallthru
          _
      $region164: #{fqfpn_forward.1} parent=5 // pred_fallthru
        _
      %p5449 = scmp.le.s32.totalorder 2, %s92
      // Predicated region
      $region245: #{fqfpn_forward.1} parent=5 // pred_check
        %p5450 = pneg %p5449
      $region246: #{fqfpn_forward.1} parent=5 // pred_check_branch
        %5452 = sbr.rel (%p5450) target = $region248
      $region247: #{fqfpn_forward.1} parent=5 // pred_region
        %s5453 = ssub.s32 %s92, 2
        // Predicated region
        $region249: #{fqfpn_forward.1} parent=247 // pred_check
          %p5454 = pneg %p892
        $region250: #{fqfpn_forward.1} parent=247 // pred_check_branch
          %5456 = sbr.rel (%p5454) target = $region252
        $region251: #{fqfpn_forward.1} parent=247 // pred_region
          %p5457 = scmp.lt.s32.totalorder %s98, 1
          %s5458 = scalar_select %p5457, %s98, 1
          %s5459 = smul.addr %s5458, 8
          %s5460 = scalar_lea.vmem %s73, %s5459
        $region252: #{fqfpn_forward.1} parent=247 // pred_fallthru
          _
        // Predicated region
        $region253: #{fqfpn_forward.1} parent=247 // pred_check
          %p5461 = pneg %p918
        $region254: #{fqfpn_forward.1} parent=247 // pred_check_branch
          %5463 = sbr.rel (%p5461) target = $region256
        $region255: #{fqfpn_forward.1} parent=247 // pred_region
          %p5464 = scmp.lt.s32.totalorder %s98, 1
          %s5465 = scalar_select %p5464, %s98, 1
          %s5466 = smul.addr %s5465, 8
          %s5467 = scalar_lea.vmem %s75, %s5466
        $region256: #{fqfpn_forward.1} parent=247 // pred_fallthru
          _
      $region248: #{fqfpn_forward.1} parent=5 // pred_fallthru
        _
    $region6: #{fqfpn_forward.1} parent=1 // loop_footer
      %s96 = sadd.s32 1, %s92
    $region7: #{fqfpn_forward.1} parent=1 // loop_footer_branch
      %91 = sbr.rel target = $region3
    $region8: #{fqfpn_forward.1} parent=1 // loop_exit
      _
    %5468 = vsyncpa [#allocation4], 1
    %s5469 = scalar_lea.sflag [#allocation4], 1
    %5470 = vsyncpa %s5469, 1
    %5471 = vsyncpa [#allocation6], 1
    %5472 = vsyncpa [#allocation9], 1
    %5473 = vsyncpa [#allocation12], 1
    %5474 = vsyncpa [#allocation15], 1
    %5475 = vsyncpa [#allocation18], 1
    %5476 = vsyncpa [#allocation21], 1
    %5477 = vsyncpa [#allocation24], 1
    %5478 = vsyncpa [#allocation27], 1
    %5479 = vsyncpa [#allocation30], 1

</llo_original>
